<compile_context>
chip_gen: v7x
topology: tpu7x:2x2x1
jax: 0.10.0
libtpu: 0.0.40
codegen_flags: <defaults>
</compile_context>

<pallas_src>
import functools

import jax
import jax.numpy as jnp
import numpy as np
from jax.experimental import pallas as pl
from jax.experimental.pallas import tpu as pltpu

NEG_SLOPE = 0.01   # nn.LeakyReLU default
EPS = 1e-5         # BatchNorm2d / LayerNorm default eps
KS = 3             # both convs: kernel 3, stride 2, pad 1


def _leaky(x):
    return jnp.where(x > 0, x, NEG_SLOPE * x)


def _layer_norm(v, gamma, beta):
    mu = jnp.mean(v, axis=-1, keepdims=True)
    var = jnp.mean((v - mu) ** 2, axis=-1, keepdims=True)
    return (v - mu) * jax.lax.rsqrt(var + EPS) * gamma + beta


def _bn_train_cm(y, pool, expand, gamma, beta, inv_batch):
    """BatchNorm2d training-mode forward on channel-major flattened activations.

    y: (B, C*P) with lane index = c*P + p.  pool: (C*P, C) with 1/P entries;
    expand: (C, C*P) 0/1.  Per-channel stats over (batch, spatial) via matmuls so
    no in-kernel reshapes/relayouts are needed.
    """
    s = jnp.sum(y, axis=0, keepdims=True)                     # (1, C*P)
    ssq = jnp.sum(y * y, axis=0, keepdims=True)
    mean = jnp.dot(s, pool, preferred_element_type=jnp.float32) * inv_batch    # (1, C)
    ex2 = jnp.dot(ssq, pool, preferred_element_type=jnp.float32) * inv_batch
    var = ex2 - mean * mean                                    # biased var (torch train)
    scale = gamma * jax.lax.rsqrt(var + EPS)
    shift = beta - mean * scale
    return (y * jnp.dot(scale, expand, preferred_element_type=jnp.float32)
            + jnp.dot(shift, expand, preferred_element_type=jnp.float32))


# ------------------------------ fused kernel ----------------------------------

def _policy_kernel(x_ref, state_ref,
                   m1_ref, b1e_ref, p1_ref, e1_ref, g1_ref, be1_ref,
                   m2_ref, b2e_ref, p2_ref, e2_ref, g2_ref, be2_ref,
                   wfc_ref, bfc_ref,
                   wihs_ref, wihf_ref, bl_ref, whh_ref, h0_ref, c0_ref,
                   w1_ref, bb1_ref, lg1_ref, lb1_ref,
                   w2_ref, bb2_ref, lg2_ref, lb2_ref,
                   w3_ref, bb3_ref,
                   out_ref, hn_ref, cn_ref, h_scr,
                   *, seq_len, batch):
    inv_b = 1.0 / batch

    # ---------------- SpectralCNN: conv-as-dense batch-major matmuls --------------
    x = x_ref[...]                                                        # (B, 512)
    y1 = jnp.dot(x, m1_ref[...], preferred_element_type=jnp.float32) + b1e_ref[...]
    y1 = _leaky(_bn_train_cm(y1, p1_ref[...], e1_ref[...],
                             g1_ref[...], be1_ref[...], inv_b))           # (B, 1024)
    y2 = jnp.dot(y1, m2_ref[...], preferred_element_type=jnp.float32) + b2e_ref[...]
    y2 = _leaky(_bn_train_cm(y2, p2_ref[...], e2_ref[...],
                             g2_ref[...], be2_ref[...], inv_b))           # (B, 512)
    # AdaptiveAvgPool2d((4,4)) is the identity here (conv2 output is already 4x4)
    # and Flatten's (c,h,w) order equals the channel-major lane layout of y2.
    feat = _leaky(jnp.dot(y2, wfc_ref[...], preferred_element_type=jnp.float32)
                  + bfc_ref[...])                                         # (B, sdim)

    # ---------------- LSTM: batched input projection + unrolled recurrence --------
    hdim = whh_ref.shape[0]
    gx = jnp.dot(state_ref[...], wihs_ref[...],
                 preferred_element_type=jnp.float32)                      # (T*B, 4H)
    gf = (jnp.dot(feat, wihf_ref[...], preferred_element_type=jnp.float32)
          + bl_ref[...])                                                  # (B, 4H)
    whh = whh_ref[...]
    h = h0_ref[...]
    c = c0_ref[...]
    for t in range(seq_len):                 # fully unrolled in-kernel time loop
        gates = (gx[t * batch:(t + 1) * batch, :] + gf
                 + jnp.dot(h, whh, preferred_element_type=jnp.float32))   # (B, 4H)
        # PyTorch gate order [i, f, g, o]; slice before the nonlinearity so no
        # EUP work is wasted on the g-gate block.
        i_g = jax.nn.sigmoid(gates[:, 0 * hdim:1 * hdim])
        f_g = jax.nn.sigmoid(gates[:, 1 * hdim:2 * hdim])
        g_g = jnp.tanh(gates[:, 2 * hdim:3 * hdim])
        o_g = jax.nn.sigmoid(gates[:, 3 * hdim:4 * hdim])
        c = f_g * c + i_g * g_g
        h = o_g * jnp.tanh(c)
        h_scr[t * batch:(t + 1) * batch, :] = h                          # stash h_t
    hn_ref[...] = h                          # written once, after the final step
    cn_ref[...] = c

    # ---------------- MLP head over all T*B rows at once --------------------------
    hs = h_scr[...]                                                       # (T*B, H)
    y = _leaky(_layer_norm(jnp.dot(hs, w1_ref[...],
                                   preferred_element_type=jnp.float32) + bb1_ref[...],
                           lg1_ref[...], lb1_ref[...]))
    y = _leaky(_layer_norm(jnp.dot(y, w2_ref[...],
                                   preferred_element_type=jnp.float32) + bb2_ref[...],
                           lg2_ref[...], lb2_ref[...]))
    out_ref[...] = jnp.tanh(jnp.dot(y, w3_ref[...],
                                    preferred_element_type=jnp.float32) + bb3_ref[...])


# ------------------------------ forward wrapper --------------------------------

def recurrent_policy_forward(p, state_seq, spectrum_img, hidden):
    B, T, Ds = state_seq.shape
    assert spectrum_img.shape[1:] == (2, 16, 16), \
        "dense conv matrices / identity-pool assumption are built for (2,16,16) inputs"
    # TODO(synk): other image sizes need rebuilt conv matrices and a real adaptive pool.
    hdim = p["whh_t"].shape[0]
    adim = p["fc3_w"].shape[1]
    sdim = p["cnnfc_b"].shape[1]

    x_flat = spectrum_img.reshape(B, -1)                         # free reshape (c,h,w)
    state_tb = state_seq.transpose(1, 0, 2).reshape(T * B, Ds)   # time-major rows
    h0, c0 = hidden                                              # (1, B, H) each

    args = [x_flat, state_tb]
    args += [p[k] for k in ("m1", "b1e", "p1", "e1", "bn1_g", "bn1_b",
                            "m2", "b2e", "p2", "e2", "bn2_g", "bn2_b",
                            "cnnfc_w", "cnnfc_b",
                            "wih_s", "wih_f", "b_lstm", "whh_t")]
    args += [h0[0], c0[0]]
    args += [p[k] for k in ("fc1_w", "fc1_b", "ln1_g", "ln1_b",
                            "fc2_w", "fc2_b", "ln2_g", "ln2_b",
                            "fc3_w", "fc3_b")]

    k1, n1 = p["m1"].shape
    k2, n2 = p["m2"].shape
    flops = (2 * B * (k1 * n1 + k2 * n2 + n2 * sdim)
             + 2 * (T * B * Ds * 4 * hdim + B * sdim * 4 * hdim
                    + T * B * hdim * 4 * hdim)
             + 2 * T * B * (hdim * hdim + hdim * (hdim // 2) + (hdim // 2) * adim))
    transcendentals = T * B * (5 * hdim + adim)
    bytes_accessed = (sum(int(np.prod(a.shape)) for a in args)
                      + T * B * adim + 2 * B * hdim) * 4

    out_tb, hn, cn = pl.pallas_call(
        functools.partial(_policy_kernel, seq_len=T, batch=B),
        out_shape=(jax.ShapeDtypeStruct((T * B, adim), jnp.float32),
                   jax.ShapeDtypeStruct((B, hdim), jnp.float32),
                   jax.ShapeDtypeStruct((B, hdim), jnp.float32)),
        scratch_shapes=[pltpu.VMEM((T * B, hdim), jnp.float32)],
        compiler_params=pltpu.CompilerParams(vmem_limit_bytes=32 * 1024 * 1024),
        cost_estimate=pl.CostEstimate(flops=flops, transcendentals=transcendentals,
                                      bytes_accessed=bytes_accessed),
    )(*args)

    act_seq = out_tb.reshape(T, B, adim).transpose(1, 0, 2)      # tiny host-side relayout
    return act_seq, (hn[None], cn[None])


# ----------------------------- parameter plumbing ------------------------------

def _conv_taps(h_in, w_in, ksize=KS, stride=2, pad=1):
    """taps[q, out_pos, in_pos] = 1 if in_pos is the tap-q source of out_pos."""
    h_out = (h_in + 2 * pad - ksize) // stride + 1
    w_out = (w_in + 2 * pad - ksize) // stride + 1
    taps = np.zeros((ksize * ksize, h_out * w_out, h_in * w_in), np.float32)
    for ki in range(ksize):
        for kj in range(ksize):
            q = ki * ksize + kj
            for oh in range(h_out):
                ih = oh * stride - pad + ki
                if not 0 <= ih < h_in:
                    continue
                for ow in range(w_out):
                    iw = ow * stride - pad + kj
                    if not 0 <= iw < w_in:
                        continue
                    taps[q, oh * w_out + ow, ih * w_in + iw] = 1.0
    return taps


def _dense_conv_matrix(w, taps):
    """Fold a conv into a dense (Cin*S_in, Cout*S_out) matrix acting on
    channel-major flattened per-sample vectors (batch-independent)."""
    w = np.asarray(w, np.float32)
    cout, cin = w.shape[0], w.shape[1]
    wq = w.reshape(cout, cin, KS * KS)                          # (o, i, q)
    m = np.einsum('qps,oiq->isop', taps, wq)                    # (i, s, o, p)
    return jnp.asarray(m.reshape(cin * taps.shape[2], cout * taps.shape[1]))


def _pool_expand(cout, spatial):
    pool = np.kron(np.eye(cout, dtype=np.float32),
                   np.ones((spatial, 1), np.float32)) / spatial  # (C*P, C)
    expand = np.kron(np.eye(cout, dtype=np.float32),
                     np.ones((1, spatial), np.float32))          # (C, C*P)
    return jnp.asarray(pool), jnp.asarray(expand)


def prepare_params(tp, state_dim):
    """Convert PyTorch-layout parameters into batch-independent kernel layouts."""
    p = {}
    taps1 = _conv_taps(16, 16)                                   # (9, 64, 256)
    taps2 = _conv_taps(8, 8)                                     # (9, 16, 64)

    p["m1"] = _dense_conv_matrix(tp["conv1_w"], taps1)           # (512, 1024)
    p["b1e"] = jnp.asarray(np.repeat(np.asarray(tp["conv1_b"], np.float32), 64)[None, :])
    p["p1"], p["e1"] = _pool_expand(16, 64)
    p["bn1_g"], p["bn1_b"] = tp["bn1_g"][None, :], tp["bn1_b"][None, :]

    p["m2"] = _dense_conv_matrix(tp["conv2_w"], taps2)           # (1024, 512)
    p["b2e"] = jnp.asarray(np.repeat(np.asarray(tp["conv2_b"], np.float32), 16)[None, :])
    p["p2"], p["e2"] = _pool_expand(32, 16)
    p["bn2_g"], p["bn2_b"] = tp["bn2_g"][None, :], tp["bn2_b"][None, :]

    # cnn fc: torch Linear stores (out, in); the in-ordering (c,h,w) matches the
    # kernel's channel-major lanes, so a plain transpose suffices.
    p["cnnfc_w"] = tp["cnnfc_w"].T                               # (512, sdim)
    p["cnnfc_b"] = tp["cnnfc_b"][None, :]

    # LSTM: W_ih^T split into state / spectrum column blocks; fold b_ih + b_hh.
    wih_t = tp["w_ih"].T                                         # (D, 4H)
    p["wih_s"] = wih_t[:state_dim, :]
    p["wih_f"] = wih_t[state_dim:, :]
    p["whh_t"] = tp["w_hh"].T                                    # (H, 4H)
    p["b_lstm"] = (tp["b_ih"] + tp["b_hh"])[None, :]

    # MLP head: torch Linear stores (out, in) -> transpose to (in, out).
    p["fc1_w"], p["fc1_b"] = tp["fc1_w"].T, tp["fc1_b"][None, :]
    p["ln1_g"], p["ln1_b"] = tp["ln1_g"][None, :], tp["ln1_b"][None, :]
    p["fc2_w"], p["fc2_b"] = tp["fc2_w"].T, tp["fc2_b"][None, :]
    p["ln2_g"], p["ln2_b"] = tp["ln2_g"][None, :], tp["ln2_b"][None, :]
    p["fc3_w"], p["fc3_b"] = tp["fc3_w"].T, tp["fc3_b"][None, :]
    return p


def _uniform(key, shape, bound):
    return jax.random.uniform(key, shape, jnp.float32, -bound, bound)


def init_torch_params(key, state_dim, action_dim, hidden_dim, spectrum_dim):
    """Random parameters in PyTorch layouts / default-init ranges."""
    ks = jax.random.split(key, 16)
    hd, hd2 = hidden_dim, hidden_dim // 2
    din = state_dim + spectrum_dim
    b_c1, b_c2 = 1.0 / (2 * 9) ** 0.5, 1.0 / (16 * 9) ** 0.5
    b_fc, b_l = 1.0 / 512 ** 0.5, 1.0 / hidden_dim ** 0.5
    b_h1, b_h3 = 1.0 / hd ** 0.5, 1.0 / hd2 ** 0.5
    return {
        "conv1_w": _uniform(ks[0], (16, 2, 3, 3), b_c1),
        "conv1_b": _uniform(ks[1], (16,), b_c1),
        "bn1_g": jnp.ones((16,), jnp.float32), "bn1_b": jnp.zeros((16,), jnp.float32),
        "conv2_w": _uniform(ks[2], (32, 16, 3, 3), b_c2),
        "conv2_b": _uniform(ks[3], (32,), b_c2),
        "bn2_g": jnp.ones((32,), jnp.float32), "bn2_b": jnp.zeros((32,), jnp.float32),
        "cnnfc_w": _uniform(ks[4], (spectrum_dim, 512), b_fc),
        "cnnfc_b": _uniform(ks[5], (spectrum_dim,), b_fc),
        "w_ih": _uniform(ks[6], (4 * hidden_dim, din), b_l),
        "w_hh": _uniform(ks[7], (4 * hidden_dim, hidden_dim), b_l),
        "b_ih": _uniform(ks[8], (4 * hidden_dim,), b_l),
        "b_hh": _uniform(ks[9], (4 * hidden_dim,), b_l),
        "fc1_w": _uniform(ks[10], (hd, hd), b_h1),
        "fc1_b": _uniform(ks[11], (hd,), b_h1),
        "ln1_g": jnp.ones((hd,), jnp.float32), "ln1_b": jnp.zeros((hd,), jnp.float32),
        "fc2_w": _uniform(ks[12], (hd2, hd), b_h1),
        "fc2_b": _uniform(ks[13], (hd2,), b_h1),
        "ln2_g": jnp.ones((hd2,), jnp.float32), "ln2_b": jnp.zeros((hd2,), jnp.float32),
        "fc3_w": _uniform(ks[14], (action_dim, hd2), b_h3),
        "fc3_b": _uniform(ks[15], (action_dim,), b_h3),
    }


# ------------------------------------ main -------------------------------------

if __name__ == "__main__":
    B, T = 2, 8
    state_dim, action_dim = 8, 4
    hidden_dim, spectrum_dim = 32, 16
    img_hw = 16

    torch_params = init_torch_params(jax.random.PRNGKey(1), state_dim, action_dim,
                                     hidden_dim, spectrum_dim)
    params = prepare_params(torch_params, state_dim)   # batch-independent

    k1, k2 = jax.random.split(jax.random.PRNGKey(0))
    state_seq = jax.random.normal(k1, (B, T, state_dim), jnp.float32)
    spectrum_img = jax.random.normal(k2, (B, 2, img_hw, img_hw), jnp.float32)  # NCHW
    h0 = jnp.zeros((1, B, hidden_dim), jnp.float32)
    c0 = jnp.zeros((1, B, hidden_dim), jnp.float32)

    fwd = jax.jit(recurrent_policy_forward)
    act_seq, (hn, cn) = fwd(params, state_seq, spectrum_img, (h0, c0))
    jax.block_until_ready((act_seq, hn, cn))

    assert act_seq.shape == (B, T, action_dim)
    assert hn.shape == (1, B, hidden_dim) and cn.shape == (1, B, hidden_dim)
    assert bool(jnp.all(jnp.isfinite(act_seq)))
    assert bool(jnp.all(jnp.abs(act_seq) <= 1.0))
    print("KERNEL_OK")
</pallas_src>

<mosaic_0001>
module attributes {stable_mosaic.version = 11 : i64} {
  func.func @_policy_kernel(%arg0: memref<2x512xf32, #tpu.memory_space<vmem>>, %arg1: memref<16x8xf32, #tpu.memory_space<vmem>>, %arg2: memref<512x1024xf32, #tpu.memory_space<vmem>>, %arg3: memref<1x1024xf32, #tpu.memory_space<vmem>>, %arg4: memref<1024x16xf32, #tpu.memory_space<vmem>>, %arg5: memref<16x1024xf32, #tpu.memory_space<vmem>>, %arg6: memref<1x16xf32, #tpu.memory_space<vmem>>, %arg7: memref<1x16xf32, #tpu.memory_space<vmem>>, %arg8: memref<1024x512xf32, #tpu.memory_space<vmem>>, %arg9: memref<1x512xf32, #tpu.memory_space<vmem>>, %arg10: memref<512x32xf32, #tpu.memory_space<vmem>>, %arg11: memref<32x512xf32, #tpu.memory_space<vmem>>, %arg12: memref<1x32xf32, #tpu.memory_space<vmem>>, %arg13: memref<1x32xf32, #tpu.memory_space<vmem>>, %arg14: memref<512x16xf32, #tpu.memory_space<vmem>>, %arg15: memref<1x16xf32, #tpu.memory_space<vmem>>, %arg16: memref<8x128xf32, #tpu.memory_space<vmem>>, %arg17: memref<16x128xf32, #tpu.memory_space<vmem>>, %arg18: memref<1x128xf32, #tpu.memory_space<vmem>>, %arg19: memref<32x128xf32, #tpu.memory_space<vmem>>, %arg20: memref<2x32xf32, #tpu.memory_space<vmem>>, %arg21: memref<2x32xf32, #tpu.memory_space<vmem>>, %arg22: memref<32x32xf32, #tpu.memory_space<vmem>>, %arg23: memref<1x32xf32, #tpu.memory_space<vmem>>, %arg24: memref<1x32xf32, #tpu.memory_space<vmem>>, %arg25: memref<1x32xf32, #tpu.memory_space<vmem>>, %arg26: memref<32x16xf32, #tpu.memory_space<vmem>>, %arg27: memref<1x16xf32, #tpu.memory_space<vmem>>, %arg28: memref<1x16xf32, #tpu.memory_space<vmem>>, %arg29: memref<1x16xf32, #tpu.memory_space<vmem>>, %arg30: memref<16x4xf32, #tpu.memory_space<vmem>>, %arg31: memref<1x4xf32, #tpu.memory_space<vmem>>, %arg32: memref<16x4xf32, #tpu.memory_space<vmem>>, %arg33: memref<2x32xf32, #tpu.memory_space<vmem>>, %arg34: memref<2x32xf32, #tpu.memory_space<vmem>>, %arg35: memref<16x32xf32, #tpu.memory_space<vmem>>) attributes {dimension_semantics = [], scalar_prefetch = 0 : i64, scratch_operands = 1 : i64, tpu.core_type = #tpu.core_type<tc>} {
    %c0 = arith.constant 0 : index
    %c0_0 = arith.constant 0 : index
    %0 = vector.load %arg0[%c0, %c0_0] : memref<2x512xf32, #tpu.memory_space<vmem>>, vector<2x512xf32>
    %c0_1 = arith.constant 0 : index
    %c0_2 = arith.constant 0 : index
    %1 = vector.load %arg2[%c0_1, %c0_2] : memref<512x1024xf32, #tpu.memory_space<vmem>>, vector<512x1024xf32>
    %cst = arith.constant dense<0.000000e+00> : vector<2x1024xf32>
    %2 = tpu.matmul %0, %1, %cst {dimension_numbers = #tpu.dot_dimension_numbers<[1], [0], [0], [1], [0, 0, 1, 1], [], []>} : vector<2x512xf32>, vector<512x1024xf32>, vector<2x1024xf32> -> vector<2x1024xf32>
    %c0_3 = arith.constant 0 : index
    %c0_4 = arith.constant 0 : index
    %3 = vector.load %arg3[%c0_3, %c0_4] : memref<1x1024xf32, #tpu.memory_space<vmem>>, vector<1x1024xf32>
    %4 = vector.broadcast %3 : vector<1x1024xf32> to vector<2x1024xf32>
    %5 = arith.addf %2, %4 : vector<2x1024xf32>
    %c0_5 = arith.constant 0 : index
    %c0_6 = arith.constant 0 : index
    %6 = vector.load %arg4[%c0_5, %c0_6] : memref<1024x16xf32, #tpu.memory_space<vmem>>, vector<1024x16xf32>
    %c0_7 = arith.constant 0 : index
    %c0_8 = arith.constant 0 : index
    %7 = vector.load %arg5[%c0_7, %c0_8] : memref<16x1024xf32, #tpu.memory_space<vmem>>, vector<16x1024xf32>
    %c0_9 = arith.constant 0 : index
    %c0_10 = arith.constant 0 : index
    %8 = vector.load %arg6[%c0_9, %c0_10] : memref<1x16xf32, #tpu.memory_space<vmem>>, vector<1x16xf32>
    %c0_11 = arith.constant 0 : index
    %c0_12 = arith.constant 0 : index
    %9 = vector.load %arg7[%c0_11, %c0_12] : memref<1x16xf32, #tpu.memory_space<vmem>>, vector<1x16xf32>
    %cst_13 = arith.constant dense<0.000000e+00> : vector<1024xf32>
    %10 = vector.multi_reduction <add>, %5, %cst_13 [0] : vector<2x1024xf32> to vector<1024xf32>
    %11 = vector.shape_cast %10 : vector<1024xf32> to vector<1x1024xf32>
    %12 = arith.mulf %5, %5 : vector<2x1024xf32>
    %cst_14 = arith.constant dense<0.000000e+00> : vector<1024xf32>
    %13 = vector.multi_reduction <add>, %12, %cst_14 [0] : vector<2x1024xf32> to vector<1024xf32>
    %14 = vector.shape_cast %13 : vector<1024xf32> to vector<1x1024xf32>
    %cst_15 = arith.constant dense<0.000000e+00> : vector<1x16xf32>
    %15 = tpu.matmul %11, %6, %cst_15 {dimension_numbers = #tpu.dot_dimension_numbers<[1], [0], [0], [1], [0, 0, 1, 1], [], []>} : vector<1x1024xf32>, vector<1024x16xf32>, vector<1x16xf32> -> vector<1x16xf32>
    %cst_16 = arith.constant 5.000000e-01 : f32
    %16 = vector.broadcast %cst_16 : f32 to vector<1x16xf32>
    %17 = arith.mulf %15, %16 : vector<1x16xf32>
    %cst_17 = arith.constant dense<0.000000e+00> : vector<1x16xf32>
    %18 = tpu.matmul %14, %6, %cst_17 {dimension_numbers = #tpu.dot_dimension_numbers<[1], [0], [0], [1], [0, 0, 1, 1], [], []>} : vector<1x1024xf32>, vector<1024x16xf32>, vector<1x16xf32> -> vector<1x16xf32>
    %cst_18 = arith.constant 5.000000e-01 : f32
    %19 = vector.broadcast %cst_18 : f32 to vector<1x16xf32>
    %20 = arith.mulf %18, %19 : vector<1x16xf32>
    %21 = arith.mulf %17, %17 : vector<1x16xf32>
    %22 = arith.subf %20, %21 : vector<1x16xf32>
    %cst_19 = arith.constant 9.99999974E-6 : f32
    %23 = vector.broadcast %cst_19 : f32 to vector<1x16xf32>
    %24 = arith.addf %22, %23 : vector<1x16xf32>
    %25 = math.rsqrt %24 : vector<1x16xf32>
    %26 = arith.mulf %8, %25 : vector<1x16xf32>
    %27 = arith.mulf %17, %26 : vector<1x16xf32>
    %28 = arith.subf %9, %27 : vector<1x16xf32>
    %cst_20 = arith.constant dense<0.000000e+00> : vector<1x1024xf32>
    %29 = tpu.matmul %26, %7, %cst_20 {dimension_numbers = #tpu.dot_dimension_numbers<[1], [0], [0], [1], [0, 0, 1, 1], [], []>} : vector<1x16xf32>, vector<16x1024xf32>, vector<1x1024xf32> -> vector<1x1024xf32>
    %30 = vector.broadcast %29 : vector<1x1024xf32> to vector<2x1024xf32>
    %31 = arith.mulf %5, %30 : vector<2x1024xf32>
    %cst_21 = arith.constant dense<0.000000e+00> : vector<1x1024xf32>
    %32 = tpu.matmul %28, %7, %cst_21 {dimension_numbers = #tpu.dot_dimension_numbers<[1], [0], [0], [1], [0, 0, 1, 1], [], []>} : vector<1x16xf32>, vector<16x1024xf32>, vector<1x1024xf32> -> vector<1x1024xf32>
    %33 = vector.broadcast %32 : vector<1x1024xf32> to vector<2x1024xf32>
    %34 = arith.addf %31, %33 : vector<2x1024xf32>
    %cst_22 = arith.constant 0.000000e+00 : f32
    %35 = vector.broadcast %cst_22 : f32 to vector<2x1024xf32>
    %36 = arith.cmpf ogt, %34, %35 : vector<2x1024xf32>
    %cst_23 = arith.constant 0.00999999977 : f32
    %37 = vector.broadcast %cst_23 : f32 to vector<2x1024xf32>
    %38 = arith.mulf %37, %34 : vector<2x1024xf32>
    %39 = arith.select %36, %34, %38 : vector<2x1024xi1>, vector<2x1024xf32>
    %c0_24 = arith.constant 0 : index
    %c0_25 = arith.constant 0 : index
    %40 = vector.load %arg8[%c0_24, %c0_25] : memref<1024x512xf32, #tpu.memory_space<vmem>>, vector<1024x512xf32>
    %cst_26 = arith.constant dense<0.000000e+00> : vector<2x512xf32>
    %41 = tpu.matmul %39, %40, %cst_26 {dimension_numbers = #tpu.dot_dimension_numbers<[1], [0], [0], [1], [0, 0, 1, 1], [], []>} : vector<2x1024xf32>, vector<1024x512xf32>, vector<2x512xf32> -> vector<2x512xf32>
    %c0_27 = arith.constant 0 : index
    %c0_28 = arith.constant 0 : index
    %42 = vector.load %arg9[%c0_27, %c0_28] : memref<1x512xf32, #tpu.memory_space<vmem>>, vector<1x512xf32>
    %43 = vector.broadcast %42 : vector<1x512xf32> to vector<2x512xf32>
    %44 = arith.addf %41, %43 : vector<2x512xf32>
    %c0_29 = arith.constant 0 : index
    %c0_30 = arith.constant 0 : index
    %45 = vector.load %arg10[%c0_29, %c0_30] : memref<512x32xf32, #tpu.memory_space<vmem>>, vector<512x32xf32>
    %c0_31 = arith.constant 0 : index
    %c0_32 = arith.constant 0 : index
    %46 = vector.load %arg11[%c0_31, %c0_32] : memref<32x512xf32, #tpu.memory_space<vmem>>, vector<32x512xf32>
    %c0_33 = arith.constant 0 : index
    %c0_34 = arith.constant 0 : index
    %47 = vector.load %arg12[%c0_33, %c0_34] : memref<1x32xf32, #tpu.memory_space<vmem>>, vector<1x32xf32>
    %c0_35 = arith.constant 0 : index
    %c0_36 = arith.constant 0 : index
    %48 = vector.load %arg13[%c0_35, %c0_36] : memref<1x32xf32, #tpu.memory_space<vmem>>, vector<1x32xf32>
    %cst_37 = arith.constant dense<0.000000e+00> : vector<512xf32>
    %49 = vector.multi_reduction <add>, %44, %cst_37 [0] : vector<2x512xf32> to vector<512xf32>
    %50 = vector.shape_cast %49 : vector<512xf32> to vector<1x512xf32>
    %51 = arith.mulf %44, %44 : vector<2x512xf32>
    %cst_38 = arith.constant dense<0.000000e+00> : vector<512xf32>
    %52 = vector.multi_reduction <add>, %51, %cst_38 [0] : vector<2x512xf32> to vector<512xf32>
    %53 = vector.shape_cast %52 : vector<512xf32> to vector<1x512xf32>
    %cst_39 = arith.constant dense<0.000000e+00> : vector<1x32xf32>
    %54 = tpu.matmul %50, %45, %cst_39 {dimension_numbers = #tpu.dot_dimension_numbers<[1], [0], [0], [1], [0, 0, 1, 1], [], []>} : vector<1x512xf32>, vector<512x32xf32>, vector<1x32xf32> -> vector<1x32xf32>
    %cst_40 = arith.constant 5.000000e-01 : f32
    %55 = vector.broadcast %cst_40 : f32 to vector<1x32xf32>
    %56 = arith.mulf %54, %55 : vector<1x32xf32>
    %cst_41 = arith.constant dense<0.000000e+00> : vector<1x32xf32>
    %57 = tpu.matmul %53, %45, %cst_41 {dimension_numbers = #tpu.dot_dimension_numbers<[1], [0], [0], [1], [0, 0, 1, 1], [], []>} : vector<1x512xf32>, vector<512x32xf32>, vector<1x32xf32> -> vector<1x32xf32>
    %cst_42 = arith.constant 5.000000e-01 : f32
    %58 = vector.broadcast %cst_42 : f32 to vector<1x32xf32>
    %59 = arith.mulf %57, %58 : vector<1x32xf32>
    %60 = arith.mulf %56, %56 : vector<1x32xf32>
    %61 = arith.subf %59, %60 : vector<1x32xf32>
    %cst_43 = arith.constant 9.99999974E-6 : f32
    %62 = vector.broadcast %cst_43 : f32 to vector<1x32xf32>
    %63 = arith.addf %61, %62 : vector<1x32xf32>
    %64 = math.rsqrt %63 : vector<1x32xf32>
    %65 = arith.mulf %47, %64 : vector<1x32xf32>
    %66 = arith.mulf %56, %65 : vector<1x32xf32>
    %67 = arith.subf %48, %66 : vector<1x32xf32>
    %cst_44 = arith.constant dense<0.000000e+00> : vector<1x512xf32>
    %68 = tpu.matmul %65, %46, %cst_44 {dimension_numbers = #tpu.dot_dimension_numbers<[1], [0], [0], [1], [0, 0, 1, 1], [], []>} : vector<1x32xf32>, vector<32x512xf32>, vector<1x512xf32> -> vector<1x512xf32>
    %69 = vector.broadcast %68 : vector<1x512xf32> to vector<2x512xf32>
    %70 = arith.mulf %44, %69 : vector<2x512xf32>
    %cst_45 = arith.constant dense<0.000000e+00> : vector<1x512xf32>
    %71 = tpu.matmul %67, %46, %cst_45 {dimension_numbers = #tpu.dot_dimension_numbers<[1], [0], [0], [1], [0, 0, 1, 1], [], []>} : vector<1x32xf32>, vector<32x512xf32>, vector<1x512xf32> -> vector<1x512xf32>
    %72 = vector.broadcast %71 : vector<1x512xf32> to vector<2x512xf32>
    %73 = arith.addf %70, %72 : vector<2x512xf32>
    %cst_46 = arith.constant 0.000000e+00 : f32
    %74 = vector.broadcast %cst_46 : f32 to vector<2x512xf32>
    %75 = arith.cmpf ogt, %73, %74 : vector<2x512xf32>
    %cst_47 = arith.constant 0.00999999977 : f32
    %76 = vector.broadcast %cst_47 : f32 to vector<2x512xf32>
    %77 = arith.mulf %76, %73 : vector<2x512xf32>
    %78 = arith.select %75, %73, %77 : vector<2x512xi1>, vector<2x512xf32>
    %c0_48 = arith.constant 0 : index
    %c0_49 = arith.constant 0 : index
    %79 = vector.load %arg14[%c0_48, %c0_49] : memref<512x16xf32, #tpu.memory_space<vmem>>, vector<512x16xf32>
    %cst_50 = arith.constant dense<0.000000e+00> : vector<2x16xf32>
    %80 = tpu.matmul %78, %79, %cst_50 {dimension_numbers = #tpu.dot_dimension_numbers<[1], [0], [0], [1], [0, 0, 1, 1], [], []>} : vector<2x512xf32>, vector<512x16xf32>, vector<2x16xf32> -> vector<2x16xf32>
    %c0_51 = arith.constant 0 : index
    %c0_52 = arith.constant 0 : index
    %81 = vector.load %arg15[%c0_51, %c0_52] : memref<1x16xf32, #tpu.memory_space<vmem>>, vector<1x16xf32>
    %82 = vector.broadcast %81 : vector<1x16xf32> to vector<2x16xf32>
    %83 = arith.addf %80, %82 : vector<2x16xf32>
    %cst_53 = arith.constant 0.000000e+00 : f32
    %84 = vector.broadcast %cst_53 : f32 to vector<2x16xf32>
    %85 = arith.cmpf ogt, %83, %84 : vector<2x16xf32>
    %cst_54 = arith.constant 0.00999999977 : f32
    %86 = vector.broadcast %cst_54 : f32 to vector<2x16xf32>
    %87 = arith.mulf %86, %83 : vector<2x16xf32>
    %88 = arith.select %85, %83, %87 : vector<2x16xi1>, vector<2x16xf32>
    %c0_55 = arith.constant 0 : index
    %c0_56 = arith.constant 0 : index
    %89 = vector.load %arg1[%c0_55, %c0_56] : memref<16x8xf32, #tpu.memory_space<vmem>>, vector<16x8xf32>
    %c0_57 = arith.constant 0 : index
    %c0_58 = arith.constant 0 : index
    %90 = vector.load %arg16[%c0_57, %c0_58] : memref<8x128xf32, #tpu.memory_space<vmem>>, vector<8x128xf32>
    %cst_59 = arith.constant dense<0.000000e+00> : vector<16x128xf32>
    %91 = tpu.matmul %89, %90, %cst_59 {dimension_numbers = #tpu.dot_dimension_numbers<[1], [0], [0], [1], [0, 0, 1, 1], [], []>} : vector<16x8xf32>, vector<8x128xf32>, vector<16x128xf32> -> vector<16x128xf32>
    %c0_60 = arith.constant 0 : index
    %c0_61 = arith.constant 0 : index
    %92 = vector.load %arg17[%c0_60, %c0_61] : memref<16x128xf32, #tpu.memory_space<vmem>>, vector<16x128xf32>
    %cst_62 = arith.constant dense<0.000000e+00> : vector<2x128xf32>
    %93 = tpu.matmul %88, %92, %cst_62 {dimension_numbers = #tpu.dot_dimension_numbers<[1], [0], [0], [1], [0, 0, 1, 1], [], []>} : vector<2x16xf32>, vector<16x128xf32>, vector<2x128xf32> -> vector<2x128xf32>
    %c0_63 = arith.constant 0 : index
    %c0_64 = arith.constant 0 : index
    %94 = vector.load %arg18[%c0_63, %c0_64] : memref<1x128xf32, #tpu.memory_space<vmem>>, vector<1x128xf32>
    %95 = vector.broadcast %94 : vector<1x128xf32> to vector<2x128xf32>
    %96 = arith.addf %93, %95 : vector<2x128xf32>
    %c0_65 = arith.constant 0 : index
    %c0_66 = arith.constant 0 : index
    %97 = vector.load %arg19[%c0_65, %c0_66] : memref<32x128xf32, #tpu.memory_space<vmem>>, vector<32x128xf32>
    %c0_67 = arith.constant 0 : index
    %c0_68 = arith.constant 0 : index
    %98 = vector.load %arg20[%c0_67, %c0_68] : memref<2x32xf32, #tpu.memory_space<vmem>>, vector<2x32xf32>
    %c0_69 = arith.constant 0 : index
    %c0_70 = arith.constant 0 : index
    %99 = vector.load %arg21[%c0_69, %c0_70] : memref<2x32xf32, #tpu.memory_space<vmem>>, vector<2x32xf32>
    %100 = vector.extract_strided_slice %91 {offsets = [0, 0], sizes = [2, 128], strides = [1, 1]} : vector<16x128xf32> to vector<2x128xf32>
    %101 = arith.addf %100, %96 : vector<2x128xf32>
    %cst_71 = arith.constant dense<0.000000e+00> : vector<2x128xf32>
    %102 = tpu.matmul %98, %97, %cst_71 {dimension_numbers = #tpu.dot_dimension_numbers<[1], [0], [0], [1], [0, 0, 1, 1], [], []>} : vector<2x32xf32>, vector<32x128xf32>, vector<2x128xf32> -> vector<2x128xf32>
    %103 = arith.addf %101, %102 : vector<2x128xf32>
    %104 = vector.extract_strided_slice %103 {offsets = [0, 0], sizes = [2, 32], strides = [1, 1]} : vector<2x128xf32> to vector<2x32xf32>
    %105 = arith.negf %104 : vector<2x32xf32>
    %106 = math.exp %105 : vector<2x32xf32>
    %cst_72 = arith.constant 1.000000e+00 : f32
    %107 = vector.broadcast %cst_72 : f32 to vector<2x32xf32>
    %108 = arith.addf %107, %106 : vector<2x32xf32>
    %109 = arith.divf %107, %108 : vector<2x32xf32>
    %110 = vector.extract_strided_slice %103 {offsets = [0, 32], sizes = [2, 32], strides = [1, 1]} : vector<2x128xf32> to vector<2x32xf32>
    %111 = arith.negf %110 : vector<2x32xf32>
    %112 = math.exp %111 : vector<2x32xf32>
    %cst_73 = arith.constant 1.000000e+00 : f32
    %113 = vector.broadcast %cst_73 : f32 to vector<2x32xf32>
    %114 = arith.addf %113, %112 : vector<2x32xf32>
    %115 = arith.divf %113, %114 : vector<2x32xf32>
    %116 = vector.extract_strided_slice %103 {offsets = [0, 64], sizes = [2, 32], strides = [1, 1]} : vector<2x128xf32> to vector<2x32xf32>
    %117 = math.tanh %116 : vector<2x32xf32>
    %118 = vector.extract_strided_slice %103 {offsets = [0, 96], sizes = [2, 32], strides = [1, 1]} : vector<2x128xf32> to vector<2x32xf32>
    %119 = arith.negf %118 : vector<2x32xf32>
    %120 = math.exp %119 : vector<2x32xf32>
    %cst_74 = arith.constant 1.000000e+00 : f32
    %121 = vector.broadcast %cst_74 : f32 to vector<2x32xf32>
    %122 = arith.addf %121, %120 : vector<2x32xf32>
    %123 = arith.divf %121, %122 : vector<2x32xf32>
    %124 = arith.mulf %115, %99 : vector<2x32xf32>
    %125 = arith.mulf %109, %117 : vector<2x32xf32>
    %126 = arith.addf %124, %125 : vector<2x32xf32>
    %127 = math.tanh %126 : vector<2x32xf32>
    %128 = arith.mulf %123, %127 : vector<2x32xf32>
    %c0_75 = arith.constant 0 : index
    %c0_76 = arith.constant 0 : index
    %129 = vector.load %arg35[%c0_75, %c0_76] : memref<16x32xf32, #tpu.memory_space<vmem>>, vector<2x32xf32>
    tpu.vector_store %arg35[%c0_75, %c0_76], %128 {strides = array<i32>} : memref<16x32xf32, #tpu.memory_space<vmem>>, vector<2x32xf32>,
    %130 = vector.extract_strided_slice %91 {offsets = [2, 0], sizes = [2, 128], strides = [1, 1]} : vector<16x128xf32> to vector<2x128xf32>
    %131 = arith.addf %130, %96 : vector<2x128xf32>
    %cst_77 = arith.constant dense<0.000000e+00> : vector<2x128xf32>
    %132 = tpu.matmul %128, %97, %cst_77 {dimension_numbers = #tpu.dot_dimension_numbers<[1], [0], [0], [1], [0, 0, 1, 1], [], []>} : vector<2x32xf32>, vector<32x128xf32>, vector<2x128xf32> -> vector<2x128xf32>
    %133 = arith.addf %131, %132 : vector<2x128xf32>
    %134 = vector.extract_strided_slice %133 {offsets = [0, 0], sizes = [2, 32], strides = [1, 1]} : vector<2x128xf32> to vector<2x32xf32>
    %135 = arith.negf %134 : vector<2x32xf32>
    %136 = math.exp %135 : vector<2x32xf32>
    %cst_78 = arith.constant 1.000000e+00 : f32
    %137 = vector.broadcast %cst_78 : f32 to vector<2x32xf32>
    %138 = arith.addf %137, %136 : vector<2x32xf32>
    %139 = arith.divf %137, %138 : vector<2x32xf32>
    %140 = vector.extract_strided_slice %133 {offsets = [0, 32], sizes = [2, 32], strides = [1, 1]} : vector<2x128xf32> to vector<2x32xf32>
    %141 = arith.negf %140 : vector<2x32xf32>
    %142 = math.exp %141 : vector<2x32xf32>
    %cst_79 = arith.constant 1.000000e+00 : f32
    %143 = vector.broadcast %cst_79 : f32 to vector<2x32xf32>
    %144 = arith.addf %143, %142 : vector<2x32xf32>
    %145 = arith.divf %143, %144 : vector<2x32xf32>
    %146 = vector.extract_strided_slice %133 {offsets = [0, 64], sizes = [2, 32], strides = [1, 1]} : vector<2x128xf32> to vector<2x32xf32>
    %147 = math.tanh %146 : vector<2x32xf32>
    %148 = vector.extract_strided_slice %133 {offsets = [0, 96], sizes = [2, 32], strides = [1, 1]} : vector<2x128xf32> to vector<2x32xf32>
    %149 = arith.negf %148 : vector<2x32xf32>
    %150 = math.exp %149 : vector<2x32xf32>
    %cst_80 = arith.constant 1.000000e+00 : f32
    %151 = vector.broadcast %cst_80 : f32 to vector<2x32xf32>
    %152 = arith.addf %151, %150 : vector<2x32xf32>
    %153 = arith.divf %151, %152 : vector<2x32xf32>
    %154 = arith.mulf %145, %126 : vector<2x32xf32>
    %155 = arith.mulf %139, %147 : vector<2x32xf32>
    %156 = arith.addf %154, %155 : vector<2x32xf32>
    %157 = math.tanh %156 : vector<2x32xf32>
    %158 = arith.mulf %153, %157 : vector<2x32xf32>
    %c2 = arith.constant 2 : index
    %c0_81 = arith.constant 0 : index
    %159 = vector.load %arg35[%c2, %c0_81] : memref<16x32xf32, #tpu.memory_space<vmem>>, vector<2x32xf32>
    tpu.vector_store %arg35[%c2, %c0_81], %158 {strides = array<i32>} : memref<16x32xf32, #tpu.memory_space<vmem>>, vector<2x32xf32>,
    %160 = vector.extract_strided_slice %91 {offsets = [4, 0], sizes = [2, 128], strides = [1, 1]} : vector<16x128xf32> to vector<2x128xf32>
    %161 = arith.addf %160, %96 : vector<2x128xf32>
    %cst_82 = arith.constant dense<0.000000e+00> : vector<2x128xf32>
    %162 = tpu.matmul %158, %97, %cst_82 {dimension_numbers = #tpu.dot_dimension_numbers<[1], [0], [0], [1], [0, 0, 1, 1], [], []>} : vector<2x32xf32>, vector<32x128xf32>, vector<2x128xf32> -> vector<2x128xf32>
    %163 = arith.addf %161, %162 : vector<2x128xf32>
    %164 = vector.extract_strided_slice %163 {offsets = [0, 0], sizes = [2, 32], strides = [1, 1]} : vector<2x128xf32> to vector<2x32xf32>
    %165 = arith.negf %164 : vector<2x32xf32>
    %166 = math.exp %165 : vector<2x32xf32>
    %cst_83 = arith.constant 1.000000e+00 : f32
    %167 = vector.broadcast %cst_83 : f32 to vector<2x32xf32>
    %168 = arith.addf %167, %166 : vector<2x32xf32>
    %169 = arith.divf %167, %168 : vector<2x32xf32>
    %170 = vector.extract_strided_slice %163 {offsets = [0, 32], sizes = [2, 32], strides = [1, 1]} : vector<2x128xf32> to vector<2x32xf32>
    %171 = arith.negf %170 : vector<2x32xf32>
    %172 = math.exp %171 : vector<2x32xf32>
    %cst_84 = arith.constant 1.000000e+00 : f32
    %173 = vector.broadcast %cst_84 : f32 to vector<2x32xf32>
    %174 = arith.addf %173, %172 : vector<2x32xf32>
    %175 = arith.divf %173, %174 : vector<2x32xf32>
    %176 = vector.extract_strided_slice %163 {offsets = [0, 64], sizes = [2, 32], strides = [1, 1]} : vector<2x128xf32> to vector<2x32xf32>
    %177 = math.tanh %176 : vector<2x32xf32>
    %178 = vector.extract_strided_slice %163 {offsets = [0, 96], sizes = [2, 32], strides = [1, 1]} : vector<2x128xf32> to vector<2x32xf32>
    %179 = arith.negf %178 : vector<2x32xf32>
    %180 = math.exp %179 : vector<2x32xf32>
    %cst_85 = arith.constant 1.000000e+00 : f32
    %181 = vector.broadcast %cst_85 : f32 to vector<2x32xf32>
    %182 = arith.addf %181, %180 : vector<2x32xf32>
    %183 = arith.divf %181, %182 : vector<2x32xf32>
    %184 = arith.mulf %175, %156 : vector<2x32xf32>
    %185 = arith.mulf %169, %177 : vector<2x32xf32>
    %186 = arith.addf %184, %185 : vector<2x32xf32>
    %187 = math.tanh %186 : vector<2x32xf32>
    %188 = arith.mulf %183, %187 : vector<2x32xf32>
    %c4 = arith.constant 4 : index
    %c0_86 = arith.constant 0 : index
    %189 = vector.load %arg35[%c4, %c0_86] : memref<16x32xf32, #tpu.memory_space<vmem>>, vector<2x32xf32>
    tpu.vector_store %arg35[%c4, %c0_86], %188 {strides = array<i32>} : memref<16x32xf32, #tpu.memory_space<vmem>>, vector<2x32xf32>,
    %190 = vector.extract_strided_slice %91 {offsets = [6, 0], sizes = [2, 128], strides = [1, 1]} : vector<16x128xf32> to vector<2x128xf32>
    %191 = arith.addf %190, %96 : vector<2x128xf32>
    %cst_87 = arith.constant dense<0.000000e+00> : vector<2x128xf32>
    %192 = tpu.matmul %188, %97, %cst_87 {dimension_numbers = #tpu.dot_dimension_numbers<[1], [0], [0], [1], [0, 0, 1, 1], [], []>} : vector<2x32xf32>, vector<32x128xf32>, vector<2x128xf32> -> vector<2x128xf32>
    %193 = arith.addf %191, %192 : vector<2x128xf32>
    %194 = vector.extract_strided_slice %193 {offsets = [0, 0], sizes = [2, 32], strides = [1, 1]} : vector<2x128xf32> to vector<2x32xf32>
    %195 = arith.negf %194 : vector<2x32xf32>
    %196 = math.exp %195 : vector<2x32xf32>
    %cst_88 = arith.constant 1.000000e+00 : f32
    %197 = vector.broadcast %cst_88 : f32 to vector<2x32xf32>
    %198 = arith.addf %197, %196 : vector<2x32xf32>
    %199 = arith.divf %197, %198 : vector<2x32xf32>
    %200 = vector.extract_strided_slice %193 {offsets = [0, 32], sizes = [2, 32], strides = [1, 1]} : vector<2x128xf32> to vector<2x32xf32>
    %201 = arith.negf %200 : vector<2x32xf32>
    %202 = math.exp %201 : vector<2x32xf32>
    %cst_89 = arith.constant 1.000000e+00 : f32
    %203 = vector.broadcast %cst_89 : f32 to vector<2x32xf32>
    %204 = arith.addf %203, %202 : vector<2x32xf32>
    %205 = arith.divf %203, %204 : vector<2x32xf32>
    %206 = vector.extract_strided_slice %193 {offsets = [0, 64], sizes = [2, 32], strides = [1, 1]} : vector<2x128xf32> to vector<2x32xf32>
    %207 = math.tanh %206 : vector<2x32xf32>
    %208 = vector.extract_strided_slice %193 {offsets = [0, 96], sizes = [2, 32], strides = [1, 1]} : vector<2x128xf32> to vector<2x32xf32>
    %209 = arith.negf %208 : vector<2x32xf32>
    %210 = math.exp %209 : vector<2x32xf32>
    %cst_90 = arith.constant 1.000000e+00 : f32
    %211 = vector.broadcast %cst_90 : f32 to vector<2x32xf32>
    %212 = arith.addf %211, %210 : vector<2x32xf32>
    %213 = arith.divf %211, %212 : vector<2x32xf32>
    %214 = arith.mulf %205, %186 : vector<2x32xf32>
    %215 = arith.mulf %199, %207 : vector<2x32xf32>
    %216 = arith.addf %214, %215 : vector<2x32xf32>
    %217 = math.tanh %216 : vector<2x32xf32>
    %218 = arith.mulf %213, %217 : vector<2x32xf32>
    %c6 = arith.constant 6 : index
    %c0_91 = arith.constant 0 : index
    %219 = vector.load %arg35[%c6, %c0_91] : memref<16x32xf32, #tpu.memory_space<vmem>>, vector<2x32xf32>
    tpu.vector_store %arg35[%c6, %c0_91], %218 {strides = array<i32>} : memref<16x32xf32, #tpu.memory_space<vmem>>, vector<2x32xf32>,
    %220 = vector.extract_strided_slice %91 {offsets = [8, 0], sizes = [2, 128], strides = [1, 1]} : vector<16x128xf32> to vector<2x128xf32>
    %221 = arith.addf %220, %96 : vector<2x128xf32>
    %cst_92 = arith.constant dense<0.000000e+00> : vector<2x128xf32>
    %222 = tpu.matmul %218, %97, %cst_92 {dimension_numbers = #tpu.dot_dimension_numbers<[1], [0], [0], [1], [0, 0, 1, 1], [], []>} : vector<2x32xf32>, vector<32x128xf32>, vector<2x128xf32> -> vector<2x128xf32>
    %223 = arith.addf %221, %222 : vector<2x128xf32>
    %224 = vector.extract_strided_slice %223 {offsets = [0, 0], sizes = [2, 32], strides = [1, 1]} : vector<2x128xf32> to vector<2x32xf32>
    %225 = arith.negf %224 : vector<2x32xf32>
    %226 = math.exp %225 : vector<2x32xf32>
    %cst_93 = arith.constant 1.000000e+00 : f32
    %227 = vector.broadcast %cst_93 : f32 to vector<2x32xf32>
    %228 = arith.addf %227, %226 : vector<2x32xf32>
    %229 = arith.divf %227, %228 : vector<2x32xf32>
    %230 = vector.extract_strided_slice %223 {offsets = [0, 32], sizes = [2, 32], strides = [1, 1]} : vector<2x128xf32> to vector<2x32xf32>
    %231 = arith.negf %230 : vector<2x32xf32>
    %232 = math.exp %231 : vector<2x32xf32>
    %cst_94 = arith.constant 1.000000e+00 : f32
    %233 = vector.broadcast %cst_94 : f32 to vector<2x32xf32>
    %234 = arith.addf %233, %232 : vector<2x32xf32>
    %235 = arith.divf %233, %234 : vector<2x32xf32>
    %236 = vector.extract_strided_slice %223 {offsets = [0, 64], sizes = [2, 32], strides = [1, 1]} : vector<2x128xf32> to vector<2x32xf32>
    %237 = math.tanh %236 : vector<2x32xf32>
    %238 = vector.extract_strided_slice %223 {offsets = [0, 96], sizes = [2, 32], strides = [1, 1]} : vector<2x128xf32> to vector<2x32xf32>
    %239 = arith.negf %238 : vector<2x32xf32>
    %240 = math.exp %239 : vector<2x32xf32>
    %cst_95 = arith.constant 1.000000e+00 : f32
    %241 = vector.broadcast %cst_95 : f32 to vector<2x32xf32>
    %242 = arith.addf %241, %240 : vector<2x32xf32>
    %243 = arith.divf %241, %242 : vector<2x32xf32>
    %244 = arith.mulf %235, %216 : vector<2x32xf32>
    %245 = arith.mulf %229, %237 : vector<2x32xf32>
    %246 = arith.addf %244, %245 : vector<2x32xf32>
    %247 = math.tanh %246 : vector<2x32xf32>
    %248 = arith.mulf %243, %247 : vector<2x32xf32>
    %c8 = arith.constant 8 : index
    %c0_96 = arith.constant 0 : index
    %249 = vector.load %arg35[%c8, %c0_96] : memref<16x32xf32, #tpu.memory_space<vmem>>, vector<2x32xf32>
    tpu.vector_store %arg35[%c8, %c0_96], %248 {strides = array<i32>} : memref<16x32xf32, #tpu.memory_space<vmem>>, vector<2x32xf32>,
    %250 = vector.extract_strided_slice %91 {offsets = [10, 0], sizes = [2, 128], strides = [1, 1]} : vector<16x128xf32> to vector<2x128xf32>
    %251 = arith.addf %250, %96 : vector<2x128xf32>
    %cst_97 = arith.constant dense<0.000000e+00> : vector<2x128xf32>
    %252 = tpu.matmul %248, %97, %cst_97 {dimension_numbers = #tpu.dot_dimension_numbers<[1], [0], [0], [1], [0, 0, 1, 1], [], []>} : vector<2x32xf32>, vector<32x128xf32>, vector<2x128xf32> -> vector<2x128xf32>
    %253 = arith.addf %251, %252 : vector<2x128xf32>
    %254 = vector.extract_strided_slice %253 {offsets = [0, 0], sizes = [2, 32], strides = [1, 1]} : vector<2x128xf32> to vector<2x32xf32>
    %255 = arith.negf %254 : vector<2x32xf32>
    %256 = math.exp %255 : vector<2x32xf32>
    %cst_98 = arith.constant 1.000000e+00 : f32
    %257 = vector.broadcast %cst_98 : f32 to vector<2x32xf32>
    %258 = arith.addf %257, %256 : vector<2x32xf32>
    %259 = arith.divf %257, %258 : vector<2x32xf32>
    %260 = vector.extract_strided_slice %253 {offsets = [0, 32], sizes = [2, 32], strides = [1, 1]} : vector<2x128xf32> to vector<2x32xf32>
    %261 = arith.negf %260 : vector<2x32xf32>
    %262 = math.exp %261 : vector<2x32xf32>
    %cst_99 = arith.constant 1.000000e+00 : f32
    %263 = vector.broadcast %cst_99 : f32 to vector<2x32xf32>
    %264 = arith.addf %263, %262 : vector<2x32xf32>
    %265 = arith.divf %263, %264 : vector<2x32xf32>
    %266 = vector.extract_strided_slice %253 {offsets = [0, 64], sizes = [2, 32], strides = [1, 1]} : vector<2x128xf32> to vector<2x32xf32>
    %267 = math.tanh %266 : vector<2x32xf32>
    %268 = vector.extract_strided_slice %253 {offsets = [0, 96], sizes = [2, 32], strides = [1, 1]} : vector<2x128xf32> to vector<2x32xf32>
    %269 = arith.negf %268 : vector<2x32xf32>
    %270 = math.exp %269 : vector<2x32xf32>
    %cst_100 = arith.constant 1.000000e+00 : f32
    %271 = vector.broadcast %cst_100 : f32 to vector<2x32xf32>
    %272 = arith.addf %271, %270 : vector<2x32xf32>
    %273 = arith.divf %271, %272 : vector<2x32xf32>
    %274 = arith.mulf %265, %246 : vector<2x32xf32>
    %275 = arith.mulf %259, %267 : vector<2x32xf32>
    %276 = arith.addf %274, %275 : vector<2x32xf32>
    %277 = math.tanh %276 : vector<2x32xf32>
    %278 = arith.mulf %273, %277 : vector<2x32xf32>
    %c10 = arith.constant 10 : index
    %c0_101 = arith.constant 0 : index
    %279 = vector.load %arg35[%c10, %c0_101] : memref<16x32xf32, #tpu.memory_space<vmem>>, vector<2x32xf32>
    tpu.vector_store %arg35[%c10, %c0_101], %278 {strides = array<i32>} : memref<16x32xf32, #tpu.memory_space<vmem>>, vector<2x32xf32>,
    %280 = vector.extract_strided_slice %91 {offsets = [12, 0], sizes = [2, 128], strides = [1, 1]} : vector<16x128xf32> to vector<2x128xf32>
    %281 = arith.addf %280, %96 : vector<2x128xf32>
    %cst_102 = arith.constant dense<0.000000e+00> : vector<2x128xf32>
    %282 = tpu.matmul %278, %97, %cst_102 {dimension_numbers = #tpu.dot_dimension_numbers<[1], [0], [0], [1], [0, 0, 1, 1], [], []>} : vector<2x32xf32>, vector<32x128xf32>, vector<2x128xf32> -> vector<2x128xf32>
    %283 = arith.addf %281, %282 : vector<2x128xf32>
    %284 = vector.extract_strided_slice %283 {offsets = [0, 0], sizes = [2, 32], strides = [1, 1]} : vector<2x128xf32> to vector<2x32xf32>
    %285 = arith.negf %284 : vector<2x32xf32>
    %286 = math.exp %285 : vector<2x32xf32>
    %cst_103 = arith.constant 1.000000e+00 : f32
    %287 = vector.broadcast %cst_103 : f32 to vector<2x32xf32>
    %288 = arith.addf %287, %286 : vector<2x32xf32>
    %289 = arith.divf %287, %288 : vector<2x32xf32>
    %290 = vector.extract_strided_slice %283 {offsets = [0, 32], sizes = [2, 32], strides = [1, 1]} : vector<2x128xf32> to vector<2x32xf32>
    %291 = arith.negf %290 : vector<2x32xf32>
    %292 = math.exp %291 : vector<2x32xf32>
    %cst_104 = arith.constant 1.000000e+00 : f32
    %293 = vector.broadcast %cst_104 : f32 to vector<2x32xf32>
    %294 = arith.addf %293, %292 : vector<2x32xf32>
    %295 = arith.divf %293, %294 : vector<2x32xf32>
    %296 = vector.extract_strided_slice %283 {offsets = [0, 64], sizes = [2, 32], strides = [1, 1]} : vector<2x128xf32> to vector<2x32xf32>
    %297 = math.tanh %296 : vector<2x32xf32>
    %298 = vector.extract_strided_slice %283 {offsets = [0, 96], sizes = [2, 32], strides = [1, 1]} : vector<2x128xf32> to vector<2x32xf32>
    %299 = arith.negf %298 : vector<2x32xf32>
    %300 = math.exp %299 : vector<2x32xf32>
    %cst_105 = arith.constant 1.000000e+00 : f32
    %301 = vector.broadcast %cst_105 : f32 to vector<2x32xf32>
    %302 = arith.addf %301, %300 : vector<2x32xf32>
    %303 = arith.divf %301, %302 : vector<2x32xf32>
    %304 = arith.mulf %295, %276 : vector<2x32xf32>
    %305 = arith.mulf %289, %297 : vector<2x32xf32>
    %306 = arith.addf %304, %305 : vector<2x32xf32>
    %307 = math.tanh %306 : vector<2x32xf32>
    %308 = arith.mulf %303, %307 : vector<2x32xf32>
    %c12 = arith.constant 12 : index
    %c0_106 = arith.constant 0 : index
    %309 = vector.load %arg35[%c12, %c0_106] : memref<16x32xf32, #tpu.memory_space<vmem>>, vector<2x32xf32>
    tpu.vector_store %arg35[%c12, %c0_106], %308 {strides = array<i32>} : memref<16x32xf32, #tpu.memory_space<vmem>>, vector<2x32xf32>,
    %310 = vector.extract_strided_slice %91 {offsets = [14, 0], sizes = [2, 128], strides = [1, 1]} : vector<16x128xf32> to vector<2x128xf32>
    %311 = arith.addf %310, %96 : vector<2x128xf32>
    %cst_107 = arith.constant dense<0.000000e+00> : vector<2x128xf32>
    %312 = tpu.matmul %308, %97, %cst_107 {dimension_numbers = #tpu.dot_dimension_numbers<[1], [0], [0], [1], [0, 0, 1, 1], [], []>} : vector<2x32xf32>, vector<32x128xf32>, vector<2x128xf32> -> vector<2x128xf32>
    %313 = arith.addf %311, %312 : vector<2x128xf32>
    %314 = vector.extract_strided_slice %313 {offsets = [0, 0], sizes = [2, 32], strides = [1, 1]} : vector<2x128xf32> to vector<2x32xf32>
    %315 = arith.negf %314 : vector<2x32xf32>
    %316 = math.exp %315 : vector<2x32xf32>
    %cst_108 = arith.constant 1.000000e+00 : f32
    %317 = vector.broadcast %cst_108 : f32 to vector<2x32xf32>
    %318 = arith.addf %317, %316 : vector<2x32xf32>
    %319 = arith.divf %317, %318 : vector<2x32xf32>
    %320 = vector.extract_strided_slice %313 {offsets = [0, 32], sizes = [2, 32], strides = [1, 1]} : vector<2x128xf32> to vector<2x32xf32>
    %321 = arith.negf %320 : vector<2x32xf32>
    %322 = math.exp %321 : vector<2x32xf32>
    %cst_109 = arith.constant 1.000000e+00 : f32
    %323 = vector.broadcast %cst_109 : f32 to vector<2x32xf32>
    %324 = arith.addf %323, %322 : vector<2x32xf32>
    %325 = arith.divf %323, %324 : vector<2x32xf32>
    %326 = vector.extract_strided_slice %313 {offsets = [0, 64], sizes = [2, 32], strides = [1, 1]} : vector<2x128xf32> to vector<2x32xf32>
    %327 = math.tanh %326 : vector<2x32xf32>
    %328 = vector.extract_strided_slice %313 {offsets = [0, 96], sizes = [2, 32], strides = [1, 1]} : vector<2x128xf32> to vector<2x32xf32>
    %329 = arith.negf %328 : vector<2x32xf32>
    %330 = math.exp %329 : vector<2x32xf32>
    %cst_110 = arith.constant 1.000000e+00 : f32
    %331 = vector.broadcast %cst_110 : f32 to vector<2x32xf32>
    %332 = arith.addf %331, %330 : vector<2x32xf32>
    %333 = arith.divf %331, %332 : vector<2x32xf32>
    %334 = arith.mulf %325, %306 : vector<2x32xf32>
    %335 = arith.mulf %319, %327 : vector<2x32xf32>
    %336 = arith.addf %334, %335 : vector<2x32xf32>
    %337 = math.tanh %336 : vector<2x32xf32>
    %338 = arith.mulf %333, %337 : vector<2x32xf32>
    %c14 = arith.constant 14 : index
    %c0_111 = arith.constant 0 : index
    %339 = vector.load %arg35[%c14, %c0_111] : memref<16x32xf32, #tpu.memory_space<vmem>>, vector<2x32xf32>
    tpu.vector_store %arg35[%c14, %c0_111], %338 {strides = array<i32>} : memref<16x32xf32, #tpu.memory_space<vmem>>, vector<2x32xf32>,
    %c0_112 = arith.constant 0 : index
    %c0_113 = arith.constant 0 : index
    %340 = vector.load %arg33[%c0_112, %c0_113] : memref<2x32xf32, #tpu.memory_space<vmem>>, vector<2x32xf32>
    tpu.vector_store %arg33[%c0_112, %c0_113], %338 {strides = array<i32>} : memref<2x32xf32, #tpu.memory_space<vmem>>, vector<2x32xf32>,
    %c0_114 = arith.constant 0 : index
    %c0_115 = arith.constant 0 : index
    %341 = vector.load %arg34[%c0_114, %c0_115] : memref<2x32xf32, #tpu.memory_space<vmem>>, vector<2x32xf32>
    tpu.vector_store %arg34[%c0_114, %c0_115], %336 {strides = array<i32>} : memref<2x32xf32, #tpu.memory_space<vmem>>, vector<2x32xf32>,
    %c0_116 = arith.constant 0 : index
    %c0_117 = arith.constant 0 : index
    %342 = vector.load %arg35[%c0_116, %c0_117] : memref<16x32xf32, #tpu.memory_space<vmem>>, vector<16x32xf32>
    %c0_118 = arith.constant 0 : index
    %c0_119 = arith.constant 0 : index
    %343 = vector.load %arg22[%c0_118, %c0_119] : memref<32x32xf32, #tpu.memory_space<vmem>>, vector<32x32xf32>
    %cst_120 = arith.constant dense<0.000000e+00> : vector<16x32xf32>
    %344 = tpu.matmul %342, %343, %cst_120 {dimension_numbers = #tpu.dot_dimension_numbers<[1], [0], [0], [1], [0, 0, 1, 1], [], []>} : vector<16x32xf32>, vector<32x32xf32>, vector<16x32xf32> -> vector<16x32xf32>
    %c0_121 = arith.constant 0 : index
    %c0_122 = arith.constant 0 : index
    %345 = vector.load %arg23[%c0_121, %c0_122] : memref<1x32xf32, #tpu.memory_space<vmem>>, vector<1x32xf32>
    %346 = vector.broadcast %345 : vector<1x32xf32> to vector<16x32xf32>
    %347 = arith.addf %344, %346 : vector<16x32xf32>
    %c0_123 = arith.constant 0 : index
    %c0_124 = arith.constant 0 : index
    %348 = vector.load %arg24[%c0_123, %c0_124] : memref<1x32xf32, #tpu.memory_space<vmem>>, vector<1x32xf32>
    %c0_125 = arith.constant 0 : index
    %c0_126 = arith.constant 0 : index
    %349 = vector.load %arg25[%c0_125, %c0_126] : memref<1x32xf32, #tpu.memory_space<vmem>>, vector<1x32xf32>
    %cst_127 = arith.constant dense<0.000000e+00> : vector<16xf32>
    %350 = vector.multi_reduction <add>, %347, %cst_127 [1] : vector<16x32xf32> to vector<16xf32>
    %351 = vector.shape_cast %350 : vector<16xf32> to vector<16x1xf32>
    %cst_128 = arith.constant 3.200000e+01 : f32
    %352 = vector.broadcast %cst_128 : f32 to vector<16x1xf32>
    %353 = arith.divf %351, %352 : vector<16x1xf32>
    %354 = vector.broadcast %353 : vector<16x1xf32> to vector<16x32xf32>
    %355 = arith.subf %347, %354 : vector<16x32xf32>
    %356 = arith.mulf %355, %355 : vector<16x32xf32>
    %cst_129 = arith.constant dense<0.000000e+00> : vector<16xf32>
    %357 = vector.multi_reduction <add>, %356, %cst_129 [1] : vector<16x32xf32> to vector<16xf32>
    %358 = vector.shape_cast %357 : vector<16xf32> to vector<16x1xf32>
    %cst_130 = arith.constant 3.200000e+01 : f32
    %359 = vector.broadcast %cst_130 : f32 to vector<16x1xf32>
    %360 = arith.divf %358, %359 : vector<16x1xf32>
    %361 = vector.broadcast %353 : vector<16x1xf32> to vector<16x32xf32>
    %362 = arith.subf %347, %361 : vector<16x32xf32>
    %cst_131 = arith.constant 9.99999974E-6 : f32
    %363 = vector.broadcast %cst_131 : f32 to vector<16x1xf32>
    %364 = arith.addf %360, %363 : vector<16x1xf32>
    %365 = math.rsqrt %364 : vector<16x1xf32>
    %366 = vector.broadcast %365 : vector<16x1xf32> to vector<16x32xf32>
    %367 = arith.mulf %362, %366 : vector<16x32xf32>
    %368 = vector.broadcast %348 : vector<1x32xf32> to vector<16x32xf32>
    %369 = arith.mulf %367, %368 : vector<16x32xf32>
    %370 = vector.broadcast %349 : vector<1x32xf32> to vector<16x32xf32>
    %371 = arith.addf %369, %370 : vector<16x32xf32>
    %cst_132 = arith.constant 0.000000e+00 : f32
    %372 = vector.broadcast %cst_132 : f32 to vector<16x32xf32>
    %373 = arith.cmpf ogt, %371, %372 : vector<16x32xf32>
    %cst_133 = arith.constant 0.00999999977 : f32
    %374 = vector.broadcast %cst_133 : f32 to vector<16x32xf32>
    %375 = arith.mulf %374, %371 : vector<16x32xf32>
    %376 = arith.select %373, %371, %375 : vector<16x32xi1>, vector<16x32xf32>
    %c0_134 = arith.constant 0 : index
    %c0_135 = arith.constant 0 : index
    %377 = vector.load %arg26[%c0_134, %c0_135] : memref<32x16xf32, #tpu.memory_space<vmem>>, vector<32x16xf32>
    %cst_136 = arith.constant dense<0.000000e+00> : vector<16x16xf32>
    %378 = tpu.matmul %376, %377, %cst_136 {dimension_numbers = #tpu.dot_dimension_numbers<[1], [0], [0], [1], [0, 0, 1, 1], [], []>} : vector<16x32xf32>, vector<32x16xf32>, vector<16x16xf32> -> vector<16x16xf32>
    %c0_137 = arith.constant 0 : index
    %c0_138 = arith.constant 0 : index
    %379 = vector.load %arg27[%c0_137, %c0_138] : memref<1x16xf32, #tpu.memory_space<vmem>>, vector<1x16xf32>
    %380 = vector.broadcast %379 : vector<1x16xf32> to vector<16x16xf32>
    %381 = arith.addf %378, %380 : vector<16x16xf32>
    %c0_139 = arith.constant 0 : index
    %c0_140 = arith.constant 0 : index
    %382 = vector.load %arg28[%c0_139, %c0_140] : memref<1x16xf32, #tpu.memory_space<vmem>>, vector<1x16xf32>
    %c0_141 = arith.constant 0 : index
    %c0_142 = arith.constant 0 : index
    %383 = vector.load %arg29[%c0_141, %c0_142] : memref<1x16xf32, #tpu.memory_space<vmem>>, vector<1x16xf32>
    %cst_143 = arith.constant dense<0.000000e+00> : vector<16xf32>
    %384 = vector.multi_reduction <add>, %381, %cst_143 [1] : vector<16x16xf32> to vector<16xf32>
    %385 = vector.shape_cast %384 : vector<16xf32> to vector<16x1xf32>
    %cst_144 = arith.constant 1.600000e+01 : f32
    %386 = vector.broadcast %cst_144 : f32 to vector<16x1xf32>
    %387 = arith.divf %385, %386 : vector<16x1xf32>
    %388 = vector.broadcast %387 : vector<16x1xf32> to vector<16x16xf32>
    %389 = arith.subf %381, %388 : vector<16x16xf32>
    %390 = arith.mulf %389, %389 : vector<16x16xf32>
    %cst_145 = arith.constant dense<0.000000e+00> : vector<16xf32>
    %391 = vector.multi_reduction <add>, %390, %cst_145 [1] : vector<16x16xf32> to vector<16xf32>
    %392 = vector.shape_cast %391 : vector<16xf32> to vector<16x1xf32>
    %cst_146 = arith.constant 1.600000e+01 : f32
    %393 = vector.broadcast %cst_146 : f32 to vector<16x1xf32>
    %394 = arith.divf %392, %393 : vector<16x1xf32>
    %395 = vector.broadcast %387 : vector<16x1xf32> to vector<16x16xf32>
    %396 = arith.subf %381, %395 : vector<16x16xf32>
    %cst_147 = arith.constant 9.99999974E-6 : f32
    %397 = vector.broadcast %cst_147 : f32 to vector<16x1xf32>
    %398 = arith.addf %394, %397 : vector<16x1xf32>
    %399 = math.rsqrt %398 : vector<16x1xf32>
    %400 = vector.broadcast %399 : vector<16x1xf32> to vector<16x16xf32>
    %401 = arith.mulf %396, %400 : vector<16x16xf32>
    %402 = vector.broadcast %382 : vector<1x16xf32> to vector<16x16xf32>
    %403 = arith.mulf %401, %402 : vector<16x16xf32>
    %404 = vector.broadcast %383 : vector<1x16xf32> to vector<16x16xf32>
    %405 = arith.addf %403, %404 : vector<16x16xf32>
    %cst_148 = arith.constant 0.000000e+00 : f32
    %406 = vector.broadcast %cst_148 : f32 to vector<16x16xf32>
    %407 = arith.cmpf ogt, %405, %406 : vector<16x16xf32>
    %cst_149 = arith.constant 0.00999999977 : f32
    %408 = vector.broadcast %cst_149 : f32 to vector<16x16xf32>
    %409 = arith.mulf %408, %405 : vector<16x16xf32>
    %410 = arith.select %407, %405, %409 : vector<16x16xi1>, vector<16x16xf32>
    %c0_150 = arith.constant 0 : index
    %c0_151 = arith.constant 0 : index
    %411 = vector.load %arg30[%c0_150, %c0_151] : memref<16x4xf32, #tpu.memory_space<vmem>>, vector<16x4xf32>
    %cst_152 = arith.constant dense<0.000000e+00> : vector<16x4xf32>
    %412 = tpu.matmul %410, %411, %cst_152 {dimension_numbers = #tpu.dot_dimension_numbers<[1], [0], [0], [1], [0, 0, 1, 1], [], []>} : vector<16x16xf32>, vector<16x4xf32>, vector<16x4xf32> -> vector<16x4xf32>
    %c0_153 = arith.constant 0 : index
    %c0_154 = arith.constant 0 : index
    %413 = vector.load %arg31[%c0_153, %c0_154] : memref<1x4xf32, #tpu.memory_space<vmem>>, vector<1x4xf32>
    %414 = vector.broadcast %413 : vector<1x4xf32> to vector<16x4xf32>
    %415 = arith.addf %412, %414 : vector<16x4xf32>
    %416 = math.tanh %415 : vector<16x4xf32>
    %c0_155 = arith.constant 0 : index
    %c0_156 = arith.constant 0 : index
    %417 = vector.load %arg32[%c0_155, %c0_156] : memref<16x4xf32, #tpu.memory_space<vmem>>, vector<16x4xf32>
    tpu.vector_store %arg32[%c0_155, %c0_156], %416 {strides = array<i32>} : memref<16x4xf32, #tpu.memory_space<vmem>>, vector<16x4xf32>,
    return
  }
}

</mosaic_0001>

<llo_original>
// kernel: recurrent_policy_forward.1
$region0: #{recurrent_policy_forward.1}
  #allocation0 [shape = 'u32[]', space=smem, size = 0x4, offset = 0x4, fixed_abs, tag = 'smem constant byte address 0x4 - core index']
  #allocation1 [shape = 'u32[144,128]{1,0:T(1,128)}', space=vmem, size = 0x12000, scoped, tag = 'internal scratch']
  #allocation2 [shape = 'f32[16,32]{1,0:T(8,128)}', space=vmem, size = 0x2000, scoped, tag = 'scratch operand']
  %s0 = inlined_call_operand.smem [shape: u32[35], index: -1, kind: input, shape index: {}]
  %s1 = sld [smem:[%s0]]
  %s2 = scalar_lea.smem %s0, 1
  %s3 = sld [smem:[%s2]]
  %s4 = scalar_lea.smem %s0, 2
  %s5 = sld [smem:[%s4]]
  %s6 = scalar_lea.smem %s0, 3
  %s7 = sld [smem:[%s6]]
  %s8 = scalar_lea.smem %s0, 4
  %s9 = sld [smem:[%s8]]
  %s10 = scalar_lea.smem %s0, 5
  %s11 = sld [smem:[%s10]]
  %s12 = scalar_lea.smem %s0, 6
  %s13 = sld [smem:[%s12]]
  %s14 = scalar_lea.smem %s0, 7
  %s15 = sld [smem:[%s14]]
  %s16 = scalar_lea.smem %s0, 8
  %s17 = sld [smem:[%s16]]
  %s18 = scalar_lea.smem %s0, 9
  %s19 = sld [smem:[%s18]]
  %s20 = scalar_lea.smem %s0, 10
  %s21 = sld [smem:[%s20]]
  %s22 = scalar_lea.smem %s0, 11
  %s23 = sld [smem:[%s22]]
  %s24 = scalar_lea.smem %s0, 12
  %s25 = sld [smem:[%s24]]
  %s26 = scalar_lea.smem %s0, 13
  %s27 = sld [smem:[%s26]]
  %s28 = scalar_lea.smem %s0, 14
  %s29 = sld [smem:[%s28]]
  %s30 = scalar_lea.smem %s0, 15
  %s31 = sld [smem:[%s30]]
  %s32 = scalar_lea.smem %s0, 16
  %s33 = sld [smem:[%s32]]
  %s34 = scalar_lea.smem %s0, 17
  %s35 = sld [smem:[%s34]]
  %s36 = scalar_lea.smem %s0, 18
  %s37 = sld [smem:[%s36]]
  %s38 = scalar_lea.smem %s0, 19
  %s39 = sld [smem:[%s38]]
  %s40 = scalar_lea.smem %s0, 20
  %s41 = sld [smem:[%s40]]
  %s42 = scalar_lea.smem %s0, 21
  %s43 = sld [smem:[%s42]]
  %s44 = scalar_lea.smem %s0, 22
  %s45 = sld [smem:[%s44]]
  %s46 = scalar_lea.smem %s0, 23
  %s47 = sld [smem:[%s46]]
  %s48 = scalar_lea.smem %s0, 24
  %s49 = sld [smem:[%s48]]
  %s50 = scalar_lea.smem %s0, 25
  %s51 = sld [smem:[%s50]]
  %s52 = scalar_lea.smem %s0, 26
  %s53 = sld [smem:[%s52]]
  %s54 = scalar_lea.smem %s0, 27
  %s55 = sld [smem:[%s54]]
  %s56 = scalar_lea.smem %s0, 28
  %s57 = sld [smem:[%s56]]
  %s58 = scalar_lea.smem %s0, 29
  %s59 = sld [smem:[%s58]]
  %s60 = scalar_lea.smem %s0, 30
  %s61 = sld [smem:[%s60]]
  %s62 = scalar_lea.smem %s0, 31
  %s63 = sld [smem:[%s62]]
  %s64 = scalar_lea.smem %s0, 32
  %s65 = sld [smem:[%s64]]
  %s66 = scalar_lea.smem %s0, 33
  %s67 = sld [smem:[%s66]]
  %s68 = scalar_lea.smem %s0, 34
  %s69 = sld [smem:[%s68]]
  %70 = xla_tuple %s65, %s67, %s69
  %s71 = sld [smem:[#allocation0]]
  $region254: #{recurrent_policy_forward.1} parent=0
    _
  %s73 = ssub.s32 1, %s71
  %s74 = scalar_select 0, %s73, %s71
  $region1: #{recurrent_policy_forward.1} parent=0
    #allocation3 [shape = 'u8[2097152]{0}', space=vmem, size = 0x200000, scoped, tag = 'input window, operand 2, single buffered']
    #allocation4 [shape = 's32[1]{0}', space=sflag, size = 0x4, scoped, tag = 'scoped memory for recurrent_policy_forward.1']
    #allocation5 [shape = 's32[1]{0}', space=sflag, size = 0x4, scoped, tag = 'scoped memory for recurrent_policy_forward.1']
    #allocation6 [shape = 'u8[4096]{0}', space=vmem, size = 0x1000, scoped, tag = 'input window, operand 3, single buffered']
    #allocation7 [shape = 's32[1]{0}', space=sflag, size = 0x4, scoped, tag = 'scoped memory for recurrent_policy_forward.1']
    #allocation8 [shape = 'u8[65536]{0}', space=vmem, size = 0x10000, scoped, tag = 'input window, operand 5, single buffered']
    #allocation9 [shape = 'u8[512]{0}', space=vmem, size = 0x400, scoped, tag = 'input window, operand 6, single buffered']
    #allocation10 [shape = 's32[1]{0}', space=sflag, size = 0x4, scoped, tag = 'scoped memory for recurrent_policy_forward.1']
    #allocation11 [shape = 'u8[512]{0}', space=vmem, size = 0x400, scoped, tag = 'input window, operand 7, single buffered']
    #allocation12 [shape = 'u8[2097152]{0}', space=vmem, size = 0x200000, scoped, tag = 'input window, operand 8, single buffered']
    #allocation13 [shape = 's32[1]{0}', space=sflag, size = 0x4, scoped, tag = 'scoped memory for recurrent_policy_forward.1']
    #allocation14 [shape = 'u8[2048]{0}', space=vmem, size = 0x800, scoped, tag = 'input window, operand 9, single buffered']
    #allocation15 [shape = 'u8[65536]{0}', space=vmem, size = 0x10000, scoped, tag = 'input window, operand 11, single buffered']
    #allocation16 [shape = 's32[1]{0}', space=sflag, size = 0x4, scoped, tag = 'scoped memory for recurrent_policy_forward.1']
    #allocation17 [shape = 'u8[512]{0}', space=vmem, size = 0x400, scoped, tag = 'input window, operand 12, single buffered']
    #allocation18 [shape = 'u8[512]{0}', space=vmem, size = 0x400, scoped, tag = 'input window, operand 13, single buffered']
    #allocation19 [shape = 's32[1]{0}', space=sflag, size = 0x4, scoped, tag = 'scoped memory for recurrent_policy_forward.1']
    #allocation20 [shape = 'u8[512]{0}', space=vmem, size = 0x400, scoped, tag = 'input window, operand 15, single buffered']
    #allocation21 [shape = 'u8[4096]{0}', space=vmem, size = 0x1000, scoped, tag = 'input window, operand 16, single buffered']
    #allocation22 [shape = 's32[1]{0}', space=sflag, size = 0x4, scoped, tag = 'scoped memory for recurrent_policy_forward.1']
    #allocation23 [shape = 'u8[8192]{0}', space=vmem, size = 0x2000, scoped, tag = 'input window, operand 17, single buffered']
    #allocation24 [shape = 'u8[512]{0}', space=vmem, size = 0x400, scoped, tag = 'input window, operand 18, single buffered']
    #allocation25 [shape = 's32[1]{0}', space=sflag, size = 0x4, scoped, tag = 'scoped memory for recurrent_policy_forward.1']
    #allocation26 [shape = 'u8[16384]{0}', space=vmem, size = 0x4000, scoped, tag = 'input window, operand 19, single buffered']
    #allocation27 [shape = 'u8[1024]{0}', space=vmem, size = 0x400, scoped, tag = 'input window, operand 20, single buffered']
    #allocation28 [shape = 's32[1]{0}', space=sflag, size = 0x4, scoped, tag = 'scoped memory for recurrent_policy_forward.1']
    #allocation29 [shape = 'u8[1024]{0}', space=vmem, size = 0x400, scoped, tag = 'input window, operand 21, single buffered']
    #allocation30 [shape = 'u8[16384]{0}', space=vmem, size = 0x4000, scoped, tag = 'input window, operand 22, single buffered']
    #allocation31 [shape = 's32[1]{0}', space=sflag, size = 0x4, scoped, tag = 'scoped memory for recurrent_policy_forward.1']
    #allocation32 [shape = 'u8[512]{0}', space=vmem, size = 0x400, scoped, tag = 'input window, operand 23, single buffered']
    #allocation33 [shape = 'u8[512]{0}', space=vmem, size = 0x400, scoped, tag = 'input window, operand 24, single buffered']
    #allocation34 [shape = 's32[1]{0}', space=sflag, size = 0x4, scoped, tag = 'scoped memory for recurrent_policy_forward.1']
    #allocation35 [shape = 'u8[512]{0}', space=vmem, size = 0x400, scoped, tag = 'input window, operand 25, single buffered']
    #allocation36 [shape = 'u8[512]{0}', space=vmem, size = 0x400, scoped, tag = 'input window, operand 27, single buffered']
    #allocation37 [shape = 's32[1]{0}', space=sflag, size = 0x4, scoped, tag = 'scoped memory for recurrent_policy_forward.1']
    #allocation38 [shape = 'u8[512]{0}', space=vmem, size = 0x400, scoped, tag = 'input window, operand 28, single buffered']
    #allocation39 [shape = 'u8[512]{0}', space=vmem, size = 0x400, scoped, tag = 'input window, operand 29, single buffered']
    #allocation40 [shape = 's32[1]{0}', space=sflag, size = 0x4, scoped, tag = 'scoped memory for recurrent_policy_forward.1']
    #allocation41 [shape = 'u8[512]{0}', space=vmem, size = 0x400, scoped, tag = 'input window, operand 31, single buffered']
    #allocation42 [shape = 'u8[1024]{0}', space=vmem, size = 0x400, scoped, tag = 'output window, operand 1, single buffered']
    #allocation43 [shape = 'u8[1024]{0}', space=vmem, size = 0x400, scoped, tag = 'output window, operand 2, single buffered']
    #allocation44 [shape = 's32[1]{0}', space=sflag, size = 0x4, scoped, tag = 'scoped memory for recurrent_policy_forward.1']
    %75 = vsyncpa [#allocation4], 0
    %76 = vsyncpa [#allocation7], 0
    %77 = vsyncpa [#allocation10], 0
    %78 = vsyncpa [#allocation13], 0
    %79 = vsyncpa [#allocation16], 0
    %80 = vsyncpa [#allocation19], 0
    %81 = vsyncpa [#allocation22], 0
    %82 = vsyncpa [#allocation25], 0
    %83 = vsyncpa [#allocation28], 0
    %84 = vsyncpa [#allocation31], 0
    %85 = vsyncpa [#allocation34], 0
    %86 = vsyncpa [#allocation37], 0
    %87 = vsyncpa [#allocation40], 0
    %88 = vsyncpa [#allocation5], 0
    %89 = vsyncpa [#allocation44], 0
    // Predicated region
    $region2: #{recurrent_policy_forward.1} parent=1 // pred_check
      _
    $region3: #{recurrent_policy_forward.1} parent=1 // pred_check_branch
      %91 = sbr.rel (0) target = $region5
    $region4: #{recurrent_policy_forward.1} parent=1 // pred_region
      _
    $region5: #{recurrent_policy_forward.1} parent=1 // pred_fallthru
      _
    // Predicated region
    $region6: #{recurrent_policy_forward.1} parent=1 // pred_check
      _
    $region7: #{recurrent_policy_forward.1} parent=1 // pred_check_branch
      %93 = sbr.rel (0) target = $region9
    $region8: #{recurrent_policy_forward.1} parent=1 // pred_region
      _
    $region9: #{recurrent_policy_forward.1} parent=1 // pred_fallthru
      _
    // Predicated region
    $region10: #{recurrent_policy_forward.1} parent=1 // pred_check
      _
    $region11: #{recurrent_policy_forward.1} parent=1 // pred_check_branch
      %95 = sbr.rel (0) target = $region13
    $region12: #{recurrent_policy_forward.1} parent=1 // pred_region
      %s97 = ssub.s32 65536, 65536
      %98 = vsyncadd [#allocation4], %s97
      %s99 = sshll.u32 [#allocation3], 4
      %s100 = int_to_ptr.vmem [resolvable:$true] %s99
      %105 = dma.hbm_to_vmem [thread:$0]  %s5, 65536, %s100, [#allocation4], 1024, 1024, 64
    $region13: #{recurrent_policy_forward.1} parent=1 // pred_fallthru
      _
    // Predicated region
    $region14: #{recurrent_policy_forward.1} parent=1 // pred_check
      _
    $region15: #{recurrent_policy_forward.1} parent=1 // pred_check_branch
      %107 = sbr.rel (0) target = $region17
    $region16: #{recurrent_policy_forward.1} parent=1 // pred_region
      %s109 = ssub.s32 128, 128
      %110 = vsyncadd [#allocation7], %s109
      %s112 = sshll.u32 [#allocation6], 4
      %s113 = int_to_ptr.vmem [resolvable:$true] %s112
      %115 = dma.hbm_to_vmem [thread:$0]  %s7, 128, %s113, [#allocation7]
    $region17: #{recurrent_policy_forward.1} parent=1 // pred_fallthru
      _
    // Predicated region
    $region18: #{recurrent_policy_forward.1} parent=1 // pred_check
      _
    $region19: #{recurrent_policy_forward.1} parent=1 // pred_check_branch
      %117 = sbr.rel (0) target = $region21
    $region20: #{recurrent_policy_forward.1} parent=1 // pred_region
      _
    $region21: #{recurrent_policy_forward.1} parent=1 // pred_fallthru
      _
    // Predicated region
    $region22: #{recurrent_policy_forward.1} parent=1 // pred_check
      _
    $region23: #{recurrent_policy_forward.1} parent=1 // pred_check_branch
      %119 = sbr.rel (0) target = $region25
    $region24: #{recurrent_policy_forward.1} parent=1 // pred_region
      %s121 = ssub.s32 2048, 2048
      %122 = vsyncadd [#allocation7], %s121
      %s123 = sshll.u32 [#allocation8], 4
      %s124 = int_to_ptr.vmem [resolvable:$true] %s123
      %129 = dma.hbm_to_vmem [thread:$0]  %s11, 2048, %s124, [#allocation7], 1024, 1024, 64
    $region25: #{recurrent_policy_forward.1} parent=1 // pred_fallthru
      _
    // Predicated region
    $region26: #{recurrent_policy_forward.1} parent=1 // pred_check
      _
    $region27: #{recurrent_policy_forward.1} parent=1 // pred_check_branch
      %131 = sbr.rel (0) target = $region29
    $region28: #{recurrent_policy_forward.1} parent=1 // pred_region
      %s133 = ssub.s32 16, 16
      %134 = vsyncadd [#allocation10], %s133
      %s136 = sshll.u32 [#allocation9], 4
      %s137 = int_to_ptr.vmem [resolvable:$true] %s136
      %139 = dma.hbm_to_vmem [thread:$0]  %s13, 16, %s137, [#allocation10]
    $region29: #{recurrent_policy_forward.1} parent=1 // pred_fallthru
      _
    // Predicated region
    $region30: #{recurrent_policy_forward.1} parent=1 // pred_check
      _
    $region31: #{recurrent_policy_forward.1} parent=1 // pred_check_branch
      %141 = sbr.rel (0) target = $region33
    $region32: #{recurrent_policy_forward.1} parent=1 // pred_region
      %s143 = ssub.s32 16, 16
      %144 = vsyncadd [#allocation10], %s143
      %s146 = sshll.u32 [#allocation11], 4
      %s147 = int_to_ptr.vmem [resolvable:$true] %s146
      %149 = dma.hbm_to_vmem [thread:$0]  %s15, 16, %s147, [#allocation10]
    $region33: #{recurrent_policy_forward.1} parent=1 // pred_fallthru
      _
    // Predicated region
    $region34: #{recurrent_policy_forward.1} parent=1 // pred_check
      _
    $region35: #{recurrent_policy_forward.1} parent=1 // pred_check_branch
      %151 = sbr.rel (0) target = $region37
    $region36: #{recurrent_policy_forward.1} parent=1 // pred_region
      %s153 = ssub.s32 65536, 65536
      %154 = vsyncadd [#allocation13], %s153
      %s155 = sshll.u32 [#allocation12], 4
      %s156 = int_to_ptr.vmem [resolvable:$true] %s155
      %161 = dma.hbm_to_vmem [thread:$0]  %s17, 65536, %s156, [#allocation13], 512, 512, 32
    $region37: #{recurrent_policy_forward.1} parent=1 // pred_fallthru
      _
    // Predicated region
    $region38: #{recurrent_policy_forward.1} parent=1 // pred_check
      _
    $region39: #{recurrent_policy_forward.1} parent=1 // pred_check_branch
      %163 = sbr.rel (0) target = $region41
    $region40: #{recurrent_policy_forward.1} parent=1 // pred_region
      %s165 = ssub.s32 64, 64
      %166 = vsyncadd [#allocation13], %s165
      %s168 = sshll.u32 [#allocation14], 4
      %s169 = int_to_ptr.vmem [resolvable:$true] %s168
      %171 = dma.hbm_to_vmem [thread:$0]  %s19, 64, %s169, [#allocation13]
    $region41: #{recurrent_policy_forward.1} parent=1 // pred_fallthru
      _
    // Predicated region
    $region42: #{recurrent_policy_forward.1} parent=1 // pred_check
      _
    $region43: #{recurrent_policy_forward.1} parent=1 // pred_check_branch
      %173 = sbr.rel (0) target = $region45
    $region44: #{recurrent_policy_forward.1} parent=1 // pred_region
      _
    $region45: #{recurrent_policy_forward.1} parent=1 // pred_fallthru
      _
    // Predicated region
    $region46: #{recurrent_policy_forward.1} parent=1 // pred_check
      _
    $region47: #{recurrent_policy_forward.1} parent=1 // pred_check_branch
      %175 = sbr.rel (0) target = $region49
    $region48: #{recurrent_policy_forward.1} parent=1 // pred_region
      %s177 = ssub.s32 2048, 2048
      %178 = vsyncadd [#allocation16], %s177
      %s179 = sshll.u32 [#allocation15], 4
      %s180 = int_to_ptr.vmem [resolvable:$true] %s179
      %185 = dma.hbm_to_vmem [thread:$0]  %s23, 2048, %s180, [#allocation16], 512, 512, 32
    $region49: #{recurrent_policy_forward.1} parent=1 // pred_fallthru
      _
    // Predicated region
    $region50: #{recurrent_policy_forward.1} parent=1 // pred_check
      _
    $region51: #{recurrent_policy_forward.1} parent=1 // pred_check_branch
      %187 = sbr.rel (0) target = $region53
    $region52: #{recurrent_policy_forward.1} parent=1 // pred_region
      %s189 = ssub.s32 16, 16
      %190 = vsyncadd [#allocation16], %s189
      %s192 = sshll.u32 [#allocation17], 4
      %s193 = int_to_ptr.vmem [resolvable:$true] %s192
      %195 = dma.hbm_to_vmem [thread:$0]  %s25, 16, %s193, [#allocation16]
    $region53: #{recurrent_policy_forward.1} parent=1 // pred_fallthru
      _
    // Predicated region
    $region54: #{recurrent_policy_forward.1} parent=1 // pred_check
      _
    $region55: #{recurrent_policy_forward.1} parent=1 // pred_check_branch
      %197 = sbr.rel (0) target = $region57
    $region56: #{recurrent_policy_forward.1} parent=1 // pred_region
      %s199 = ssub.s32 16, 16
      %200 = vsyncadd [#allocation19], %s199
      %s202 = sshll.u32 [#allocation18], 4
      %s203 = int_to_ptr.vmem [resolvable:$true] %s202
      %205 = dma.hbm_to_vmem [thread:$0]  %s27, 16, %s203, [#allocation19]
    $region57: #{recurrent_policy_forward.1} parent=1 // pred_fallthru
      _
    // Predicated region
    $region58: #{recurrent_policy_forward.1} parent=1 // pred_check
      _
    $region59: #{recurrent_policy_forward.1} parent=1 // pred_check_branch
      %207 = sbr.rel (0) target = $region61
    $region60: #{recurrent_policy_forward.1} parent=1 // pred_region
      _
    $region61: #{recurrent_policy_forward.1} parent=1 // pred_fallthru
      _
    // Predicated region
    $region62: #{recurrent_policy_forward.1} parent=1 // pred_check
      _
    $region63: #{recurrent_policy_forward.1} parent=1 // pred_check_branch
      %209 = sbr.rel (0) target = $region65
    $region64: #{recurrent_policy_forward.1} parent=1 // pred_region
      %s211 = ssub.s32 16, 16
      %212 = vsyncadd [#allocation19], %s211
      %s214 = sshll.u32 [#allocation20], 4
      %s215 = int_to_ptr.vmem [resolvable:$true] %s214
      %217 = dma.hbm_to_vmem [thread:$0]  %s31, 16, %s215, [#allocation19]
    $region65: #{recurrent_policy_forward.1} parent=1 // pred_fallthru
      _
    // Predicated region
    $region66: #{recurrent_policy_forward.1} parent=1 // pred_check
      _
    $region67: #{recurrent_policy_forward.1} parent=1 // pred_check_branch
      %219 = sbr.rel (0) target = $region69
    $region68: #{recurrent_policy_forward.1} parent=1 // pred_region
      %s221 = ssub.s32 128, 128
      %222 = vsyncadd [#allocation22], %s221
      %s224 = sshll.u32 [#allocation21], 4
      %s225 = int_to_ptr.vmem [resolvable:$true] %s224
      %227 = dma.hbm_to_vmem [thread:$0]  %s33, 128, %s225, [#allocation22]
    $region69: #{recurrent_policy_forward.1} parent=1 // pred_fallthru
      _
    // Predicated region
    $region70: #{recurrent_policy_forward.1} parent=1 // pred_check
      _
    $region71: #{recurrent_policy_forward.1} parent=1 // pred_check_branch
      %229 = sbr.rel (0) target = $region73
    $region72: #{recurrent_policy_forward.1} parent=1 // pred_region
      %s231 = ssub.s32 256, 256
      %232 = vsyncadd [#allocation22], %s231
      %s233 = sshll.u32 [#allocation23], 4
      %s234 = int_to_ptr.vmem [resolvable:$true] %s233
      %239 = dma.hbm_to_vmem [thread:$0]  %s35, 256, %s234, [#allocation22], 128, 128, 8
    $region73: #{recurrent_policy_forward.1} parent=1 // pred_fallthru
      _
    // Predicated region
    $region74: #{recurrent_policy_forward.1} parent=1 // pred_check
      _
    $region75: #{recurrent_policy_forward.1} parent=1 // pred_check_branch
      %241 = sbr.rel (0) target = $region77
    $region76: #{recurrent_policy_forward.1} parent=1 // pred_region
      %s243 = ssub.s32 16, 16
      %244 = vsyncadd [#allocation25], %s243
      %s246 = sshll.u32 [#allocation24], 4
      %s247 = int_to_ptr.vmem [resolvable:$true] %s246
      %249 = dma.hbm_to_vmem [thread:$0]  %s37, 16, %s247, [#allocation25]
    $region77: #{recurrent_policy_forward.1} parent=1 // pred_fallthru
      _
    // Predicated region
    $region78: #{recurrent_policy_forward.1} parent=1 // pred_check
      _
    $region79: #{recurrent_policy_forward.1} parent=1 // pred_check_branch
      %251 = sbr.rel (0) target = $region81
    $region80: #{recurrent_policy_forward.1} parent=1 // pred_region
      %s253 = ssub.s32 512, 512
      %254 = vsyncadd [#allocation25], %s253
      %s255 = sshll.u32 [#allocation26], 4
      %s256 = int_to_ptr.vmem [resolvable:$true] %s255
      %261 = dma.hbm_to_vmem [thread:$0]  %s39, 512, %s256, [#allocation25], 128, 128, 8
    $region81: #{recurrent_policy_forward.1} parent=1 // pred_fallthru
      _
    // Predicated region
    $region82: #{recurrent_policy_forward.1} parent=1 // pred_check
      _
    $region83: #{recurrent_policy_forward.1} parent=1 // pred_check_branch
      %263 = sbr.rel (0) target = $region85
    $region84: #{recurrent_policy_forward.1} parent=1 // pred_region
      %s265 = ssub.s32 32, 32
      %266 = vsyncadd [#allocation28], %s265
      %s268 = sshll.u32 [#allocation27], 4
      %s269 = int_to_ptr.vmem [resolvable:$true] %s268
      %271 = dma.hbm_to_vmem [thread:$0]  %s41, 32, %s269, [#allocation28]
    $region85: #{recurrent_policy_forward.1} parent=1 // pred_fallthru
      _
    // Predicated region
    $region86: #{recurrent_policy_forward.1} parent=1 // pred_check
      _
    $region87: #{recurrent_policy_forward.1} parent=1 // pred_check_branch
      %273 = sbr.rel (0) target = $region89
    $region88: #{recurrent_policy_forward.1} parent=1 // pred_region
      %s275 = ssub.s32 32, 32
      %276 = vsyncadd [#allocation28], %s275
      %s278 = sshll.u32 [#allocation29], 4
      %s279 = int_to_ptr.vmem [resolvable:$true] %s278
      %281 = dma.hbm_to_vmem [thread:$0]  %s43, 32, %s279, [#allocation28]
    $region89: #{recurrent_policy_forward.1} parent=1 // pred_fallthru
      _
    // Predicated region
    $region90: #{recurrent_policy_forward.1} parent=1 // pred_check
      _
    $region91: #{recurrent_policy_forward.1} parent=1 // pred_check_branch
      %283 = sbr.rel (0) target = $region93
    $region92: #{recurrent_policy_forward.1} parent=1 // pred_region
      %s285 = ssub.s32 512, 512
      %286 = vsyncadd [#allocation31], %s285
      %s287 = sshll.u32 [#allocation30], 4
      %s288 = int_to_ptr.vmem [resolvable:$true] %s287
      %293 = dma.hbm_to_vmem [thread:$0]  %s45, 512, %s288, [#allocation31], 128, 128, 8
    $region93: #{recurrent_policy_forward.1} parent=1 // pred_fallthru
      _
    // Predicated region
    $region94: #{recurrent_policy_forward.1} parent=1 // pred_check
      _
    $region95: #{recurrent_policy_forward.1} parent=1 // pred_check_branch
      %295 = sbr.rel (0) target = $region97
    $region96: #{recurrent_policy_forward.1} parent=1 // pred_region
      %s297 = ssub.s32 16, 16
      %298 = vsyncadd [#allocation31], %s297
      %s300 = sshll.u32 [#allocation32], 4
      %s301 = int_to_ptr.vmem [resolvable:$true] %s300
      %303 = dma.hbm_to_vmem [thread:$0]  %s47, 16, %s301, [#allocation31]
    $region97: #{recurrent_policy_forward.1} parent=1 // pred_fallthru
      _
    // Predicated region
    $region98: #{recurrent_policy_forward.1} parent=1 // pred_check
      _
    $region99: #{recurrent_policy_forward.1} parent=1 // pred_check_branch
      %305 = sbr.rel (0) target = $region101
    $region100: #{recurrent_policy_forward.1} parent=1 // pred_region
      %s307 = ssub.s32 16, 16
      %308 = vsyncadd [#allocation34], %s307
      %s310 = sshll.u32 [#allocation33], 4
      %s311 = int_to_ptr.vmem [resolvable:$true] %s310
      %313 = dma.hbm_to_vmem [thread:$0]  %s49, 16, %s311, [#allocation34]
    $region101: #{recurrent_policy_forward.1} parent=1 // pred_fallthru
      _
    // Predicated region
    $region102: #{recurrent_policy_forward.1} parent=1 // pred_check
      _
    $region103: #{recurrent_policy_forward.1} parent=1 // pred_check_branch
      %315 = sbr.rel (0) target = $region105
    $region104: #{recurrent_policy_forward.1} parent=1 // pred_region
      %s317 = ssub.s32 16, 16
      %318 = vsyncadd [#allocation34], %s317
      %s320 = sshll.u32 [#allocation35], 4
      %s321 = int_to_ptr.vmem [resolvable:$true] %s320
      %323 = dma.hbm_to_vmem [thread:$0]  %s51, 16, %s321, [#allocation34]
    $region105: #{recurrent_policy_forward.1} parent=1 // pred_fallthru
      _
    // Predicated region
    $region106: #{recurrent_policy_forward.1} parent=1 // pred_check
      _
    $region107: #{recurrent_policy_forward.1} parent=1 // pred_check_branch
      %325 = sbr.rel (0) target = $region109
    $region108: #{recurrent_policy_forward.1} parent=1 // pred_region
      _
    $region109: #{recurrent_policy_forward.1} parent=1 // pred_fallthru
      _
    // Predicated region
    $region110: #{recurrent_policy_forward.1} parent=1 // pred_check
      _
    $region111: #{recurrent_policy_forward.1} parent=1 // pred_check_branch
      %327 = sbr.rel (0) target = $region113
    $region112: #{recurrent_policy_forward.1} parent=1 // pred_region
      %s329 = ssub.s32 16, 16
      %330 = vsyncadd [#allocation37], %s329
      %s332 = sshll.u32 [#allocation36], 4
      %s333 = int_to_ptr.vmem [resolvable:$true] %s332
      %335 = dma.hbm_to_vmem [thread:$0]  %s55, 16, %s333, [#allocation37]
    $region113: #{recurrent_policy_forward.1} parent=1 // pred_fallthru
      _
    // Predicated region
    $region114: #{recurrent_policy_forward.1} parent=1 // pred_check
      _
    $region115: #{recurrent_policy_forward.1} parent=1 // pred_check_branch
      %337 = sbr.rel (0) target = $region117
    $region116: #{recurrent_policy_forward.1} parent=1 // pred_region
      %s339 = ssub.s32 16, 16
      %340 = vsyncadd [#allocation37], %s339
      %s342 = sshll.u32 [#allocation38], 4
      %s343 = int_to_ptr.vmem [resolvable:$true] %s342
      %345 = dma.hbm_to_vmem [thread:$0]  %s57, 16, %s343, [#allocation37]
    $region117: #{recurrent_policy_forward.1} parent=1 // pred_fallthru
      _
    // Predicated region
    $region118: #{recurrent_policy_forward.1} parent=1 // pred_check
      _
    $region119: #{recurrent_policy_forward.1} parent=1 // pred_check_branch
      %347 = sbr.rel (0) target = $region121
    $region120: #{recurrent_policy_forward.1} parent=1 // pred_region
      %s349 = ssub.s32 16, 16
      %350 = vsyncadd [#allocation40], %s349
      %s352 = sshll.u32 [#allocation39], 4
      %s353 = int_to_ptr.vmem [resolvable:$true] %s352
      %355 = dma.hbm_to_vmem [thread:$0]  %s59, 16, %s353, [#allocation40]
    $region121: #{recurrent_policy_forward.1} parent=1 // pred_fallthru
      _
    // Predicated region
    $region122: #{recurrent_policy_forward.1} parent=1 // pred_check
      _
    $region123: #{recurrent_policy_forward.1} parent=1 // pred_check_branch
      %357 = sbr.rel (0) target = $region125
    $region124: #{recurrent_policy_forward.1} parent=1 // pred_region
      _
    $region125: #{recurrent_policy_forward.1} parent=1 // pred_fallthru
      _
    // Predicated region
    $region126: #{recurrent_policy_forward.1} parent=1 // pred_check
      _
    $region127: #{recurrent_policy_forward.1} parent=1 // pred_check_branch
      %359 = sbr.rel (0) target = $region129
    $region128: #{recurrent_policy_forward.1} parent=1 // pred_region
      %s361 = ssub.s32 16, 16
      %362 = vsyncadd [#allocation40], %s361
      %s364 = sshll.u32 [#allocation41], 4
      %s365 = int_to_ptr.vmem [resolvable:$true] %s364
      %367 = dma.hbm_to_vmem [thread:$0]  %s63, 16, %s365, [#allocation40]
    $region129: #{recurrent_policy_forward.1} parent=1 // pred_fallthru
      _
    // Predicated region
    $region130: #{recurrent_policy_forward.1} parent=1 // pred_check
      _
    $region131: #{recurrent_policy_forward.1} parent=1 // pred_check_branch
      %369 = sbr.rel (0) target = $region133
    $region132: #{recurrent_policy_forward.1} parent=1 // pred_region
      %370 = dma.done [#allocation4], 65536
    $region133: #{recurrent_policy_forward.1} parent=1 // pred_fallthru
      _
    // Predicated region
    $region134: #{recurrent_policy_forward.1} parent=1 // pred_check
      _
    $region135: #{recurrent_policy_forward.1} parent=1 // pred_check_branch
      %372 = sbr.rel (0) target = $region137
    $region136: #{recurrent_policy_forward.1} parent=1 // pred_region
      %373 = dma.done [#allocation7], 128
    $region137: #{recurrent_policy_forward.1} parent=1 // pred_fallthru
      _
    // Predicated region
    $region138: #{recurrent_policy_forward.1} parent=1 // pred_check
      _
    $region139: #{recurrent_policy_forward.1} parent=1 // pred_check_branch
      %375 = sbr.rel (0) target = $region141
    $region140: #{recurrent_policy_forward.1} parent=1 // pred_region
      %376 = dma.done [#allocation7], 2048
    $region141: #{recurrent_policy_forward.1} parent=1 // pred_fallthru
      _
    // Predicated region
    $region142: #{recurrent_policy_forward.1} parent=1 // pred_check
      _
    $region143: #{recurrent_policy_forward.1} parent=1 // pred_check_branch
      %378 = sbr.rel (0) target = $region145
    $region144: #{recurrent_policy_forward.1} parent=1 // pred_region
      %379 = dma.done [#allocation10], 16
    $region145: #{recurrent_policy_forward.1} parent=1 // pred_fallthru
      _
    // Predicated region
    $region146: #{recurrent_policy_forward.1} parent=1 // pred_check
      _
    $region147: #{recurrent_policy_forward.1} parent=1 // pred_check_branch
      %381 = sbr.rel (0) target = $region149
    $region148: #{recurrent_policy_forward.1} parent=1 // pred_region
      %382 = dma.done [#allocation10], 16
    $region149: #{recurrent_policy_forward.1} parent=1 // pred_fallthru
      _
    // Predicated region
    $region150: #{recurrent_policy_forward.1} parent=1 // pred_check
      _
    $region151: #{recurrent_policy_forward.1} parent=1 // pred_check_branch
      %384 = sbr.rel (0) target = $region153
    $region152: #{recurrent_policy_forward.1} parent=1 // pred_region
      %385 = dma.done [#allocation13], 65536
    $region153: #{recurrent_policy_forward.1} parent=1 // pred_fallthru
      _
    // Predicated region
    $region154: #{recurrent_policy_forward.1} parent=1 // pred_check
      _
    $region155: #{recurrent_policy_forward.1} parent=1 // pred_check_branch
      %387 = sbr.rel (0) target = $region157
    $region156: #{recurrent_policy_forward.1} parent=1 // pred_region
      %388 = dma.done [#allocation13], 64
    $region157: #{recurrent_policy_forward.1} parent=1 // pred_fallthru
      _
    // Predicated region
    $region158: #{recurrent_policy_forward.1} parent=1 // pred_check
      _
    $region159: #{recurrent_policy_forward.1} parent=1 // pred_check_branch
      %390 = sbr.rel (0) target = $region161
    $region160: #{recurrent_policy_forward.1} parent=1 // pred_region
      %391 = dma.done [#allocation16], 2048
    $region161: #{recurrent_policy_forward.1} parent=1 // pred_fallthru
      _
    // Predicated region
    $region162: #{recurrent_policy_forward.1} parent=1 // pred_check
      _
    $region163: #{recurrent_policy_forward.1} parent=1 // pred_check_branch
      %393 = sbr.rel (0) target = $region165
    $region164: #{recurrent_policy_forward.1} parent=1 // pred_region
      %394 = dma.done [#allocation16], 16
    $region165: #{recurrent_policy_forward.1} parent=1 // pred_fallthru
      _
    // Predicated region
    $region166: #{recurrent_policy_forward.1} parent=1 // pred_check
      _
    $region167: #{recurrent_policy_forward.1} parent=1 // pred_check_branch
      %396 = sbr.rel (0) target = $region169
    $region168: #{recurrent_policy_forward.1} parent=1 // pred_region
      %397 = dma.done [#allocation19], 16
    $region169: #{recurrent_policy_forward.1} parent=1 // pred_fallthru
      _
    // Predicated region
    $region170: #{recurrent_policy_forward.1} parent=1 // pred_check
      _
    $region171: #{recurrent_policy_forward.1} parent=1 // pred_check_branch
      %399 = sbr.rel (0) target = $region173
    $region172: #{recurrent_policy_forward.1} parent=1 // pred_region
      %400 = dma.done [#allocation19], 16
    $region173: #{recurrent_policy_forward.1} parent=1 // pred_fallthru
      _
    // Predicated region
    $region174: #{recurrent_policy_forward.1} parent=1 // pred_check
      _
    $region175: #{recurrent_policy_forward.1} parent=1 // pred_check_branch
      %402 = sbr.rel (0) target = $region177
    $region176: #{recurrent_policy_forward.1} parent=1 // pred_region
      %403 = dma.done [#allocation22], 128
    $region177: #{recurrent_policy_forward.1} parent=1 // pred_fallthru
      _
    // Predicated region
    $region178: #{recurrent_policy_forward.1} parent=1 // pred_check
      _
    $region179: #{recurrent_policy_forward.1} parent=1 // pred_check_branch
      %405 = sbr.rel (0) target = $region181
    $region180: #{recurrent_policy_forward.1} parent=1 // pred_region
      %406 = dma.done [#allocation22], 256
    $region181: #{recurrent_policy_forward.1} parent=1 // pred_fallthru
      _
    // Predicated region
    $region182: #{recurrent_policy_forward.1} parent=1 // pred_check
      _
    $region183: #{recurrent_policy_forward.1} parent=1 // pred_check_branch
      %408 = sbr.rel (0) target = $region185
    $region184: #{recurrent_policy_forward.1} parent=1 // pred_region
      %409 = dma.done [#allocation25], 16
    $region185: #{recurrent_policy_forward.1} parent=1 // pred_fallthru
      _
    // Predicated region
    $region186: #{recurrent_policy_forward.1} parent=1 // pred_check
      _
    $region187: #{recurrent_policy_forward.1} parent=1 // pred_check_branch
      %411 = sbr.rel (0) target = $region189
    $region188: #{recurrent_policy_forward.1} parent=1 // pred_region
      %412 = dma.done [#allocation25], 512
    $region189: #{recurrent_policy_forward.1} parent=1 // pred_fallthru
      _
    // Predicated region
    $region190: #{recurrent_policy_forward.1} parent=1 // pred_check
      _
    $region191: #{recurrent_policy_forward.1} parent=1 // pred_check_branch
      %414 = sbr.rel (0) target = $region193
    $region192: #{recurrent_policy_forward.1} parent=1 // pred_region
      %415 = dma.done [#allocation28], 32
    $region193: #{recurrent_policy_forward.1} parent=1 // pred_fallthru
      _
    // Predicated region
    $region194: #{recurrent_policy_forward.1} parent=1 // pred_check
      _
    $region195: #{recurrent_policy_forward.1} parent=1 // pred_check_branch
      %417 = sbr.rel (0) target = $region197
    $region196: #{recurrent_policy_forward.1} parent=1 // pred_region
      %418 = dma.done [#allocation28], 32
    $region197: #{recurrent_policy_forward.1} parent=1 // pred_fallthru
      _
    // Predicated region
    $region198: #{recurrent_policy_forward.1} parent=1 // pred_check
      _
    $region199: #{recurrent_policy_forward.1} parent=1 // pred_check_branch
      %420 = sbr.rel (0) target = $region201
    $region200: #{recurrent_policy_forward.1} parent=1 // pred_region
      %421 = dma.done [#allocation31], 512
    $region201: #{recurrent_policy_forward.1} parent=1 // pred_fallthru
      _
    // Predicated region
    $region202: #{recurrent_policy_forward.1} parent=1 // pred_check
      _
    $region203: #{recurrent_policy_forward.1} parent=1 // pred_check_branch
      %423 = sbr.rel (0) target = $region205
    $region204: #{recurrent_policy_forward.1} parent=1 // pred_region
      %424 = dma.done [#allocation31], 16
    $region205: #{recurrent_policy_forward.1} parent=1 // pred_fallthru
      _
    // Predicated region
    $region206: #{recurrent_policy_forward.1} parent=1 // pred_check
      _
    $region207: #{recurrent_policy_forward.1} parent=1 // pred_check_branch
      %426 = sbr.rel (0) target = $region209
    $region208: #{recurrent_policy_forward.1} parent=1 // pred_region
      %427 = dma.done [#allocation34], 16
    $region209: #{recurrent_policy_forward.1} parent=1 // pred_fallthru
      _
    // Predicated region
    $region210: #{recurrent_policy_forward.1} parent=1 // pred_check
      _
    $region211: #{recurrent_policy_forward.1} parent=1 // pred_check_branch
      %429 = sbr.rel (0) target = $region213
    $region212: #{recurrent_policy_forward.1} parent=1 // pred_region
      %430 = dma.done [#allocation34], 16
    $region213: #{recurrent_policy_forward.1} parent=1 // pred_fallthru
      _
    // Predicated region
    $region214: #{recurrent_policy_forward.1} parent=1 // pred_check
      _
    $region215: #{recurrent_policy_forward.1} parent=1 // pred_check_branch
      %432 = sbr.rel (0) target = $region217
    $region216: #{recurrent_policy_forward.1} parent=1 // pred_region
      %433 = dma.done [#allocation37], 16
    $region217: #{recurrent_policy_forward.1} parent=1 // pred_fallthru
      _
    // Predicated region
    $region218: #{recurrent_policy_forward.1} parent=1 // pred_check
      _
    $region219: #{recurrent_policy_forward.1} parent=1 // pred_check_branch
      %435 = sbr.rel (0) target = $region221
    $region220: #{recurrent_policy_forward.1} parent=1 // pred_region
      %436 = dma.done [#allocation37], 16
    $region221: #{recurrent_policy_forward.1} parent=1 // pred_fallthru
      _
    // Predicated region
    $region222: #{recurrent_policy_forward.1} parent=1 // pred_check
      _
    $region223: #{recurrent_policy_forward.1} parent=1 // pred_check_branch
      %438 = sbr.rel (0) target = $region225
    $region224: #{recurrent_policy_forward.1} parent=1 // pred_region
      %439 = dma.done [#allocation40], 16
    $region225: #{recurrent_policy_forward.1} parent=1 // pred_fallthru
      _
    // Predicated region
    $region226: #{recurrent_policy_forward.1} parent=1 // pred_check
      _
    $region227: #{recurrent_policy_forward.1} parent=1 // pred_check_branch
      %441 = sbr.rel (0) target = $region229
    $region228: #{recurrent_policy_forward.1} parent=1 // pred_region
      %442 = dma.done [#allocation40], 16
    $region229: #{recurrent_policy_forward.1} parent=1 // pred_fallthru
      _
    %v443 = vld [vmem:[%s1] sm:$0xff]
    %v444 = vld [vmem:[#allocation3] sm:$0xff]
    %v445 = vld [vmem:[#allocation3 + $0x8] sm:$0xff]
    %v446 = vld [vmem:[#allocation3 + $0x10] sm:$0xff]
    %v447 = vld [vmem:[#allocation3 + $0x18] sm:$0xff]
    %v448 = vld [vmem:[#allocation3 + $0x20] sm:$0xff]
    %v449 = vld [vmem:[#allocation3 + $0x28] sm:$0xff]
    %v450 = vld [vmem:[#allocation3 + $0x30] sm:$0xff]
    %v451 = vld [vmem:[#allocation3 + $0x38] sm:$0xff]
    %v452 = vld [vmem:[#allocation3 + $0x40] sm:$0xff]
    %v453 = vld [vmem:[#allocation3 + $0x48] sm:$0xff]
    %v454 = vld [vmem:[#allocation3 + $0x50] sm:$0xff]
    %v455 = vld [vmem:[#allocation3 + $0x58] sm:$0xff]
    %v456 = vld [vmem:[#allocation3 + $0x60] sm:$0xff]
    %v457 = vld [vmem:[#allocation3 + $0x68] sm:$0xff]
    %v458 = vld [vmem:[#allocation3 + $0x70] sm:$0xff]
    %v459 = vld [vmem:[#allocation3 + $0x78] sm:$0xff]
    %v460 = vld [vmem:[#allocation3 + $0x80] sm:$0xff]
    %v461 = vld [vmem:[#allocation3 + $0x88] sm:$0xff]
    %v462 = vld [vmem:[#allocation3 + $0x90] sm:$0xff]
    %v463 = vld [vmem:[#allocation3 + $0x98] sm:$0xff]
    %v464 = vld [vmem:[#allocation3 + $0xa0] sm:$0xff]
    %v465 = vld [vmem:[#allocation3 + $0xa8] sm:$0xff]
    %v466 = vld [vmem:[#allocation3 + $0xb0] sm:$0xff]
    %v467 = vld [vmem:[#allocation3 + $0xb8] sm:$0xff]
    %v468 = vld [vmem:[#allocation3 + $0xc0] sm:$0xff]
    %v469 = vld [vmem:[#allocation3 + $0xc8] sm:$0xff]
    %v470 = vld [vmem:[#allocation3 + $0xd0] sm:$0xff]
    %v471 = vld [vmem:[#allocation3 + $0xd8] sm:$0xff]
    %v472 = vld [vmem:[#allocation3 + $0xe0] sm:$0xff]
    %v473 = vld [vmem:[#allocation3 + $0xe8] sm:$0xff]
    %v474 = vld [vmem:[#allocation3 + $0xf0] sm:$0xff]
    %v475 = vld [vmem:[#allocation3 + $0xf8] sm:$0xff]
    %v476 = vld [vmem:[#allocation3 + $0x100] sm:$0xff]
    %v477 = vld [vmem:[#allocation3 + $0x108] sm:$0xff]
    %v478 = vld [vmem:[#allocation3 + $0x110] sm:$0xff]
    %v479 = vld [vmem:[#allocation3 + $0x118] sm:$0xff]
    %v480 = vld [vmem:[#allocation3 + $0x120] sm:$0xff]
    %v481 = vld [vmem:[#allocation3 + $0x128] sm:$0xff]
    %v482 = vld [vmem:[#allocation3 + $0x130] sm:$0xff]
    %v483 = vld [vmem:[#allocation3 + $0x138] sm:$0xff]
    %v484 = vld [vmem:[#allocation3 + $0x140] sm:$0xff]
    %v485 = vld [vmem:[#allocation3 + $0x148] sm:$0xff]
    %v486 = vld [vmem:[#allocation3 + $0x150] sm:$0xff]
    %v487 = vld [vmem:[#allocation3 + $0x158] sm:$0xff]
    %v488 = vld [vmem:[#allocation3 + $0x160] sm:$0xff]
    %v489 = vld [vmem:[#allocation3 + $0x168] sm:$0xff]
    %v490 = vld [vmem:[#allocation3 + $0x170] sm:$0xff]
    %v491 = vld [vmem:[#allocation3 + $0x178] sm:$0xff]
    %v492 = vld [vmem:[#allocation3 + $0x180] sm:$0xff]
    %v493 = vld [vmem:[#allocation3 + $0x188] sm:$0xff]
    %v494 = vld [vmem:[#allocation3 + $0x190] sm:$0xff]
    %v495 = vld [vmem:[#allocation3 + $0x198] sm:$0xff]
    %v496 = vld [vmem:[#allocation3 + $0x1a0] sm:$0xff]
    %v497 = vld [vmem:[#allocation3 + $0x1a8] sm:$0xff]
    %v498 = vld [vmem:[#allocation3 + $0x1b0] sm:$0xff]
    %v499 = vld [vmem:[#allocation3 + $0x1b8] sm:$0xff]
    %v500 = vld [vmem:[#allocation3 + $0x1c0] sm:$0xff]
    %v501 = vld [vmem:[#allocation3 + $0x1c8] sm:$0xff]
    %v502 = vld [vmem:[#allocation3 + $0x1d0] sm:$0xff]
    %v503 = vld [vmem:[#allocation3 + $0x1d8] sm:$0xff]
    %v504 = vld [vmem:[#allocation3 + $0x1e0] sm:$0xff]
    %v505 = vld [vmem:[#allocation3 + $0x1e8] sm:$0xff]
    %v506 = vld [vmem:[#allocation3 + $0x1f0] sm:$0xff]
    %v507 = vld [vmem:[#allocation3 + $0x1f8] sm:$0xff]
    %v508 = vld [vmem:[#allocation3 + $0x200] sm:$0xff]
    %v509 = vld [vmem:[#allocation3 + $0x208] sm:$0xff]
    %v510 = vld [vmem:[#allocation3 + $0x210] sm:$0xff]
    %v511 = vld [vmem:[#allocation3 + $0x218] sm:$0xff]
    %v512 = vld [vmem:[#allocation3 + $0x220] sm:$0xff]
    %v513 = vld [vmem:[#allocation3 + $0x228] sm:$0xff]
    %v514 = vld [vmem:[#allocation3 + $0x230] sm:$0xff]
    %v515 = vld [vmem:[#allocation3 + $0x238] sm:$0xff]
    %v516 = vld [vmem:[#allocation3 + $0x240] sm:$0xff]
    %v517 = vld [vmem:[#allocation3 + $0x248] sm:$0xff]
    %v518 = vld [vmem:[#allocation3 + $0x250] sm:$0xff]
    %v519 = vld [vmem:[#allocation3 + $0x258] sm:$0xff]
    %v520 = vld [vmem:[#allocation3 + $0x260] sm:$0xff]
    %v521 = vld [vmem:[#allocation3 + $0x268] sm:$0xff]
    %v522 = vld [vmem:[#allocation3 + $0x270] sm:$0xff]
    %v523 = vld [vmem:[#allocation3 + $0x278] sm:$0xff]
    %v524 = vld [vmem:[#allocation3 + $0x280] sm:$0xff]
    %v525 = vld [vmem:[#allocation3 + $0x288] sm:$0xff]
    %v526 = vld [vmem:[#allocation3 + $0x290] sm:$0xff]
    %v527 = vld [vmem:[#allocation3 + $0x298] sm:$0xff]
    %v528 = vld [vmem:[#allocation3 + $0x2a0] sm:$0xff]
    %v529 = vld [vmem:[#allocation3 + $0x2a8] sm:$0xff]
    %v530 = vld [vmem:[#allocation3 + $0x2b0] sm:$0xff]
    %v531 = vld [vmem:[#allocation3 + $0x2b8] sm:$0xff]
    %v532 = vld [vmem:[#allocation3 + $0x2c0] sm:$0xff]
    %v533 = vld [vmem:[#allocation3 + $0x2c8] sm:$0xff]
    %v534 = vld [vmem:[#allocation3 + $0x2d0] sm:$0xff]
    %v535 = vld [vmem:[#allocation3 + $0x2d8] sm:$0xff]
    %v536 = vld [vmem:[#allocation3 + $0x2e0] sm:$0xff]
    %v537 = vld [vmem:[#allocation3 + $0x2e8] sm:$0xff]
    %v538 = vld [vmem:[#allocation3 + $0x2f0] sm:$0xff]
    %v539 = vld [vmem:[#allocation3 + $0x2f8] sm:$0xff]
    %v540 = vld [vmem:[#allocation3 + $0x300] sm:$0xff]
    %v541 = vld [vmem:[#allocation3 + $0x308] sm:$0xff]
    %v542 = vld [vmem:[#allocation3 + $0x310] sm:$0xff]
    %v543 = vld [vmem:[#allocation3 + $0x318] sm:$0xff]
    %v544 = vld [vmem:[#allocation3 + $0x320] sm:$0xff]
    %v545 = vld [vmem:[#allocation3 + $0x328] sm:$0xff]
    %v546 = vld [vmem:[#allocation3 + $0x330] sm:$0xff]
    %v547 = vld [vmem:[#allocation3 + $0x338] sm:$0xff]
    %v548 = vld [vmem:[#allocation3 + $0x340] sm:$0xff]
    %v549 = vld [vmem:[#allocation3 + $0x348] sm:$0xff]
    %v550 = vld [vmem:[#allocation3 + $0x350] sm:$0xff]
    %v551 = vld [vmem:[#allocation3 + $0x358] sm:$0xff]
    %v552 = vld [vmem:[#allocation3 + $0x360] sm:$0xff]
    %v553 = vld [vmem:[#allocation3 + $0x368] sm:$0xff]
    %v554 = vld [vmem:[#allocation3 + $0x370] sm:$0xff]
    %v555 = vld [vmem:[#allocation3 + $0x378] sm:$0xff]
    %v556 = vld [vmem:[#allocation3 + $0x380] sm:$0xff]
    %v557 = vld [vmem:[#allocation3 + $0x388] sm:$0xff]
    %v558 = vld [vmem:[#allocation3 + $0x390] sm:$0xff]
    %v559 = vld [vmem:[#allocation3 + $0x398] sm:$0xff]
    %v560 = vld [vmem:[#allocation3 + $0x3a0] sm:$0xff]
    %v561 = vld [vmem:[#allocation3 + $0x3a8] sm:$0xff]
    %v562 = vld [vmem:[#allocation3 + $0x3b0] sm:$0xff]
    %v563 = vld [vmem:[#allocation3 + $0x3b8] sm:$0xff]
    %v564 = vld [vmem:[#allocation3 + $0x3c0] sm:$0xff]
    %v565 = vld [vmem:[#allocation3 + $0x3c8] sm:$0xff]
    %v566 = vld [vmem:[#allocation3 + $0x3d0] sm:$0xff]
    %v567 = vld [vmem:[#allocation3 + $0x3d8] sm:$0xff]
    %v568 = vld [vmem:[#allocation3 + $0x3e0] sm:$0xff]
    %v569 = vld [vmem:[#allocation3 + $0x3e8] sm:$0xff]
    %v570 = vld [vmem:[#allocation3 + $0x3f0] sm:$0xff]
    %v571 = vld [vmem:[#allocation3 + $0x3f8] sm:$0xff]
    %v572 = vld [vmem:[#allocation3 + $0x400] sm:$0xff]
    %v573 = vld [vmem:[#allocation3 + $0x408] sm:$0xff]
    %v574 = vld [vmem:[#allocation3 + $0x410] sm:$0xff]
    %v575 = vld [vmem:[#allocation3 + $0x418] sm:$0xff]
    %v576 = vld [vmem:[#allocation3 + $0x420] sm:$0xff]
    %v577 = vld [vmem:[#allocation3 + $0x428] sm:$0xff]
    %v578 = vld [vmem:[#allocation3 + $0x430] sm:$0xff]
    %v579 = vld [vmem:[#allocation3 + $0x438] sm:$0xff]
    %v580 = vld [vmem:[#allocation3 + $0x440] sm:$0xff]
    %v581 = vld [vmem:[#allocation3 + $0x448] sm:$0xff]
    %v582 = vld [vmem:[#allocation3 + $0x450] sm:$0xff]
    %v583 = vld [vmem:[#allocation3 + $0x458] sm:$0xff]
    %v584 = vld [vmem:[#allocation3 + $0x460] sm:$0xff]
    %v585 = vld [vmem:[#allocation3 + $0x468] sm:$0xff]
    %v586 = vld [vmem:[#allocation3 + $0x470] sm:$0xff]
    %v587 = vld [vmem:[#allocation3 + $0x478] sm:$0xff]
    %v588 = vld [vmem:[#allocation3 + $0x480] sm:$0xff]
    %v589 = vld [vmem:[#allocation3 + $0x488] sm:$0xff]
    %v590 = vld [vmem:[#allocation3 + $0x490] sm:$0xff]
    %v591 = vld [vmem:[#allocation3 + $0x498] sm:$0xff]
    %v592 = vld [vmem:[#allocation3 + $0x4a0] sm:$0xff]
    %v593 = vld [vmem:[#allocation3 + $0x4a8] sm:$0xff]
    %v594 = vld [vmem:[#allocation3 + $0x4b0] sm:$0xff]
    %v595 = vld [vmem:[#allocation3 + $0x4b8] sm:$0xff]
    %v596 = vld [vmem:[#allocation3 + $0x4c0] sm:$0xff]
    %v597 = vld [vmem:[#allocation3 + $0x4c8] sm:$0xff]
    %v598 = vld [vmem:[#allocation3 + $0x4d0] sm:$0xff]
    %v599 = vld [vmem:[#allocation3 + $0x4d8] sm:$0xff]
    %v600 = vld [vmem:[#allocation3 + $0x4e0] sm:$0xff]
    %v601 = vld [vmem:[#allocation3 + $0x4e8] sm:$0xff]
    %v602 = vld [vmem:[#allocation3 + $0x4f0] sm:$0xff]
    %v603 = vld [vmem:[#allocation3 + $0x4f8] sm:$0xff]
    %v604 = vld [vmem:[#allocation3 + $0x500] sm:$0xff]
    %v605 = vld [vmem:[#allocation3 + $0x508] sm:$0xff]
    %v606 = vld [vmem:[#allocation3 + $0x510] sm:$0xff]
    %v607 = vld [vmem:[#allocation3 + $0x518] sm:$0xff]
    %v608 = vld [vmem:[#allocation3 + $0x520] sm:$0xff]
    %v609 = vld [vmem:[#allocation3 + $0x528] sm:$0xff]
    %v610 = vld [vmem:[#allocation3 + $0x530] sm:$0xff]
    %v611 = vld [vmem:[#allocation3 + $0x538] sm:$0xff]
    %v612 = vld [vmem:[#allocation3 + $0x540] sm:$0xff]
    %v613 = vld [vmem:[#allocation3 + $0x548] sm:$0xff]
    %v614 = vld [vmem:[#allocation3 + $0x550] sm:$0xff]
    %v615 = vld [vmem:[#allocation3 + $0x558] sm:$0xff]
    %v616 = vld [vmem:[#allocation3 + $0x560] sm:$0xff]
    %v617 = vld [vmem:[#allocation3 + $0x568] sm:$0xff]
    %v618 = vld [vmem:[#allocation3 + $0x570] sm:$0xff]
    %v619 = vld [vmem:[#allocation3 + $0x578] sm:$0xff]
    %v620 = vld [vmem:[#allocation3 + $0x580] sm:$0xff]
    %v621 = vld [vmem:[#allocation3 + $0x588] sm:$0xff]
    %v622 = vld [vmem:[#allocation3 + $0x590] sm:$0xff]
    %v623 = vld [vmem:[#allocation3 + $0x598] sm:$0xff]
    %v624 = vld [vmem:[#allocation3 + $0x5a0] sm:$0xff]
    %v625 = vld [vmem:[#allocation3 + $0x5a8] sm:$0xff]
    %v626 = vld [vmem:[#allocation3 + $0x5b0] sm:$0xff]
    %v627 = vld [vmem:[#allocation3 + $0x5b8] sm:$0xff]
    %v628 = vld [vmem:[#allocation3 + $0x5c0] sm:$0xff]
    %v629 = vld [vmem:[#allocation3 + $0x5c8] sm:$0xff]
    %v630 = vld [vmem:[#allocation3 + $0x5d0] sm:$0xff]
    %v631 = vld [vmem:[#allocation3 + $0x5d8] sm:$0xff]
    %v632 = vld [vmem:[#allocation3 + $0x5e0] sm:$0xff]
    %v633 = vld [vmem:[#allocation3 + $0x5e8] sm:$0xff]
    %v634 = vld [vmem:[#allocation3 + $0x5f0] sm:$0xff]
    %v635 = vld [vmem:[#allocation3 + $0x5f8] sm:$0xff]
    %v636 = vld [vmem:[#allocation3 + $0x600] sm:$0xff]
    %v637 = vld [vmem:[#allocation3 + $0x608] sm:$0xff]
    %v638 = vld [vmem:[#allocation3 + $0x610] sm:$0xff]
    %v639 = vld [vmem:[#allocation3 + $0x618] sm:$0xff]
    %v640 = vld [vmem:[#allocation3 + $0x620] sm:$0xff]
    %v641 = vld [vmem:[#allocation3 + $0x628] sm:$0xff]
    %v642 = vld [vmem:[#allocation3 + $0x630] sm:$0xff]
    %v643 = vld [vmem:[#allocation3 + $0x638] sm:$0xff]
    %v644 = vld [vmem:[#allocation3 + $0x640] sm:$0xff]
    %v645 = vld [vmem:[#allocation3 + $0x648] sm:$0xff]
    %v646 = vld [vmem:[#allocation3 + $0x650] sm:$0xff]
    %v647 = vld [vmem:[#allocation3 + $0x658] sm:$0xff]
    %v648 = vld [vmem:[#allocation3 + $0x660] sm:$0xff]
    %v649 = vld [vmem:[#allocation3 + $0x668] sm:$0xff]
    %v650 = vld [vmem:[#allocation3 + $0x670] sm:$0xff]
    %v651 = vld [vmem:[#allocation3 + $0x678] sm:$0xff]
    %v652 = vld [vmem:[#allocation3 + $0x680] sm:$0xff]
    %v653 = vld [vmem:[#allocation3 + $0x688] sm:$0xff]
    %v654 = vld [vmem:[#allocation3 + $0x690] sm:$0xff]
    %v655 = vld [vmem:[#allocation3 + $0x698] sm:$0xff]
    %v656 = vld [vmem:[#allocation3 + $0x6a0] sm:$0xff]
    %v657 = vld [vmem:[#allocation3 + $0x6a8] sm:$0xff]
    %v658 = vld [vmem:[#allocation3 + $0x6b0] sm:$0xff]
    %v659 = vld [vmem:[#allocation3 + $0x6b8] sm:$0xff]
    %v660 = vld [vmem:[#allocation3 + $0x6c0] sm:$0xff]
    %v661 = vld [vmem:[#allocation3 + $0x6c8] sm:$0xff]
    %v662 = vld [vmem:[#allocation3 + $0x6d0] sm:$0xff]
    %v663 = vld [vmem:[#allocation3 + $0x6d8] sm:$0xff]
    %v664 = vld [vmem:[#allocation3 + $0x6e0] sm:$0xff]
    %v665 = vld [vmem:[#allocation3 + $0x6e8] sm:$0xff]
    %v666 = vld [vmem:[#allocation3 + $0x6f0] sm:$0xff]
    %v667 = vld [vmem:[#allocation3 + $0x6f8] sm:$0xff]
    %v668 = vld [vmem:[#allocation3 + $0x700] sm:$0xff]
    %v669 = vld [vmem:[#allocation3 + $0x708] sm:$0xff]
    %v670 = vld [vmem:[#allocation3 + $0x710] sm:$0xff]
    %v671 = vld [vmem:[#allocation3 + $0x718] sm:$0xff]
    %v672 = vld [vmem:[#allocation3 + $0x720] sm:$0xff]
    %v673 = vld [vmem:[#allocation3 + $0x728] sm:$0xff]
    %v674 = vld [vmem:[#allocation3 + $0x730] sm:$0xff]
    %v675 = vld [vmem:[#allocation3 + $0x738] sm:$0xff]
    %v676 = vld [vmem:[#allocation3 + $0x740] sm:$0xff]
    %v677 = vld [vmem:[#allocation3 + $0x748] sm:$0xff]
    %v678 = vld [vmem:[#allocation3 + $0x750] sm:$0xff]
    %v679 = vld [vmem:[#allocation3 + $0x758] sm:$0xff]
    %v680 = vld [vmem:[#allocation3 + $0x760] sm:$0xff]
    %v681 = vld [vmem:[#allocation3 + $0x768] sm:$0xff]
    %v682 = vld [vmem:[#allocation3 + $0x770] sm:$0xff]
    %v683 = vld [vmem:[#allocation3 + $0x778] sm:$0xff]
    %v684 = vld [vmem:[#allocation3 + $0x780] sm:$0xff]
    %v685 = vld [vmem:[#allocation3 + $0x788] sm:$0xff]
    %v686 = vld [vmem:[#allocation3 + $0x790] sm:$0xff]
    %v687 = vld [vmem:[#allocation3 + $0x798] sm:$0xff]
    %v688 = vld [vmem:[#allocation3 + $0x7a0] sm:$0xff]
    %v689 = vld [vmem:[#allocation3 + $0x7a8] sm:$0xff]
    %v690 = vld [vmem:[#allocation3 + $0x7b0] sm:$0xff]
    %v691 = vld [vmem:[#allocation3 + $0x7b8] sm:$0xff]
    %v692 = vld [vmem:[#allocation3 + $0x7c0] sm:$0xff]
    %v693 = vld [vmem:[#allocation3 + $0x7c8] sm:$0xff]
    %v694 = vld [vmem:[#allocation3 + $0x7d0] sm:$0xff]
    %v695 = vld [vmem:[#allocation3 + $0x7d8] sm:$0xff]
    %v696 = vld [vmem:[#allocation3 + $0x7e0] sm:$0xff]
    %v697 = vld [vmem:[#allocation3 + $0x7e8] sm:$0xff]
    %v698 = vld [vmem:[#allocation3 + $0x7f0] sm:$0xff]
    %v699 = vld [vmem:[#allocation3 + $0x7f8] sm:$0xff]
    %v700 = vld [vmem:[#allocation3 + $0x800] sm:$0xff]
    %v701 = vld [vmem:[#allocation3 + $0x808] sm:$0xff]
    %v702 = vld [vmem:[#allocation3 + $0x810] sm:$0xff]
    %v703 = vld [vmem:[#allocation3 + $0x818] sm:$0xff]
    %v704 = vld [vmem:[#allocation3 + $0x820] sm:$0xff]
    %v705 = vld [vmem:[#allocation3 + $0x828] sm:$0xff]
    %v706 = vld [vmem:[#allocation3 + $0x830] sm:$0xff]
    %v707 = vld [vmem:[#allocation3 + $0x838] sm:$0xff]
    %v708 = vld [vmem:[#allocation3 + $0x840] sm:$0xff]
    %v709 = vld [vmem:[#allocation3 + $0x848] sm:$0xff]
    %v710 = vld [vmem:[#allocation3 + $0x850] sm:$0xff]
    %v711 = vld [vmem:[#allocation3 + $0x858] sm:$0xff]
    %v712 = vld [vmem:[#allocation3 + $0x860] sm:$0xff]
    %v713 = vld [vmem:[#allocation3 + $0x868] sm:$0xff]
    %v714 = vld [vmem:[#allocation3 + $0x870] sm:$0xff]
    %v715 = vld [vmem:[#allocation3 + $0x878] sm:$0xff]
    %v716 = vld [vmem:[#allocation3 + $0x880] sm:$0xff]
    %v717 = vld [vmem:[#allocation3 + $0x888] sm:$0xff]
    %v718 = vld [vmem:[#allocation3 + $0x890] sm:$0xff]
    %v719 = vld [vmem:[#allocation3 + $0x898] sm:$0xff]
    %v720 = vld [vmem:[#allocation3 + $0x8a0] sm:$0xff]
    %v721 = vld [vmem:[#allocation3 + $0x8a8] sm:$0xff]
    %v722 = vld [vmem:[#allocation3 + $0x8b0] sm:$0xff]
    %v723 = vld [vmem:[#allocation3 + $0x8b8] sm:$0xff]
    %v724 = vld [vmem:[#allocation3 + $0x8c0] sm:$0xff]
    %v725 = vld [vmem:[#allocation3 + $0x8c8] sm:$0xff]
    %v726 = vld [vmem:[#allocation3 + $0x8d0] sm:$0xff]
    %v727 = vld [vmem:[#allocation3 + $0x8d8] sm:$0xff]
    %v728 = vld [vmem:[#allocation3 + $0x8e0] sm:$0xff]
    %v729 = vld [vmem:[#allocation3 + $0x8e8] sm:$0xff]
    %v730 = vld [vmem:[#allocation3 + $0x8f0] sm:$0xff]
    %v731 = vld [vmem:[#allocation3 + $0x8f8] sm:$0xff]
    %v732 = vld [vmem:[#allocation3 + $0x900] sm:$0xff]
    %v733 = vld [vmem:[#allocation3 + $0x908] sm:$0xff]
    %v734 = vld [vmem:[#allocation3 + $0x910] sm:$0xff]
    %v735 = vld [vmem:[#allocation3 + $0x918] sm:$0xff]
    %v736 = vld [vmem:[#allocation3 + $0x920] sm:$0xff]
    %v737 = vld [vmem:[#allocation3 + $0x928] sm:$0xff]
    %v738 = vld [vmem:[#allocation3 + $0x930] sm:$0xff]
    %v739 = vld [vmem:[#allocation3 + $0x938] sm:$0xff]
    %v740 = vld [vmem:[#allocation3 + $0x940] sm:$0xff]
    %v741 = vld [vmem:[#allocation3 + $0x948] sm:$0xff]
    %v742 = vld [vmem:[#allocation3 + $0x950] sm:$0xff]
    %v743 = vld [vmem:[#allocation3 + $0x958] sm:$0xff]
    %v744 = vld [vmem:[#allocation3 + $0x960] sm:$0xff]
    %v745 = vld [vmem:[#allocation3 + $0x968] sm:$0xff]
    %v746 = vld [vmem:[#allocation3 + $0x970] sm:$0xff]
    %v747 = vld [vmem:[#allocation3 + $0x978] sm:$0xff]
    %v748 = vld [vmem:[#allocation3 + $0x980] sm:$0xff]
    %v749 = vld [vmem:[#allocation3 + $0x988] sm:$0xff]
    %v750 = vld [vmem:[#allocation3 + $0x990] sm:$0xff]
    %v751 = vld [vmem:[#allocation3 + $0x998] sm:$0xff]
    %v752 = vld [vmem:[#allocation3 + $0x9a0] sm:$0xff]
    %v753 = vld [vmem:[#allocation3 + $0x9a8] sm:$0xff]
    %v754 = vld [vmem:[#allocation3 + $0x9b0] sm:$0xff]
    %v755 = vld [vmem:[#allocation3 + $0x9b8] sm:$0xff]
    %v756 = vld [vmem:[#allocation3 + $0x9c0] sm:$0xff]
    %v757 = vld [vmem:[#allocation3 + $0x9c8] sm:$0xff]
    %v758 = vld [vmem:[#allocation3 + $0x9d0] sm:$0xff]
    %v759 = vld [vmem:[#allocation3 + $0x9d8] sm:$0xff]
    %v760 = vld [vmem:[#allocation3 + $0x9e0] sm:$0xff]
    %v761 = vld [vmem:[#allocation3 + $0x9e8] sm:$0xff]
    %v762 = vld [vmem:[#allocation3 + $0x9f0] sm:$0xff]
    %v763 = vld [vmem:[#allocation3 + $0x9f8] sm:$0xff]
    %v764 = vld [vmem:[#allocation3 + $0xa00] sm:$0xff]
    %v765 = vld [vmem:[#allocation3 + $0xa08] sm:$0xff]
    %v766 = vld [vmem:[#allocation3 + $0xa10] sm:$0xff]
    %v767 = vld [vmem:[#allocation3 + $0xa18] sm:$0xff]
    %v768 = vld [vmem:[#allocation3 + $0xa20] sm:$0xff]
    %v769 = vld [vmem:[#allocation3 + $0xa28] sm:$0xff]
    %v770 = vld [vmem:[#allocation3 + $0xa30] sm:$0xff]
    %v771 = vld [vmem:[#allocation3 + $0xa38] sm:$0xff]
    %v772 = vld [vmem:[#allocation3 + $0xa40] sm:$0xff]
    %v773 = vld [vmem:[#allocation3 + $0xa48] sm:$0xff]
    %v774 = vld [vmem:[#allocation3 + $0xa50] sm:$0xff]
    %v775 = vld [vmem:[#allocation3 + $0xa58] sm:$0xff]
    %v776 = vld [vmem:[#allocation3 + $0xa60] sm:$0xff]
    %v777 = vld [vmem:[#allocation3 + $0xa68] sm:$0xff]
    %v778 = vld [vmem:[#allocation3 + $0xa70] sm:$0xff]
    %v779 = vld [vmem:[#allocation3 + $0xa78] sm:$0xff]
    %v780 = vld [vmem:[#allocation3 + $0xa80] sm:$0xff]
    %v781 = vld [vmem:[#allocation3 + $0xa88] sm:$0xff]
    %v782 = vld [vmem:[#allocation3 + $0xa90] sm:$0xff]
    %v783 = vld [vmem:[#allocation3 + $0xa98] sm:$0xff]
    %v784 = vld [vmem:[#allocation3 + $0xaa0] sm:$0xff]
    %v785 = vld [vmem:[#allocation3 + $0xaa8] sm:$0xff]
    %v786 = vld [vmem:[#allocation3 + $0xab0] sm:$0xff]
    %v787 = vld [vmem:[#allocation3 + $0xab8] sm:$0xff]
    %v788 = vld [vmem:[#allocation3 + $0xac0] sm:$0xff]
    %v789 = vld [vmem:[#allocation3 + $0xac8] sm:$0xff]
    %v790 = vld [vmem:[#allocation3 + $0xad0] sm:$0xff]
    %v791 = vld [vmem:[#allocation3 + $0xad8] sm:$0xff]
    %v792 = vld [vmem:[#allocation3 + $0xae0] sm:$0xff]
    %v793 = vld [vmem:[#allocation3 + $0xae8] sm:$0xff]
    %v794 = vld [vmem:[#allocation3 + $0xaf0] sm:$0xff]
    %v795 = vld [vmem:[#allocation3 + $0xaf8] sm:$0xff]
    %v796 = vld [vmem:[#allocation3 + $0xb00] sm:$0xff]
    %v797 = vld [vmem:[#allocation3 + $0xb08] sm:$0xff]
    %v798 = vld [vmem:[#allocation3 + $0xb10] sm:$0xff]
    %v799 = vld [vmem:[#allocation3 + $0xb18] sm:$0xff]
    %v800 = vld [vmem:[#allocation3 + $0xb20] sm:$0xff]
    %v801 = vld [vmem:[#allocation3 + $0xb28] sm:$0xff]
    %v802 = vld [vmem:[#allocation3 + $0xb30] sm:$0xff]
    %v803 = vld [vmem:[#allocation3 + $0xb38] sm:$0xff]
    %v804 = vld [vmem:[#allocation3 + $0xb40] sm:$0xff]
    %v805 = vld [vmem:[#allocation3 + $0xb48] sm:$0xff]
    %v806 = vld [vmem:[#allocation3 + $0xb50] sm:$0xff]
    %v807 = vld [vmem:[#allocation3 + $0xb58] sm:$0xff]
    %v808 = vld [vmem:[#allocation3 + $0xb60] sm:$0xff]
    %v809 = vld [vmem:[#allocation3 + $0xb68] sm:$0xff]
    %v810 = vld [vmem:[#allocation3 + $0xb70] sm:$0xff]
    %v811 = vld [vmem:[#allocation3 + $0xb78] sm:$0xff]
    %v812 = vld [vmem:[#allocation3 + $0xb80] sm:$0xff]
    %v813 = vld [vmem:[#allocation3 + $0xb88] sm:$0xff]
    %v814 = vld [vmem:[#allocation3 + $0xb90] sm:$0xff]
    %v815 = vld [vmem:[#allocation3 + $0xb98] sm:$0xff]
    %v816 = vld [vmem:[#allocation3 + $0xba0] sm:$0xff]
    %v817 = vld [vmem:[#allocation3 + $0xba8] sm:$0xff]
    %v818 = vld [vmem:[#allocation3 + $0xbb0] sm:$0xff]
    %v819 = vld [vmem:[#allocation3 + $0xbb8] sm:$0xff]
    %v820 = vld [vmem:[#allocation3 + $0xbc0] sm:$0xff]
    %v821 = vld [vmem:[#allocation3 + $0xbc8] sm:$0xff]
    %v822 = vld [vmem:[#allocation3 + $0xbd0] sm:$0xff]
    %v823 = vld [vmem:[#allocation3 + $0xbd8] sm:$0xff]
    %v824 = vld [vmem:[#allocation3 + $0xbe0] sm:$0xff]
    %v825 = vld [vmem:[#allocation3 + $0xbe8] sm:$0xff]
    %v826 = vld [vmem:[#allocation3 + $0xbf0] sm:$0xff]
    %v827 = vld [vmem:[#allocation3 + $0xbf8] sm:$0xff]
    %v828 = vld [vmem:[#allocation3 + $0xc00] sm:$0xff]
    %v829 = vld [vmem:[#allocation3 + $0xc08] sm:$0xff]
    %v830 = vld [vmem:[#allocation3 + $0xc10] sm:$0xff]
    %v831 = vld [vmem:[#allocation3 + $0xc18] sm:$0xff]
    %v832 = vld [vmem:[#allocation3 + $0xc20] sm:$0xff]
    %v833 = vld [vmem:[#allocation3 + $0xc28] sm:$0xff]
    %v834 = vld [vmem:[#allocation3 + $0xc30] sm:$0xff]
    %v835 = vld [vmem:[#allocation3 + $0xc38] sm:$0xff]
    %v836 = vld [vmem:[#allocation3 + $0xc40] sm:$0xff]
    %v837 = vld [vmem:[#allocation3 + $0xc48] sm:$0xff]
    %v838 = vld [vmem:[#allocation3 + $0xc50] sm:$0xff]
    %v839 = vld [vmem:[#allocation3 + $0xc58] sm:$0xff]
    %v840 = vld [vmem:[#allocation3 + $0xc60] sm:$0xff]
    %v841 = vld [vmem:[#allocation3 + $0xc68] sm:$0xff]
    %v842 = vld [vmem:[#allocation3 + $0xc70] sm:$0xff]
    %v843 = vld [vmem:[#allocation3 + $0xc78] sm:$0xff]
    %v844 = vld [vmem:[#allocation3 + $0xc80] sm:$0xff]
    %v845 = vld [vmem:[#allocation3 + $0xc88] sm:$0xff]
    %v846 = vld [vmem:[#allocation3 + $0xc90] sm:$0xff]
    %v847 = vld [vmem:[#allocation3 + $0xc98] sm:$0xff]
    %v848 = vld [vmem:[#allocation3 + $0xca0] sm:$0xff]
    %v849 = vld [vmem:[#allocation3 + $0xca8] sm:$0xff]
    %v850 = vld [vmem:[#allocation3 + $0xcb0] sm:$0xff]
    %v851 = vld [vmem:[#allocation3 + $0xcb8] sm:$0xff]
    %v852 = vld [vmem:[#allocation3 + $0xcc0] sm:$0xff]
    %v853 = vld [vmem:[#allocation3 + $0xcc8] sm:$0xff]
    %v854 = vld [vmem:[#allocation3 + $0xcd0] sm:$0xff]
    %v855 = vld [vmem:[#allocation3 + $0xcd8] sm:$0xff]
    %v856 = vld [vmem:[#allocation3 + $0xce0] sm:$0xff]
    %v857 = vld [vmem:[#allocation3 + $0xce8] sm:$0xff]
    %v858 = vld [vmem:[#allocation3 + $0xcf0] sm:$0xff]
    %v859 = vld [vmem:[#allocation3 + $0xcf8] sm:$0xff]
    %v860 = vld [vmem:[#allocation3 + $0xd00] sm:$0xff]
    %v861 = vld [vmem:[#allocation3 + $0xd08] sm:$0xff]
    %v862 = vld [vmem:[#allocation3 + $0xd10] sm:$0xff]
    %v863 = vld [vmem:[#allocation3 + $0xd18] sm:$0xff]
    %v864 = vld [vmem:[#allocation3 + $0xd20] sm:$0xff]
    %v865 = vld [vmem:[#allocation3 + $0xd28] sm:$0xff]
    %v866 = vld [vmem:[#allocation3 + $0xd30] sm:$0xff]
    %v867 = vld [vmem:[#allocation3 + $0xd38] sm:$0xff]
    %v868 = vld [vmem:[#allocation3 + $0xd40] sm:$0xff]
    %v869 = vld [vmem:[#allocation3 + $0xd48] sm:$0xff]
    %v870 = vld [vmem:[#allocation3 + $0xd50] sm:$0xff]
    %v871 = vld [vmem:[#allocation3 + $0xd58] sm:$0xff]
    %v872 = vld [vmem:[#allocation3 + $0xd60] sm:$0xff]
    %v873 = vld [vmem:[#allocation3 + $0xd68] sm:$0xff]
    %v874 = vld [vmem:[#allocation3 + $0xd70] sm:$0xff]
    %v875 = vld [vmem:[#allocation3 + $0xd78] sm:$0xff]
    %v876 = vld [vmem:[#allocation3 + $0xd80] sm:$0xff]
    %v877 = vld [vmem:[#allocation3 + $0xd88] sm:$0xff]
    %v878 = vld [vmem:[#allocation3 + $0xd90] sm:$0xff]
    %v879 = vld [vmem:[#allocation3 + $0xd98] sm:$0xff]
    %v880 = vld [vmem:[#allocation3 + $0xda0] sm:$0xff]
    %v881 = vld [vmem:[#allocation3 + $0xda8] sm:$0xff]
    %v882 = vld [vmem:[#allocation3 + $0xdb0] sm:$0xff]
    %v883 = vld [vmem:[#allocation3 + $0xdb8] sm:$0xff]
    %v884 = vld [vmem:[#allocation3 + $0xdc0] sm:$0xff]
    %v885 = vld [vmem:[#allocation3 + $0xdc8] sm:$0xff]
    %v886 = vld [vmem:[#allocation3 + $0xdd0] sm:$0xff]
    %v887 = vld [vmem:[#allocation3 + $0xdd8] sm:$0xff]
    %v888 = vld [vmem:[#allocation3 + $0xde0] sm:$0xff]
    %v889 = vld [vmem:[#allocation3 + $0xde8] sm:$0xff]
    %v890 = vld [vmem:[#allocation3 + $0xdf0] sm:$0xff]
    %v891 = vld [vmem:[#allocation3 + $0xdf8] sm:$0xff]
    %v892 = vld [vmem:[#allocation3 + $0xe00] sm:$0xff]
    %v893 = vld [vmem:[#allocation3 + $0xe08] sm:$0xff]
    %v894 = vld [vmem:[#allocation3 + $0xe10] sm:$0xff]
    %v895 = vld [vmem:[#allocation3 + $0xe18] sm:$0xff]
    %v896 = vld [vmem:[#allocation3 + $0xe20] sm:$0xff]
    %v897 = vld [vmem:[#allocation3 + $0xe28] sm:$0xff]
    %v898 = vld [vmem:[#allocation3 + $0xe30] sm:$0xff]
    %v899 = vld [vmem:[#allocation3 + $0xe38] sm:$0xff]
    %v900 = vld [vmem:[#allocation3 + $0xe40] sm:$0xff]
    %v901 = vld [vmem:[#allocation3 + $0xe48] sm:$0xff]
    %v902 = vld [vmem:[#allocation3 + $0xe50] sm:$0xff]
    %v903 = vld [vmem:[#allocation3 + $0xe58] sm:$0xff]
    %v904 = vld [vmem:[#allocation3 + $0xe60] sm:$0xff]
    %v905 = vld [vmem:[#allocation3 + $0xe68] sm:$0xff]
    %v906 = vld [vmem:[#allocation3 + $0xe70] sm:$0xff]
    %v907 = vld [vmem:[#allocation3 + $0xe78] sm:$0xff]
    %v908 = vld [vmem:[#allocation3 + $0xe80] sm:$0xff]
    %v909 = vld [vmem:[#allocation3 + $0xe88] sm:$0xff]
    %v910 = vld [vmem:[#allocation3 + $0xe90] sm:$0xff]
    %v911 = vld [vmem:[#allocation3 + $0xe98] sm:$0xff]
    %v912 = vld [vmem:[#allocation3 + $0xea0] sm:$0xff]
    %v913 = vld [vmem:[#allocation3 + $0xea8] sm:$0xff]
    %v914 = vld [vmem:[#allocation3 + $0xeb0] sm:$0xff]
    %v915 = vld [vmem:[#allocation3 + $0xeb8] sm:$0xff]
    %v916 = vld [vmem:[#allocation3 + $0xec0] sm:$0xff]
    %v917 = vld [vmem:[#allocation3 + $0xec8] sm:$0xff]
    %v918 = vld [vmem:[#allocation3 + $0xed0] sm:$0xff]
    %v919 = vld [vmem:[#allocation3 + $0xed8] sm:$0xff]
    %v920 = vld [vmem:[#allocation3 + $0xee0] sm:$0xff]
    %v921 = vld [vmem:[#allocation3 + $0xee8] sm:$0xff]
    %v922 = vld [vmem:[#allocation3 + $0xef0] sm:$0xff]
    %v923 = vld [vmem:[#allocation3 + $0xef8] sm:$0xff]
    %v924 = vld [vmem:[#allocation3 + $0xf00] sm:$0xff]
    %v925 = vld [vmem:[#allocation3 + $0xf08] sm:$0xff]
    %v926 = vld [vmem:[#allocation3 + $0xf10] sm:$0xff]
    %v927 = vld [vmem:[#allocation3 + $0xf18] sm:$0xff]
    %v928 = vld [vmem:[#allocation3 + $0xf20] sm:$0xff]
    %v929 = vld [vmem:[#allocation3 + $0xf28] sm:$0xff]
    %v930 = vld [vmem:[#allocation3 + $0xf30] sm:$0xff]
    %v931 = vld [vmem:[#allocation3 + $0xf38] sm:$0xff]
    %v932 = vld [vmem:[#allocation3 + $0xf40] sm:$0xff]
    %v933 = vld [vmem:[#allocation3 + $0xf48] sm:$0xff]
    %v934 = vld [vmem:[#allocation3 + $0xf50] sm:$0xff]
    %v935 = vld [vmem:[#allocation3 + $0xf58] sm:$0xff]
    %v936 = vld [vmem:[#allocation3 + $0xf60] sm:$0xff]
    %v937 = vld [vmem:[#allocation3 + $0xf68] sm:$0xff]
    %v938 = vld [vmem:[#allocation3 + $0xf70] sm:$0xff]
    %v939 = vld [vmem:[#allocation3 + $0xf78] sm:$0xff]
    %v940 = vld [vmem:[#allocation3 + $0xf80] sm:$0xff]
    %v941 = vld [vmem:[#allocation3 + $0xf88] sm:$0xff]
    %v942 = vld [vmem:[#allocation3 + $0xf90] sm:$0xff]
    %v943 = vld [vmem:[#allocation3 + $0xf98] sm:$0xff]
    %v944 = vld [vmem:[#allocation3 + $0xfa0] sm:$0xff]
    %v945 = vld [vmem:[#allocation3 + $0xfa8] sm:$0xff]
    %v946 = vld [vmem:[#allocation3 + $0xfb0] sm:$0xff]
    %v947 = vld [vmem:[#allocation3 + $0xfb8] sm:$0xff]
    %v948 = vld [vmem:[#allocation3 + $0xfc0] sm:$0xff]
    %v949 = vld [vmem:[#allocation3 + $0xfc8] sm:$0xff]
    %v950 = vld [vmem:[#allocation3 + $0xfd0] sm:$0xff]
    %v951 = vld [vmem:[#allocation3 + $0xfd8] sm:$0xff]
    %v952 = vld [vmem:[#allocation3 + $0xfe0] sm:$0xff]
    %v953 = vld [vmem:[#allocation3 + $0xfe8] sm:$0xff]
    %v954 = vld [vmem:[#allocation3 + $0xff0] sm:$0xff]
    %v955 = vld [vmem:[#allocation3 + $0xff8] sm:$0xff]
    %v956 = vld [vmem:[#allocation6] sm:$0xff]
    %v958 = vlaneseq
    %v959 = vshrl.u32 %v958, 7
    %v960 = vsub.s32 0, %v959
    %v961 = vrot.slane %v956, %v960
    %v962 = vlaneseq
    %v963 = vshrl.u32 %v962, 7
    %v964 = vsub.s32 1, %v963
    %v965 = vrot.slane %v956, %v964
    %v966 = vlaneseq
    %v967 = vshrl.u32 %v966, 7
    %v968 = vsub.s32 2, %v967
    %v969 = vrot.slane %v956, %v968
    %v970 = vlaneseq
    %v971 = vshrl.u32 %v970, 7
    %v972 = vsub.s32 3, %v971
    %v973 = vrot.slane %v956, %v972
    %v974 = vlaneseq
    %v975 = vshrl.u32 %v974, 7
    %v976 = vsub.s32 4, %v975
    %v977 = vrot.slane %v956, %v976
    %v978 = vlaneseq
    %v979 = vshrl.u32 %v978, 7
    %v980 = vsub.s32 5, %v979
    %v981 = vrot.slane %v956, %v980
    %v982 = vlaneseq
    %v983 = vshrl.u32 %v982, 7
    %v984 = vsub.s32 6, %v983
    %v985 = vrot.slane %v956, %v984
    %v986 = vlaneseq
    %v987 = vshrl.u32 %v986, 7
    %v988 = vsub.s32 7, %v987
    %v989 = vrot.slane %v956, %v988
    %v999 = vcombine.high %v443, %v443
    %v1001 = vunpack.c.l.s4 1983009808
    %v1002 = vunpack.c.0.s8 %v1001
    %v1003 = vlaneseq
    %v1004 = vshrl.u32 %v1003, 7
    %v1005 = vsub.s32 %v1002, %v1004
    %v1006 = vrot.slane %v443, %v1005
    %v1008 = vunpack.c.l.s4 1983009808
    %v1009 = vunpack.c.0.s8 %v1008
    %v1010 = vlaneseq
    %v1011 = vshrl.u32 %v1010, 7
    %v1012 = vsub.s32 %v1009, %v1011
    %v1013 = vrot.slane %v999, %v1012
    %v1014 = vcombine.high %v1006, %v1006
    %v1015 = vcombine.high %v1013, %v1013
    %1020 = vmatprep.subr.mxu0 %v445
    %1021 = vmatpush1.msra.mxu0 %v444
    %1022 = vmatprep.subr.mxu0 %v453
    %1023 = vmatpush1.msra.mxu0 %v452
    %1024 = vmatprep.subr.mxu0 %v461
    %1025 = vmatpush1.msra.mxu0 %v460
    %1026 = vmatprep.subr.mxu0 %v469
    %1027 = vmatpush1.msra.mxu0 %v468
    %1028 = vmatprep.subr.mxu0 %v477
    %1029 = vmatpush1.msra.mxu0 %v476
    %1030 = vmatprep.subr.mxu0 %v485
    %1031 = vmatpush1.msra.mxu0 %v484
    %1032 = vmatprep.subr.mxu0 %v493
    %1033 = vmatpush1.msra.mxu0 %v492
    %1034 = vmatprep.subr.mxu0 %v501
    %1035 = vmatpush1.msra.mxu0 %v500
    %1036 = vmatprep.subr.mxu0 %v509
    %1037 = vmatpush1.msra.mxu0 %v508
    %1038 = vmatprep.subr.mxu0 %v517
    %1039 = vmatpush1.msra.mxu0 %v516
    %1040 = vmatprep.subr.mxu0 %v525
    %1041 = vmatpush1.msra.mxu0 %v524
    %1042 = vmatprep.subr.mxu0 %v533
    %1043 = vmatpush1.msra.mxu0 %v532
    %1044 = vmatprep.subr.mxu0 %v541
    %1045 = vmatpush1.msra.mxu0 %v540
    %1046 = vmatprep.subr.mxu0 %v549
    %1047 = vmatpush1.msra.mxu0 %v548
    %1048 = vmatprep.subr.mxu0 %v557
    %1049 = vmatpush1.msra.mxu0 %v556
    %1050 = vmatprep.subr.mxu0 %v565
    %1051 = vmatpush1.msra.mxu0 %v564
    %1052 = vmatprep.subr.mxu0 %v573
    %1053 = vmatpush1.msra.mxu0 %v572
    %1054 = vmatprep.subr.mxu0 %v581
    %1055 = vmatpush1.msra.mxu0 %v580
    %1056 = vmatprep.subr.mxu0 %v589
    %1057 = vmatpush1.msra.mxu0 %v588
    %1058 = vmatprep.subr.mxu0 %v597
    %1059 = vmatpush1.msra.mxu0 %v596
    %1060 = vmatprep.subr.mxu0 %v605
    %1061 = vmatpush1.msra.mxu0 %v604
    %1062 = vmatprep.subr.mxu0 %v613
    %1063 = vmatpush1.msra.mxu0 %v612
    %1064 = vmatprep.subr.mxu0 %v621
    %1065 = vmatpush1.msra.mxu0 %v620
    %1066 = vmatprep.subr.mxu0 %v629
    %1067 = vmatpush1.msra.mxu0 %v628
    %1068 = vmatprep.subr.mxu0 %v637
    %1069 = vmatpush1.msra.mxu0 %v636
    %1070 = vmatprep.subr.mxu0 %v645
    %1071 = vmatpush1.msra.mxu0 %v644
    %1072 = vmatprep.subr.mxu0 %v653
    %1073 = vmatpush1.msra.mxu0 %v652
    %1074 = vmatprep.subr.mxu0 %v661
    %1075 = vmatpush1.msra.mxu0 %v660
    %1076 = vmatprep.subr.mxu0 %v669
    %1077 = vmatpush1.msra.mxu0 %v668
    %1078 = vmatprep.subr.mxu0 %v677
    %1079 = vmatpush1.msra.mxu0 %v676
    %1080 = vmatprep.subr.mxu0 %v685
    %1081 = vmatpush1.msra.mxu0 %v684
    %1082 = vmatprep.subr.mxu0 %v693
    %1083 = vmatpush1.msra.mxu0 %v692
    %1084 = vmatprep.mubr.f32.mxu0 %v1014
    %1085 = vmatmul.mubr.f32.gmra.mrb[0].mxu0 %v1006
    %v1086 = vpop.f32.mrb[0].mxu0
    %v1087 = vadd.f32 %v961, %v1086
    %v1088 = vpop.f32.mrb[0].mxu0
    %v1089 = vadd.f32 %v965, %v1088
    %1090 = vdwg.mxu0
    %1091 = vmatprep.subr.mxu0 %v701
    %1092 = vmatpush1.msra.mxu0 %v700
    %1093 = vmatprep.subr.mxu0 %v709
    %1094 = vmatpush1.msra.mxu0 %v708
    %1095 = vmatprep.subr.mxu0 %v717
    %1096 = vmatpush1.msra.mxu0 %v716
    %1097 = vmatprep.subr.mxu0 %v725
    %1098 = vmatpush1.msra.mxu0 %v724
    %1099 = vmatprep.subr.mxu0 %v733
    %1100 = vmatpush1.msra.mxu0 %v732
    %1101 = vmatprep.subr.mxu0 %v741
    %1102 = vmatpush1.msra.mxu0 %v740
    %1103 = vmatprep.subr.mxu0 %v749
    %1104 = vmatpush1.msra.mxu0 %v748
    %1105 = vmatprep.subr.mxu0 %v757
    %1106 = vmatpush1.msra.mxu0 %v756
    %1107 = vmatprep.subr.mxu0 %v765
    %1108 = vmatpush1.msra.mxu0 %v764
    %1109 = vmatprep.subr.mxu0 %v773
    %1110 = vmatpush1.msra.mxu0 %v772
    %1111 = vmatprep.subr.mxu0 %v781
    %1112 = vmatpush1.msra.mxu0 %v780
    %1113 = vmatprep.subr.mxu0 %v789
    %1114 = vmatpush1.msra.mxu0 %v788
    %1115 = vmatprep.subr.mxu0 %v797
    %1116 = vmatpush1.msra.mxu0 %v796
    %1117 = vmatprep.subr.mxu0 %v805
    %1118 = vmatpush1.msra.mxu0 %v804
    %1119 = vmatprep.subr.mxu0 %v813
    %1120 = vmatpush1.msra.mxu0 %v812
    %1121 = vmatprep.subr.mxu0 %v821
    %1122 = vmatpush1.msra.mxu0 %v820
    %1123 = vmatprep.subr.mxu0 %v829
    %1124 = vmatpush1.msra.mxu0 %v828
    %1125 = vmatprep.subr.mxu0 %v837
    %1126 = vmatpush1.msra.mxu0 %v836
    %1127 = vmatprep.subr.mxu0 %v845
    %1128 = vmatpush1.msra.mxu0 %v844
    %1129 = vmatprep.subr.mxu0 %v853
    %1130 = vmatpush1.msra.mxu0 %v852
    %1131 = vmatprep.subr.mxu0 %v861
    %1132 = vmatpush1.msra.mxu0 %v860
    %1133 = vmatprep.subr.mxu0 %v869
    %1134 = vmatpush1.msra.mxu0 %v868
    %1135 = vmatprep.subr.mxu0 %v877
    %1136 = vmatpush1.msra.mxu0 %v876
    %1137 = vmatprep.subr.mxu0 %v885
    %1138 = vmatpush1.msra.mxu0 %v884
    %1139 = vmatprep.subr.mxu0 %v893
    %1140 = vmatpush1.msra.mxu0 %v892
    %1141 = vmatprep.subr.mxu0 %v901
    %1142 = vmatpush1.msra.mxu0 %v900
    %1143 = vmatprep.subr.mxu0 %v909
    %1144 = vmatpush1.msra.mxu0 %v908
    %1145 = vmatprep.subr.mxu0 %v917
    %1146 = vmatpush1.msra.mxu0 %v916
    %1147 = vmatprep.subr.mxu0 %v925
    %1148 = vmatpush1.msra.mxu0 %v924
    %1149 = vmatprep.subr.mxu0 %v933
    %1150 = vmatpush1.msra.mxu0 %v932
    %1151 = vmatprep.subr.mxu0 %v941
    %1152 = vmatpush1.msra.mxu0 %v940
    %1153 = vmatprep.subr.mxu0 %v949
    %1154 = vmatpush1.msra.mxu0 %v948
    %1155 = vmatprep.mubr.f32.mxu0 %v1015
    %1156 = vmatmul.mubr.f32.gmra.mrb[0].mxu0 %v1013
    %v1157 = vpop.f32.mrb[0].mxu0
    %v1158 = vadd.f32 %v1087, %v1157
    %v1159 = vpop.f32.mrb[0].mxu0
    %v1160 = vadd.f32 %v1089, %v1159
    %1161 = vdwg.mxu0
    %1162 = vmatprep.subr.mxu0 %v447
    %1163 = vmatpush1.msra.mxu0 %v446
    %1164 = vmatprep.subr.mxu0 %v455
    %1165 = vmatpush1.msra.mxu0 %v454
    %1166 = vmatprep.subr.mxu0 %v463
    %1167 = vmatpush1.msra.mxu0 %v462
    %1168 = vmatprep.subr.mxu0 %v471
    %1169 = vmatpush1.msra.mxu0 %v470
    %1170 = vmatprep.subr.mxu0 %v479
    %1171 = vmatpush1.msra.mxu0 %v478
    %1172 = vmatprep.subr.mxu0 %v487
    %1173 = vmatpush1.msra.mxu0 %v486
    %1174 = vmatprep.subr.mxu0 %v495
    %1175 = vmatpush1.msra.mxu0 %v494
    %1176 = vmatprep.subr.mxu0 %v503
    %1177 = vmatpush1.msra.mxu0 %v502
    %1178 = vmatprep.subr.mxu0 %v511
    %1179 = vmatpush1.msra.mxu0 %v510
    %1180 = vmatprep.subr.mxu0 %v519
    %1181 = vmatpush1.msra.mxu0 %v518
    %1182 = vmatprep.subr.mxu0 %v527
    %1183 = vmatpush1.msra.mxu0 %v526
    %1184 = vmatprep.subr.mxu0 %v535
    %1185 = vmatpush1.msra.mxu0 %v534
    %1186 = vmatprep.subr.mxu0 %v543
    %1187 = vmatpush1.msra.mxu0 %v542
    %1188 = vmatprep.subr.mxu0 %v551
    %1189 = vmatpush1.msra.mxu0 %v550
    %1190 = vmatprep.subr.mxu0 %v559
    %1191 = vmatpush1.msra.mxu0 %v558
    %1192 = vmatprep.subr.mxu0 %v567
    %1193 = vmatpush1.msra.mxu0 %v566
    %1194 = vmatprep.subr.mxu0 %v575
    %1195 = vmatpush1.msra.mxu0 %v574
    %1196 = vmatprep.subr.mxu0 %v583
    %1197 = vmatpush1.msra.mxu0 %v582
    %1198 = vmatprep.subr.mxu0 %v591
    %1199 = vmatpush1.msra.mxu0 %v590
    %1200 = vmatprep.subr.mxu0 %v599
    %1201 = vmatpush1.msra.mxu0 %v598
    %1202 = vmatprep.subr.mxu0 %v607
    %1203 = vmatpush1.msra.mxu0 %v606
    %1204 = vmatprep.subr.mxu0 %v615
    %1205 = vmatpush1.msra.mxu0 %v614
    %1206 = vmatprep.subr.mxu0 %v623
    %1207 = vmatpush1.msra.mxu0 %v622
    %1208 = vmatprep.subr.mxu0 %v631
    %1209 = vmatpush1.msra.mxu0 %v630
    %1210 = vmatprep.subr.mxu0 %v639
    %1211 = vmatpush1.msra.mxu0 %v638
    %1212 = vmatprep.subr.mxu0 %v647
    %1213 = vmatpush1.msra.mxu0 %v646
    %1214 = vmatprep.subr.mxu0 %v655
    %1215 = vmatpush1.msra.mxu0 %v654
    %1216 = vmatprep.subr.mxu0 %v663
    %1217 = vmatpush1.msra.mxu0 %v662
    %1218 = vmatprep.subr.mxu0 %v671
    %1219 = vmatpush1.msra.mxu0 %v670
    %1220 = vmatprep.subr.mxu0 %v679
    %1221 = vmatpush1.msra.mxu0 %v678
    %1222 = vmatprep.subr.mxu0 %v687
    %1223 = vmatpush1.msra.mxu0 %v686
    %1224 = vmatprep.subr.mxu0 %v695
    %1225 = vmatpush1.msra.mxu0 %v694
    %1226 = vmatprep.mubr.f32.mxu0 %v1014
    %1227 = vmatmul.mubr.f32.gmra.mrb[0].mxu0 %v1006
    %v1228 = vpop.f32.mrb[0].mxu0
    %v1229 = vadd.f32 %v969, %v1228
    %v1230 = vpop.f32.mrb[0].mxu0
    %v1231 = vadd.f32 %v973, %v1230
    %1232 = vdwg.mxu0
    %1233 = vmatprep.subr.mxu0 %v703
    %1234 = vmatpush1.msra.mxu0 %v702
    %1235 = vmatprep.subr.mxu0 %v711
    %1236 = vmatpush1.msra.mxu0 %v710
    %1237 = vmatprep.subr.mxu0 %v719
    %1238 = vmatpush1.msra.mxu0 %v718
    %1239 = vmatprep.subr.mxu0 %v727
    %1240 = vmatpush1.msra.mxu0 %v726
    %1241 = vmatprep.subr.mxu0 %v735
    %1242 = vmatpush1.msra.mxu0 %v734
    %1243 = vmatprep.subr.mxu0 %v743
    %1244 = vmatpush1.msra.mxu0 %v742
    %1245 = vmatprep.subr.mxu0 %v751
    %1246 = vmatpush1.msra.mxu0 %v750
    %1247 = vmatprep.subr.mxu0 %v759
    %1248 = vmatpush1.msra.mxu0 %v758
    %1249 = vmatprep.subr.mxu0 %v767
    %1250 = vmatpush1.msra.mxu0 %v766
    %1251 = vmatprep.subr.mxu0 %v775
    %1252 = vmatpush1.msra.mxu0 %v774
    %1253 = vmatprep.subr.mxu0 %v783
    %1254 = vmatpush1.msra.mxu0 %v782
    %1255 = vmatprep.subr.mxu0 %v791
    %1256 = vmatpush1.msra.mxu0 %v790
    %1257 = vmatprep.subr.mxu0 %v799
    %1258 = vmatpush1.msra.mxu0 %v798
    %1259 = vmatprep.subr.mxu0 %v807
    %1260 = vmatpush1.msra.mxu0 %v806
    %1261 = vmatprep.subr.mxu0 %v815
    %1262 = vmatpush1.msra.mxu0 %v814
    %1263 = vmatprep.subr.mxu0 %v823
    %1264 = vmatpush1.msra.mxu0 %v822
    %1265 = vmatprep.subr.mxu0 %v831
    %1266 = vmatpush1.msra.mxu0 %v830
    %1267 = vmatprep.subr.mxu0 %v839
    %1268 = vmatpush1.msra.mxu0 %v838
    %1269 = vmatprep.subr.mxu0 %v847
    %1270 = vmatpush1.msra.mxu0 %v846
    %1271 = vmatprep.subr.mxu0 %v855
    %1272 = vmatpush1.msra.mxu0 %v854
    %1273 = vmatprep.subr.mxu0 %v863
    %1274 = vmatpush1.msra.mxu0 %v862
    %1275 = vmatprep.subr.mxu0 %v871
    %1276 = vmatpush1.msra.mxu0 %v870
    %1277 = vmatprep.subr.mxu0 %v879
    %1278 = vmatpush1.msra.mxu0 %v878
    %1279 = vmatprep.subr.mxu0 %v887
    %1280 = vmatpush1.msra.mxu0 %v886
    %1281 = vmatprep.subr.mxu0 %v895
    %1282 = vmatpush1.msra.mxu0 %v894
    %1283 = vmatprep.subr.mxu0 %v903
    %1284 = vmatpush1.msra.mxu0 %v902
    %1285 = vmatprep.subr.mxu0 %v911
    %1286 = vmatpush1.msra.mxu0 %v910
    %1287 = vmatprep.subr.mxu0 %v919
    %1288 = vmatpush1.msra.mxu0 %v918
    %1289 = vmatprep.subr.mxu0 %v927
    %1290 = vmatpush1.msra.mxu0 %v926
    %1291 = vmatprep.subr.mxu0 %v935
    %1292 = vmatpush1.msra.mxu0 %v934
    %1293 = vmatprep.subr.mxu0 %v943
    %1294 = vmatpush1.msra.mxu0 %v942
    %1295 = vmatprep.subr.mxu0 %v951
    %1296 = vmatpush1.msra.mxu0 %v950
    %1297 = vmatprep.mubr.f32.mxu0 %v1015
    %1298 = vmatmul.mubr.f32.gmra.mrb[0].mxu0 %v1013
    %v1299 = vpop.f32.mrb[0].mxu0
    %v1300 = vadd.f32 %v1229, %v1299
    %v1301 = vpop.f32.mrb[0].mxu0
    %v1302 = vadd.f32 %v1231, %v1301
    %1303 = vdwg.mxu0
    %1304 = vmatprep.subr.mxu0 %v449
    %1305 = vmatpush1.msra.mxu0 %v448
    %1306 = vmatprep.subr.mxu0 %v457
    %1307 = vmatpush1.msra.mxu0 %v456
    %1308 = vmatprep.subr.mxu0 %v465
    %1309 = vmatpush1.msra.mxu0 %v464
    %1310 = vmatprep.subr.mxu0 %v473
    %1311 = vmatpush1.msra.mxu0 %v472
    %1312 = vmatprep.subr.mxu0 %v481
    %1313 = vmatpush1.msra.mxu0 %v480
    %1314 = vmatprep.subr.mxu0 %v489
    %1315 = vmatpush1.msra.mxu0 %v488
    %1316 = vmatprep.subr.mxu0 %v497
    %1317 = vmatpush1.msra.mxu0 %v496
    %1318 = vmatprep.subr.mxu0 %v505
    %1319 = vmatpush1.msra.mxu0 %v504
    %1320 = vmatprep.subr.mxu0 %v513
    %1321 = vmatpush1.msra.mxu0 %v512
    %1322 = vmatprep.subr.mxu0 %v521
    %1323 = vmatpush1.msra.mxu0 %v520
    %1324 = vmatprep.subr.mxu0 %v529
    %1325 = vmatpush1.msra.mxu0 %v528
    %1326 = vmatprep.subr.mxu0 %v537
    %1327 = vmatpush1.msra.mxu0 %v536
    %1328 = vmatprep.subr.mxu0 %v545
    %1329 = vmatpush1.msra.mxu0 %v544
    %1330 = vmatprep.subr.mxu0 %v553
    %1331 = vmatpush1.msra.mxu0 %v552
    %1332 = vmatprep.subr.mxu0 %v561
    %1333 = vmatpush1.msra.mxu0 %v560
    %1334 = vmatprep.subr.mxu0 %v569
    %1335 = vmatpush1.msra.mxu0 %v568
    %1336 = vmatprep.subr.mxu0 %v577
    %1337 = vmatpush1.msra.mxu0 %v576
    %1338 = vmatprep.subr.mxu0 %v585
    %1339 = vmatpush1.msra.mxu0 %v584
    %1340 = vmatprep.subr.mxu0 %v593
    %1341 = vmatpush1.msra.mxu0 %v592
    %1342 = vmatprep.subr.mxu0 %v601
    %1343 = vmatpush1.msra.mxu0 %v600
    %1344 = vmatprep.subr.mxu0 %v609
    %1345 = vmatpush1.msra.mxu0 %v608
    %1346 = vmatprep.subr.mxu0 %v617
    %1347 = vmatpush1.msra.mxu0 %v616
    %1348 = vmatprep.subr.mxu0 %v625
    %1349 = vmatpush1.msra.mxu0 %v624
    %1350 = vmatprep.subr.mxu0 %v633
    %1351 = vmatpush1.msra.mxu0 %v632
    %1352 = vmatprep.subr.mxu0 %v641
    %1353 = vmatpush1.msra.mxu0 %v640
    %1354 = vmatprep.subr.mxu0 %v649
    %1355 = vmatpush1.msra.mxu0 %v648
    %1356 = vmatprep.subr.mxu0 %v657
    %1357 = vmatpush1.msra.mxu0 %v656
    %1358 = vmatprep.subr.mxu0 %v665
    %1359 = vmatpush1.msra.mxu0 %v664
    %1360 = vmatprep.subr.mxu0 %v673
    %1361 = vmatpush1.msra.mxu0 %v672
    %1362 = vmatprep.subr.mxu0 %v681
    %1363 = vmatpush1.msra.mxu0 %v680
    %1364 = vmatprep.subr.mxu0 %v689
    %1365 = vmatpush1.msra.mxu0 %v688
    %1366 = vmatprep.subr.mxu0 %v697
    %1367 = vmatpush1.msra.mxu0 %v696
    %1368 = vmatprep.mubr.f32.mxu0 %v1014
    %1369 = vmatmul.mubr.f32.gmra.mrb[0].mxu0 %v1006
    %v1370 = vpop.f32.mrb[0].mxu0
    %v1371 = vadd.f32 %v977, %v1370
    %v1372 = vpop.f32.mrb[0].mxu0
    %v1373 = vadd.f32 %v981, %v1372
    %1374 = vdwg.mxu0
    %1375 = vmatprep.subr.mxu0 %v705
    %1376 = vmatpush1.msra.mxu0 %v704
    %1377 = vmatprep.subr.mxu0 %v713
    %1378 = vmatpush1.msra.mxu0 %v712
    %1379 = vmatprep.subr.mxu0 %v721
    %1380 = vmatpush1.msra.mxu0 %v720
    %1381 = vmatprep.subr.mxu0 %v729
    %1382 = vmatpush1.msra.mxu0 %v728
    %1383 = vmatprep.subr.mxu0 %v737
    %1384 = vmatpush1.msra.mxu0 %v736
    %1385 = vmatprep.subr.mxu0 %v745
    %1386 = vmatpush1.msra.mxu0 %v744
    %1387 = vmatprep.subr.mxu0 %v753
    %1388 = vmatpush1.msra.mxu0 %v752
    %1389 = vmatprep.subr.mxu0 %v761
    %1390 = vmatpush1.msra.mxu0 %v760
    %1391 = vmatprep.subr.mxu0 %v769
    %1392 = vmatpush1.msra.mxu0 %v768
    %1393 = vmatprep.subr.mxu0 %v777
    %1394 = vmatpush1.msra.mxu0 %v776
    %1395 = vmatprep.subr.mxu0 %v785
    %1396 = vmatpush1.msra.mxu0 %v784
    %1397 = vmatprep.subr.mxu0 %v793
    %1398 = vmatpush1.msra.mxu0 %v792
    %1399 = vmatprep.subr.mxu0 %v801
    %1400 = vmatpush1.msra.mxu0 %v800
    %1401 = vmatprep.subr.mxu0 %v809
    %1402 = vmatpush1.msra.mxu0 %v808
    %1403 = vmatprep.subr.mxu0 %v817
    %1404 = vmatpush1.msra.mxu0 %v816
    %1405 = vmatprep.subr.mxu0 %v825
    %1406 = vmatpush1.msra.mxu0 %v824
    %1407 = vmatprep.subr.mxu0 %v833
    %1408 = vmatpush1.msra.mxu0 %v832
    %1409 = vmatprep.subr.mxu0 %v841
    %1410 = vmatpush1.msra.mxu0 %v840
    %1411 = vmatprep.subr.mxu0 %v849
    %1412 = vmatpush1.msra.mxu0 %v848
    %1413 = vmatprep.subr.mxu0 %v857
    %1414 = vmatpush1.msra.mxu0 %v856
    %1415 = vmatprep.subr.mxu0 %v865
    %1416 = vmatpush1.msra.mxu0 %v864
    %1417 = vmatprep.subr.mxu0 %v873
    %1418 = vmatpush1.msra.mxu0 %v872
    %1419 = vmatprep.subr.mxu0 %v881
    %1420 = vmatpush1.msra.mxu0 %v880
    %1421 = vmatprep.subr.mxu0 %v889
    %1422 = vmatpush1.msra.mxu0 %v888
    %1423 = vmatprep.subr.mxu0 %v897
    %1424 = vmatpush1.msra.mxu0 %v896
    %1425 = vmatprep.subr.mxu0 %v905
    %1426 = vmatpush1.msra.mxu0 %v904
    %1427 = vmatprep.subr.mxu0 %v913
    %1428 = vmatpush1.msra.mxu0 %v912
    %1429 = vmatprep.subr.mxu0 %v921
    %1430 = vmatpush1.msra.mxu0 %v920
    %1431 = vmatprep.subr.mxu0 %v929
    %1432 = vmatpush1.msra.mxu0 %v928
    %1433 = vmatprep.subr.mxu0 %v937
    %1434 = vmatpush1.msra.mxu0 %v936
    %1435 = vmatprep.subr.mxu0 %v945
    %1436 = vmatpush1.msra.mxu0 %v944
    %1437 = vmatprep.subr.mxu0 %v953
    %1438 = vmatpush1.msra.mxu0 %v952
    %1439 = vmatprep.mubr.f32.mxu0 %v1015
    %1440 = vmatmul.mubr.f32.gmra.mrb[0].mxu0 %v1013
    %v1441 = vpop.f32.mrb[0].mxu0
    %v1442 = vadd.f32 %v1371, %v1441
    %v1443 = vpop.f32.mrb[0].mxu0
    %v1444 = vadd.f32 %v1373, %v1443
    %1445 = vdwg.mxu0
    %1446 = vmatprep.subr.mxu0 %v451
    %1447 = vmatpush1.msra.mxu0 %v450
    %1448 = vmatprep.subr.mxu0 %v459
    %1449 = vmatpush1.msra.mxu0 %v458
    %1450 = vmatprep.subr.mxu0 %v467
    %1451 = vmatpush1.msra.mxu0 %v466
    %1452 = vmatprep.subr.mxu0 %v475
    %1453 = vmatpush1.msra.mxu0 %v474
    %1454 = vmatprep.subr.mxu0 %v483
    %1455 = vmatpush1.msra.mxu0 %v482
    %1456 = vmatprep.subr.mxu0 %v491
    %1457 = vmatpush1.msra.mxu0 %v490
    %1458 = vmatprep.subr.mxu0 %v499
    %1459 = vmatpush1.msra.mxu0 %v498
    %1460 = vmatprep.subr.mxu0 %v507
    %1461 = vmatpush1.msra.mxu0 %v506
    %1462 = vmatprep.subr.mxu0 %v515
    %1463 = vmatpush1.msra.mxu0 %v514
    %1464 = vmatprep.subr.mxu0 %v523
    %1465 = vmatpush1.msra.mxu0 %v522
    %1466 = vmatprep.subr.mxu0 %v531
    %1467 = vmatpush1.msra.mxu0 %v530
    %1468 = vmatprep.subr.mxu0 %v539
    %1469 = vmatpush1.msra.mxu0 %v538
    %1470 = vmatprep.subr.mxu0 %v547
    %1471 = vmatpush1.msra.mxu0 %v546
    %1472 = vmatprep.subr.mxu0 %v555
    %1473 = vmatpush1.msra.mxu0 %v554
    %1474 = vmatprep.subr.mxu0 %v563
    %1475 = vmatpush1.msra.mxu0 %v562
    %1476 = vmatprep.subr.mxu0 %v571
    %1477 = vmatpush1.msra.mxu0 %v570
    %1478 = vmatprep.subr.mxu0 %v579
    %1479 = vmatpush1.msra.mxu0 %v578
    %1480 = vmatprep.subr.mxu0 %v587
    %1481 = vmatpush1.msra.mxu0 %v586
    %1482 = vmatprep.subr.mxu0 %v595
    %1483 = vmatpush1.msra.mxu0 %v594
    %1484 = vmatprep.subr.mxu0 %v603
    %1485 = vmatpush1.msra.mxu0 %v602
    %1486 = vmatprep.subr.mxu0 %v611
    %1487 = vmatpush1.msra.mxu0 %v610
    %1488 = vmatprep.subr.mxu0 %v619
    %1489 = vmatpush1.msra.mxu0 %v618
    %1490 = vmatprep.subr.mxu0 %v627
    %1491 = vmatpush1.msra.mxu0 %v626
    %1492 = vmatprep.subr.mxu0 %v635
    %1493 = vmatpush1.msra.mxu0 %v634
    %1494 = vmatprep.subr.mxu0 %v643
    %1495 = vmatpush1.msra.mxu0 %v642
    %1496 = vmatprep.subr.mxu0 %v651
    %1497 = vmatpush1.msra.mxu0 %v650
    %1498 = vmatprep.subr.mxu0 %v659
    %1499 = vmatpush1.msra.mxu0 %v658
    %1500 = vmatprep.subr.mxu0 %v667
    %1501 = vmatpush1.msra.mxu0 %v666
    %1502 = vmatprep.subr.mxu0 %v675
    %1503 = vmatpush1.msra.mxu0 %v674
    %1504 = vmatprep.subr.mxu0 %v683
    %1505 = vmatpush1.msra.mxu0 %v682
    %1506 = vmatprep.subr.mxu0 %v691
    %1507 = vmatpush1.msra.mxu0 %v690
    %1508 = vmatprep.subr.mxu0 %v699
    %1509 = vmatpush1.msra.mxu0 %v698
    %1510 = vmatprep.mubr.f32.mxu0 %v1014
    %1511 = vmatmul.mubr.f32.gmra.mrb[0].mxu0 %v1006
    %v1512 = vpop.f32.mrb[0].mxu0
    %v1513 = vadd.f32 %v985, %v1512
    %v1514 = vpop.f32.mrb[0].mxu0
    %v1515 = vadd.f32 %v989, %v1514
    %1516 = vdwg.mxu0
    %1517 = vmatprep.subr.mxu0 %v707
    %1518 = vmatpush1.msra.mxu0 %v706
    %1519 = vmatprep.subr.mxu0 %v715
    %1520 = vmatpush1.msra.mxu0 %v714
    %1521 = vmatprep.subr.mxu0 %v723
    %1522 = vmatpush1.msra.mxu0 %v722
    %1523 = vmatprep.subr.mxu0 %v731
    %1524 = vmatpush1.msra.mxu0 %v730
    %1525 = vmatprep.subr.mxu0 %v739
    %1526 = vmatpush1.msra.mxu0 %v738
    %1527 = vmatprep.subr.mxu0 %v747
    %1528 = vmatpush1.msra.mxu0 %v746
    %1529 = vmatprep.subr.mxu0 %v755
    %1530 = vmatpush1.msra.mxu0 %v754
    %1531 = vmatprep.subr.mxu0 %v763
    %1532 = vmatpush1.msra.mxu0 %v762
    %1533 = vmatprep.subr.mxu0 %v771
    %1534 = vmatpush1.msra.mxu0 %v770
    %1535 = vmatprep.subr.mxu0 %v779
    %1536 = vmatpush1.msra.mxu0 %v778
    %1537 = vmatprep.subr.mxu0 %v787
    %1538 = vmatpush1.msra.mxu0 %v786
    %1539 = vmatprep.subr.mxu0 %v795
    %1540 = vmatpush1.msra.mxu0 %v794
    %1541 = vmatprep.subr.mxu0 %v803
    %1542 = vmatpush1.msra.mxu0 %v802
    %1543 = vmatprep.subr.mxu0 %v811
    %1544 = vmatpush1.msra.mxu0 %v810
    %1545 = vmatprep.subr.mxu0 %v819
    %1546 = vmatpush1.msra.mxu0 %v818
    %1547 = vmatprep.subr.mxu0 %v827
    %1548 = vmatpush1.msra.mxu0 %v826
    %1549 = vmatprep.subr.mxu0 %v835
    %1550 = vmatpush1.msra.mxu0 %v834
    %1551 = vmatprep.subr.mxu0 %v843
    %1552 = vmatpush1.msra.mxu0 %v842
    %1553 = vmatprep.subr.mxu0 %v851
    %1554 = vmatpush1.msra.mxu0 %v850
    %1555 = vmatprep.subr.mxu0 %v859
    %1556 = vmatpush1.msra.mxu0 %v858
    %1557 = vmatprep.subr.mxu0 %v867
    %1558 = vmatpush1.msra.mxu0 %v866
    %1559 = vmatprep.subr.mxu0 %v875
    %1560 = vmatpush1.msra.mxu0 %v874
    %1561 = vmatprep.subr.mxu0 %v883
    %1562 = vmatpush1.msra.mxu0 %v882
    %1563 = vmatprep.subr.mxu0 %v891
    %1564 = vmatpush1.msra.mxu0 %v890
    %1565 = vmatprep.subr.mxu0 %v899
    %1566 = vmatpush1.msra.mxu0 %v898
    %1567 = vmatprep.subr.mxu0 %v907
    %1568 = vmatpush1.msra.mxu0 %v906
    %1569 = vmatprep.subr.mxu0 %v915
    %1570 = vmatpush1.msra.mxu0 %v914
    %1571 = vmatprep.subr.mxu0 %v923
    %1572 = vmatpush1.msra.mxu0 %v922
    %1573 = vmatprep.subr.mxu0 %v931
    %1574 = vmatpush1.msra.mxu0 %v930
    %1575 = vmatprep.subr.mxu0 %v939
    %1576 = vmatpush1.msra.mxu0 %v938
    %1577 = vmatprep.subr.mxu0 %v947
    %1578 = vmatpush1.msra.mxu0 %v946
    %1579 = vmatprep.subr.mxu0 %v955
    %1580 = vmatpush1.msra.mxu0 %v954
    %1581 = vmatprep.mubr.f32.mxu0 %v1015
    %1582 = vmatmul.mubr.f32.gmra.mrb[0].mxu0 %v1013
    %v1583 = vpop.f32.mrb[0].mxu0
    %v1584 = vadd.f32 %v1513, %v1583
    %v1585 = vpop.f32.mrb[0].mxu0
    %v1586 = vadd.f32 %v1515, %v1585
    %1587 = vdwg.mxu0
    %v1588 = vld [vmem:[%s9] sm:$0xff]
    %v1589 = vld [vmem:[%s9 + $0x8] sm:$0xff]
    %v1590 = vld [vmem:[%s9 + $0x10] sm:$0xff]
    %v1591 = vld [vmem:[%s9 + $0x18] sm:$0xff]
    %v1592 = vld [vmem:[%s9 + $0x20] sm:$0xff]
    %v1593 = vld [vmem:[%s9 + $0x28] sm:$0xff]
    %v1594 = vld [vmem:[%s9 + $0x30] sm:$0xff]
    %v1595 = vld [vmem:[%s9 + $0x38] sm:$0xff]
    %v1596 = vld [vmem:[%s9 + $0x40] sm:$0xff]
    %v1597 = vld [vmem:[%s9 + $0x48] sm:$0xff]
    %v1598 = vld [vmem:[%s9 + $0x50] sm:$0xff]
    %v1599 = vld [vmem:[%s9 + $0x58] sm:$0xff]
    %v1600 = vld [vmem:[%s9 + $0x60] sm:$0xff]
    %v1601 = vld [vmem:[%s9 + $0x68] sm:$0xff]
    %v1602 = vld [vmem:[%s9 + $0x70] sm:$0xff]
    %v1603 = vld [vmem:[%s9 + $0x78] sm:$0xff]
    %v1604 = vld [vmem:[%s9 + $0x80] sm:$0xff]
    %v1605 = vld [vmem:[%s9 + $0x88] sm:$0xff]
    %v1606 = vld [vmem:[%s9 + $0x90] sm:$0xff]
    %v1607 = vld [vmem:[%s9 + $0x98] sm:$0xff]
    %v1608 = vld [vmem:[%s9 + $0xa0] sm:$0xff]
    %v1609 = vld [vmem:[%s9 + $0xa8] sm:$0xff]
    %v1610 = vld [vmem:[%s9 + $0xb0] sm:$0xff]
    %v1611 = vld [vmem:[%s9 + $0xb8] sm:$0xff]
    %v1612 = vld [vmem:[%s9 + $0xc0] sm:$0xff]
    %v1613 = vld [vmem:[%s9 + $0xc8] sm:$0xff]
    %v1614 = vld [vmem:[%s9 + $0xd0] sm:$0xff]
    %v1615 = vld [vmem:[%s9 + $0xd8] sm:$0xff]
    %v1616 = vld [vmem:[%s9 + $0xe0] sm:$0xff]
    %v1617 = vld [vmem:[%s9 + $0xe8] sm:$0xff]
    %v1618 = vld [vmem:[%s9 + $0xf0] sm:$0xff]
    %v1619 = vld [vmem:[%s9 + $0xf8] sm:$0xff]
    %v1620 = vld [vmem:[%s9 + $0x100] sm:$0xff]
    %v1621 = vld [vmem:[%s9 + $0x108] sm:$0xff]
    %v1622 = vld [vmem:[%s9 + $0x110] sm:$0xff]
    %v1623 = vld [vmem:[%s9 + $0x118] sm:$0xff]
    %v1624 = vld [vmem:[%s9 + $0x120] sm:$0xff]
    %v1625 = vld [vmem:[%s9 + $0x128] sm:$0xff]
    %v1626 = vld [vmem:[%s9 + $0x130] sm:$0xff]
    %v1627 = vld [vmem:[%s9 + $0x138] sm:$0xff]
    %v1628 = vld [vmem:[%s9 + $0x140] sm:$0xff]
    %v1629 = vld [vmem:[%s9 + $0x148] sm:$0xff]
    %v1630 = vld [vmem:[%s9 + $0x150] sm:$0xff]
    %v1631 = vld [vmem:[%s9 + $0x158] sm:$0xff]
    %v1632 = vld [vmem:[%s9 + $0x160] sm:$0xff]
    %v1633 = vld [vmem:[%s9 + $0x168] sm:$0xff]
    %v1634 = vld [vmem:[%s9 + $0x170] sm:$0xff]
    %v1635 = vld [vmem:[%s9 + $0x178] sm:$0xff]
    %v1636 = vld [vmem:[%s9 + $0x180] sm:$0xff]
    %v1637 = vld [vmem:[%s9 + $0x188] sm:$0xff]
    %v1638 = vld [vmem:[%s9 + $0x190] sm:$0xff]
    %v1639 = vld [vmem:[%s9 + $0x198] sm:$0xff]
    %v1640 = vld [vmem:[%s9 + $0x1a0] sm:$0xff]
    %v1641 = vld [vmem:[%s9 + $0x1a8] sm:$0xff]
    %v1642 = vld [vmem:[%s9 + $0x1b0] sm:$0xff]
    %v1643 = vld [vmem:[%s9 + $0x1b8] sm:$0xff]
    %v1644 = vld [vmem:[%s9 + $0x1c0] sm:$0xff]
    %v1645 = vld [vmem:[%s9 + $0x1c8] sm:$0xff]
    %v1646 = vld [vmem:[%s9 + $0x1d0] sm:$0xff]
    %v1647 = vld [vmem:[%s9 + $0x1d8] sm:$0xff]
    %v1648 = vld [vmem:[%s9 + $0x1e0] sm:$0xff]
    %v1649 = vld [vmem:[%s9 + $0x1e8] sm:$0xff]
    %v1650 = vld [vmem:[%s9 + $0x1f0] sm:$0xff]
    %v1651 = vld [vmem:[%s9 + $0x1f8] sm:$0xff]
    %v1652 = vld [vmem:[%s9 + $0x200] sm:$0xff]
    %v1653 = vld [vmem:[%s9 + $0x208] sm:$0xff]
    %v1654 = vld [vmem:[%s9 + $0x210] sm:$0xff]
    %v1655 = vld [vmem:[%s9 + $0x218] sm:$0xff]
    %v1656 = vld [vmem:[%s9 + $0x220] sm:$0xff]
    %v1657 = vld [vmem:[%s9 + $0x228] sm:$0xff]
    %v1658 = vld [vmem:[%s9 + $0x230] sm:$0xff]
    %v1659 = vld [vmem:[%s9 + $0x238] sm:$0xff]
    %v1660 = vld [vmem:[%s9 + $0x240] sm:$0xff]
    %v1661 = vld [vmem:[%s9 + $0x248] sm:$0xff]
    %v1662 = vld [vmem:[%s9 + $0x250] sm:$0xff]
    %v1663 = vld [vmem:[%s9 + $0x258] sm:$0xff]
    %v1664 = vld [vmem:[%s9 + $0x260] sm:$0xff]
    %v1665 = vld [vmem:[%s9 + $0x268] sm:$0xff]
    %v1666 = vld [vmem:[%s9 + $0x270] sm:$0xff]
    %v1667 = vld [vmem:[%s9 + $0x278] sm:$0xff]
    %v1668 = vld [vmem:[%s9 + $0x280] sm:$0xff]
    %v1669 = vld [vmem:[%s9 + $0x288] sm:$0xff]
    %v1670 = vld [vmem:[%s9 + $0x290] sm:$0xff]
    %v1671 = vld [vmem:[%s9 + $0x298] sm:$0xff]
    %v1672 = vld [vmem:[%s9 + $0x2a0] sm:$0xff]
    %v1673 = vld [vmem:[%s9 + $0x2a8] sm:$0xff]
    %v1674 = vld [vmem:[%s9 + $0x2b0] sm:$0xff]
    %v1675 = vld [vmem:[%s9 + $0x2b8] sm:$0xff]
    %v1676 = vld [vmem:[%s9 + $0x2c0] sm:$0xff]
    %v1677 = vld [vmem:[%s9 + $0x2c8] sm:$0xff]
    %v1678 = vld [vmem:[%s9 + $0x2d0] sm:$0xff]
    %v1679 = vld [vmem:[%s9 + $0x2d8] sm:$0xff]
    %v1680 = vld [vmem:[%s9 + $0x2e0] sm:$0xff]
    %v1681 = vld [vmem:[%s9 + $0x2e8] sm:$0xff]
    %v1682 = vld [vmem:[%s9 + $0x2f0] sm:$0xff]
    %v1683 = vld [vmem:[%s9 + $0x2f8] sm:$0xff]
    %v1684 = vld [vmem:[%s9 + $0x300] sm:$0xff]
    %v1685 = vld [vmem:[%s9 + $0x308] sm:$0xff]
    %v1686 = vld [vmem:[%s9 + $0x310] sm:$0xff]
    %v1687 = vld [vmem:[%s9 + $0x318] sm:$0xff]
    %v1688 = vld [vmem:[%s9 + $0x320] sm:$0xff]
    %v1689 = vld [vmem:[%s9 + $0x328] sm:$0xff]
    %v1690 = vld [vmem:[%s9 + $0x330] sm:$0xff]
    %v1691 = vld [vmem:[%s9 + $0x338] sm:$0xff]
    %v1692 = vld [vmem:[%s9 + $0x340] sm:$0xff]
    %v1693 = vld [vmem:[%s9 + $0x348] sm:$0xff]
    %v1694 = vld [vmem:[%s9 + $0x350] sm:$0xff]
    %v1695 = vld [vmem:[%s9 + $0x358] sm:$0xff]
    %v1696 = vld [vmem:[%s9 + $0x360] sm:$0xff]
    %v1697 = vld [vmem:[%s9 + $0x368] sm:$0xff]
    %v1698 = vld [vmem:[%s9 + $0x370] sm:$0xff]
    %v1699 = vld [vmem:[%s9 + $0x378] sm:$0xff]
    %v1700 = vld [vmem:[%s9 + $0x380] sm:$0xff]
    %v1701 = vld [vmem:[%s9 + $0x388] sm:$0xff]
    %v1702 = vld [vmem:[%s9 + $0x390] sm:$0xff]
    %v1703 = vld [vmem:[%s9 + $0x398] sm:$0xff]
    %v1704 = vld [vmem:[%s9 + $0x3a0] sm:$0xff]
    %v1705 = vld [vmem:[%s9 + $0x3a8] sm:$0xff]
    %v1706 = vld [vmem:[%s9 + $0x3b0] sm:$0xff]
    %v1707 = vld [vmem:[%s9 + $0x3b8] sm:$0xff]
    %v1708 = vld [vmem:[%s9 + $0x3c0] sm:$0xff]
    %v1709 = vld [vmem:[%s9 + $0x3c8] sm:$0xff]
    %v1710 = vld [vmem:[%s9 + $0x3d0] sm:$0xff]
    %v1711 = vld [vmem:[%s9 + $0x3d8] sm:$0xff]
    %v1712 = vld [vmem:[%s9 + $0x3e0] sm:$0xff]
    %v1713 = vld [vmem:[%s9 + $0x3e8] sm:$0xff]
    %v1714 = vld [vmem:[%s9 + $0x3f0] sm:$0xff]
    %v1715 = vld [vmem:[%s9 + $0x3f8] sm:$0xff]
    %v1716 = vld [vmem:[#allocation8] sm:$0xff]
    %v1717 = vld [vmem:[#allocation8 + $0x8] sm:$0xff]
    %v1718 = vld [vmem:[#allocation8 + $0x10] sm:$0xff]
    %v1719 = vld [vmem:[#allocation8 + $0x18] sm:$0xff]
    %v1720 = vld [vmem:[#allocation8 + $0x20] sm:$0xff]
    %v1721 = vld [vmem:[#allocation8 + $0x28] sm:$0xff]
    %v1722 = vld [vmem:[#allocation8 + $0x30] sm:$0xff]
    %v1723 = vld [vmem:[#allocation8 + $0x38] sm:$0xff]
    %v1724 = vld [vmem:[#allocation8 + $0x40] sm:$0xff]
    %v1725 = vld [vmem:[#allocation8 + $0x48] sm:$0xff]
    %v1726 = vld [vmem:[#allocation8 + $0x50] sm:$0xff]
    %v1727 = vld [vmem:[#allocation8 + $0x58] sm:$0xff]
    %v1728 = vld [vmem:[#allocation8 + $0x60] sm:$0xff]
    %v1729 = vld [vmem:[#allocation8 + $0x68] sm:$0xff]
    %v1730 = vld [vmem:[#allocation8 + $0x70] sm:$0xff]
    %v1731 = vld [vmem:[#allocation8 + $0x78] sm:$0xff]
    %v1732 = vld [vmem:[#allocation9] sm:$0x1]
    %v1733 = vld [vmem:[#allocation11] sm:$0x1]
    %vm1734 = vcmask 1041408
    %v1735 = vsel %vm1734, %v1158, 0.0
    %v1736 = vrot.slane %v1735, 4
    %v1737 = vadd.f32 %v1735, %v1736
    %v1738 = vrot.slane %v1737, 2
    %v1739 = vadd.f32 %v1737, %v1738
    %v1740 = vrot.slane %v1739, 1
    %v1741 = vadd.f32 %v1739, %v1740
    %v1742 = vsel %vm1734, %v1160, 0.0
    %v1743 = vrot.slane %v1742, 4
    %v1744 = vadd.f32 %v1742, %v1743
    %v1745 = vrot.slane %v1744, 2
    %v1746 = vadd.f32 %v1744, %v1745
    %v1747 = vrot.slane %v1746, 1
    %v1748 = vadd.f32 %v1746, %v1747
    %v1749 = vsel %vm1734, %v1300, 0.0
    %v1750 = vrot.slane %v1749, 4
    %v1751 = vadd.f32 %v1749, %v1750
    %v1752 = vrot.slane %v1751, 2
    %v1753 = vadd.f32 %v1751, %v1752
    %v1754 = vrot.slane %v1753, 1
    %v1755 = vadd.f32 %v1753, %v1754
    %v1756 = vsel %vm1734, %v1302, 0.0
    %v1757 = vrot.slane %v1756, 4
    %v1758 = vadd.f32 %v1756, %v1757
    %v1759 = vrot.slane %v1758, 2
    %v1760 = vadd.f32 %v1758, %v1759
    %v1761 = vrot.slane %v1760, 1
    %v1762 = vadd.f32 %v1760, %v1761
    %v1763 = vsel %vm1734, %v1442, 0.0
    %v1764 = vrot.slane %v1763, 4
    %v1765 = vadd.f32 %v1763, %v1764
    %v1766 = vrot.slane %v1765, 2
    %v1767 = vadd.f32 %v1765, %v1766
    %v1768 = vrot.slane %v1767, 1
    %v1769 = vadd.f32 %v1767, %v1768
    %v1770 = vsel %vm1734, %v1444, 0.0
    %v1771 = vrot.slane %v1770, 4
    %v1772 = vadd.f32 %v1770, %v1771
    %v1773 = vrot.slane %v1772, 2
    %v1774 = vadd.f32 %v1772, %v1773
    %v1775 = vrot.slane %v1774, 1
    %v1776 = vadd.f32 %v1774, %v1775
    %v1777 = vsel %vm1734, %v1584, 0.0
    %v1778 = vrot.slane %v1777, 4
    %v1779 = vadd.f32 %v1777, %v1778
    %v1780 = vrot.slane %v1779, 2
    %v1781 = vadd.f32 %v1779, %v1780
    %v1782 = vrot.slane %v1781, 1
    %v1783 = vadd.f32 %v1781, %v1782
    %v1784 = vsel %vm1734, %v1586, 0.0
    %v1785 = vrot.slane %v1784, 4
    %v1786 = vadd.f32 %v1784, %v1785
    %v1787 = vrot.slane %v1786, 2
    %v1788 = vadd.f32 %v1786, %v1787
    %v1789 = vrot.slane %v1788, 1
    %v1790 = vadd.f32 %v1788, %v1789
    %v1791 = vmul.f32 %v1158, %v1158
    %v1792 = vmul.f32 %v1160, %v1160
    %v1793 = vmul.f32 %v1300, %v1300
    %v1794 = vmul.f32 %v1302, %v1302
    %v1795 = vmul.f32 %v1442, %v1442
    %v1796 = vmul.f32 %v1444, %v1444
    %v1797 = vmul.f32 %v1584, %v1584
    %v1798 = vmul.f32 %v1586, %v1586
    %v1799 = vsel %vm1734, %v1791, 0.0
    %v1800 = vrot.slane %v1799, 4
    %v1801 = vadd.f32 %v1799, %v1800
    %v1802 = vrot.slane %v1801, 2
    %v1803 = vadd.f32 %v1801, %v1802
    %v1804 = vrot.slane %v1803, 1
    %v1805 = vadd.f32 %v1803, %v1804
    %v1806 = vsel %vm1734, %v1792, 0.0
    %v1807 = vrot.slane %v1806, 4
    %v1808 = vadd.f32 %v1806, %v1807
    %v1809 = vrot.slane %v1808, 2
    %v1810 = vadd.f32 %v1808, %v1809
    %v1811 = vrot.slane %v1810, 1
    %v1812 = vadd.f32 %v1810, %v1811
    %v1813 = vsel %vm1734, %v1793, 0.0
    %v1814 = vrot.slane %v1813, 4
    %v1815 = vadd.f32 %v1813, %v1814
    %v1816 = vrot.slane %v1815, 2
    %v1817 = vadd.f32 %v1815, %v1816
    %v1818 = vrot.slane %v1817, 1
    %v1819 = vadd.f32 %v1817, %v1818
    %v1820 = vsel %vm1734, %v1794, 0.0
    %v1821 = vrot.slane %v1820, 4
    %v1822 = vadd.f32 %v1820, %v1821
    %v1823 = vrot.slane %v1822, 2
    %v1824 = vadd.f32 %v1822, %v1823
    %v1825 = vrot.slane %v1824, 1
    %v1826 = vadd.f32 %v1824, %v1825
    %v1827 = vsel %vm1734, %v1795, 0.0
    %v1828 = vrot.slane %v1827, 4
    %v1829 = vadd.f32 %v1827, %v1828
    %v1830 = vrot.slane %v1829, 2
    %v1831 = vadd.f32 %v1829, %v1830
    %v1832 = vrot.slane %v1831, 1
    %v1833 = vadd.f32 %v1831, %v1832
    %v1834 = vsel %vm1734, %v1796, 0.0
    %v1835 = vrot.slane %v1834, 4
    %v1836 = vadd.f32 %v1834, %v1835
    %v1837 = vrot.slane %v1836, 2
    %v1838 = vadd.f32 %v1836, %v1837
    %v1839 = vrot.slane %v1838, 1
    %v1840 = vadd.f32 %v1838, %v1839
    %v1841 = vsel %vm1734, %v1797, 0.0
    %v1842 = vrot.slane %v1841, 4
    %v1843 = vadd.f32 %v1841, %v1842
    %v1844 = vrot.slane %v1843, 2
    %v1845 = vadd.f32 %v1843, %v1844
    %v1846 = vrot.slane %v1845, 1
    %v1847 = vadd.f32 %v1845, %v1846
    %v1848 = vsel %vm1734, %v1798, 0.0
    %v1849 = vrot.slane %v1848, 4
    %v1850 = vadd.f32 %v1848, %v1849
    %v1851 = vrot.slane %v1850, 2
    %v1852 = vadd.f32 %v1850, %v1851
    %v1853 = vrot.slane %v1852, 1
    %v1854 = vadd.f32 %v1852, %v1853
    %1855 = vmatprep.subr.mxu0 0.0
    %1856 = vmatpush1.msra.mxu0 %v1588
    %1857 = vmatprep.subr.mxu0 0.0
    %1858 = vmatpush1.msra.mxu0 %v1589
    %1859 = vmatprep.subr.mxu0 0.0
    %1860 = vmatpush1.msra.mxu0 %v1590
    %1861 = vmatprep.subr.mxu0 0.0
    %1862 = vmatpush1.msra.mxu0 %v1591
    %1863 = vmatprep.subr.mxu0 0.0
    %1864 = vmatpush1.msra.mxu0 %v1592
    %1865 = vmatprep.subr.mxu0 0.0
    %1866 = vmatpush1.msra.mxu0 %v1593
    %1867 = vmatprep.subr.mxu0 0.0
    %1868 = vmatpush1.msra.mxu0 %v1594
    %1869 = vmatprep.subr.mxu0 0.0
    %1870 = vmatpush1.msra.mxu0 %v1595
    %1871 = vmatprep.subr.mxu0 0.0
    %1872 = vmatpush1.msra.mxu0 %v1596
    %1873 = vmatprep.subr.mxu0 0.0
    %1874 = vmatpush1.msra.mxu0 %v1597
    %1875 = vmatprep.subr.mxu0 0.0
    %1876 = vmatpush1.msra.mxu0 %v1598
    %1877 = vmatprep.subr.mxu0 0.0
    %1878 = vmatpush1.msra.mxu0 %v1599
    %1879 = vmatprep.subr.mxu0 0.0
    %1880 = vmatpush1.msra.mxu0 %v1600
    %1881 = vmatprep.subr.mxu0 0.0
    %1882 = vmatpush1.msra.mxu0 %v1601
    %1883 = vmatprep.subr.mxu0 0.0
    %1884 = vmatpush1.msra.mxu0 %v1602
    %1885 = vmatprep.subr.mxu0 0.0
    %1886 = vmatpush1.msra.mxu0 %v1603
    %1887 = vmatprep.subr.mxu0 0.0
    %1888 = vmatpush1.msra.mxu0 %v1604
    %1889 = vmatprep.subr.mxu0 0.0
    %1890 = vmatpush1.msra.mxu0 %v1605
    %1891 = vmatprep.subr.mxu0 0.0
    %1892 = vmatpush1.msra.mxu0 %v1606
    %1893 = vmatprep.subr.mxu0 0.0
    %1894 = vmatpush1.msra.mxu0 %v1607
    %1895 = vmatprep.subr.mxu0 0.0
    %1896 = vmatpush1.msra.mxu0 %v1608
    %1897 = vmatprep.subr.mxu0 0.0
    %1898 = vmatpush1.msra.mxu0 %v1609
    %1899 = vmatprep.subr.mxu0 0.0
    %1900 = vmatpush1.msra.mxu0 %v1610
    %1901 = vmatprep.subr.mxu0 0.0
    %1902 = vmatpush1.msra.mxu0 %v1611
    %1903 = vmatprep.subr.mxu0 0.0
    %1904 = vmatpush1.msra.mxu0 %v1612
    %1905 = vmatprep.subr.mxu0 0.0
    %1906 = vmatpush1.msra.mxu0 %v1613
    %1907 = vmatprep.subr.mxu0 0.0
    %1908 = vmatpush1.msra.mxu0 %v1614
    %1909 = vmatprep.subr.mxu0 0.0
    %1910 = vmatpush1.msra.mxu0 %v1615
    %1911 = vmatprep.subr.mxu0 0.0
    %1912 = vmatpush1.msra.mxu0 %v1616
    %1913 = vmatprep.subr.mxu0 0.0
    %1914 = vmatpush1.msra.mxu0 %v1617
    %1915 = vmatprep.subr.mxu0 0.0
    %1916 = vmatpush1.msra.mxu0 %v1618
    %1917 = vmatprep.subr.mxu0 0.0
    %1918 = vmatpush1.msra.mxu0 %v1619
    %1919 = vmatprep.mubr.f32.mxu0 %v1748
    %1920 = vmatmul.mubr.f32.gmra.mrb[0].mxu0 %v1741
    %v1921 = vpop.f32.mrb[0].mxu0
    %v1922 = vadd.f32 0.0, %v1921
    %v1923 = vpop.f32.mrb[0].mxu0
    %1924 = vdwg.mxu0
    %1925 = vmatprep.subr.mxu0 0.0
    %1926 = vmatpush1.msra.mxu0 %v1620
    %1927 = vmatprep.subr.mxu0 0.0
    %1928 = vmatpush1.msra.mxu0 %v1621
    %1929 = vmatprep.subr.mxu0 0.0
    %1930 = vmatpush1.msra.mxu0 %v1622
    %1931 = vmatprep.subr.mxu0 0.0
    %1932 = vmatpush1.msra.mxu0 %v1623
    %1933 = vmatprep.subr.mxu0 0.0
    %1934 = vmatpush1.msra.mxu0 %v1624
    %1935 = vmatprep.subr.mxu0 0.0
    %1936 = vmatpush1.msra.mxu0 %v1625
    %1937 = vmatprep.subr.mxu0 0.0
    %1938 = vmatpush1.msra.mxu0 %v1626
    %1939 = vmatprep.subr.mxu0 0.0
    %1940 = vmatpush1.msra.mxu0 %v1627
    %1941 = vmatprep.subr.mxu0 0.0
    %1942 = vmatpush1.msra.mxu0 %v1628
    %1943 = vmatprep.subr.mxu0 0.0
    %1944 = vmatpush1.msra.mxu0 %v1629
    %1945 = vmatprep.subr.mxu0 0.0
    %1946 = vmatpush1.msra.mxu0 %v1630
    %1947 = vmatprep.subr.mxu0 0.0
    %1948 = vmatpush1.msra.mxu0 %v1631
    %1949 = vmatprep.subr.mxu0 0.0
    %1950 = vmatpush1.msra.mxu0 %v1632
    %1951 = vmatprep.subr.mxu0 0.0
    %1952 = vmatpush1.msra.mxu0 %v1633
    %1953 = vmatprep.subr.mxu0 0.0
    %1954 = vmatpush1.msra.mxu0 %v1634
    %1955 = vmatprep.subr.mxu0 0.0
    %1956 = vmatpush1.msra.mxu0 %v1635
    %1957 = vmatprep.subr.mxu0 0.0
    %1958 = vmatpush1.msra.mxu0 %v1636
    %1959 = vmatprep.subr.mxu0 0.0
    %1960 = vmatpush1.msra.mxu0 %v1637
    %1961 = vmatprep.subr.mxu0 0.0
    %1962 = vmatpush1.msra.mxu0 %v1638
    %1963 = vmatprep.subr.mxu0 0.0
    %1964 = vmatpush1.msra.mxu0 %v1639
    %1965 = vmatprep.subr.mxu0 0.0
    %1966 = vmatpush1.msra.mxu0 %v1640
    %1967 = vmatprep.subr.mxu0 0.0
    %1968 = vmatpush1.msra.mxu0 %v1641
    %1969 = vmatprep.subr.mxu0 0.0
    %1970 = vmatpush1.msra.mxu0 %v1642
    %1971 = vmatprep.subr.mxu0 0.0
    %1972 = vmatpush1.msra.mxu0 %v1643
    %1973 = vmatprep.subr.mxu0 0.0
    %1974 = vmatpush1.msra.mxu0 %v1644
    %1975 = vmatprep.subr.mxu0 0.0
    %1976 = vmatpush1.msra.mxu0 %v1645
    %1977 = vmatprep.subr.mxu0 0.0
    %1978 = vmatpush1.msra.mxu0 %v1646
    %1979 = vmatprep.subr.mxu0 0.0
    %1980 = vmatpush1.msra.mxu0 %v1647
    %1981 = vmatprep.subr.mxu0 0.0
    %1982 = vmatpush1.msra.mxu0 %v1648
    %1983 = vmatprep.subr.mxu0 0.0
    %1984 = vmatpush1.msra.mxu0 %v1649
    %1985 = vmatprep.subr.mxu0 0.0
    %1986 = vmatpush1.msra.mxu0 %v1650
    %1987 = vmatprep.subr.mxu0 0.0
    %1988 = vmatpush1.msra.mxu0 %v1651
    %1989 = vmatprep.mubr.f32.mxu0 %v1762
    %1990 = vmatmul.mubr.f32.gmra.mrb[0].mxu0 %v1755
    %v1991 = vpop.f32.mrb[0].mxu0
    %v1992 = vadd.f32 %v1922, %v1991
    %v1993 = vpop.f32.mrb[0].mxu0
    %1994 = vdwg.mxu0
    %1995 = vmatprep.subr.mxu0 0.0
    %1996 = vmatpush1.msra.mxu0 %v1652
    %1997 = vmatprep.subr.mxu0 0.0
    %1998 = vmatpush1.msra.mxu0 %v1653
    %1999 = vmatprep.subr.mxu0 0.0
    %2000 = vmatpush1.msra.mxu0 %v1654
    %2001 = vmatprep.subr.mxu0 0.0
    %2002 = vmatpush1.msra.mxu0 %v1655
    %2003 = vmatprep.subr.mxu0 0.0
    %2004 = vmatpush1.msra.mxu0 %v1656
    %2005 = vmatprep.subr.mxu0 0.0
    %2006 = vmatpush1.msra.mxu0 %v1657
    %2007 = vmatprep.subr.mxu0 0.0
    %2008 = vmatpush1.msra.mxu0 %v1658
    %2009 = vmatprep.subr.mxu0 0.0
    %2010 = vmatpush1.msra.mxu0 %v1659
    %2011 = vmatprep.subr.mxu0 0.0
    %2012 = vmatpush1.msra.mxu0 %v1660
    %2013 = vmatprep.subr.mxu0 0.0
    %2014 = vmatpush1.msra.mxu0 %v1661
    %2015 = vmatprep.subr.mxu0 0.0
    %2016 = vmatpush1.msra.mxu0 %v1662
    %2017 = vmatprep.subr.mxu0 0.0
    %2018 = vmatpush1.msra.mxu0 %v1663
    %2019 = vmatprep.subr.mxu0 0.0
    %2020 = vmatpush1.msra.mxu0 %v1664
    %2021 = vmatprep.subr.mxu0 0.0
    %2022 = vmatpush1.msra.mxu0 %v1665
    %2023 = vmatprep.subr.mxu0 0.0
    %2024 = vmatpush1.msra.mxu0 %v1666
    %2025 = vmatprep.subr.mxu0 0.0
    %2026 = vmatpush1.msra.mxu0 %v1667
    %2027 = vmatprep.subr.mxu0 0.0
    %2028 = vmatpush1.msra.mxu0 %v1668
    %2029 = vmatprep.subr.mxu0 0.0
    %2030 = vmatpush1.msra.mxu0 %v1669
    %2031 = vmatprep.subr.mxu0 0.0
    %2032 = vmatpush1.msra.mxu0 %v1670
    %2033 = vmatprep.subr.mxu0 0.0
    %2034 = vmatpush1.msra.mxu0 %v1671
    %2035 = vmatprep.subr.mxu0 0.0
    %2036 = vmatpush1.msra.mxu0 %v1672
    %2037 = vmatprep.subr.mxu0 0.0
    %2038 = vmatpush1.msra.mxu0 %v1673
    %2039 = vmatprep.subr.mxu0 0.0
    %2040 = vmatpush1.msra.mxu0 %v1674
    %2041 = vmatprep.subr.mxu0 0.0
    %2042 = vmatpush1.msra.mxu0 %v1675
    %2043 = vmatprep.subr.mxu0 0.0
    %2044 = vmatpush1.msra.mxu0 %v1676
    %2045 = vmatprep.subr.mxu0 0.0
    %2046 = vmatpush1.msra.mxu0 %v1677
    %2047 = vmatprep.subr.mxu0 0.0
    %2048 = vmatpush1.msra.mxu0 %v1678
    %2049 = vmatprep.subr.mxu0 0.0
    %2050 = vmatpush1.msra.mxu0 %v1679
    %2051 = vmatprep.subr.mxu0 0.0
    %2052 = vmatpush1.msra.mxu0 %v1680
    %2053 = vmatprep.subr.mxu0 0.0
    %2054 = vmatpush1.msra.mxu0 %v1681
    %2055 = vmatprep.subr.mxu0 0.0
    %2056 = vmatpush1.msra.mxu0 %v1682
    %2057 = vmatprep.subr.mxu0 0.0
    %2058 = vmatpush1.msra.mxu0 %v1683
    %2059 = vmatprep.mubr.f32.mxu0 %v1776
    %2060 = vmatmul.mubr.f32.gmra.mrb[0].mxu0 %v1769
    %v2061 = vpop.f32.mrb[0].mxu0
    %v2062 = vadd.f32 %v1992, %v2061
    %v2063 = vpop.f32.mrb[0].mxu0
    %2064 = vdwg.mxu0
    %2065 = vmatprep.subr.mxu0 0.0
    %2066 = vmatpush1.msra.mxu0 %v1684
    %2067 = vmatprep.subr.mxu0 0.0
    %2068 = vmatpush1.msra.mxu0 %v1685
    %2069 = vmatprep.subr.mxu0 0.0
    %2070 = vmatpush1.msra.mxu0 %v1686
    %2071 = vmatprep.subr.mxu0 0.0
    %2072 = vmatpush1.msra.mxu0 %v1687
    %2073 = vmatprep.subr.mxu0 0.0
    %2074 = vmatpush1.msra.mxu0 %v1688
    %2075 = vmatprep.subr.mxu0 0.0
    %2076 = vmatpush1.msra.mxu0 %v1689
    %2077 = vmatprep.subr.mxu0 0.0
    %2078 = vmatpush1.msra.mxu0 %v1690
    %2079 = vmatprep.subr.mxu0 0.0
    %2080 = vmatpush1.msra.mxu0 %v1691
    %2081 = vmatprep.subr.mxu0 0.0
    %2082 = vmatpush1.msra.mxu0 %v1692
    %2083 = vmatprep.subr.mxu0 0.0
    %2084 = vmatpush1.msra.mxu0 %v1693
    %2085 = vmatprep.subr.mxu0 0.0
    %2086 = vmatpush1.msra.mxu0 %v1694
    %2087 = vmatprep.subr.mxu0 0.0
    %2088 = vmatpush1.msra.mxu0 %v1695
    %2089 = vmatprep.subr.mxu0 0.0
    %2090 = vmatpush1.msra.mxu0 %v1696
    %2091 = vmatprep.subr.mxu0 0.0
    %2092 = vmatpush1.msra.mxu0 %v1697
    %2093 = vmatprep.subr.mxu0 0.0
    %2094 = vmatpush1.msra.mxu0 %v1698
    %2095 = vmatprep.subr.mxu0 0.0
    %2096 = vmatpush1.msra.mxu0 %v1699
    %2097 = vmatprep.subr.mxu0 0.0
    %2098 = vmatpush1.msra.mxu0 %v1700
    %2099 = vmatprep.subr.mxu0 0.0
    %2100 = vmatpush1.msra.mxu0 %v1701
    %2101 = vmatprep.subr.mxu0 0.0
    %2102 = vmatpush1.msra.mxu0 %v1702
    %2103 = vmatprep.subr.mxu0 0.0
    %2104 = vmatpush1.msra.mxu0 %v1703
    %2105 = vmatprep.subr.mxu0 0.0
    %2106 = vmatpush1.msra.mxu0 %v1704
    %2107 = vmatprep.subr.mxu0 0.0
    %2108 = vmatpush1.msra.mxu0 %v1705
    %2109 = vmatprep.subr.mxu0 0.0
    %2110 = vmatpush1.msra.mxu0 %v1706
    %2111 = vmatprep.subr.mxu0 0.0
    %2112 = vmatpush1.msra.mxu0 %v1707
    %2113 = vmatprep.subr.mxu0 0.0
    %2114 = vmatpush1.msra.mxu0 %v1708
    %2115 = vmatprep.subr.mxu0 0.0
    %2116 = vmatpush1.msra.mxu0 %v1709
    %2117 = vmatprep.subr.mxu0 0.0
    %2118 = vmatpush1.msra.mxu0 %v1710
    %2119 = vmatprep.subr.mxu0 0.0
    %2120 = vmatpush1.msra.mxu0 %v1711
    %2121 = vmatprep.subr.mxu0 0.0
    %2122 = vmatpush1.msra.mxu0 %v1712
    %2123 = vmatprep.subr.mxu0 0.0
    %2124 = vmatpush1.msra.mxu0 %v1713
    %2125 = vmatprep.subr.mxu0 0.0
    %2126 = vmatpush1.msra.mxu0 %v1714
    %2127 = vmatprep.subr.mxu0 0.0
    %2128 = vmatpush1.msra.mxu0 %v1715
    %2129 = vmatprep.mubr.f32.mxu0 %v1790
    %2130 = vmatmul.mubr.f32.gmra.mrb[0].mxu0 %v1783
    %v2131 = vpop.f32.mrb[0].mxu0
    %v2132 = vadd.f32 %v2062, %v2131
    %v2133 = vpop.f32.mrb[0].mxu0
    %2134 = vdwg.mxu0
    %v2135 = vmul.f32 %v2132, 0.5
    %2136 = vmatprep.subr.mxu0 0.0
    %2137 = vmatpush1.msra.mxu0 %v1588
    %2138 = vmatprep.subr.mxu0 0.0
    %2139 = vmatpush1.msra.mxu0 %v1589
    %2140 = vmatprep.subr.mxu0 0.0
    %2141 = vmatpush1.msra.mxu0 %v1590
    %2142 = vmatprep.subr.mxu0 0.0
    %2143 = vmatpush1.msra.mxu0 %v1591
    %2144 = vmatprep.subr.mxu0 0.0
    %2145 = vmatpush1.msra.mxu0 %v1592
    %2146 = vmatprep.subr.mxu0 0.0
    %2147 = vmatpush1.msra.mxu0 %v1593
    %2148 = vmatprep.subr.mxu0 0.0
    %2149 = vmatpush1.msra.mxu0 %v1594
    %2150 = vmatprep.subr.mxu0 0.0
    %2151 = vmatpush1.msra.mxu0 %v1595
    %2152 = vmatprep.subr.mxu0 0.0
    %2153 = vmatpush1.msra.mxu0 %v1596
    %2154 = vmatprep.subr.mxu0 0.0
    %2155 = vmatpush1.msra.mxu0 %v1597
    %2156 = vmatprep.subr.mxu0 0.0
    %2157 = vmatpush1.msra.mxu0 %v1598
    %2158 = vmatprep.subr.mxu0 0.0
    %2159 = vmatpush1.msra.mxu0 %v1599
    %2160 = vmatprep.subr.mxu0 0.0
    %2161 = vmatpush1.msra.mxu0 %v1600
    %2162 = vmatprep.subr.mxu0 0.0
    %2163 = vmatpush1.msra.mxu0 %v1601
    %2164 = vmatprep.subr.mxu0 0.0
    %2165 = vmatpush1.msra.mxu0 %v1602
    %2166 = vmatprep.subr.mxu0 0.0
    %2167 = vmatpush1.msra.mxu0 %v1603
    %2168 = vmatprep.subr.mxu0 0.0
    %2169 = vmatpush1.msra.mxu0 %v1604
    %2170 = vmatprep.subr.mxu0 0.0
    %2171 = vmatpush1.msra.mxu0 %v1605
    %2172 = vmatprep.subr.mxu0 0.0
    %2173 = vmatpush1.msra.mxu0 %v1606
    %2174 = vmatprep.subr.mxu0 0.0
    %2175 = vmatpush1.msra.mxu0 %v1607
    %2176 = vmatprep.subr.mxu0 0.0
    %2177 = vmatpush1.msra.mxu0 %v1608
    %2178 = vmatprep.subr.mxu0 0.0
    %2179 = vmatpush1.msra.mxu0 %v1609
    %2180 = vmatprep.subr.mxu0 0.0
    %2181 = vmatpush1.msra.mxu0 %v1610
    %2182 = vmatprep.subr.mxu0 0.0
    %2183 = vmatpush1.msra.mxu0 %v1611
    %2184 = vmatprep.subr.mxu0 0.0
    %2185 = vmatpush1.msra.mxu0 %v1612
    %2186 = vmatprep.subr.mxu0 0.0
    %2187 = vmatpush1.msra.mxu0 %v1613
    %2188 = vmatprep.subr.mxu0 0.0
    %2189 = vmatpush1.msra.mxu0 %v1614
    %2190 = vmatprep.subr.mxu0 0.0
    %2191 = vmatpush1.msra.mxu0 %v1615
    %2192 = vmatprep.subr.mxu0 0.0
    %2193 = vmatpush1.msra.mxu0 %v1616
    %2194 = vmatprep.subr.mxu0 0.0
    %2195 = vmatpush1.msra.mxu0 %v1617
    %2196 = vmatprep.subr.mxu0 0.0
    %2197 = vmatpush1.msra.mxu0 %v1618
    %2198 = vmatprep.subr.mxu0 0.0
    %2199 = vmatpush1.msra.mxu0 %v1619
    %2200 = vmatprep.mubr.f32.mxu0 %v1812
    %2201 = vmatmul.mubr.f32.gmra.mrb[0].mxu0 %v1805
    %v2202 = vpop.f32.mrb[0].mxu0
    %v2203 = vadd.f32 0.0, %v2202
    %v2204 = vpop.f32.mrb[0].mxu0
    %2205 = vdwg.mxu0
    %2206 = vmatprep.subr.mxu0 0.0
    %2207 = vmatpush1.msra.mxu0 %v1620
    %2208 = vmatprep.subr.mxu0 0.0
    %2209 = vmatpush1.msra.mxu0 %v1621
    %2210 = vmatprep.subr.mxu0 0.0
    %2211 = vmatpush1.msra.mxu0 %v1622
    %2212 = vmatprep.subr.mxu0 0.0
    %2213 = vmatpush1.msra.mxu0 %v1623
    %2214 = vmatprep.subr.mxu0 0.0
    %2215 = vmatpush1.msra.mxu0 %v1624
    %2216 = vmatprep.subr.mxu0 0.0
    %2217 = vmatpush1.msra.mxu0 %v1625
    %2218 = vmatprep.subr.mxu0 0.0
    %2219 = vmatpush1.msra.mxu0 %v1626
    %2220 = vmatprep.subr.mxu0 0.0
    %2221 = vmatpush1.msra.mxu0 %v1627
    %2222 = vmatprep.subr.mxu0 0.0
    %2223 = vmatpush1.msra.mxu0 %v1628
    %2224 = vmatprep.subr.mxu0 0.0
    %2225 = vmatpush1.msra.mxu0 %v1629
    %2226 = vmatprep.subr.mxu0 0.0
    %2227 = vmatpush1.msra.mxu0 %v1630
    %2228 = vmatprep.subr.mxu0 0.0
    %2229 = vmatpush1.msra.mxu0 %v1631
    %2230 = vmatprep.subr.mxu0 0.0
    %2231 = vmatpush1.msra.mxu0 %v1632
    %2232 = vmatprep.subr.mxu0 0.0
    %2233 = vmatpush1.msra.mxu0 %v1633
    %2234 = vmatprep.subr.mxu0 0.0
    %2235 = vmatpush1.msra.mxu0 %v1634
    %2236 = vmatprep.subr.mxu0 0.0
    %2237 = vmatpush1.msra.mxu0 %v1635
    %2238 = vmatprep.subr.mxu0 0.0
    %2239 = vmatpush1.msra.mxu0 %v1636
    %2240 = vmatprep.subr.mxu0 0.0
    %2241 = vmatpush1.msra.mxu0 %v1637
    %2242 = vmatprep.subr.mxu0 0.0
    %2243 = vmatpush1.msra.mxu0 %v1638
    %2244 = vmatprep.subr.mxu0 0.0
    %2245 = vmatpush1.msra.mxu0 %v1639
    %2246 = vmatprep.subr.mxu0 0.0
    %2247 = vmatpush1.msra.mxu0 %v1640
    %2248 = vmatprep.subr.mxu0 0.0
    %2249 = vmatpush1.msra.mxu0 %v1641
    %2250 = vmatprep.subr.mxu0 0.0
    %2251 = vmatpush1.msra.mxu0 %v1642
    %2252 = vmatprep.subr.mxu0 0.0
    %2253 = vmatpush1.msra.mxu0 %v1643
    %2254 = vmatprep.subr.mxu0 0.0
    %2255 = vmatpush1.msra.mxu0 %v1644
    %2256 = vmatprep.subr.mxu0 0.0
    %2257 = vmatpush1.msra.mxu0 %v1645
    %2258 = vmatprep.subr.mxu0 0.0
    %2259 = vmatpush1.msra.mxu0 %v1646
    %2260 = vmatprep.subr.mxu0 0.0
    %2261 = vmatpush1.msra.mxu0 %v1647
    %2262 = vmatprep.subr.mxu0 0.0
    %2263 = vmatpush1.msra.mxu0 %v1648
    %2264 = vmatprep.subr.mxu0 0.0
    %2265 = vmatpush1.msra.mxu0 %v1649
    %2266 = vmatprep.subr.mxu0 0.0
    %2267 = vmatpush1.msra.mxu0 %v1650
    %2268 = vmatprep.subr.mxu0 0.0
    %2269 = vmatpush1.msra.mxu0 %v1651
    %2270 = vmatprep.mubr.f32.mxu0 %v1826
    %2271 = vmatmul.mubr.f32.gmra.mrb[0].mxu0 %v1819
    %v2272 = vpop.f32.mrb[0].mxu0
    %v2273 = vadd.f32 %v2203, %v2272
    %v2274 = vpop.f32.mrb[0].mxu0
    %2275 = vdwg.mxu0
    %2276 = vmatprep.subr.mxu0 0.0
    %2277 = vmatpush1.msra.mxu0 %v1652
    %2278 = vmatprep.subr.mxu0 0.0
    %2279 = vmatpush1.msra.mxu0 %v1653
    %2280 = vmatprep.subr.mxu0 0.0
    %2281 = vmatpush1.msra.mxu0 %v1654
    %2282 = vmatprep.subr.mxu0 0.0
    %2283 = vmatpush1.msra.mxu0 %v1655
    %2284 = vmatprep.subr.mxu0 0.0
    %2285 = vmatpush1.msra.mxu0 %v1656
    %2286 = vmatprep.subr.mxu0 0.0
    %2287 = vmatpush1.msra.mxu0 %v1657
    %2288 = vmatprep.subr.mxu0 0.0
    %2289 = vmatpush1.msra.mxu0 %v1658
    %2290 = vmatprep.subr.mxu0 0.0
    %2291 = vmatpush1.msra.mxu0 %v1659
    %2292 = vmatprep.subr.mxu0 0.0
    %2293 = vmatpush1.msra.mxu0 %v1660
    %2294 = vmatprep.subr.mxu0 0.0
    %2295 = vmatpush1.msra.mxu0 %v1661
    %2296 = vmatprep.subr.mxu0 0.0
    %2297 = vmatpush1.msra.mxu0 %v1662
    %2298 = vmatprep.subr.mxu0 0.0
    %2299 = vmatpush1.msra.mxu0 %v1663
    %2300 = vmatprep.subr.mxu0 0.0
    %2301 = vmatpush1.msra.mxu0 %v1664
    %2302 = vmatprep.subr.mxu0 0.0
    %2303 = vmatpush1.msra.mxu0 %v1665
    %2304 = vmatprep.subr.mxu0 0.0
    %2305 = vmatpush1.msra.mxu0 %v1666
    %2306 = vmatprep.subr.mxu0 0.0
    %2307 = vmatpush1.msra.mxu0 %v1667
    %2308 = vmatprep.subr.mxu0 0.0
    %2309 = vmatpush1.msra.mxu0 %v1668
    %2310 = vmatprep.subr.mxu0 0.0
    %2311 = vmatpush1.msra.mxu0 %v1669
    %2312 = vmatprep.subr.mxu0 0.0
    %2313 = vmatpush1.msra.mxu0 %v1670
    %2314 = vmatprep.subr.mxu0 0.0
    %2315 = vmatpush1.msra.mxu0 %v1671
    %2316 = vmatprep.subr.mxu0 0.0
    %2317 = vmatpush1.msra.mxu0 %v1672
    %2318 = vmatprep.subr.mxu0 0.0
    %2319 = vmatpush1.msra.mxu0 %v1673
    %2320 = vmatprep.subr.mxu0 0.0
    %2321 = vmatpush1.msra.mxu0 %v1674
    %2322 = vmatprep.subr.mxu0 0.0
    %2323 = vmatpush1.msra.mxu0 %v1675
    %2324 = vmatprep.subr.mxu0 0.0
    %2325 = vmatpush1.msra.mxu0 %v1676
    %2326 = vmatprep.subr.mxu0 0.0
    %2327 = vmatpush1.msra.mxu0 %v1677
    %2328 = vmatprep.subr.mxu0 0.0
    %2329 = vmatpush1.msra.mxu0 %v1678
    %2330 = vmatprep.subr.mxu0 0.0
    %2331 = vmatpush1.msra.mxu0 %v1679
    %2332 = vmatprep.subr.mxu0 0.0
    %2333 = vmatpush1.msra.mxu0 %v1680
    %2334 = vmatprep.subr.mxu0 0.0
    %2335 = vmatpush1.msra.mxu0 %v1681
    %2336 = vmatprep.subr.mxu0 0.0
    %2337 = vmatpush1.msra.mxu0 %v1682
    %2338 = vmatprep.subr.mxu0 0.0
    %2339 = vmatpush1.msra.mxu0 %v1683
    %2340 = vmatprep.mubr.f32.mxu0 %v1840
    %2341 = vmatmul.mubr.f32.gmra.mrb[0].mxu0 %v1833
    %v2342 = vpop.f32.mrb[0].mxu0
    %v2343 = vadd.f32 %v2273, %v2342
    %v2344 = vpop.f32.mrb[0].mxu0
    %2345 = vdwg.mxu0
    %2346 = vmatprep.subr.mxu0 0.0
    %2347 = vmatpush1.msra.mxu0 %v1684
    %2348 = vmatprep.subr.mxu0 0.0
    %2349 = vmatpush1.msra.mxu0 %v1685
    %2350 = vmatprep.subr.mxu0 0.0
    %2351 = vmatpush1.msra.mxu0 %v1686
    %2352 = vmatprep.subr.mxu0 0.0
    %2353 = vmatpush1.msra.mxu0 %v1687
    %2354 = vmatprep.subr.mxu0 0.0
    %2355 = vmatpush1.msra.mxu0 %v1688
    %2356 = vmatprep.subr.mxu0 0.0
    %2357 = vmatpush1.msra.mxu0 %v1689
    %2358 = vmatprep.subr.mxu0 0.0
    %2359 = vmatpush1.msra.mxu0 %v1690
    %2360 = vmatprep.subr.mxu0 0.0
    %2361 = vmatpush1.msra.mxu0 %v1691
    %2362 = vmatprep.subr.mxu0 0.0
    %2363 = vmatpush1.msra.mxu0 %v1692
    %2364 = vmatprep.subr.mxu0 0.0
    %2365 = vmatpush1.msra.mxu0 %v1693
    %2366 = vmatprep.subr.mxu0 0.0
    %2367 = vmatpush1.msra.mxu0 %v1694
    %2368 = vmatprep.subr.mxu0 0.0
    %2369 = vmatpush1.msra.mxu0 %v1695
    %2370 = vmatprep.subr.mxu0 0.0
    %2371 = vmatpush1.msra.mxu0 %v1696
    %2372 = vmatprep.subr.mxu0 0.0
    %2373 = vmatpush1.msra.mxu0 %v1697
    %2374 = vmatprep.subr.mxu0 0.0
    %2375 = vmatpush1.msra.mxu0 %v1698
    %2376 = vmatprep.subr.mxu0 0.0
    %2377 = vmatpush1.msra.mxu0 %v1699
    %2378 = vmatprep.subr.mxu0 0.0
    %2379 = vmatpush1.msra.mxu0 %v1700
    %2380 = vmatprep.subr.mxu0 0.0
    %2381 = vmatpush1.msra.mxu0 %v1701
    %2382 = vmatprep.subr.mxu0 0.0
    %2383 = vmatpush1.msra.mxu0 %v1702
    %2384 = vmatprep.subr.mxu0 0.0
    %2385 = vmatpush1.msra.mxu0 %v1703
    %2386 = vmatprep.subr.mxu0 0.0
    %2387 = vmatpush1.msra.mxu0 %v1704
    %2388 = vmatprep.subr.mxu0 0.0
    %2389 = vmatpush1.msra.mxu0 %v1705
    %2390 = vmatprep.subr.mxu0 0.0
    %2391 = vmatpush1.msra.mxu0 %v1706
    %2392 = vmatprep.subr.mxu0 0.0
    %2393 = vmatpush1.msra.mxu0 %v1707
    %2394 = vmatprep.subr.mxu0 0.0
    %2395 = vmatpush1.msra.mxu0 %v1708
    %2396 = vmatprep.subr.mxu0 0.0
    %2397 = vmatpush1.msra.mxu0 %v1709
    %2398 = vmatprep.subr.mxu0 0.0
    %2399 = vmatpush1.msra.mxu0 %v1710
    %2400 = vmatprep.subr.mxu0 0.0
    %2401 = vmatpush1.msra.mxu0 %v1711
    %2402 = vmatprep.subr.mxu0 0.0
    %2403 = vmatpush1.msra.mxu0 %v1712
    %2404 = vmatprep.subr.mxu0 0.0
    %2405 = vmatpush1.msra.mxu0 %v1713
    %2406 = vmatprep.subr.mxu0 0.0
    %2407 = vmatpush1.msra.mxu0 %v1714
    %2408 = vmatprep.subr.mxu0 0.0
    %2409 = vmatpush1.msra.mxu0 %v1715
    %2410 = vmatprep.mubr.f32.mxu0 %v1854
    %2411 = vmatmul.mubr.f32.gmra.mrb[0].mxu0 %v1847
    %v2412 = vpop.f32.mrb[0].mxu0
    %v2413 = vadd.f32 %v2343, %v2412
    %v2414 = vpop.f32.mrb[0].mxu0
    %2415 = vdwg.mxu0
    %v2416 = vmul.f32 %v2413, 0.5
    %v2417 = vmul.f32 %v2135, %v2135
    %v2418 = vsub.f32 %v2416, %v2417
    %v2419 = vadd.f32 %v2418, 1e-05
    %v2420 = vrsqrt.pop %v2419
    %v2421 = vmul.f32 %v1732, %v2420
    %v2422 = vmul.f32 %v2135, %v2421
    %v2423 = vsub.f32 %v1733, %v2422
    %vm2424 = vcmask 130048
    %v2426 = vsel %vm2424, %v2421, 0
    %2428 = vmatprep.subr.mxu0 %v1717
    %2429 = vmatpush1.msra.mxu0 %v1716
    %2430 = vmatprep.subr.mxu0 %v1725
    %2431 = vmatpush1.msra.mxu0 %v1724
    %2432 = vmatprep.subr.mxu0 0.0
    %2433 = vmatpush1.msra.mxu0 0.0
    %2434 = vmatprep.subr.mxu0 0.0
    %2435 = vmatpush1.msra.mxu0 0.0
    %2436 = vmatprep.subr.mxu0 0.0
    %2437 = vmatpush1.msra.mxu0 0.0
    %2438 = vmatprep.subr.mxu0 0.0
    %2439 = vmatpush1.msra.mxu0 0.0
    %2440 = vmatprep.subr.mxu0 0.0
    %2441 = vmatpush1.msra.mxu0 0.0
    %2442 = vmatprep.subr.mxu0 0.0
    %2443 = vmatpush1.msra.mxu0 0.0
    %2444 = vmatprep.subr.mxu0 0.0
    %2445 = vmatpush1.msra.mxu0 0.0
    %2446 = vmatprep.subr.mxu0 0.0
    %2447 = vmatpush1.msra.mxu0 0.0
    %2448 = vmatprep.subr.mxu0 0.0
    %2449 = vmatpush1.msra.mxu0 0.0
    %2450 = vmatprep.subr.mxu0 0.0
    %2451 = vmatpush1.msra.mxu0 0.0
    %2452 = vmatprep.subr.mxu0 0.0
    %2453 = vmatpush1.msra.mxu0 0.0
    %2454 = vmatprep.subr.mxu0 0.0
    %2455 = vmatpush1.msra.mxu0 0.0
    %2456 = vmatprep.subr.mxu0 0.0
    %2457 = vmatpush1.msra.mxu0 0.0
    %2458 = vmatprep.subr.mxu0 0.0
    %2459 = vmatpush1.msra.mxu0 0.0
    %2460 = vmatprep.subr.mxu0 0.0
    %2461 = vmatpush1.msra.mxu0 0.0
    %2462 = vmatprep.subr.mxu0 0.0
    %2463 = vmatpush1.msra.mxu0 0.0
    %2464 = vmatprep.subr.mxu0 0.0
    %2465 = vmatpush1.msra.mxu0 0.0
    %2466 = vmatprep.subr.mxu0 0.0
    %2467 = vmatpush1.msra.mxu0 0.0
    %2468 = vmatprep.subr.mxu0 0.0
    %2469 = vmatpush1.msra.mxu0 0.0
    %2470 = vmatprep.subr.mxu0 0.0
    %2471 = vmatpush1.msra.mxu0 0.0
    %2472 = vmatprep.subr.mxu0 0.0
    %2473 = vmatpush1.msra.mxu0 0.0
    %2474 = vmatprep.subr.mxu0 0.0
    %2475 = vmatpush1.msra.mxu0 0.0
    %2476 = vmatprep.subr.mxu0 0.0
    %2477 = vmatpush1.msra.mxu0 0.0
    %2478 = vmatprep.subr.mxu0 0.0
    %2479 = vmatpush1.msra.mxu0 0.0
    %2480 = vmatprep.subr.mxu0 0.0
    %2481 = vmatpush1.msra.mxu0 0.0
    %2482 = vmatprep.subr.mxu0 0.0
    %2483 = vmatpush1.msra.mxu0 0.0
    %2484 = vmatprep.subr.mxu0 0.0
    %2485 = vmatpush1.msra.mxu0 0.0
    %2486 = vmatprep.subr.mxu0 0.0
    %2487 = vmatpush1.msra.mxu0 0.0
    %2488 = vmatprep.subr.mxu0 0.0
    %2489 = vmatpush1.msra.mxu0 0.0
    %2490 = vmatprep.subr.mxu0 0.0
    %2491 = vmatpush1.msra.mxu0 0.0
    %2492 = vmatprep.mubr.f32.mxu0 0.0
    %2493 = vmatmul.mubr.f32.gmra.mrb[0].mxu0 %v2426
    %v2494 = vpop.f32.mrb[0].mxu0
    %v2495 = vadd.f32 0.0, %v2494
    %v2496 = vpop.f32.mrb[0].mxu0
    %v2497 = vadd.f32 0.0, %v2496
    %2498 = vdwg.mxu0
    %2499 = vmatprep.subr.mxu0 %v1719
    %2500 = vmatpush1.msra.mxu0 %v1718
    %2501 = vmatprep.subr.mxu0 %v1727
    %2502 = vmatpush1.msra.mxu0 %v1726
    %2503 = vmatprep.subr.mxu0 0.0
    %2504 = vmatpush1.msra.mxu0 0.0
    %2505 = vmatprep.subr.mxu0 0.0
    %2506 = vmatpush1.msra.mxu0 0.0
    %2507 = vmatprep.subr.mxu0 0.0
    %2508 = vmatpush1.msra.mxu0 0.0
    %2509 = vmatprep.subr.mxu0 0.0
    %2510 = vmatpush1.msra.mxu0 0.0
    %2511 = vmatprep.subr.mxu0 0.0
    %2512 = vmatpush1.msra.mxu0 0.0
    %2513 = vmatprep.subr.mxu0 0.0
    %2514 = vmatpush1.msra.mxu0 0.0
    %2515 = vmatprep.subr.mxu0 0.0
    %2516 = vmatpush1.msra.mxu0 0.0
    %2517 = vmatprep.subr.mxu0 0.0
    %2518 = vmatpush1.msra.mxu0 0.0
    %2519 = vmatprep.subr.mxu0 0.0
    %2520 = vmatpush1.msra.mxu0 0.0
    %2521 = vmatprep.subr.mxu0 0.0
    %2522 = vmatpush1.msra.mxu0 0.0
    %2523 = vmatprep.subr.mxu0 0.0
    %2524 = vmatpush1.msra.mxu0 0.0
    %2525 = vmatprep.subr.mxu0 0.0
    %2526 = vmatpush1.msra.mxu0 0.0
    %2527 = vmatprep.subr.mxu0 0.0
    %2528 = vmatpush1.msra.mxu0 0.0
    %2529 = vmatprep.subr.mxu0 0.0
    %2530 = vmatpush1.msra.mxu0 0.0
    %2531 = vmatprep.subr.mxu0 0.0
    %2532 = vmatpush1.msra.mxu0 0.0
    %2533 = vmatprep.subr.mxu0 0.0
    %2534 = vmatpush1.msra.mxu0 0.0
    %2535 = vmatprep.subr.mxu0 0.0
    %2536 = vmatpush1.msra.mxu0 0.0
    %2537 = vmatprep.subr.mxu0 0.0
    %2538 = vmatpush1.msra.mxu0 0.0
    %2539 = vmatprep.subr.mxu0 0.0
    %2540 = vmatpush1.msra.mxu0 0.0
    %2541 = vmatprep.subr.mxu0 0.0
    %2542 = vmatpush1.msra.mxu0 0.0
    %2543 = vmatprep.subr.mxu0 0.0
    %2544 = vmatpush1.msra.mxu0 0.0
    %2545 = vmatprep.subr.mxu0 0.0
    %2546 = vmatpush1.msra.mxu0 0.0
    %2547 = vmatprep.subr.mxu0 0.0
    %2548 = vmatpush1.msra.mxu0 0.0
    %2549 = vmatprep.subr.mxu0 0.0
    %2550 = vmatpush1.msra.mxu0 0.0
    %2551 = vmatprep.subr.mxu0 0.0
    %2552 = vmatpush1.msra.mxu0 0.0
    %2553 = vmatprep.subr.mxu0 0.0
    %2554 = vmatpush1.msra.mxu0 0.0
    %2555 = vmatprep.subr.mxu0 0.0
    %2556 = vmatpush1.msra.mxu0 0.0
    %2557 = vmatprep.subr.mxu0 0.0
    %2558 = vmatpush1.msra.mxu0 0.0
    %2559 = vmatprep.subr.mxu0 0.0
    %2560 = vmatpush1.msra.mxu0 0.0
    %2561 = vmatprep.subr.mxu0 0.0
    %2562 = vmatpush1.msra.mxu0 0.0
    %2563 = vmatprep.mubr.f32.mxu0 0.0
    %2564 = vmatmul.mubr.f32.gmra.mrb[0].mxu0 %v2426
    %v2565 = vpop.f32.mrb[0].mxu0
    %v2566 = vadd.f32 0.0, %v2565
    %v2567 = vpop.f32.mrb[0].mxu0
    %v2568 = vadd.f32 0.0, %v2567
    %2569 = vdwg.mxu0
    %2570 = vmatprep.subr.mxu0 %v1721
    %2571 = vmatpush1.msra.mxu0 %v1720
    %2572 = vmatprep.subr.mxu0 %v1729
    %2573 = vmatpush1.msra.mxu0 %v1728
    %2574 = vmatprep.subr.mxu0 0.0
    %2575 = vmatpush1.msra.mxu0 0.0
    %2576 = vmatprep.subr.mxu0 0.0
    %2577 = vmatpush1.msra.mxu0 0.0
    %2578 = vmatprep.subr.mxu0 0.0
    %2579 = vmatpush1.msra.mxu0 0.0
    %2580 = vmatprep.subr.mxu0 0.0
    %2581 = vmatpush1.msra.mxu0 0.0
    %2582 = vmatprep.subr.mxu0 0.0
    %2583 = vmatpush1.msra.mxu0 0.0
    %2584 = vmatprep.subr.mxu0 0.0
    %2585 = vmatpush1.msra.mxu0 0.0
    %2586 = vmatprep.subr.mxu0 0.0
    %2587 = vmatpush1.msra.mxu0 0.0
    %2588 = vmatprep.subr.mxu0 0.0
    %2589 = vmatpush1.msra.mxu0 0.0
    %2590 = vmatprep.subr.mxu0 0.0
    %2591 = vmatpush1.msra.mxu0 0.0
    %2592 = vmatprep.subr.mxu0 0.0
    %2593 = vmatpush1.msra.mxu0 0.0
    %2594 = vmatprep.subr.mxu0 0.0
    %2595 = vmatpush1.msra.mxu0 0.0
    %2596 = vmatprep.subr.mxu0 0.0
    %2597 = vmatpush1.msra.mxu0 0.0
    %2598 = vmatprep.subr.mxu0 0.0
    %2599 = vmatpush1.msra.mxu0 0.0
    %2600 = vmatprep.subr.mxu0 0.0
    %2601 = vmatpush1.msra.mxu0 0.0
    %2602 = vmatprep.subr.mxu0 0.0
    %2603 = vmatpush1.msra.mxu0 0.0
    %2604 = vmatprep.subr.mxu0 0.0
    %2605 = vmatpush1.msra.mxu0 0.0
    %2606 = vmatprep.subr.mxu0 0.0
    %2607 = vmatpush1.msra.mxu0 0.0
    %2608 = vmatprep.subr.mxu0 0.0
    %2609 = vmatpush1.msra.mxu0 0.0
    %2610 = vmatprep.subr.mxu0 0.0
    %2611 = vmatpush1.msra.mxu0 0.0
    %2612 = vmatprep.subr.mxu0 0.0
    %2613 = vmatpush1.msra.mxu0 0.0
    %2614 = vmatprep.subr.mxu0 0.0
    %2615 = vmatpush1.msra.mxu0 0.0
    %2616 = vmatprep.subr.mxu0 0.0
    %2617 = vmatpush1.msra.mxu0 0.0
    %2618 = vmatprep.subr.mxu0 0.0
    %2619 = vmatpush1.msra.mxu0 0.0
    %2620 = vmatprep.subr.mxu0 0.0
    %2621 = vmatpush1.msra.mxu0 0.0
    %2622 = vmatprep.subr.mxu0 0.0
    %2623 = vmatpush1.msra.mxu0 0.0
    %2624 = vmatprep.subr.mxu0 0.0
    %2625 = vmatpush1.msra.mxu0 0.0
    %2626 = vmatprep.subr.mxu0 0.0
    %2627 = vmatpush1.msra.mxu0 0.0
    %2628 = vmatprep.subr.mxu0 0.0
    %2629 = vmatpush1.msra.mxu0 0.0
    %2630 = vmatprep.subr.mxu0 0.0
    %2631 = vmatpush1.msra.mxu0 0.0
    %2632 = vmatprep.subr.mxu0 0.0
    %2633 = vmatpush1.msra.mxu0 0.0
    %2634 = vmatprep.mubr.f32.mxu0 0.0
    %2635 = vmatmul.mubr.f32.gmra.mrb[0].mxu0 %v2426
    %v2636 = vpop.f32.mrb[0].mxu0
    %v2637 = vadd.f32 0.0, %v2636
    %v2638 = vpop.f32.mrb[0].mxu0
    %v2639 = vadd.f32 0.0, %v2638
    %2640 = vdwg.mxu0
    %2641 = vmatprep.subr.mxu0 %v1723
    %2642 = vmatpush1.msra.mxu0 %v1722
    %2643 = vmatprep.subr.mxu0 %v1731
    %2644 = vmatpush1.msra.mxu0 %v1730
    %2645 = vmatprep.subr.mxu0 0.0
    %2646 = vmatpush1.msra.mxu0 0.0
    %2647 = vmatprep.subr.mxu0 0.0
    %2648 = vmatpush1.msra.mxu0 0.0
    %2649 = vmatprep.subr.mxu0 0.0
    %2650 = vmatpush1.msra.mxu0 0.0
    %2651 = vmatprep.subr.mxu0 0.0
    %2652 = vmatpush1.msra.mxu0 0.0
    %2653 = vmatprep.subr.mxu0 0.0
    %2654 = vmatpush1.msra.mxu0 0.0
    %2655 = vmatprep.subr.mxu0 0.0
    %2656 = vmatpush1.msra.mxu0 0.0
    %2657 = vmatprep.subr.mxu0 0.0
    %2658 = vmatpush1.msra.mxu0 0.0
    %2659 = vmatprep.subr.mxu0 0.0
    %2660 = vmatpush1.msra.mxu0 0.0
    %2661 = vmatprep.subr.mxu0 0.0
    %2662 = vmatpush1.msra.mxu0 0.0
    %2663 = vmatprep.subr.mxu0 0.0
    %2664 = vmatpush1.msra.mxu0 0.0
    %2665 = vmatprep.subr.mxu0 0.0
    %2666 = vmatpush1.msra.mxu0 0.0
    %2667 = vmatprep.subr.mxu0 0.0
    %2668 = vmatpush1.msra.mxu0 0.0
    %2669 = vmatprep.subr.mxu0 0.0
    %2670 = vmatpush1.msra.mxu0 0.0
    %2671 = vmatprep.subr.mxu0 0.0
    %2672 = vmatpush1.msra.mxu0 0.0
    %2673 = vmatprep.subr.mxu0 0.0
    %2674 = vmatpush1.msra.mxu0 0.0
    %2675 = vmatprep.subr.mxu0 0.0
    %2676 = vmatpush1.msra.mxu0 0.0
    %2677 = vmatprep.subr.mxu0 0.0
    %2678 = vmatpush1.msra.mxu0 0.0
    %2679 = vmatprep.subr.mxu0 0.0
    %2680 = vmatpush1.msra.mxu0 0.0
    %2681 = vmatprep.subr.mxu0 0.0
    %2682 = vmatpush1.msra.mxu0 0.0
    %2683 = vmatprep.subr.mxu0 0.0
    %2684 = vmatpush1.msra.mxu0 0.0
    %2685 = vmatprep.subr.mxu0 0.0
    %2686 = vmatpush1.msra.mxu0 0.0
    %2687 = vmatprep.subr.mxu0 0.0
    %2688 = vmatpush1.msra.mxu0 0.0
    %2689 = vmatprep.subr.mxu0 0.0
    %2690 = vmatpush1.msra.mxu0 0.0
    %2691 = vmatprep.subr.mxu0 0.0
    %2692 = vmatpush1.msra.mxu0 0.0
    %2693 = vmatprep.subr.mxu0 0.0
    %2694 = vmatpush1.msra.mxu0 0.0
    %2695 = vmatprep.subr.mxu0 0.0
    %2696 = vmatpush1.msra.mxu0 0.0
    %2697 = vmatprep.subr.mxu0 0.0
    %2698 = vmatpush1.msra.mxu0 0.0
    %2699 = vmatprep.subr.mxu0 0.0
    %2700 = vmatpush1.msra.mxu0 0.0
    %2701 = vmatprep.subr.mxu0 0.0
    %2702 = vmatpush1.msra.mxu0 0.0
    %2703 = vmatprep.subr.mxu0 0.0
    %2704 = vmatpush1.msra.mxu0 0.0
    %2705 = vmatprep.mubr.f32.mxu0 0.0
    %2706 = vmatmul.mubr.f32.gmra.mrb[0].mxu0 %v2426
    %v2707 = vpop.f32.mrb[0].mxu0
    %v2708 = vadd.f32 0.0, %v2707
    %v2709 = vpop.f32.mrb[0].mxu0
    %v2710 = vadd.f32 0.0, %v2709
    %2711 = vdwg.mxu0
    %v2712 = vlaneseq
    %v2713 = vshrl.u32 %v2712, 7
    %v2714 = vsub.s32 0, %v2713
    %v2715 = vrot.slane %v2495, %v2714
    %v2716 = vlaneseq
    %v2717 = vshrl.u32 %v2716, 7
    %v2718 = vsub.s32 0, %v2717
    %v2719 = vrot.slane %v2497, %v2718
    %v2720 = vlaneseq
    %v2721 = vshrl.u32 %v2720, 7
    %v2722 = vsub.s32 0, %v2721
    %v2723 = vrot.slane %v2566, %v2722
    %v2724 = vlaneseq
    %v2725 = vshrl.u32 %v2724, 7
    %v2726 = vsub.s32 0, %v2725
    %v2727 = vrot.slane %v2568, %v2726
    %v2728 = vlaneseq
    %v2729 = vshrl.u32 %v2728, 7
    %v2730 = vsub.s32 0, %v2729
    %v2731 = vrot.slane %v2637, %v2730
    %v2732 = vlaneseq
    %v2733 = vshrl.u32 %v2732, 7
    %v2734 = vsub.s32 0, %v2733
    %v2735 = vrot.slane %v2639, %v2734
    %v2736 = vlaneseq
    %v2737 = vshrl.u32 %v2736, 7
    %v2738 = vsub.s32 0, %v2737
    %v2739 = vrot.slane %v2708, %v2738
    %v2740 = vlaneseq
    %v2741 = vshrl.u32 %v2740, 7
    %v2742 = vsub.s32 0, %v2741
    %v2743 = vrot.slane %v2710, %v2742
    %v2744 = vmul.f32 %v1158, %v2715
    %v2745 = vmul.f32 %v1160, %v2719
    %v2746 = vmul.f32 %v1300, %v2723
    %v2747 = vmul.f32 %v1302, %v2727
    %v2748 = vmul.f32 %v1442, %v2731
    %v2749 = vmul.f32 %v1444, %v2735
    %v2750 = vmul.f32 %v1584, %v2739
    %v2751 = vmul.f32 %v1586, %v2743
    %v2753 = vsel %vm2424, %v2423, 0
    %2755 = vmatprep.subr.mxu0 %v1717
    %2756 = vmatpush1.msra.mxu0 %v1716
    %2757 = vmatprep.subr.mxu0 %v1725
    %2758 = vmatpush1.msra.mxu0 %v1724
    %2759 = vmatprep.subr.mxu0 0.0
    %2760 = vmatpush1.msra.mxu0 0.0
    %2761 = vmatprep.subr.mxu0 0.0
    %2762 = vmatpush1.msra.mxu0 0.0
    %2763 = vmatprep.subr.mxu0 0.0
    %2764 = vmatpush1.msra.mxu0 0.0
    %2765 = vmatprep.subr.mxu0 0.0
    %2766 = vmatpush1.msra.mxu0 0.0
    %2767 = vmatprep.subr.mxu0 0.0
    %2768 = vmatpush1.msra.mxu0 0.0
    %2769 = vmatprep.subr.mxu0 0.0
    %2770 = vmatpush1.msra.mxu0 0.0
    %2771 = vmatprep.subr.mxu0 0.0
    %2772 = vmatpush1.msra.mxu0 0.0
    %2773 = vmatprep.subr.mxu0 0.0
    %2774 = vmatpush1.msra.mxu0 0.0
    %2775 = vmatprep.subr.mxu0 0.0
    %2776 = vmatpush1.msra.mxu0 0.0
    %2777 = vmatprep.subr.mxu0 0.0
    %2778 = vmatpush1.msra.mxu0 0.0
    %2779 = vmatprep.subr.mxu0 0.0
    %2780 = vmatpush1.msra.mxu0 0.0
    %2781 = vmatprep.subr.mxu0 0.0
    %2782 = vmatpush1.msra.mxu0 0.0
    %2783 = vmatprep.subr.mxu0 0.0
    %2784 = vmatpush1.msra.mxu0 0.0
    %2785 = vmatprep.subr.mxu0 0.0
    %2786 = vmatpush1.msra.mxu0 0.0
    %2787 = vmatprep.subr.mxu0 0.0
    %2788 = vmatpush1.msra.mxu0 0.0
    %2789 = vmatprep.subr.mxu0 0.0
    %2790 = vmatpush1.msra.mxu0 0.0
    %2791 = vmatprep.subr.mxu0 0.0
    %2792 = vmatpush1.msra.mxu0 0.0
    %2793 = vmatprep.subr.mxu0 0.0
    %2794 = vmatpush1.msra.mxu0 0.0
    %2795 = vmatprep.subr.mxu0 0.0
    %2796 = vmatpush1.msra.mxu0 0.0
    %2797 = vmatprep.subr.mxu0 0.0
    %2798 = vmatpush1.msra.mxu0 0.0
    %2799 = vmatprep.subr.mxu0 0.0
    %2800 = vmatpush1.msra.mxu0 0.0
    %2801 = vmatprep.subr.mxu0 0.0
    %2802 = vmatpush1.msra.mxu0 0.0
    %2803 = vmatprep.subr.mxu0 0.0
    %2804 = vmatpush1.msra.mxu0 0.0
    %2805 = vmatprep.subr.mxu0 0.0
    %2806 = vmatpush1.msra.mxu0 0.0
    %2807 = vmatprep.subr.mxu0 0.0
    %2808 = vmatpush1.msra.mxu0 0.0
    %2809 = vmatprep.subr.mxu0 0.0
    %2810 = vmatpush1.msra.mxu0 0.0
    %2811 = vmatprep.subr.mxu0 0.0
    %2812 = vmatpush1.msra.mxu0 0.0
    %2813 = vmatprep.subr.mxu0 0.0
    %2814 = vmatpush1.msra.mxu0 0.0
    %2815 = vmatprep.subr.mxu0 0.0
    %2816 = vmatpush1.msra.mxu0 0.0
    %2817 = vmatprep.subr.mxu0 0.0
    %2818 = vmatpush1.msra.mxu0 0.0
    %2819 = vmatprep.mubr.f32.mxu0 0.0
    %2820 = vmatmul.mubr.f32.gmra.mrb[0].mxu0 %v2753
    %v2821 = vpop.f32.mrb[0].mxu0
    %v2822 = vadd.f32 0.0, %v2821
    %v2823 = vpop.f32.mrb[0].mxu0
    %v2824 = vadd.f32 0.0, %v2823
    %2825 = vdwg.mxu0
    %2826 = vmatprep.subr.mxu0 %v1719
    %2827 = vmatpush1.msra.mxu0 %v1718
    %2828 = vmatprep.subr.mxu0 %v1727
    %2829 = vmatpush1.msra.mxu0 %v1726
    %2830 = vmatprep.subr.mxu0 0.0
    %2831 = vmatpush1.msra.mxu0 0.0
    %2832 = vmatprep.subr.mxu0 0.0
    %2833 = vmatpush1.msra.mxu0 0.0
    %2834 = vmatprep.subr.mxu0 0.0
    %2835 = vmatpush1.msra.mxu0 0.0
    %2836 = vmatprep.subr.mxu0 0.0
    %2837 = vmatpush1.msra.mxu0 0.0
    %2838 = vmatprep.subr.mxu0 0.0
    %2839 = vmatpush1.msra.mxu0 0.0
    %2840 = vmatprep.subr.mxu0 0.0
    %2841 = vmatpush1.msra.mxu0 0.0
    %2842 = vmatprep.subr.mxu0 0.0
    %2843 = vmatpush1.msra.mxu0 0.0
    %2844 = vmatprep.subr.mxu0 0.0
    %2845 = vmatpush1.msra.mxu0 0.0
    %2846 = vmatprep.subr.mxu0 0.0
    %2847 = vmatpush1.msra.mxu0 0.0
    %2848 = vmatprep.subr.mxu0 0.0
    %2849 = vmatpush1.msra.mxu0 0.0
    %2850 = vmatprep.subr.mxu0 0.0
    %2851 = vmatpush1.msra.mxu0 0.0
    %2852 = vmatprep.subr.mxu0 0.0
    %2853 = vmatpush1.msra.mxu0 0.0
    %2854 = vmatprep.subr.mxu0 0.0
    %2855 = vmatpush1.msra.mxu0 0.0
    %2856 = vmatprep.subr.mxu0 0.0
    %2857 = vmatpush1.msra.mxu0 0.0
    %2858 = vmatprep.subr.mxu0 0.0
    %2859 = vmatpush1.msra.mxu0 0.0
    %2860 = vmatprep.subr.mxu0 0.0
    %2861 = vmatpush1.msra.mxu0 0.0
    %2862 = vmatprep.subr.mxu0 0.0
    %2863 = vmatpush1.msra.mxu0 0.0
    %2864 = vmatprep.subr.mxu0 0.0
    %2865 = vmatpush1.msra.mxu0 0.0
    %2866 = vmatprep.subr.mxu0 0.0
    %2867 = vmatpush1.msra.mxu0 0.0
    %2868 = vmatprep.subr.mxu0 0.0
    %2869 = vmatpush1.msra.mxu0 0.0
    %2870 = vmatprep.subr.mxu0 0.0
    %2871 = vmatpush1.msra.mxu0 0.0
    %2872 = vmatprep.subr.mxu0 0.0
    %2873 = vmatpush1.msra.mxu0 0.0
    %2874 = vmatprep.subr.mxu0 0.0
    %2875 = vmatpush1.msra.mxu0 0.0
    %2876 = vmatprep.subr.mxu0 0.0
    %2877 = vmatpush1.msra.mxu0 0.0
    %2878 = vmatprep.subr.mxu0 0.0
    %2879 = vmatpush1.msra.mxu0 0.0
    %2880 = vmatprep.subr.mxu0 0.0
    %2881 = vmatpush1.msra.mxu0 0.0
    %2882 = vmatprep.subr.mxu0 0.0
    %2883 = vmatpush1.msra.mxu0 0.0
    %2884 = vmatprep.subr.mxu0 0.0
    %2885 = vmatpush1.msra.mxu0 0.0
    %2886 = vmatprep.subr.mxu0 0.0
    %2887 = vmatpush1.msra.mxu0 0.0
    %2888 = vmatprep.subr.mxu0 0.0
    %2889 = vmatpush1.msra.mxu0 0.0
    %2890 = vmatprep.mubr.f32.mxu0 0.0
    %2891 = vmatmul.mubr.f32.gmra.mrb[0].mxu0 %v2753
    %v2892 = vpop.f32.mrb[0].mxu0
    %v2893 = vadd.f32 0.0, %v2892
    %v2894 = vpop.f32.mrb[0].mxu0
    %v2895 = vadd.f32 0.0, %v2894
    %2896 = vdwg.mxu0
    %2897 = vmatprep.subr.mxu0 %v1721
    %2898 = vmatpush1.msra.mxu0 %v1720
    %2899 = vmatprep.subr.mxu0 %v1729
    %2900 = vmatpush1.msra.mxu0 %v1728
    %2901 = vmatprep.subr.mxu0 0.0
    %2902 = vmatpush1.msra.mxu0 0.0
    %2903 = vmatprep.subr.mxu0 0.0
    %2904 = vmatpush1.msra.mxu0 0.0
    %2905 = vmatprep.subr.mxu0 0.0
    %2906 = vmatpush1.msra.mxu0 0.0
    %2907 = vmatprep.subr.mxu0 0.0
    %2908 = vmatpush1.msra.mxu0 0.0
    %2909 = vmatprep.subr.mxu0 0.0
    %2910 = vmatpush1.msra.mxu0 0.0
    %2911 = vmatprep.subr.mxu0 0.0
    %2912 = vmatpush1.msra.mxu0 0.0
    %2913 = vmatprep.subr.mxu0 0.0
    %2914 = vmatpush1.msra.mxu0 0.0
    %2915 = vmatprep.subr.mxu0 0.0
    %2916 = vmatpush1.msra.mxu0 0.0
    %2917 = vmatprep.subr.mxu0 0.0
    %2918 = vmatpush1.msra.mxu0 0.0
    %2919 = vmatprep.subr.mxu0 0.0
    %2920 = vmatpush1.msra.mxu0 0.0
    %2921 = vmatprep.subr.mxu0 0.0
    %2922 = vmatpush1.msra.mxu0 0.0
    %2923 = vmatprep.subr.mxu0 0.0
    %2924 = vmatpush1.msra.mxu0 0.0
    %2925 = vmatprep.subr.mxu0 0.0
    %2926 = vmatpush1.msra.mxu0 0.0
    %2927 = vmatprep.subr.mxu0 0.0
    %2928 = vmatpush1.msra.mxu0 0.0
    %2929 = vmatprep.subr.mxu0 0.0
    %2930 = vmatpush1.msra.mxu0 0.0
    %2931 = vmatprep.subr.mxu0 0.0
    %2932 = vmatpush1.msra.mxu0 0.0
    %2933 = vmatprep.subr.mxu0 0.0
    %2934 = vmatpush1.msra.mxu0 0.0
    %2935 = vmatprep.subr.mxu0 0.0
    %2936 = vmatpush1.msra.mxu0 0.0
    %2937 = vmatprep.subr.mxu0 0.0
    %2938 = vmatpush1.msra.mxu0 0.0
    %2939 = vmatprep.subr.mxu0 0.0
    %2940 = vmatpush1.msra.mxu0 0.0
    %2941 = vmatprep.subr.mxu0 0.0
    %2942 = vmatpush1.msra.mxu0 0.0
    %2943 = vmatprep.subr.mxu0 0.0
    %2944 = vmatpush1.msra.mxu0 0.0
    %2945 = vmatprep.subr.mxu0 0.0
    %2946 = vmatpush1.msra.mxu0 0.0
    %2947 = vmatprep.subr.mxu0 0.0
    %2948 = vmatpush1.msra.mxu0 0.0
    %2949 = vmatprep.subr.mxu0 0.0
    %2950 = vmatpush1.msra.mxu0 0.0
    %2951 = vmatprep.subr.mxu0 0.0
    %2952 = vmatpush1.msra.mxu0 0.0
    %2953 = vmatprep.subr.mxu0 0.0
    %2954 = vmatpush1.msra.mxu0 0.0
    %2955 = vmatprep.subr.mxu0 0.0
    %2956 = vmatpush1.msra.mxu0 0.0
    %2957 = vmatprep.subr.mxu0 0.0
    %2958 = vmatpush1.msra.mxu0 0.0
    %2959 = vmatprep.subr.mxu0 0.0
    %2960 = vmatpush1.msra.mxu0 0.0
    %2961 = vmatprep.mubr.f32.mxu0 0.0
    %2962 = vmatmul.mubr.f32.gmra.mrb[0].mxu0 %v2753
    %v2963 = vpop.f32.mrb[0].mxu0
    %v2964 = vadd.f32 0.0, %v2963
    %v2965 = vpop.f32.mrb[0].mxu0
    %v2966 = vadd.f32 0.0, %v2965
    %2967 = vdwg.mxu0
    %2968 = vmatprep.subr.mxu0 %v1723
    %2969 = vmatpush1.msra.mxu0 %v1722
    %2970 = vmatprep.subr.mxu0 %v1731
    %2971 = vmatpush1.msra.mxu0 %v1730
    %2972 = vmatprep.subr.mxu0 0.0
    %2973 = vmatpush1.msra.mxu0 0.0
    %2974 = vmatprep.subr.mxu0 0.0
    %2975 = vmatpush1.msra.mxu0 0.0
    %2976 = vmatprep.subr.mxu0 0.0
    %2977 = vmatpush1.msra.mxu0 0.0
    %2978 = vmatprep.subr.mxu0 0.0
    %2979 = vmatpush1.msra.mxu0 0.0
    %2980 = vmatprep.subr.mxu0 0.0
    %2981 = vmatpush1.msra.mxu0 0.0
    %2982 = vmatprep.subr.mxu0 0.0
    %2983 = vmatpush1.msra.mxu0 0.0
    %2984 = vmatprep.subr.mxu0 0.0
    %2985 = vmatpush1.msra.mxu0 0.0
    %2986 = vmatprep.subr.mxu0 0.0
    %2987 = vmatpush1.msra.mxu0 0.0
    %2988 = vmatprep.subr.mxu0 0.0
    %2989 = vmatpush1.msra.mxu0 0.0
    %2990 = vmatprep.subr.mxu0 0.0
    %2991 = vmatpush1.msra.mxu0 0.0
    %2992 = vmatprep.subr.mxu0 0.0
    %2993 = vmatpush1.msra.mxu0 0.0
    %2994 = vmatprep.subr.mxu0 0.0
    %2995 = vmatpush1.msra.mxu0 0.0
    %2996 = vmatprep.subr.mxu0 0.0
    %2997 = vmatpush1.msra.mxu0 0.0
    %2998 = vmatprep.subr.mxu0 0.0
    %2999 = vmatpush1.msra.mxu0 0.0
    %3000 = vmatprep.subr.mxu0 0.0
    %3001 = vmatpush1.msra.mxu0 0.0
    %3002 = vmatprep.subr.mxu0 0.0
    %3003 = vmatpush1.msra.mxu0 0.0
    %3004 = vmatprep.subr.mxu0 0.0
    %3005 = vmatpush1.msra.mxu0 0.0
    %3006 = vmatprep.subr.mxu0 0.0
    %3007 = vmatpush1.msra.mxu0 0.0
    %3008 = vmatprep.subr.mxu0 0.0
    %3009 = vmatpush1.msra.mxu0 0.0
    %3010 = vmatprep.subr.mxu0 0.0
    %3011 = vmatpush1.msra.mxu0 0.0
    %3012 = vmatprep.subr.mxu0 0.0
    %3013 = vmatpush1.msra.mxu0 0.0
    %3014 = vmatprep.subr.mxu0 0.0
    %3015 = vmatpush1.msra.mxu0 0.0
    %3016 = vmatprep.subr.mxu0 0.0
    %3017 = vmatpush1.msra.mxu0 0.0
    %3018 = vmatprep.subr.mxu0 0.0
    %3019 = vmatpush1.msra.mxu0 0.0
    %3020 = vmatprep.subr.mxu0 0.0
    %3021 = vmatpush1.msra.mxu0 0.0
    %3022 = vmatprep.subr.mxu0 0.0
    %3023 = vmatpush1.msra.mxu0 0.0
    %3024 = vmatprep.subr.mxu0 0.0
    %3025 = vmatpush1.msra.mxu0 0.0
    %3026 = vmatprep.subr.mxu0 0.0
    %3027 = vmatpush1.msra.mxu0 0.0
    %3028 = vmatprep.subr.mxu0 0.0
    %3029 = vmatpush1.msra.mxu0 0.0
    %3030 = vmatprep.subr.mxu0 0.0
    %3031 = vmatpush1.msra.mxu0 0.0
    %3032 = vmatprep.mubr.f32.mxu0 0.0
    %3033 = vmatmul.mubr.f32.gmra.mrb[0].mxu0 %v2753
    %v3034 = vpop.f32.mrb[0].mxu0
    %v3035 = vadd.f32 0.0, %v3034
    %v3036 = vpop.f32.mrb[0].mxu0
    %v3037 = vadd.f32 0.0, %v3036
    %3038 = vdwg.mxu0
    %v3039 = vlaneseq
    %v3040 = vshrl.u32 %v3039, 7
    %v3041 = vsub.s32 0, %v3040
    %v3042 = vrot.slane %v2822, %v3041
    %v3043 = vlaneseq
    %v3044 = vshrl.u32 %v3043, 7
    %v3045 = vsub.s32 0, %v3044
    %v3046 = vrot.slane %v2824, %v3045
    %v3047 = vlaneseq
    %v3048 = vshrl.u32 %v3047, 7
    %v3049 = vsub.s32 0, %v3048
    %v3050 = vrot.slane %v2893, %v3049
    %v3051 = vlaneseq
    %v3052 = vshrl.u32 %v3051, 7
    %v3053 = vsub.s32 0, %v3052
    %v3054 = vrot.slane %v2895, %v3053
    %v3055 = vlaneseq
    %v3056 = vshrl.u32 %v3055, 7
    %v3057 = vsub.s32 0, %v3056
    %v3058 = vrot.slane %v2964, %v3057
    %v3059 = vlaneseq
    %v3060 = vshrl.u32 %v3059, 7
    %v3061 = vsub.s32 0, %v3060
    %v3062 = vrot.slane %v2966, %v3061
    %v3063 = vlaneseq
    %v3064 = vshrl.u32 %v3063, 7
    %v3065 = vsub.s32 0, %v3064
    %v3066 = vrot.slane %v3035, %v3065
    %v3067 = vlaneseq
    %v3068 = vshrl.u32 %v3067, 7
    %v3069 = vsub.s32 0, %v3068
    %v3070 = vrot.slane %v3037, %v3069
    %v3071 = vadd.f32 %v2744, %v3042
    %v3072 = vadd.f32 %v2745, %v3046
    %v3073 = vadd.f32 %v2746, %v3050
    %v3074 = vadd.f32 %v2747, %v3054
    %v3075 = vadd.f32 %v2748, %v3058
    %v3076 = vadd.f32 %v2749, %v3062
    %v3077 = vadd.f32 %v2750, %v3066
    %v3078 = vadd.f32 %v2751, %v3070
    %vm3079 = vcmp.gt.f32.partialorder %v3071, 0.0
    %vm3080 = vcmp.gt.f32.partialorder %v3072, 0.0
    %vm3081 = vcmp.gt.f32.partialorder %v3073, 0.0
    %vm3082 = vcmp.gt.f32.partialorder %v3074, 0.0
    %vm3083 = vcmp.gt.f32.partialorder %v3075, 0.0
    %vm3084 = vcmp.gt.f32.partialorder %v3076, 0.0
    %vm3085 = vcmp.gt.f32.partialorder %v3077, 0.0
    %vm3086 = vcmp.gt.f32.partialorder %v3078, 0.0
    %v3087 = vmul.f32 %v3071, 0.01
    %v3088 = vmul.f32 %v3072, 0.01
    %v3089 = vmul.f32 %v3073, 0.01
    %v3090 = vmul.f32 %v3074, 0.01
    %v3091 = vmul.f32 %v3075, 0.01
    %v3092 = vmul.f32 %v3076, 0.01
    %v3093 = vmul.f32 %v3077, 0.01
    %v3094 = vmul.f32 %v3078, 0.01
    %v3095 = vsel %vm3079, %v3071, %v3087
    %v3096 = vsel %vm3080, %v3072, %v3088
    %v3097 = vsel %vm3081, %v3073, %v3089
    %v3098 = vsel %vm3082, %v3074, %v3090
    %v3099 = vsel %vm3083, %v3075, %v3091
    %v3100 = vsel %vm3084, %v3076, %v3092
    %v3101 = vsel %vm3085, %v3077, %v3093
    %v3102 = vsel %vm3086, %v3078, %v3094
    %v3103 = vld [vmem:[#allocation12] sm:$0xff]
    %v3104 = vld [vmem:[#allocation12 + $0x8] sm:$0xff]
    %v3105 = vld [vmem:[#allocation12 + $0x10] sm:$0xff]
    %v3106 = vld [vmem:[#allocation12 + $0x18] sm:$0xff]
    %v3107 = vld [vmem:[#allocation12 + $0x20] sm:$0xff]
    %v3108 = vld [vmem:[#allocation12 + $0x28] sm:$0xff]
    %v3109 = vld [vmem:[#allocation12 + $0x30] sm:$0xff]
    %v3110 = vld [vmem:[#allocation12 + $0x38] sm:$0xff]
    %v3111 = vld [vmem:[#allocation12 + $0x40] sm:$0xff]
    %v3112 = vld [vmem:[#allocation12 + $0x48] sm:$0xff]
    %v3113 = vld [vmem:[#allocation12 + $0x50] sm:$0xff]
    %v3114 = vld [vmem:[#allocation12 + $0x58] sm:$0xff]
    %v3115 = vld [vmem:[#allocation12 + $0x60] sm:$0xff]
    %v3116 = vld [vmem:[#allocation12 + $0x68] sm:$0xff]
    %v3117 = vld [vmem:[#allocation12 + $0x70] sm:$0xff]
    %v3118 = vld [vmem:[#allocation12 + $0x78] sm:$0xff]
    %v3119 = vld [vmem:[#allocation12 + $0x80] sm:$0xff]
    %v3120 = vld [vmem:[#allocation12 + $0x88] sm:$0xff]
    %v3121 = vld [vmem:[#allocation12 + $0x90] sm:$0xff]
    %v3122 = vld [vmem:[#allocation12 + $0x98] sm:$0xff]
    %v3123 = vld [vmem:[#allocation12 + $0xa0] sm:$0xff]
    %v3124 = vld [vmem:[#allocation12 + $0xa8] sm:$0xff]
    %v3125 = vld [vmem:[#allocation12 + $0xb0] sm:$0xff]
    %v3126 = vld [vmem:[#allocation12 + $0xb8] sm:$0xff]
    %v3127 = vld [vmem:[#allocation12 + $0xc0] sm:$0xff]
    %v3128 = vld [vmem:[#allocation12 + $0xc8] sm:$0xff]
    %v3129 = vld [vmem:[#allocation12 + $0xd0] sm:$0xff]
    %v3130 = vld [vmem:[#allocation12 + $0xd8] sm:$0xff]
    %v3131 = vld [vmem:[#allocation12 + $0xe0] sm:$0xff]
    %v3132 = vld [vmem:[#allocation12 + $0xe8] sm:$0xff]
    %v3133 = vld [vmem:[#allocation12 + $0xf0] sm:$0xff]
    %v3134 = vld [vmem:[#allocation12 + $0xf8] sm:$0xff]
    %v3135 = vld [vmem:[#allocation12 + $0x100] sm:$0xff]
    %v3136 = vld [vmem:[#allocation12 + $0x108] sm:$0xff]
    %v3137 = vld [vmem:[#allocation12 + $0x110] sm:$0xff]
    %v3138 = vld [vmem:[#allocation12 + $0x118] sm:$0xff]
    %v3139 = vld [vmem:[#allocation12 + $0x120] sm:$0xff]
    %v3140 = vld [vmem:[#allocation12 + $0x128] sm:$0xff]
    %v3141 = vld [vmem:[#allocation12 + $0x130] sm:$0xff]
    %v3142 = vld [vmem:[#allocation12 + $0x138] sm:$0xff]
    %v3143 = vld [vmem:[#allocation12 + $0x140] sm:$0xff]
    %v3144 = vld [vmem:[#allocation12 + $0x148] sm:$0xff]
    %v3145 = vld [vmem:[#allocation12 + $0x150] sm:$0xff]
    %v3146 = vld [vmem:[#allocation12 + $0x158] sm:$0xff]
    %v3147 = vld [vmem:[#allocation12 + $0x160] sm:$0xff]
    %v3148 = vld [vmem:[#allocation12 + $0x168] sm:$0xff]
    %v3149 = vld [vmem:[#allocation12 + $0x170] sm:$0xff]
    %v3150 = vld [vmem:[#allocation12 + $0x178] sm:$0xff]
    %v3151 = vld [vmem:[#allocation12 + $0x180] sm:$0xff]
    %v3152 = vld [vmem:[#allocation12 + $0x188] sm:$0xff]
    %v3153 = vld [vmem:[#allocation12 + $0x190] sm:$0xff]
    %v3154 = vld [vmem:[#allocation12 + $0x198] sm:$0xff]
    %v3155 = vld [vmem:[#allocation12 + $0x1a0] sm:$0xff]
    %v3156 = vld [vmem:[#allocation12 + $0x1a8] sm:$0xff]
    %v3157 = vld [vmem:[#allocation12 + $0x1b0] sm:$0xff]
    %v3158 = vld [vmem:[#allocation12 + $0x1b8] sm:$0xff]
    %v3159 = vld [vmem:[#allocation12 + $0x1c0] sm:$0xff]
    %v3160 = vld [vmem:[#allocation12 + $0x1c8] sm:$0xff]
    %v3161 = vld [vmem:[#allocation12 + $0x1d0] sm:$0xff]
    %v3162 = vld [vmem:[#allocation12 + $0x1d8] sm:$0xff]
    %v3163 = vld [vmem:[#allocation12 + $0x1e0] sm:$0xff]
    %v3164 = vld [vmem:[#allocation12 + $0x1e8] sm:$0xff]
    %v3165 = vld [vmem:[#allocation12 + $0x1f0] sm:$0xff]
    %v3166 = vld [vmem:[#allocation12 + $0x1f8] sm:$0xff]
    %v3167 = vld [vmem:[#allocation12 + $0x200] sm:$0xff]
    %v3168 = vld [vmem:[#allocation12 + $0x208] sm:$0xff]
    %v3169 = vld [vmem:[#allocation12 + $0x210] sm:$0xff]
    %v3170 = vld [vmem:[#allocation12 + $0x218] sm:$0xff]
    %v3171 = vld [vmem:[#allocation12 + $0x220] sm:$0xff]
    %v3172 = vld [vmem:[#allocation12 + $0x228] sm:$0xff]
    %v3173 = vld [vmem:[#allocation12 + $0x230] sm:$0xff]
    %v3174 = vld [vmem:[#allocation12 + $0x238] sm:$0xff]
    %v3175 = vld [vmem:[#allocation12 + $0x240] sm:$0xff]
    %v3176 = vld [vmem:[#allocation12 + $0x248] sm:$0xff]
    %v3177 = vld [vmem:[#allocation12 + $0x250] sm:$0xff]
    %v3178 = vld [vmem:[#allocation12 + $0x258] sm:$0xff]
    %v3179 = vld [vmem:[#allocation12 + $0x260] sm:$0xff]
    %v3180 = vld [vmem:[#allocation12 + $0x268] sm:$0xff]
    %v3181 = vld [vmem:[#allocation12 + $0x270] sm:$0xff]
    %v3182 = vld [vmem:[#allocation12 + $0x278] sm:$0xff]
    %v3183 = vld [vmem:[#allocation12 + $0x280] sm:$0xff]
    %v3184 = vld [vmem:[#allocation12 + $0x288] sm:$0xff]
    %v3185 = vld [vmem:[#allocation12 + $0x290] sm:$0xff]
    %v3186 = vld [vmem:[#allocation12 + $0x298] sm:$0xff]
    %v3187 = vld [vmem:[#allocation12 + $0x2a0] sm:$0xff]
    %v3188 = vld [vmem:[#allocation12 + $0x2a8] sm:$0xff]
    %v3189 = vld [vmem:[#allocation12 + $0x2b0] sm:$0xff]
    %v3190 = vld [vmem:[#allocation12 + $0x2b8] sm:$0xff]
    %v3191 = vld [vmem:[#allocation12 + $0x2c0] sm:$0xff]
    %v3192 = vld [vmem:[#allocation12 + $0x2c8] sm:$0xff]
    %v3193 = vld [vmem:[#allocation12 + $0x2d0] sm:$0xff]
    %v3194 = vld [vmem:[#allocation12 + $0x2d8] sm:$0xff]
    %v3195 = vld [vmem:[#allocation12 + $0x2e0] sm:$0xff]
    %v3196 = vld [vmem:[#allocation12 + $0x2e8] sm:$0xff]
    %v3197 = vld [vmem:[#allocation12 + $0x2f0] sm:$0xff]
    %v3198 = vld [vmem:[#allocation12 + $0x2f8] sm:$0xff]
    %v3199 = vld [vmem:[#allocation12 + $0x300] sm:$0xff]
    %v3200 = vld [vmem:[#allocation12 + $0x308] sm:$0xff]
    %v3201 = vld [vmem:[#allocation12 + $0x310] sm:$0xff]
    %v3202 = vld [vmem:[#allocation12 + $0x318] sm:$0xff]
    %v3203 = vld [vmem:[#allocation12 + $0x320] sm:$0xff]
    %v3204 = vld [vmem:[#allocation12 + $0x328] sm:$0xff]
    %v3205 = vld [vmem:[#allocation12 + $0x330] sm:$0xff]
    %v3206 = vld [vmem:[#allocation12 + $0x338] sm:$0xff]
    %v3207 = vld [vmem:[#allocation12 + $0x340] sm:$0xff]
    %v3208 = vld [vmem:[#allocation12 + $0x348] sm:$0xff]
    %v3209 = vld [vmem:[#allocation12 + $0x350] sm:$0xff]
    %v3210 = vld [vmem:[#allocation12 + $0x358] sm:$0xff]
    %v3211 = vld [vmem:[#allocation12 + $0x360] sm:$0xff]
    %v3212 = vld [vmem:[#allocation12 + $0x368] sm:$0xff]
    %v3213 = vld [vmem:[#allocation12 + $0x370] sm:$0xff]
    %v3214 = vld [vmem:[#allocation12 + $0x378] sm:$0xff]
    %v3215 = vld [vmem:[#allocation12 + $0x380] sm:$0xff]
    %v3216 = vld [vmem:[#allocation12 + $0x388] sm:$0xff]
    %v3217 = vld [vmem:[#allocation12 + $0x390] sm:$0xff]
    %v3218 = vld [vmem:[#allocation12 + $0x398] sm:$0xff]
    %v3219 = vld [vmem:[#allocation12 + $0x3a0] sm:$0xff]
    %v3220 = vld [vmem:[#allocation12 + $0x3a8] sm:$0xff]
    %v3221 = vld [vmem:[#allocation12 + $0x3b0] sm:$0xff]
    %v3222 = vld [vmem:[#allocation12 + $0x3b8] sm:$0xff]
    %v3223 = vld [vmem:[#allocation12 + $0x3c0] sm:$0xff]
    %v3224 = vld [vmem:[#allocation12 + $0x3c8] sm:$0xff]
    %v3225 = vld [vmem:[#allocation12 + $0x3d0] sm:$0xff]
    %v3226 = vld [vmem:[#allocation12 + $0x3d8] sm:$0xff]
    %v3227 = vld [vmem:[#allocation12 + $0x3e0] sm:$0xff]
    %v3228 = vld [vmem:[#allocation12 + $0x3e8] sm:$0xff]
    %v3229 = vld [vmem:[#allocation12 + $0x3f0] sm:$0xff]
    %v3230 = vld [vmem:[#allocation12 + $0x3f8] sm:$0xff]
    %v3231 = vld [vmem:[#allocation12 + $0x400] sm:$0xff]
    %v3232 = vld [vmem:[#allocation12 + $0x408] sm:$0xff]
    %v3233 = vld [vmem:[#allocation12 + $0x410] sm:$0xff]
    %v3234 = vld [vmem:[#allocation12 + $0x418] sm:$0xff]
    %v3235 = vld [vmem:[#allocation12 + $0x420] sm:$0xff]
    %v3236 = vld [vmem:[#allocation12 + $0x428] sm:$0xff]
    %v3237 = vld [vmem:[#allocation12 + $0x430] sm:$0xff]
    %v3238 = vld [vmem:[#allocation12 + $0x438] sm:$0xff]
    %v3239 = vld [vmem:[#allocation12 + $0x440] sm:$0xff]
    %v3240 = vld [vmem:[#allocation12 + $0x448] sm:$0xff]
    %v3241 = vld [vmem:[#allocation12 + $0x450] sm:$0xff]
    %v3242 = vld [vmem:[#allocation12 + $0x458] sm:$0xff]
    %v3243 = vld [vmem:[#allocation12 + $0x460] sm:$0xff]
    %v3244 = vld [vmem:[#allocation12 + $0x468] sm:$0xff]
    %v3245 = vld [vmem:[#allocation12 + $0x470] sm:$0xff]
    %v3246 = vld [vmem:[#allocation12 + $0x478] sm:$0xff]
    %v3247 = vld [vmem:[#allocation12 + $0x480] sm:$0xff]
    %v3248 = vld [vmem:[#allocation12 + $0x488] sm:$0xff]
    %v3249 = vld [vmem:[#allocation12 + $0x490] sm:$0xff]
    %v3250 = vld [vmem:[#allocation12 + $0x498] sm:$0xff]
    %v3251 = vld [vmem:[#allocation12 + $0x4a0] sm:$0xff]
    %v3252 = vld [vmem:[#allocation12 + $0x4a8] sm:$0xff]
    %v3253 = vld [vmem:[#allocation12 + $0x4b0] sm:$0xff]
    %v3254 = vld [vmem:[#allocation12 + $0x4b8] sm:$0xff]
    %v3255 = vld [vmem:[#allocation12 + $0x4c0] sm:$0xff]
    %v3256 = vld [vmem:[#allocation12 + $0x4c8] sm:$0xff]
    %v3257 = vld [vmem:[#allocation12 + $0x4d0] sm:$0xff]
    %v3258 = vld [vmem:[#allocation12 + $0x4d8] sm:$0xff]
    %v3259 = vld [vmem:[#allocation12 + $0x4e0] sm:$0xff]
    %v3260 = vld [vmem:[#allocation12 + $0x4e8] sm:$0xff]
    %v3261 = vld [vmem:[#allocation12 + $0x4f0] sm:$0xff]
    %v3262 = vld [vmem:[#allocation12 + $0x4f8] sm:$0xff]
    %v3263 = vld [vmem:[#allocation12 + $0x500] sm:$0xff]
    %v3264 = vld [vmem:[#allocation12 + $0x508] sm:$0xff]
    %v3265 = vld [vmem:[#allocation12 + $0x510] sm:$0xff]
    %v3266 = vld [vmem:[#allocation12 + $0x518] sm:$0xff]
    %v3267 = vld [vmem:[#allocation12 + $0x520] sm:$0xff]
    %v3268 = vld [vmem:[#allocation12 + $0x528] sm:$0xff]
    %v3269 = vld [vmem:[#allocation12 + $0x530] sm:$0xff]
    %v3270 = vld [vmem:[#allocation12 + $0x538] sm:$0xff]
    %v3271 = vld [vmem:[#allocation12 + $0x540] sm:$0xff]
    %v3272 = vld [vmem:[#allocation12 + $0x548] sm:$0xff]
    %v3273 = vld [vmem:[#allocation12 + $0x550] sm:$0xff]
    %v3274 = vld [vmem:[#allocation12 + $0x558] sm:$0xff]
    %v3275 = vld [vmem:[#allocation12 + $0x560] sm:$0xff]
    %v3276 = vld [vmem:[#allocation12 + $0x568] sm:$0xff]
    %v3277 = vld [vmem:[#allocation12 + $0x570] sm:$0xff]
    %v3278 = vld [vmem:[#allocation12 + $0x578] sm:$0xff]
    %v3279 = vld [vmem:[#allocation12 + $0x580] sm:$0xff]
    %v3280 = vld [vmem:[#allocation12 + $0x588] sm:$0xff]
    %v3281 = vld [vmem:[#allocation12 + $0x590] sm:$0xff]
    %v3282 = vld [vmem:[#allocation12 + $0x598] sm:$0xff]
    %v3283 = vld [vmem:[#allocation12 + $0x5a0] sm:$0xff]
    %v3284 = vld [vmem:[#allocation12 + $0x5a8] sm:$0xff]
    %v3285 = vld [vmem:[#allocation12 + $0x5b0] sm:$0xff]
    %v3286 = vld [vmem:[#allocation12 + $0x5b8] sm:$0xff]
    %v3287 = vld [vmem:[#allocation12 + $0x5c0] sm:$0xff]
    %v3288 = vld [vmem:[#allocation12 + $0x5c8] sm:$0xff]
    %v3289 = vld [vmem:[#allocation12 + $0x5d0] sm:$0xff]
    %v3290 = vld [vmem:[#allocation12 + $0x5d8] sm:$0xff]
    %v3291 = vld [vmem:[#allocation12 + $0x5e0] sm:$0xff]
    %v3292 = vld [vmem:[#allocation12 + $0x5e8] sm:$0xff]
    %v3293 = vld [vmem:[#allocation12 + $0x5f0] sm:$0xff]
    %v3294 = vld [vmem:[#allocation12 + $0x5f8] sm:$0xff]
    %v3295 = vld [vmem:[#allocation12 + $0x600] sm:$0xff]
    %v3296 = vld [vmem:[#allocation12 + $0x608] sm:$0xff]
    %v3297 = vld [vmem:[#allocation12 + $0x610] sm:$0xff]
    %v3298 = vld [vmem:[#allocation12 + $0x618] sm:$0xff]
    %v3299 = vld [vmem:[#allocation12 + $0x620] sm:$0xff]
    %v3300 = vld [vmem:[#allocation12 + $0x628] sm:$0xff]
    %v3301 = vld [vmem:[#allocation12 + $0x630] sm:$0xff]
    %v3302 = vld [vmem:[#allocation12 + $0x638] sm:$0xff]
    %v3303 = vld [vmem:[#allocation12 + $0x640] sm:$0xff]
    %v3304 = vld [vmem:[#allocation12 + $0x648] sm:$0xff]
    %v3305 = vld [vmem:[#allocation12 + $0x650] sm:$0xff]
    %v3306 = vld [vmem:[#allocation12 + $0x658] sm:$0xff]
    %v3307 = vld [vmem:[#allocation12 + $0x660] sm:$0xff]
    %v3308 = vld [vmem:[#allocation12 + $0x668] sm:$0xff]
    %v3309 = vld [vmem:[#allocation12 + $0x670] sm:$0xff]
    %v3310 = vld [vmem:[#allocation12 + $0x678] sm:$0xff]
    %v3311 = vld [vmem:[#allocation12 + $0x680] sm:$0xff]
    %v3312 = vld [vmem:[#allocation12 + $0x688] sm:$0xff]
    %v3313 = vld [vmem:[#allocation12 + $0x690] sm:$0xff]
    %v3314 = vld [vmem:[#allocation12 + $0x698] sm:$0xff]
    %v3315 = vld [vmem:[#allocation12 + $0x6a0] sm:$0xff]
    %v3316 = vld [vmem:[#allocation12 + $0x6a8] sm:$0xff]
    %v3317 = vld [vmem:[#allocation12 + $0x6b0] sm:$0xff]
    %v3318 = vld [vmem:[#allocation12 + $0x6b8] sm:$0xff]
    %v3319 = vld [vmem:[#allocation12 + $0x6c0] sm:$0xff]
    %v3320 = vld [vmem:[#allocation12 + $0x6c8] sm:$0xff]
    %v3321 = vld [vmem:[#allocation12 + $0x6d0] sm:$0xff]
    %v3322 = vld [vmem:[#allocation12 + $0x6d8] sm:$0xff]
    %v3323 = vld [vmem:[#allocation12 + $0x6e0] sm:$0xff]
    %v3324 = vld [vmem:[#allocation12 + $0x6e8] sm:$0xff]
    %v3325 = vld [vmem:[#allocation12 + $0x6f0] sm:$0xff]
    %v3326 = vld [vmem:[#allocation12 + $0x6f8] sm:$0xff]
    %v3327 = vld [vmem:[#allocation12 + $0x700] sm:$0xff]
    %v3328 = vld [vmem:[#allocation12 + $0x708] sm:$0xff]
    %v3329 = vld [vmem:[#allocation12 + $0x710] sm:$0xff]
    %v3330 = vld [vmem:[#allocation12 + $0x718] sm:$0xff]
    %v3331 = vld [vmem:[#allocation12 + $0x720] sm:$0xff]
    %v3332 = vld [vmem:[#allocation12 + $0x728] sm:$0xff]
    %v3333 = vld [vmem:[#allocation12 + $0x730] sm:$0xff]
    %v3334 = vld [vmem:[#allocation12 + $0x738] sm:$0xff]
    %v3335 = vld [vmem:[#allocation12 + $0x740] sm:$0xff]
    %v3336 = vld [vmem:[#allocation12 + $0x748] sm:$0xff]
    %v3337 = vld [vmem:[#allocation12 + $0x750] sm:$0xff]
    %v3338 = vld [vmem:[#allocation12 + $0x758] sm:$0xff]
    %v3339 = vld [vmem:[#allocation12 + $0x760] sm:$0xff]
    %v3340 = vld [vmem:[#allocation12 + $0x768] sm:$0xff]
    %v3341 = vld [vmem:[#allocation12 + $0x770] sm:$0xff]
    %v3342 = vld [vmem:[#allocation12 + $0x778] sm:$0xff]
    %v3343 = vld [vmem:[#allocation12 + $0x780] sm:$0xff]
    %v3344 = vld [vmem:[#allocation12 + $0x788] sm:$0xff]
    %v3345 = vld [vmem:[#allocation12 + $0x790] sm:$0xff]
    %v3346 = vld [vmem:[#allocation12 + $0x798] sm:$0xff]
    %v3347 = vld [vmem:[#allocation12 + $0x7a0] sm:$0xff]
    %v3348 = vld [vmem:[#allocation12 + $0x7a8] sm:$0xff]
    %v3349 = vld [vmem:[#allocation12 + $0x7b0] sm:$0xff]
    %v3350 = vld [vmem:[#allocation12 + $0x7b8] sm:$0xff]
    %v3351 = vld [vmem:[#allocation12 + $0x7c0] sm:$0xff]
    %v3352 = vld [vmem:[#allocation12 + $0x7c8] sm:$0xff]
    %v3353 = vld [vmem:[#allocation12 + $0x7d0] sm:$0xff]
    %v3354 = vld [vmem:[#allocation12 + $0x7d8] sm:$0xff]
    %v3355 = vld [vmem:[#allocation12 + $0x7e0] sm:$0xff]
    %v3356 = vld [vmem:[#allocation12 + $0x7e8] sm:$0xff]
    %v3357 = vld [vmem:[#allocation12 + $0x7f0] sm:$0xff]
    %v3358 = vld [vmem:[#allocation12 + $0x7f8] sm:$0xff]
    %v3359 = vld [vmem:[#allocation12 + $0x800] sm:$0xff]
    %v3360 = vld [vmem:[#allocation12 + $0x808] sm:$0xff]
    %v3361 = vld [vmem:[#allocation12 + $0x810] sm:$0xff]
    %v3362 = vld [vmem:[#allocation12 + $0x818] sm:$0xff]
    %v3363 = vld [vmem:[#allocation12 + $0x820] sm:$0xff]
    %v3364 = vld [vmem:[#allocation12 + $0x828] sm:$0xff]
    %v3365 = vld [vmem:[#allocation12 + $0x830] sm:$0xff]
    %v3366 = vld [vmem:[#allocation12 + $0x838] sm:$0xff]
    %v3367 = vld [vmem:[#allocation12 + $0x840] sm:$0xff]
    %v3368 = vld [vmem:[#allocation12 + $0x848] sm:$0xff]
    %v3369 = vld [vmem:[#allocation12 + $0x850] sm:$0xff]
    %v3370 = vld [vmem:[#allocation12 + $0x858] sm:$0xff]
    %v3371 = vld [vmem:[#allocation12 + $0x860] sm:$0xff]
    %v3372 = vld [vmem:[#allocation12 + $0x868] sm:$0xff]
    %v3373 = vld [vmem:[#allocation12 + $0x870] sm:$0xff]
    %v3374 = vld [vmem:[#allocation12 + $0x878] sm:$0xff]
    %v3375 = vld [vmem:[#allocation12 + $0x880] sm:$0xff]
    %v3376 = vld [vmem:[#allocation12 + $0x888] sm:$0xff]
    %v3377 = vld [vmem:[#allocation12 + $0x890] sm:$0xff]
    %v3378 = vld [vmem:[#allocation12 + $0x898] sm:$0xff]
    %v3379 = vld [vmem:[#allocation12 + $0x8a0] sm:$0xff]
    %v3380 = vld [vmem:[#allocation12 + $0x8a8] sm:$0xff]
    %v3381 = vld [vmem:[#allocation12 + $0x8b0] sm:$0xff]
    %v3382 = vld [vmem:[#allocation12 + $0x8b8] sm:$0xff]
    %v3383 = vld [vmem:[#allocation12 + $0x8c0] sm:$0xff]
    %v3384 = vld [vmem:[#allocation12 + $0x8c8] sm:$0xff]
    %v3385 = vld [vmem:[#allocation12 + $0x8d0] sm:$0xff]
    %v3386 = vld [vmem:[#allocation12 + $0x8d8] sm:$0xff]
    %v3387 = vld [vmem:[#allocation12 + $0x8e0] sm:$0xff]
    %v3388 = vld [vmem:[#allocation12 + $0x8e8] sm:$0xff]
    %v3389 = vld [vmem:[#allocation12 + $0x8f0] sm:$0xff]
    %v3390 = vld [vmem:[#allocation12 + $0x8f8] sm:$0xff]
    %v3391 = vld [vmem:[#allocation12 + $0x900] sm:$0xff]
    %v3392 = vld [vmem:[#allocation12 + $0x908] sm:$0xff]
    %v3393 = vld [vmem:[#allocation12 + $0x910] sm:$0xff]
    %v3394 = vld [vmem:[#allocation12 + $0x918] sm:$0xff]
    %v3395 = vld [vmem:[#allocation12 + $0x920] sm:$0xff]
    %v3396 = vld [vmem:[#allocation12 + $0x928] sm:$0xff]
    %v3397 = vld [vmem:[#allocation12 + $0x930] sm:$0xff]
    %v3398 = vld [vmem:[#allocation12 + $0x938] sm:$0xff]
    %v3399 = vld [vmem:[#allocation12 + $0x940] sm:$0xff]
    %v3400 = vld [vmem:[#allocation12 + $0x948] sm:$0xff]
    %v3401 = vld [vmem:[#allocation12 + $0x950] sm:$0xff]
    %v3402 = vld [vmem:[#allocation12 + $0x958] sm:$0xff]
    %v3403 = vld [vmem:[#allocation12 + $0x960] sm:$0xff]
    %v3404 = vld [vmem:[#allocation12 + $0x968] sm:$0xff]
    %v3405 = vld [vmem:[#allocation12 + $0x970] sm:$0xff]
    %v3406 = vld [vmem:[#allocation12 + $0x978] sm:$0xff]
    %v3407 = vld [vmem:[#allocation12 + $0x980] sm:$0xff]
    %v3408 = vld [vmem:[#allocation12 + $0x988] sm:$0xff]
    %v3409 = vld [vmem:[#allocation12 + $0x990] sm:$0xff]
    %v3410 = vld [vmem:[#allocation12 + $0x998] sm:$0xff]
    %v3411 = vld [vmem:[#allocation12 + $0x9a0] sm:$0xff]
    %v3412 = vld [vmem:[#allocation12 + $0x9a8] sm:$0xff]
    %v3413 = vld [vmem:[#allocation12 + $0x9b0] sm:$0xff]
    %v3414 = vld [vmem:[#allocation12 + $0x9b8] sm:$0xff]
    %v3415 = vld [vmem:[#allocation12 + $0x9c0] sm:$0xff]
    %v3416 = vld [vmem:[#allocation12 + $0x9c8] sm:$0xff]
    %v3417 = vld [vmem:[#allocation12 + $0x9d0] sm:$0xff]
    %v3418 = vld [vmem:[#allocation12 + $0x9d8] sm:$0xff]
    %v3419 = vld [vmem:[#allocation12 + $0x9e0] sm:$0xff]
    %v3420 = vld [vmem:[#allocation12 + $0x9e8] sm:$0xff]
    %v3421 = vld [vmem:[#allocation12 + $0x9f0] sm:$0xff]
    %v3422 = vld [vmem:[#allocation12 + $0x9f8] sm:$0xff]
    %v3423 = vld [vmem:[#allocation12 + $0xa00] sm:$0xff]
    %v3424 = vld [vmem:[#allocation12 + $0xa08] sm:$0xff]
    %v3425 = vld [vmem:[#allocation12 + $0xa10] sm:$0xff]
    %v3426 = vld [vmem:[#allocation12 + $0xa18] sm:$0xff]
    %v3427 = vld [vmem:[#allocation12 + $0xa20] sm:$0xff]
    %v3428 = vld [vmem:[#allocation12 + $0xa28] sm:$0xff]
    %v3429 = vld [vmem:[#allocation12 + $0xa30] sm:$0xff]
    %v3430 = vld [vmem:[#allocation12 + $0xa38] sm:$0xff]
    %v3431 = vld [vmem:[#allocation12 + $0xa40] sm:$0xff]
    %v3432 = vld [vmem:[#allocation12 + $0xa48] sm:$0xff]
    %v3433 = vld [vmem:[#allocation12 + $0xa50] sm:$0xff]
    %v3434 = vld [vmem:[#allocation12 + $0xa58] sm:$0xff]
    %v3435 = vld [vmem:[#allocation12 + $0xa60] sm:$0xff]
    %v3436 = vld [vmem:[#allocation12 + $0xa68] sm:$0xff]
    %v3437 = vld [vmem:[#allocation12 + $0xa70] sm:$0xff]
    %v3438 = vld [vmem:[#allocation12 + $0xa78] sm:$0xff]
    %v3439 = vld [vmem:[#allocation12 + $0xa80] sm:$0xff]
    %v3440 = vld [vmem:[#allocation12 + $0xa88] sm:$0xff]
    %v3441 = vld [vmem:[#allocation12 + $0xa90] sm:$0xff]
    %v3442 = vld [vmem:[#allocation12 + $0xa98] sm:$0xff]
    %v3443 = vld [vmem:[#allocation12 + $0xaa0] sm:$0xff]
    %v3444 = vld [vmem:[#allocation12 + $0xaa8] sm:$0xff]
    %v3445 = vld [vmem:[#allocation12 + $0xab0] sm:$0xff]
    %v3446 = vld [vmem:[#allocation12 + $0xab8] sm:$0xff]
    %v3447 = vld [vmem:[#allocation12 + $0xac0] sm:$0xff]
    %v3448 = vld [vmem:[#allocation12 + $0xac8] sm:$0xff]
    %v3449 = vld [vmem:[#allocation12 + $0xad0] sm:$0xff]
    %v3450 = vld [vmem:[#allocation12 + $0xad8] sm:$0xff]
    %v3451 = vld [vmem:[#allocation12 + $0xae0] sm:$0xff]
    %v3452 = vld [vmem:[#allocation12 + $0xae8] sm:$0xff]
    %v3453 = vld [vmem:[#allocation12 + $0xaf0] sm:$0xff]
    %v3454 = vld [vmem:[#allocation12 + $0xaf8] sm:$0xff]
    %v3455 = vld [vmem:[#allocation12 + $0xb00] sm:$0xff]
    %v3456 = vld [vmem:[#allocation12 + $0xb08] sm:$0xff]
    %v3457 = vld [vmem:[#allocation12 + $0xb10] sm:$0xff]
    %v3458 = vld [vmem:[#allocation12 + $0xb18] sm:$0xff]
    %v3459 = vld [vmem:[#allocation12 + $0xb20] sm:$0xff]
    %v3460 = vld [vmem:[#allocation12 + $0xb28] sm:$0xff]
    %v3461 = vld [vmem:[#allocation12 + $0xb30] sm:$0xff]
    %v3462 = vld [vmem:[#allocation12 + $0xb38] sm:$0xff]
    %v3463 = vld [vmem:[#allocation12 + $0xb40] sm:$0xff]
    %v3464 = vld [vmem:[#allocation12 + $0xb48] sm:$0xff]
    %v3465 = vld [vmem:[#allocation12 + $0xb50] sm:$0xff]
    %v3466 = vld [vmem:[#allocation12 + $0xb58] sm:$0xff]
    %v3467 = vld [vmem:[#allocation12 + $0xb60] sm:$0xff]
    %v3468 = vld [vmem:[#allocation12 + $0xb68] sm:$0xff]
    %v3469 = vld [vmem:[#allocation12 + $0xb70] sm:$0xff]
    %v3470 = vld [vmem:[#allocation12 + $0xb78] sm:$0xff]
    %v3471 = vld [vmem:[#allocation12 + $0xb80] sm:$0xff]
    %v3472 = vld [vmem:[#allocation12 + $0xb88] sm:$0xff]
    %v3473 = vld [vmem:[#allocation12 + $0xb90] sm:$0xff]
    %v3474 = vld [vmem:[#allocation12 + $0xb98] sm:$0xff]
    %v3475 = vld [vmem:[#allocation12 + $0xba0] sm:$0xff]
    %v3476 = vld [vmem:[#allocation12 + $0xba8] sm:$0xff]
    %v3477 = vld [vmem:[#allocation12 + $0xbb0] sm:$0xff]
    %v3478 = vld [vmem:[#allocation12 + $0xbb8] sm:$0xff]
    %v3479 = vld [vmem:[#allocation12 + $0xbc0] sm:$0xff]
    %v3480 = vld [vmem:[#allocation12 + $0xbc8] sm:$0xff]
    %v3481 = vld [vmem:[#allocation12 + $0xbd0] sm:$0xff]
    %v3482 = vld [vmem:[#allocation12 + $0xbd8] sm:$0xff]
    %v3483 = vld [vmem:[#allocation12 + $0xbe0] sm:$0xff]
    %v3484 = vld [vmem:[#allocation12 + $0xbe8] sm:$0xff]
    %v3485 = vld [vmem:[#allocation12 + $0xbf0] sm:$0xff]
    %v3486 = vld [vmem:[#allocation12 + $0xbf8] sm:$0xff]
    %v3487 = vld [vmem:[#allocation12 + $0xc00] sm:$0xff]
    %v3488 = vld [vmem:[#allocation12 + $0xc08] sm:$0xff]
    %v3489 = vld [vmem:[#allocation12 + $0xc10] sm:$0xff]
    %v3490 = vld [vmem:[#allocation12 + $0xc18] sm:$0xff]
    %v3491 = vld [vmem:[#allocation12 + $0xc20] sm:$0xff]
    %v3492 = vld [vmem:[#allocation12 + $0xc28] sm:$0xff]
    %v3493 = vld [vmem:[#allocation12 + $0xc30] sm:$0xff]
    %v3494 = vld [vmem:[#allocation12 + $0xc38] sm:$0xff]
    %v3495 = vld [vmem:[#allocation12 + $0xc40] sm:$0xff]
    %v3496 = vld [vmem:[#allocation12 + $0xc48] sm:$0xff]
    %v3497 = vld [vmem:[#allocation12 + $0xc50] sm:$0xff]
    %v3498 = vld [vmem:[#allocation12 + $0xc58] sm:$0xff]
    %v3499 = vld [vmem:[#allocation12 + $0xc60] sm:$0xff]
    %v3500 = vld [vmem:[#allocation12 + $0xc68] sm:$0xff]
    %v3501 = vld [vmem:[#allocation12 + $0xc70] sm:$0xff]
    %v3502 = vld [vmem:[#allocation12 + $0xc78] sm:$0xff]
    %v3503 = vld [vmem:[#allocation12 + $0xc80] sm:$0xff]
    %v3504 = vld [vmem:[#allocation12 + $0xc88] sm:$0xff]
    %v3505 = vld [vmem:[#allocation12 + $0xc90] sm:$0xff]
    %v3506 = vld [vmem:[#allocation12 + $0xc98] sm:$0xff]
    %v3507 = vld [vmem:[#allocation12 + $0xca0] sm:$0xff]
    %v3508 = vld [vmem:[#allocation12 + $0xca8] sm:$0xff]
    %v3509 = vld [vmem:[#allocation12 + $0xcb0] sm:$0xff]
    %v3510 = vld [vmem:[#allocation12 + $0xcb8] sm:$0xff]
    %v3511 = vld [vmem:[#allocation12 + $0xcc0] sm:$0xff]
    %v3512 = vld [vmem:[#allocation12 + $0xcc8] sm:$0xff]
    %v3513 = vld [vmem:[#allocation12 + $0xcd0] sm:$0xff]
    %v3514 = vld [vmem:[#allocation12 + $0xcd8] sm:$0xff]
    %v3515 = vld [vmem:[#allocation12 + $0xce0] sm:$0xff]
    %v3516 = vld [vmem:[#allocation12 + $0xce8] sm:$0xff]
    %v3517 = vld [vmem:[#allocation12 + $0xcf0] sm:$0xff]
    %v3518 = vld [vmem:[#allocation12 + $0xcf8] sm:$0xff]
    %v3519 = vld [vmem:[#allocation12 + $0xd00] sm:$0xff]
    %v3520 = vld [vmem:[#allocation12 + $0xd08] sm:$0xff]
    %v3521 = vld [vmem:[#allocation12 + $0xd10] sm:$0xff]
    %v3522 = vld [vmem:[#allocation12 + $0xd18] sm:$0xff]
    %v3523 = vld [vmem:[#allocation12 + $0xd20] sm:$0xff]
    %v3524 = vld [vmem:[#allocation12 + $0xd28] sm:$0xff]
    %v3525 = vld [vmem:[#allocation12 + $0xd30] sm:$0xff]
    %v3526 = vld [vmem:[#allocation12 + $0xd38] sm:$0xff]
    %v3527 = vld [vmem:[#allocation12 + $0xd40] sm:$0xff]
    %v3528 = vld [vmem:[#allocation12 + $0xd48] sm:$0xff]
    %v3529 = vld [vmem:[#allocation12 + $0xd50] sm:$0xff]
    %v3530 = vld [vmem:[#allocation12 + $0xd58] sm:$0xff]
    %v3531 = vld [vmem:[#allocation12 + $0xd60] sm:$0xff]
    %v3532 = vld [vmem:[#allocation12 + $0xd68] sm:$0xff]
    %v3533 = vld [vmem:[#allocation12 + $0xd70] sm:$0xff]
    %v3534 = vld [vmem:[#allocation12 + $0xd78] sm:$0xff]
    %v3535 = vld [vmem:[#allocation12 + $0xd80] sm:$0xff]
    %v3536 = vld [vmem:[#allocation12 + $0xd88] sm:$0xff]
    %v3537 = vld [vmem:[#allocation12 + $0xd90] sm:$0xff]
    %v3538 = vld [vmem:[#allocation12 + $0xd98] sm:$0xff]
    %v3539 = vld [vmem:[#allocation12 + $0xda0] sm:$0xff]
    %v3540 = vld [vmem:[#allocation12 + $0xda8] sm:$0xff]
    %v3541 = vld [vmem:[#allocation12 + $0xdb0] sm:$0xff]
    %v3542 = vld [vmem:[#allocation12 + $0xdb8] sm:$0xff]
    %v3543 = vld [vmem:[#allocation12 + $0xdc0] sm:$0xff]
    %v3544 = vld [vmem:[#allocation12 + $0xdc8] sm:$0xff]
    %v3545 = vld [vmem:[#allocation12 + $0xdd0] sm:$0xff]
    %v3546 = vld [vmem:[#allocation12 + $0xdd8] sm:$0xff]
    %v3547 = vld [vmem:[#allocation12 + $0xde0] sm:$0xff]
    %v3548 = vld [vmem:[#allocation12 + $0xde8] sm:$0xff]
    %v3549 = vld [vmem:[#allocation12 + $0xdf0] sm:$0xff]
    %v3550 = vld [vmem:[#allocation12 + $0xdf8] sm:$0xff]
    %v3551 = vld [vmem:[#allocation12 + $0xe00] sm:$0xff]
    %v3552 = vld [vmem:[#allocation12 + $0xe08] sm:$0xff]
    %v3553 = vld [vmem:[#allocation12 + $0xe10] sm:$0xff]
    %v3554 = vld [vmem:[#allocation12 + $0xe18] sm:$0xff]
    %v3555 = vld [vmem:[#allocation12 + $0xe20] sm:$0xff]
    %v3556 = vld [vmem:[#allocation12 + $0xe28] sm:$0xff]
    %v3557 = vld [vmem:[#allocation12 + $0xe30] sm:$0xff]
    %v3558 = vld [vmem:[#allocation12 + $0xe38] sm:$0xff]
    %v3559 = vld [vmem:[#allocation12 + $0xe40] sm:$0xff]
    %v3560 = vld [vmem:[#allocation12 + $0xe48] sm:$0xff]
    %v3561 = vld [vmem:[#allocation12 + $0xe50] sm:$0xff]
    %v3562 = vld [vmem:[#allocation12 + $0xe58] sm:$0xff]
    %v3563 = vld [vmem:[#allocation12 + $0xe60] sm:$0xff]
    %v3564 = vld [vmem:[#allocation12 + $0xe68] sm:$0xff]
    %v3565 = vld [vmem:[#allocation12 + $0xe70] sm:$0xff]
    %v3566 = vld [vmem:[#allocation12 + $0xe78] sm:$0xff]
    %v3567 = vld [vmem:[#allocation12 + $0xe80] sm:$0xff]
    %v3568 = vld [vmem:[#allocation12 + $0xe88] sm:$0xff]
    %v3569 = vld [vmem:[#allocation12 + $0xe90] sm:$0xff]
    %v3570 = vld [vmem:[#allocation12 + $0xe98] sm:$0xff]
    %v3571 = vld [vmem:[#allocation12 + $0xea0] sm:$0xff]
    %v3572 = vld [vmem:[#allocation12 + $0xea8] sm:$0xff]
    %v3573 = vld [vmem:[#allocation12 + $0xeb0] sm:$0xff]
    %v3574 = vld [vmem:[#allocation12 + $0xeb8] sm:$0xff]
    %v3575 = vld [vmem:[#allocation12 + $0xec0] sm:$0xff]
    %v3576 = vld [vmem:[#allocation12 + $0xec8] sm:$0xff]
    %v3577 = vld [vmem:[#allocation12 + $0xed0] sm:$0xff]
    %v3578 = vld [vmem:[#allocation12 + $0xed8] sm:$0xff]
    %v3579 = vld [vmem:[#allocation12 + $0xee0] sm:$0xff]
    %v3580 = vld [vmem:[#allocation12 + $0xee8] sm:$0xff]
    %v3581 = vld [vmem:[#allocation12 + $0xef0] sm:$0xff]
    %v3582 = vld [vmem:[#allocation12 + $0xef8] sm:$0xff]
    %v3583 = vld [vmem:[#allocation12 + $0xf00] sm:$0xff]
    %v3584 = vld [vmem:[#allocation12 + $0xf08] sm:$0xff]
    %v3585 = vld [vmem:[#allocation12 + $0xf10] sm:$0xff]
    %v3586 = vld [vmem:[#allocation12 + $0xf18] sm:$0xff]
    %v3587 = vld [vmem:[#allocation12 + $0xf20] sm:$0xff]
    %v3588 = vld [vmem:[#allocation12 + $0xf28] sm:$0xff]
    %v3589 = vld [vmem:[#allocation12 + $0xf30] sm:$0xff]
    %v3590 = vld [vmem:[#allocation12 + $0xf38] sm:$0xff]
    %v3591 = vld [vmem:[#allocation12 + $0xf40] sm:$0xff]
    %v3592 = vld [vmem:[#allocation12 + $0xf48] sm:$0xff]
    %v3593 = vld [vmem:[#allocation12 + $0xf50] sm:$0xff]
    %v3594 = vld [vmem:[#allocation12 + $0xf58] sm:$0xff]
    %v3595 = vld [vmem:[#allocation12 + $0xf60] sm:$0xff]
    %v3596 = vld [vmem:[#allocation12 + $0xf68] sm:$0xff]
    %v3597 = vld [vmem:[#allocation12 + $0xf70] sm:$0xff]
    %v3598 = vld [vmem:[#allocation12 + $0xf78] sm:$0xff]
    %v3599 = vld [vmem:[#allocation12 + $0xf80] sm:$0xff]
    %v3600 = vld [vmem:[#allocation12 + $0xf88] sm:$0xff]
    %v3601 = vld [vmem:[#allocation12 + $0xf90] sm:$0xff]
    %v3602 = vld [vmem:[#allocation12 + $0xf98] sm:$0xff]
    %v3603 = vld [vmem:[#allocation12 + $0xfa0] sm:$0xff]
    %v3604 = vld [vmem:[#allocation12 + $0xfa8] sm:$0xff]
    %v3605 = vld [vmem:[#allocation12 + $0xfb0] sm:$0xff]
    %v3606 = vld [vmem:[#allocation12 + $0xfb8] sm:$0xff]
    %v3607 = vld [vmem:[#allocation12 + $0xfc0] sm:$0xff]
    %v3608 = vld [vmem:[#allocation12 + $0xfc8] sm:$0xff]
    %v3609 = vld [vmem:[#allocation12 + $0xfd0] sm:$0xff]
    %v3610 = vld [vmem:[#allocation12 + $0xfd8] sm:$0xff]
    %v3611 = vld [vmem:[#allocation12 + $0xfe0] sm:$0xff]
    %v3612 = vld [vmem:[#allocation12 + $0xfe8] sm:$0xff]
    %v3613 = vld [vmem:[#allocation12 + $0xff0] sm:$0xff]
    %v3614 = vld [vmem:[#allocation12 + $0xff8] sm:$0xff]
    %v3615 = vld [vmem:[#allocation14] sm:$0xf]
    %v3617 = vlaneseq
    %v3618 = vshrl.u32 %v3617, 7
    %v3619 = vsub.s32 0, %v3618
    %v3620 = vrot.slane %v3615, %v3619
    %v3621 = vlaneseq
    %v3622 = vshrl.u32 %v3621, 7
    %v3623 = vsub.s32 1, %v3622
    %v3624 = vrot.slane %v3615, %v3623
    %v3625 = vlaneseq
    %v3626 = vshrl.u32 %v3625, 7
    %v3627 = vsub.s32 2, %v3626
    %v3628 = vrot.slane %v3615, %v3627
    %v3629 = vlaneseq
    %v3630 = vshrl.u32 %v3629, 7
    %v3631 = vsub.s32 3, %v3630
    %v3632 = vrot.slane %v3615, %v3631
    %3637 = vmatprep.subr.mxu0 %v3104
    %3638 = vmatpush1.msra.mxu0 %v3103
    %3639 = vmatprep.subr.mxu0 %v3108
    %3640 = vmatpush1.msra.mxu0 %v3107
    %3641 = vmatprep.subr.mxu0 %v3112
    %3642 = vmatpush1.msra.mxu0 %v3111
    %3643 = vmatprep.subr.mxu0 %v3116
    %3644 = vmatpush1.msra.mxu0 %v3115
    %3645 = vmatprep.subr.mxu0 %v3120
    %3646 = vmatpush1.msra.mxu0 %v3119
    %3647 = vmatprep.subr.mxu0 %v3124
    %3648 = vmatpush1.msra.mxu0 %v3123
    %3649 = vmatprep.subr.mxu0 %v3128
    %3650 = vmatpush1.msra.mxu0 %v3127
    %3651 = vmatprep.subr.mxu0 %v3132
    %3652 = vmatpush1.msra.mxu0 %v3131
    %3653 = vmatprep.subr.mxu0 %v3136
    %3654 = vmatpush1.msra.mxu0 %v3135
    %3655 = vmatprep.subr.mxu0 %v3140
    %3656 = vmatpush1.msra.mxu0 %v3139
    %3657 = vmatprep.subr.mxu0 %v3144
    %3658 = vmatpush1.msra.mxu0 %v3143
    %3659 = vmatprep.subr.mxu0 %v3148
    %3660 = vmatpush1.msra.mxu0 %v3147
    %3661 = vmatprep.subr.mxu0 %v3152
    %3662 = vmatpush1.msra.mxu0 %v3151
    %3663 = vmatprep.subr.mxu0 %v3156
    %3664 = vmatpush1.msra.mxu0 %v3155
    %3665 = vmatprep.subr.mxu0 %v3160
    %3666 = vmatpush1.msra.mxu0 %v3159
    %3667 = vmatprep.subr.mxu0 %v3164
    %3668 = vmatpush1.msra.mxu0 %v3163
    %3669 = vmatprep.subr.mxu0 %v3168
    %3670 = vmatpush1.msra.mxu0 %v3167
    %3671 = vmatprep.subr.mxu0 %v3172
    %3672 = vmatpush1.msra.mxu0 %v3171
    %3673 = vmatprep.subr.mxu0 %v3176
    %3674 = vmatpush1.msra.mxu0 %v3175
    %3675 = vmatprep.subr.mxu0 %v3180
    %3676 = vmatpush1.msra.mxu0 %v3179
    %3677 = vmatprep.subr.mxu0 %v3184
    %3678 = vmatpush1.msra.mxu0 %v3183
    %3679 = vmatprep.subr.mxu0 %v3188
    %3680 = vmatpush1.msra.mxu0 %v3187
    %3681 = vmatprep.subr.mxu0 %v3192
    %3682 = vmatpush1.msra.mxu0 %v3191
    %3683 = vmatprep.subr.mxu0 %v3196
    %3684 = vmatpush1.msra.mxu0 %v3195
    %3685 = vmatprep.subr.mxu0 %v3200
    %3686 = vmatpush1.msra.mxu0 %v3199
    %3687 = vmatprep.subr.mxu0 %v3204
    %3688 = vmatpush1.msra.mxu0 %v3203
    %3689 = vmatprep.subr.mxu0 %v3208
    %3690 = vmatpush1.msra.mxu0 %v3207
    %3691 = vmatprep.subr.mxu0 %v3212
    %3692 = vmatpush1.msra.mxu0 %v3211
    %3693 = vmatprep.subr.mxu0 %v3216
    %3694 = vmatpush1.msra.mxu0 %v3215
    %3695 = vmatprep.subr.mxu0 %v3220
    %3696 = vmatpush1.msra.mxu0 %v3219
    %3697 = vmatprep.subr.mxu0 %v3224
    %3698 = vmatpush1.msra.mxu0 %v3223
    %3699 = vmatprep.subr.mxu0 %v3228
    %3700 = vmatpush1.msra.mxu0 %v3227
    %3701 = vmatprep.mubr.f32.mxu0 %v3096
    %3702 = vmatmul.mubr.f32.gmra.mrb[0].mxu0 %v3095
    %v3703 = vpop.f32.mrb[0].mxu0
    %v3704 = vadd.f32 %v3620, %v3703
    %v3705 = vpop.f32.mrb[0].mxu0
    %v3706 = vadd.f32 %v3624, %v3705
    %3707 = vdwg.mxu0
    %3708 = vmatprep.subr.mxu0 %v3232
    %3709 = vmatpush1.msra.mxu0 %v3231
    %3710 = vmatprep.subr.mxu0 %v3236
    %3711 = vmatpush1.msra.mxu0 %v3235
    %3712 = vmatprep.subr.mxu0 %v3240
    %3713 = vmatpush1.msra.mxu0 %v3239
    %3714 = vmatprep.subr.mxu0 %v3244
    %3715 = vmatpush1.msra.mxu0 %v3243
    %3716 = vmatprep.subr.mxu0 %v3248
    %3717 = vmatpush1.msra.mxu0 %v3247
    %3718 = vmatprep.subr.mxu0 %v3252
    %3719 = vmatpush1.msra.mxu0 %v3251
    %3720 = vmatprep.subr.mxu0 %v3256
    %3721 = vmatpush1.msra.mxu0 %v3255
    %3722 = vmatprep.subr.mxu0 %v3260
    %3723 = vmatpush1.msra.mxu0 %v3259
    %3724 = vmatprep.subr.mxu0 %v3264
    %3725 = vmatpush1.msra.mxu0 %v3263
    %3726 = vmatprep.subr.mxu0 %v3268
    %3727 = vmatpush1.msra.mxu0 %v3267
    %3728 = vmatprep.subr.mxu0 %v3272
    %3729 = vmatpush1.msra.mxu0 %v3271
    %3730 = vmatprep.subr.mxu0 %v3276
    %3731 = vmatpush1.msra.mxu0 %v3275
    %3732 = vmatprep.subr.mxu0 %v3280
    %3733 = vmatpush1.msra.mxu0 %v3279
    %3734 = vmatprep.subr.mxu0 %v3284
    %3735 = vmatpush1.msra.mxu0 %v3283
    %3736 = vmatprep.subr.mxu0 %v3288
    %3737 = vmatpush1.msra.mxu0 %v3287
    %3738 = vmatprep.subr.mxu0 %v3292
    %3739 = vmatpush1.msra.mxu0 %v3291
    %3740 = vmatprep.subr.mxu0 %v3296
    %3741 = vmatpush1.msra.mxu0 %v3295
    %3742 = vmatprep.subr.mxu0 %v3300
    %3743 = vmatpush1.msra.mxu0 %v3299
    %3744 = vmatprep.subr.mxu0 %v3304
    %3745 = vmatpush1.msra.mxu0 %v3303
    %3746 = vmatprep.subr.mxu0 %v3308
    %3747 = vmatpush1.msra.mxu0 %v3307
    %3748 = vmatprep.subr.mxu0 %v3312
    %3749 = vmatpush1.msra.mxu0 %v3311
    %3750 = vmatprep.subr.mxu0 %v3316
    %3751 = vmatpush1.msra.mxu0 %v3315
    %3752 = vmatprep.subr.mxu0 %v3320
    %3753 = vmatpush1.msra.mxu0 %v3319
    %3754 = vmatprep.subr.mxu0 %v3324
    %3755 = vmatpush1.msra.mxu0 %v3323
    %3756 = vmatprep.subr.mxu0 %v3328
    %3757 = vmatpush1.msra.mxu0 %v3327
    %3758 = vmatprep.subr.mxu0 %v3332
    %3759 = vmatpush1.msra.mxu0 %v3331
    %3760 = vmatprep.subr.mxu0 %v3336
    %3761 = vmatpush1.msra.mxu0 %v3335
    %3762 = vmatprep.subr.mxu0 %v3340
    %3763 = vmatpush1.msra.mxu0 %v3339
    %3764 = vmatprep.subr.mxu0 %v3344
    %3765 = vmatpush1.msra.mxu0 %v3343
    %3766 = vmatprep.subr.mxu0 %v3348
    %3767 = vmatpush1.msra.mxu0 %v3347
    %3768 = vmatprep.subr.mxu0 %v3352
    %3769 = vmatpush1.msra.mxu0 %v3351
    %3770 = vmatprep.subr.mxu0 %v3356
    %3771 = vmatpush1.msra.mxu0 %v3355
    %3772 = vmatprep.mubr.f32.mxu0 %v3098
    %3773 = vmatmul.mubr.f32.gmra.mrb[0].mxu0 %v3097
    %v3774 = vpop.f32.mrb[0].mxu0
    %v3775 = vadd.f32 %v3704, %v3774
    %v3776 = vpop.f32.mrb[0].mxu0
    %v3777 = vadd.f32 %v3706, %v3776
    %3778 = vdwg.mxu0
    %3779 = vmatprep.subr.mxu0 %v3360
    %3780 = vmatpush1.msra.mxu0 %v3359
    %3781 = vmatprep.subr.mxu0 %v3364
    %3782 = vmatpush1.msra.mxu0 %v3363
    %3783 = vmatprep.subr.mxu0 %v3368
    %3784 = vmatpush1.msra.mxu0 %v3367
    %3785 = vmatprep.subr.mxu0 %v3372
    %3786 = vmatpush1.msra.mxu0 %v3371
    %3787 = vmatprep.subr.mxu0 %v3376
    %3788 = vmatpush1.msra.mxu0 %v3375
    %3789 = vmatprep.subr.mxu0 %v3380
    %3790 = vmatpush1.msra.mxu0 %v3379
    %3791 = vmatprep.subr.mxu0 %v3384
    %3792 = vmatpush1.msra.mxu0 %v3383
    %3793 = vmatprep.subr.mxu0 %v3388
    %3794 = vmatpush1.msra.mxu0 %v3387
    %3795 = vmatprep.subr.mxu0 %v3392
    %3796 = vmatpush1.msra.mxu0 %v3391
    %3797 = vmatprep.subr.mxu0 %v3396
    %3798 = vmatpush1.msra.mxu0 %v3395
    %3799 = vmatprep.subr.mxu0 %v3400
    %3800 = vmatpush1.msra.mxu0 %v3399
    %3801 = vmatprep.subr.mxu0 %v3404
    %3802 = vmatpush1.msra.mxu0 %v3403
    %3803 = vmatprep.subr.mxu0 %v3408
    %3804 = vmatpush1.msra.mxu0 %v3407
    %3805 = vmatprep.subr.mxu0 %v3412
    %3806 = vmatpush1.msra.mxu0 %v3411
    %3807 = vmatprep.subr.mxu0 %v3416
    %3808 = vmatpush1.msra.mxu0 %v3415
    %3809 = vmatprep.subr.mxu0 %v3420
    %3810 = vmatpush1.msra.mxu0 %v3419
    %3811 = vmatprep.subr.mxu0 %v3424
    %3812 = vmatpush1.msra.mxu0 %v3423
    %3813 = vmatprep.subr.mxu0 %v3428
    %3814 = vmatpush1.msra.mxu0 %v3427
    %3815 = vmatprep.subr.mxu0 %v3432
    %3816 = vmatpush1.msra.mxu0 %v3431
    %3817 = vmatprep.subr.mxu0 %v3436
    %3818 = vmatpush1.msra.mxu0 %v3435
    %3819 = vmatprep.subr.mxu0 %v3440
    %3820 = vmatpush1.msra.mxu0 %v3439
    %3821 = vmatprep.subr.mxu0 %v3444
    %3822 = vmatpush1.msra.mxu0 %v3443
    %3823 = vmatprep.subr.mxu0 %v3448
    %3824 = vmatpush1.msra.mxu0 %v3447
    %3825 = vmatprep.subr.mxu0 %v3452
    %3826 = vmatpush1.msra.mxu0 %v3451
    %3827 = vmatprep.subr.mxu0 %v3456
    %3828 = vmatpush1.msra.mxu0 %v3455
    %3829 = vmatprep.subr.mxu0 %v3460
    %3830 = vmatpush1.msra.mxu0 %v3459
    %3831 = vmatprep.subr.mxu0 %v3464
    %3832 = vmatpush1.msra.mxu0 %v3463
    %3833 = vmatprep.subr.mxu0 %v3468
    %3834 = vmatpush1.msra.mxu0 %v3467
    %3835 = vmatprep.subr.mxu0 %v3472
    %3836 = vmatpush1.msra.mxu0 %v3471
    %3837 = vmatprep.subr.mxu0 %v3476
    %3838 = vmatpush1.msra.mxu0 %v3475
    %3839 = vmatprep.subr.mxu0 %v3480
    %3840 = vmatpush1.msra.mxu0 %v3479
    %3841 = vmatprep.subr.mxu0 %v3484
    %3842 = vmatpush1.msra.mxu0 %v3483
    %3843 = vmatprep.mubr.f32.mxu0 %v3100
    %3844 = vmatmul.mubr.f32.gmra.mrb[0].mxu0 %v3099
    %v3845 = vpop.f32.mrb[0].mxu0
    %v3846 = vadd.f32 %v3775, %v3845
    %v3847 = vpop.f32.mrb[0].mxu0
    %v3848 = vadd.f32 %v3777, %v3847
    %3849 = vdwg.mxu0
    %3850 = vmatprep.subr.mxu0 %v3488
    %3851 = vmatpush1.msra.mxu0 %v3487
    %3852 = vmatprep.subr.mxu0 %v3492
    %3853 = vmatpush1.msra.mxu0 %v3491
    %3854 = vmatprep.subr.mxu0 %v3496
    %3855 = vmatpush1.msra.mxu0 %v3495
    %3856 = vmatprep.subr.mxu0 %v3500
    %3857 = vmatpush1.msra.mxu0 %v3499
    %3858 = vmatprep.subr.mxu0 %v3504
    %3859 = vmatpush1.msra.mxu0 %v3503
    %3860 = vmatprep.subr.mxu0 %v3508
    %3861 = vmatpush1.msra.mxu0 %v3507
    %3862 = vmatprep.subr.mxu0 %v3512
    %3863 = vmatpush1.msra.mxu0 %v3511
    %3864 = vmatprep.subr.mxu0 %v3516
    %3865 = vmatpush1.msra.mxu0 %v3515
    %3866 = vmatprep.subr.mxu0 %v3520
    %3867 = vmatpush1.msra.mxu0 %v3519
    %3868 = vmatprep.subr.mxu0 %v3524
    %3869 = vmatpush1.msra.mxu0 %v3523
    %3870 = vmatprep.subr.mxu0 %v3528
    %3871 = vmatpush1.msra.mxu0 %v3527
    %3872 = vmatprep.subr.mxu0 %v3532
    %3873 = vmatpush1.msra.mxu0 %v3531
    %3874 = vmatprep.subr.mxu0 %v3536
    %3875 = vmatpush1.msra.mxu0 %v3535
    %3876 = vmatprep.subr.mxu0 %v3540
    %3877 = vmatpush1.msra.mxu0 %v3539
    %3878 = vmatprep.subr.mxu0 %v3544
    %3879 = vmatpush1.msra.mxu0 %v3543
    %3880 = vmatprep.subr.mxu0 %v3548
    %3881 = vmatpush1.msra.mxu0 %v3547
    %3882 = vmatprep.subr.mxu0 %v3552
    %3883 = vmatpush1.msra.mxu0 %v3551
    %3884 = vmatprep.subr.mxu0 %v3556
    %3885 = vmatpush1.msra.mxu0 %v3555
    %3886 = vmatprep.subr.mxu0 %v3560
    %3887 = vmatpush1.msra.mxu0 %v3559
    %3888 = vmatprep.subr.mxu0 %v3564
    %3889 = vmatpush1.msra.mxu0 %v3563
    %3890 = vmatprep.subr.mxu0 %v3568
    %3891 = vmatpush1.msra.mxu0 %v3567
    %3892 = vmatprep.subr.mxu0 %v3572
    %3893 = vmatpush1.msra.mxu0 %v3571
    %3894 = vmatprep.subr.mxu0 %v3576
    %3895 = vmatpush1.msra.mxu0 %v3575
    %3896 = vmatprep.subr.mxu0 %v3580
    %3897 = vmatpush1.msra.mxu0 %v3579
    %3898 = vmatprep.subr.mxu0 %v3584
    %3899 = vmatpush1.msra.mxu0 %v3583
    %3900 = vmatprep.subr.mxu0 %v3588
    %3901 = vmatpush1.msra.mxu0 %v3587
    %3902 = vmatprep.subr.mxu0 %v3592
    %3903 = vmatpush1.msra.mxu0 %v3591
    %3904 = vmatprep.subr.mxu0 %v3596
    %3905 = vmatpush1.msra.mxu0 %v3595
    %3906 = vmatprep.subr.mxu0 %v3600
    %3907 = vmatpush1.msra.mxu0 %v3599
    %3908 = vmatprep.subr.mxu0 %v3604
    %3909 = vmatpush1.msra.mxu0 %v3603
    %3910 = vmatprep.subr.mxu0 %v3608
    %3911 = vmatpush1.msra.mxu0 %v3607
    %3912 = vmatprep.subr.mxu0 %v3612
    %3913 = vmatpush1.msra.mxu0 %v3611
    %3914 = vmatprep.mubr.f32.mxu0 %v3102
    %3915 = vmatmul.mubr.f32.gmra.mrb[0].mxu0 %v3101
    %v3916 = vpop.f32.mrb[0].mxu0
    %v3917 = vadd.f32 %v3846, %v3916
    %v3918 = vpop.f32.mrb[0].mxu0
    %v3919 = vadd.f32 %v3848, %v3918
    %3920 = vdwg.mxu0
    %3921 = vmatprep.subr.mxu0 %v3106
    %3922 = vmatpush1.msra.mxu0 %v3105
    %3923 = vmatprep.subr.mxu0 %v3110
    %3924 = vmatpush1.msra.mxu0 %v3109
    %3925 = vmatprep.subr.mxu0 %v3114
    %3926 = vmatpush1.msra.mxu0 %v3113
    %3927 = vmatprep.subr.mxu0 %v3118
    %3928 = vmatpush1.msra.mxu0 %v3117
    %3929 = vmatprep.subr.mxu0 %v3122
    %3930 = vmatpush1.msra.mxu0 %v3121
    %3931 = vmatprep.subr.mxu0 %v3126
    %3932 = vmatpush1.msra.mxu0 %v3125
    %3933 = vmatprep.subr.mxu0 %v3130
    %3934 = vmatpush1.msra.mxu0 %v3129
    %3935 = vmatprep.subr.mxu0 %v3134
    %3936 = vmatpush1.msra.mxu0 %v3133
    %3937 = vmatprep.subr.mxu0 %v3138
    %3938 = vmatpush1.msra.mxu0 %v3137
    %3939 = vmatprep.subr.mxu0 %v3142
    %3940 = vmatpush1.msra.mxu0 %v3141
    %3941 = vmatprep.subr.mxu0 %v3146
    %3942 = vmatpush1.msra.mxu0 %v3145
    %3943 = vmatprep.subr.mxu0 %v3150
    %3944 = vmatpush1.msra.mxu0 %v3149
    %3945 = vmatprep.subr.mxu0 %v3154
    %3946 = vmatpush1.msra.mxu0 %v3153
    %3947 = vmatprep.subr.mxu0 %v3158
    %3948 = vmatpush1.msra.mxu0 %v3157
    %3949 = vmatprep.subr.mxu0 %v3162
    %3950 = vmatpush1.msra.mxu0 %v3161
    %3951 = vmatprep.subr.mxu0 %v3166
    %3952 = vmatpush1.msra.mxu0 %v3165
    %3953 = vmatprep.subr.mxu0 %v3170
    %3954 = vmatpush1.msra.mxu0 %v3169
    %3955 = vmatprep.subr.mxu0 %v3174
    %3956 = vmatpush1.msra.mxu0 %v3173
    %3957 = vmatprep.subr.mxu0 %v3178
    %3958 = vmatpush1.msra.mxu0 %v3177
    %3959 = vmatprep.subr.mxu0 %v3182
    %3960 = vmatpush1.msra.mxu0 %v3181
    %3961 = vmatprep.subr.mxu0 %v3186
    %3962 = vmatpush1.msra.mxu0 %v3185
    %3963 = vmatprep.subr.mxu0 %v3190
    %3964 = vmatpush1.msra.mxu0 %v3189
    %3965 = vmatprep.subr.mxu0 %v3194
    %3966 = vmatpush1.msra.mxu0 %v3193
    %3967 = vmatprep.subr.mxu0 %v3198
    %3968 = vmatpush1.msra.mxu0 %v3197
    %3969 = vmatprep.subr.mxu0 %v3202
    %3970 = vmatpush1.msra.mxu0 %v3201
    %3971 = vmatprep.subr.mxu0 %v3206
    %3972 = vmatpush1.msra.mxu0 %v3205
    %3973 = vmatprep.subr.mxu0 %v3210
    %3974 = vmatpush1.msra.mxu0 %v3209
    %3975 = vmatprep.subr.mxu0 %v3214
    %3976 = vmatpush1.msra.mxu0 %v3213
    %3977 = vmatprep.subr.mxu0 %v3218
    %3978 = vmatpush1.msra.mxu0 %v3217
    %3979 = vmatprep.subr.mxu0 %v3222
    %3980 = vmatpush1.msra.mxu0 %v3221
    %3981 = vmatprep.subr.mxu0 %v3226
    %3982 = vmatpush1.msra.mxu0 %v3225
    %3983 = vmatprep.subr.mxu0 %v3230
    %3984 = vmatpush1.msra.mxu0 %v3229
    %3985 = vmatprep.mubr.f32.mxu0 %v3096
    %3986 = vmatmul.mubr.f32.gmra.mrb[0].mxu0 %v3095
    %v3987 = vpop.f32.mrb[0].mxu0
    %v3988 = vadd.f32 %v3628, %v3987
    %v3989 = vpop.f32.mrb[0].mxu0
    %v3990 = vadd.f32 %v3632, %v3989
    %3991 = vdwg.mxu0
    %3992 = vmatprep.subr.mxu0 %v3234
    %3993 = vmatpush1.msra.mxu0 %v3233
    %3994 = vmatprep.subr.mxu0 %v3238
    %3995 = vmatpush1.msra.mxu0 %v3237
    %3996 = vmatprep.subr.mxu0 %v3242
    %3997 = vmatpush1.msra.mxu0 %v3241
    %3998 = vmatprep.subr.mxu0 %v3246
    %3999 = vmatpush1.msra.mxu0 %v3245
    %4000 = vmatprep.subr.mxu0 %v3250
    %4001 = vmatpush1.msra.mxu0 %v3249
    %4002 = vmatprep.subr.mxu0 %v3254
    %4003 = vmatpush1.msra.mxu0 %v3253
    %4004 = vmatprep.subr.mxu0 %v3258
    %4005 = vmatpush1.msra.mxu0 %v3257
    %4006 = vmatprep.subr.mxu0 %v3262
    %4007 = vmatpush1.msra.mxu0 %v3261
    %4008 = vmatprep.subr.mxu0 %v3266
    %4009 = vmatpush1.msra.mxu0 %v3265
    %4010 = vmatprep.subr.mxu0 %v3270
    %4011 = vmatpush1.msra.mxu0 %v3269
    %4012 = vmatprep.subr.mxu0 %v3274
    %4013 = vmatpush1.msra.mxu0 %v3273
    %4014 = vmatprep.subr.mxu0 %v3278
    %4015 = vmatpush1.msra.mxu0 %v3277
    %4016 = vmatprep.subr.mxu0 %v3282
    %4017 = vmatpush1.msra.mxu0 %v3281
    %4018 = vmatprep.subr.mxu0 %v3286
    %4019 = vmatpush1.msra.mxu0 %v3285
    %4020 = vmatprep.subr.mxu0 %v3290
    %4021 = vmatpush1.msra.mxu0 %v3289
    %4022 = vmatprep.subr.mxu0 %v3294
    %4023 = vmatpush1.msra.mxu0 %v3293
    %4024 = vmatprep.subr.mxu0 %v3298
    %4025 = vmatpush1.msra.mxu0 %v3297
    %4026 = vmatprep.subr.mxu0 %v3302
    %4027 = vmatpush1.msra.mxu0 %v3301
    %4028 = vmatprep.subr.mxu0 %v3306
    %4029 = vmatpush1.msra.mxu0 %v3305
    %4030 = vmatprep.subr.mxu0 %v3310
    %4031 = vmatpush1.msra.mxu0 %v3309
    %4032 = vmatprep.subr.mxu0 %v3314
    %4033 = vmatpush1.msra.mxu0 %v3313
    %4034 = vmatprep.subr.mxu0 %v3318
    %4035 = vmatpush1.msra.mxu0 %v3317
    %4036 = vmatprep.subr.mxu0 %v3322
    %4037 = vmatpush1.msra.mxu0 %v3321
    %4038 = vmatprep.subr.mxu0 %v3326
    %4039 = vmatpush1.msra.mxu0 %v3325
    %4040 = vmatprep.subr.mxu0 %v3330
    %4041 = vmatpush1.msra.mxu0 %v3329
    %4042 = vmatprep.subr.mxu0 %v3334
    %4043 = vmatpush1.msra.mxu0 %v3333
    %4044 = vmatprep.subr.mxu0 %v3338
    %4045 = vmatpush1.msra.mxu0 %v3337
    %4046 = vmatprep.subr.mxu0 %v3342
    %4047 = vmatpush1.msra.mxu0 %v3341
    %4048 = vmatprep.subr.mxu0 %v3346
    %4049 = vmatpush1.msra.mxu0 %v3345
    %4050 = vmatprep.subr.mxu0 %v3350
    %4051 = vmatpush1.msra.mxu0 %v3349
    %4052 = vmatprep.subr.mxu0 %v3354
    %4053 = vmatpush1.msra.mxu0 %v3353
    %4054 = vmatprep.subr.mxu0 %v3358
    %4055 = vmatpush1.msra.mxu0 %v3357
    %4056 = vmatprep.mubr.f32.mxu0 %v3098
    %4057 = vmatmul.mubr.f32.gmra.mrb[0].mxu0 %v3097
    %v4058 = vpop.f32.mrb[0].mxu0
    %v4059 = vadd.f32 %v3988, %v4058
    %v4060 = vpop.f32.mrb[0].mxu0
    %v4061 = vadd.f32 %v3990, %v4060
    %4062 = vdwg.mxu0
    %4063 = vmatprep.subr.mxu0 %v3362
    %4064 = vmatpush1.msra.mxu0 %v3361
    %4065 = vmatprep.subr.mxu0 %v3366
    %4066 = vmatpush1.msra.mxu0 %v3365
    %4067 = vmatprep.subr.mxu0 %v3370
    %4068 = vmatpush1.msra.mxu0 %v3369
    %4069 = vmatprep.subr.mxu0 %v3374
    %4070 = vmatpush1.msra.mxu0 %v3373
    %4071 = vmatprep.subr.mxu0 %v3378
    %4072 = vmatpush1.msra.mxu0 %v3377
    %4073 = vmatprep.subr.mxu0 %v3382
    %4074 = vmatpush1.msra.mxu0 %v3381
    %4075 = vmatprep.subr.mxu0 %v3386
    %4076 = vmatpush1.msra.mxu0 %v3385
    %4077 = vmatprep.subr.mxu0 %v3390
    %4078 = vmatpush1.msra.mxu0 %v3389
    %4079 = vmatprep.subr.mxu0 %v3394
    %4080 = vmatpush1.msra.mxu0 %v3393
    %4081 = vmatprep.subr.mxu0 %v3398
    %4082 = vmatpush1.msra.mxu0 %v3397
    %4083 = vmatprep.subr.mxu0 %v3402
    %4084 = vmatpush1.msra.mxu0 %v3401
    %4085 = vmatprep.subr.mxu0 %v3406
    %4086 = vmatpush1.msra.mxu0 %v3405
    %4087 = vmatprep.subr.mxu0 %v3410
    %4088 = vmatpush1.msra.mxu0 %v3409
    %4089 = vmatprep.subr.mxu0 %v3414
    %4090 = vmatpush1.msra.mxu0 %v3413
    %4091 = vmatprep.subr.mxu0 %v3418
    %4092 = vmatpush1.msra.mxu0 %v3417
    %4093 = vmatprep.subr.mxu0 %v3422
    %4094 = vmatpush1.msra.mxu0 %v3421
    %4095 = vmatprep.subr.mxu0 %v3426
    %4096 = vmatpush1.msra.mxu0 %v3425
    %4097 = vmatprep.subr.mxu0 %v3430
    %4098 = vmatpush1.msra.mxu0 %v3429
    %4099 = vmatprep.subr.mxu0 %v3434
    %4100 = vmatpush1.msra.mxu0 %v3433
    %4101 = vmatprep.subr.mxu0 %v3438
    %4102 = vmatpush1.msra.mxu0 %v3437
    %4103 = vmatprep.subr.mxu0 %v3442
    %4104 = vmatpush1.msra.mxu0 %v3441
    %4105 = vmatprep.subr.mxu0 %v3446
    %4106 = vmatpush1.msra.mxu0 %v3445
    %4107 = vmatprep.subr.mxu0 %v3450
    %4108 = vmatpush1.msra.mxu0 %v3449
    %4109 = vmatprep.subr.mxu0 %v3454
    %4110 = vmatpush1.msra.mxu0 %v3453
    %4111 = vmatprep.subr.mxu0 %v3458
    %4112 = vmatpush1.msra.mxu0 %v3457
    %4113 = vmatprep.subr.mxu0 %v3462
    %4114 = vmatpush1.msra.mxu0 %v3461
    %4115 = vmatprep.subr.mxu0 %v3466
    %4116 = vmatpush1.msra.mxu0 %v3465
    %4117 = vmatprep.subr.mxu0 %v3470
    %4118 = vmatpush1.msra.mxu0 %v3469
    %4119 = vmatprep.subr.mxu0 %v3474
    %4120 = vmatpush1.msra.mxu0 %v3473
    %4121 = vmatprep.subr.mxu0 %v3478
    %4122 = vmatpush1.msra.mxu0 %v3477
    %4123 = vmatprep.subr.mxu0 %v3482
    %4124 = vmatpush1.msra.mxu0 %v3481
    %4125 = vmatprep.subr.mxu0 %v3486
    %4126 = vmatpush1.msra.mxu0 %v3485
    %4127 = vmatprep.mubr.f32.mxu0 %v3100
    %4128 = vmatmul.mubr.f32.gmra.mrb[0].mxu0 %v3099
    %v4129 = vpop.f32.mrb[0].mxu0
    %v4130 = vadd.f32 %v4059, %v4129
    %v4131 = vpop.f32.mrb[0].mxu0
    %v4132 = vadd.f32 %v4061, %v4131
    %4133 = vdwg.mxu0
    %4134 = vmatprep.subr.mxu0 %v3490
    %4135 = vmatpush1.msra.mxu0 %v3489
    %4136 = vmatprep.subr.mxu0 %v3494
    %4137 = vmatpush1.msra.mxu0 %v3493
    %4138 = vmatprep.subr.mxu0 %v3498
    %4139 = vmatpush1.msra.mxu0 %v3497
    %4140 = vmatprep.subr.mxu0 %v3502
    %4141 = vmatpush1.msra.mxu0 %v3501
    %4142 = vmatprep.subr.mxu0 %v3506
    %4143 = vmatpush1.msra.mxu0 %v3505
    %4144 = vmatprep.subr.mxu0 %v3510
    %4145 = vmatpush1.msra.mxu0 %v3509
    %4146 = vmatprep.subr.mxu0 %v3514
    %4147 = vmatpush1.msra.mxu0 %v3513
    %4148 = vmatprep.subr.mxu0 %v3518
    %4149 = vmatpush1.msra.mxu0 %v3517
    %4150 = vmatprep.subr.mxu0 %v3522
    %4151 = vmatpush1.msra.mxu0 %v3521
    %4152 = vmatprep.subr.mxu0 %v3526
    %4153 = vmatpush1.msra.mxu0 %v3525
    %4154 = vmatprep.subr.mxu0 %v3530
    %4155 = vmatpush1.msra.mxu0 %v3529
    %4156 = vmatprep.subr.mxu0 %v3534
    %4157 = vmatpush1.msra.mxu0 %v3533
    %4158 = vmatprep.subr.mxu0 %v3538
    %4159 = vmatpush1.msra.mxu0 %v3537
    %4160 = vmatprep.subr.mxu0 %v3542
    %4161 = vmatpush1.msra.mxu0 %v3541
    %4162 = vmatprep.subr.mxu0 %v3546
    %4163 = vmatpush1.msra.mxu0 %v3545
    %4164 = vmatprep.subr.mxu0 %v3550
    %4165 = vmatpush1.msra.mxu0 %v3549
    %4166 = vmatprep.subr.mxu0 %v3554
    %4167 = vmatpush1.msra.mxu0 %v3553
    %4168 = vmatprep.subr.mxu0 %v3558
    %4169 = vmatpush1.msra.mxu0 %v3557
    %4170 = vmatprep.subr.mxu0 %v3562
    %4171 = vmatpush1.msra.mxu0 %v3561
    %4172 = vmatprep.subr.mxu0 %v3566
    %4173 = vmatpush1.msra.mxu0 %v3565
    %4174 = vmatprep.subr.mxu0 %v3570
    %4175 = vmatpush1.msra.mxu0 %v3569
    %4176 = vmatprep.subr.mxu0 %v3574
    %4177 = vmatpush1.msra.mxu0 %v3573
    %4178 = vmatprep.subr.mxu0 %v3578
    %4179 = vmatpush1.msra.mxu0 %v3577
    %4180 = vmatprep.subr.mxu0 %v3582
    %4181 = vmatpush1.msra.mxu0 %v3581
    %4182 = vmatprep.subr.mxu0 %v3586
    %4183 = vmatpush1.msra.mxu0 %v3585
    %4184 = vmatprep.subr.mxu0 %v3590
    %4185 = vmatpush1.msra.mxu0 %v3589
    %4186 = vmatprep.subr.mxu0 %v3594
    %4187 = vmatpush1.msra.mxu0 %v3593
    %4188 = vmatprep.subr.mxu0 %v3598
    %4189 = vmatpush1.msra.mxu0 %v3597
    %4190 = vmatprep.subr.mxu0 %v3602
    %4191 = vmatpush1.msra.mxu0 %v3601
    %4192 = vmatprep.subr.mxu0 %v3606
    %4193 = vmatpush1.msra.mxu0 %v3605
    %4194 = vmatprep.subr.mxu0 %v3610
    %4195 = vmatpush1.msra.mxu0 %v3609
    %4196 = vmatprep.subr.mxu0 %v3614
    %4197 = vmatpush1.msra.mxu0 %v3613
    %4198 = vmatprep.mubr.f32.mxu0 %v3102
    %4199 = vmatmul.mubr.f32.gmra.mrb[0].mxu0 %v3101
    %v4200 = vpop.f32.mrb[0].mxu0
    %v4201 = vadd.f32 %v4130, %v4200
    %v4202 = vpop.f32.mrb[0].mxu0
    %v4203 = vadd.f32 %v4132, %v4202
    %4204 = vdwg.mxu0
    %v4205 = vld [vmem:[%s21] sm:$0xff]
    %v4206 = vld [vmem:[%s21 + $0x8] sm:$0xff]
    %v4207 = vld [vmem:[%s21 + $0x10] sm:$0xff]
    %v4208 = vld [vmem:[%s21 + $0x18] sm:$0xff]
    %v4209 = vld [vmem:[%s21 + $0x20] sm:$0xff]
    %v4210 = vld [vmem:[%s21 + $0x28] sm:$0xff]
    %v4211 = vld [vmem:[%s21 + $0x30] sm:$0xff]
    %v4212 = vld [vmem:[%s21 + $0x38] sm:$0xff]
    %v4213 = vld [vmem:[%s21 + $0x40] sm:$0xff]
    %v4214 = vld [vmem:[%s21 + $0x48] sm:$0xff]
    %v4215 = vld [vmem:[%s21 + $0x50] sm:$0xff]
    %v4216 = vld [vmem:[%s21 + $0x58] sm:$0xff]
    %v4217 = vld [vmem:[%s21 + $0x60] sm:$0xff]
    %v4218 = vld [vmem:[%s21 + $0x68] sm:$0xff]
    %v4219 = vld [vmem:[%s21 + $0x70] sm:$0xff]
    %v4220 = vld [vmem:[%s21 + $0x78] sm:$0xff]
    %v4221 = vld [vmem:[%s21 + $0x80] sm:$0xff]
    %v4222 = vld [vmem:[%s21 + $0x88] sm:$0xff]
    %v4223 = vld [vmem:[%s21 + $0x90] sm:$0xff]
    %v4224 = vld [vmem:[%s21 + $0x98] sm:$0xff]
    %v4225 = vld [vmem:[%s21 + $0xa0] sm:$0xff]
    %v4226 = vld [vmem:[%s21 + $0xa8] sm:$0xff]
    %v4227 = vld [vmem:[%s21 + $0xb0] sm:$0xff]
    %v4228 = vld [vmem:[%s21 + $0xb8] sm:$0xff]
    %v4229 = vld [vmem:[%s21 + $0xc0] sm:$0xff]
    %v4230 = vld [vmem:[%s21 + $0xc8] sm:$0xff]
    %v4231 = vld [vmem:[%s21 + $0xd0] sm:$0xff]
    %v4232 = vld [vmem:[%s21 + $0xd8] sm:$0xff]
    %v4233 = vld [vmem:[%s21 + $0xe0] sm:$0xff]
    %v4234 = vld [vmem:[%s21 + $0xe8] sm:$0xff]
    %v4235 = vld [vmem:[%s21 + $0xf0] sm:$0xff]
    %v4236 = vld [vmem:[%s21 + $0xf8] sm:$0xff]
    %v4237 = vld [vmem:[%s21 + $0x100] sm:$0xff]
    %v4238 = vld [vmem:[%s21 + $0x108] sm:$0xff]
    %v4239 = vld [vmem:[%s21 + $0x110] sm:$0xff]
    %v4240 = vld [vmem:[%s21 + $0x118] sm:$0xff]
    %v4241 = vld [vmem:[%s21 + $0x120] sm:$0xff]
    %v4242 = vld [vmem:[%s21 + $0x128] sm:$0xff]
    %v4243 = vld [vmem:[%s21 + $0x130] sm:$0xff]
    %v4244 = vld [vmem:[%s21 + $0x138] sm:$0xff]
    %v4245 = vld [vmem:[%s21 + $0x140] sm:$0xff]
    %v4246 = vld [vmem:[%s21 + $0x148] sm:$0xff]
    %v4247 = vld [vmem:[%s21 + $0x150] sm:$0xff]
    %v4248 = vld [vmem:[%s21 + $0x158] sm:$0xff]
    %v4249 = vld [vmem:[%s21 + $0x160] sm:$0xff]
    %v4250 = vld [vmem:[%s21 + $0x168] sm:$0xff]
    %v4251 = vld [vmem:[%s21 + $0x170] sm:$0xff]
    %v4252 = vld [vmem:[%s21 + $0x178] sm:$0xff]
    %v4253 = vld [vmem:[%s21 + $0x180] sm:$0xff]
    %v4254 = vld [vmem:[%s21 + $0x188] sm:$0xff]
    %v4255 = vld [vmem:[%s21 + $0x190] sm:$0xff]
    %v4256 = vld [vmem:[%s21 + $0x198] sm:$0xff]
    %v4257 = vld [vmem:[%s21 + $0x1a0] sm:$0xff]
    %v4258 = vld [vmem:[%s21 + $0x1a8] sm:$0xff]
    %v4259 = vld [vmem:[%s21 + $0x1b0] sm:$0xff]
    %v4260 = vld [vmem:[%s21 + $0x1b8] sm:$0xff]
    %v4261 = vld [vmem:[%s21 + $0x1c0] sm:$0xff]
    %v4262 = vld [vmem:[%s21 + $0x1c8] sm:$0xff]
    %v4263 = vld [vmem:[%s21 + $0x1d0] sm:$0xff]
    %v4264 = vld [vmem:[%s21 + $0x1d8] sm:$0xff]
    %v4265 = vld [vmem:[%s21 + $0x1e0] sm:$0xff]
    %v4266 = vld [vmem:[%s21 + $0x1e8] sm:$0xff]
    %v4267 = vld [vmem:[%s21 + $0x1f0] sm:$0xff]
    %v4268 = vld [vmem:[%s21 + $0x1f8] sm:$0xff]
    %v4269 = vld [vmem:[#allocation15] sm:$0xff]
    %v4270 = vld [vmem:[#allocation15 + $0x8] sm:$0xff]
    %v4271 = vld [vmem:[#allocation15 + $0x10] sm:$0xff]
    %v4272 = vld [vmem:[#allocation15 + $0x18] sm:$0xff]
    %v4273 = vld [vmem:[#allocation15 + $0x20] sm:$0xff]
    %v4274 = vld [vmem:[#allocation15 + $0x28] sm:$0xff]
    %v4275 = vld [vmem:[#allocation15 + $0x30] sm:$0xff]
    %v4276 = vld [vmem:[#allocation15 + $0x38] sm:$0xff]
    %v4277 = vld [vmem:[#allocation15 + $0x40] sm:$0xff]
    %v4278 = vld [vmem:[#allocation15 + $0x48] sm:$0xff]
    %v4279 = vld [vmem:[#allocation15 + $0x50] sm:$0xff]
    %v4280 = vld [vmem:[#allocation15 + $0x58] sm:$0xff]
    %v4281 = vld [vmem:[#allocation15 + $0x60] sm:$0xff]
    %v4282 = vld [vmem:[#allocation15 + $0x68] sm:$0xff]
    %v4283 = vld [vmem:[#allocation15 + $0x70] sm:$0xff]
    %v4284 = vld [vmem:[#allocation15 + $0x78] sm:$0xff]
    %v4285 = vld [vmem:[#allocation17] sm:$0x1]
    %v4286 = vld [vmem:[#allocation18] sm:$0x1]
    %v4287 = vsel %vm1734, %v3917, 0.0
    %v4288 = vrot.slane %v4287, 4
    %v4289 = vadd.f32 %v4287, %v4288
    %v4290 = vrot.slane %v4289, 2
    %v4291 = vadd.f32 %v4289, %v4290
    %v4292 = vrot.slane %v4291, 1
    %v4293 = vadd.f32 %v4291, %v4292
    %v4294 = vsel %vm1734, %v3919, 0.0
    %v4295 = vrot.slane %v4294, 4
    %v4296 = vadd.f32 %v4294, %v4295
    %v4297 = vrot.slane %v4296, 2
    %v4298 = vadd.f32 %v4296, %v4297
    %v4299 = vrot.slane %v4298, 1
    %v4300 = vadd.f32 %v4298, %v4299
    %v4301 = vsel %vm1734, %v4201, 0.0
    %v4302 = vrot.slane %v4301, 4
    %v4303 = vadd.f32 %v4301, %v4302
    %v4304 = vrot.slane %v4303, 2
    %v4305 = vadd.f32 %v4303, %v4304
    %v4306 = vrot.slane %v4305, 1
    %v4307 = vadd.f32 %v4305, %v4306
    %v4308 = vsel %vm1734, %v4203, 0.0
    %v4309 = vrot.slane %v4308, 4
    %v4310 = vadd.f32 %v4308, %v4309
    %v4311 = vrot.slane %v4310, 2
    %v4312 = vadd.f32 %v4310, %v4311
    %v4313 = vrot.slane %v4312, 1
    %v4314 = vadd.f32 %v4312, %v4313
    %v4315 = vmul.f32 %v3917, %v3917
    %v4316 = vmul.f32 %v3919, %v3919
    %v4317 = vmul.f32 %v4201, %v4201
    %v4318 = vmul.f32 %v4203, %v4203
    %v4319 = vsel %vm1734, %v4315, 0.0
    %v4320 = vrot.slane %v4319, 4
    %v4321 = vadd.f32 %v4319, %v4320
    %v4322 = vrot.slane %v4321, 2
    %v4323 = vadd.f32 %v4321, %v4322
    %v4324 = vrot.slane %v4323, 1
    %v4325 = vadd.f32 %v4323, %v4324
    %v4326 = vsel %vm1734, %v4316, 0.0
    %v4327 = vrot.slane %v4326, 4
    %v4328 = vadd.f32 %v4326, %v4327
    %v4329 = vrot.slane %v4328, 2
    %v4330 = vadd.f32 %v4328, %v4329
    %v4331 = vrot.slane %v4330, 1
    %v4332 = vadd.f32 %v4330, %v4331
    %v4333 = vsel %vm1734, %v4317, 0.0
    %v4334 = vrot.slane %v4333, 4
    %v4335 = vadd.f32 %v4333, %v4334
    %v4336 = vrot.slane %v4335, 2
    %v4337 = vadd.f32 %v4335, %v4336
    %v4338 = vrot.slane %v4337, 1
    %v4339 = vadd.f32 %v4337, %v4338
    %v4340 = vsel %vm1734, %v4318, 0.0
    %v4341 = vrot.slane %v4340, 4
    %v4342 = vadd.f32 %v4340, %v4341
    %v4343 = vrot.slane %v4342, 2
    %v4344 = vadd.f32 %v4342, %v4343
    %v4345 = vrot.slane %v4344, 1
    %v4346 = vadd.f32 %v4344, %v4345
    %4347 = vmatprep.subr.mxu0 0.0
    %4348 = vmatpush1.msra.mxu0 %v4205
    %4349 = vmatprep.subr.mxu0 0.0
    %4350 = vmatpush1.msra.mxu0 %v4206
    %4351 = vmatprep.subr.mxu0 0.0
    %4352 = vmatpush1.msra.mxu0 %v4207
    %4353 = vmatprep.subr.mxu0 0.0
    %4354 = vmatpush1.msra.mxu0 %v4208
    %4355 = vmatprep.subr.mxu0 0.0
    %4356 = vmatpush1.msra.mxu0 %v4209
    %4357 = vmatprep.subr.mxu0 0.0
    %4358 = vmatpush1.msra.mxu0 %v4210
    %4359 = vmatprep.subr.mxu0 0.0
    %4360 = vmatpush1.msra.mxu0 %v4211
    %4361 = vmatprep.subr.mxu0 0.0
    %4362 = vmatpush1.msra.mxu0 %v4212
    %4363 = vmatprep.subr.mxu0 0.0
    %4364 = vmatpush1.msra.mxu0 %v4213
    %4365 = vmatprep.subr.mxu0 0.0
    %4366 = vmatpush1.msra.mxu0 %v4214
    %4367 = vmatprep.subr.mxu0 0.0
    %4368 = vmatpush1.msra.mxu0 %v4215
    %4369 = vmatprep.subr.mxu0 0.0
    %4370 = vmatpush1.msra.mxu0 %v4216
    %4371 = vmatprep.subr.mxu0 0.0
    %4372 = vmatpush1.msra.mxu0 %v4217
    %4373 = vmatprep.subr.mxu0 0.0
    %4374 = vmatpush1.msra.mxu0 %v4218
    %4375 = vmatprep.subr.mxu0 0.0
    %4376 = vmatpush1.msra.mxu0 %v4219
    %4377 = vmatprep.subr.mxu0 0.0
    %4378 = vmatpush1.msra.mxu0 %v4220
    %4379 = vmatprep.subr.mxu0 0.0
    %4380 = vmatpush1.msra.mxu0 %v4221
    %4381 = vmatprep.subr.mxu0 0.0
    %4382 = vmatpush1.msra.mxu0 %v4222
    %4383 = vmatprep.subr.mxu0 0.0
    %4384 = vmatpush1.msra.mxu0 %v4223
    %4385 = vmatprep.subr.mxu0 0.0
    %4386 = vmatpush1.msra.mxu0 %v4224
    %4387 = vmatprep.subr.mxu0 0.0
    %4388 = vmatpush1.msra.mxu0 %v4225
    %4389 = vmatprep.subr.mxu0 0.0
    %4390 = vmatpush1.msra.mxu0 %v4226
    %4391 = vmatprep.subr.mxu0 0.0
    %4392 = vmatpush1.msra.mxu0 %v4227
    %4393 = vmatprep.subr.mxu0 0.0
    %4394 = vmatpush1.msra.mxu0 %v4228
    %4395 = vmatprep.subr.mxu0 0.0
    %4396 = vmatpush1.msra.mxu0 %v4229
    %4397 = vmatprep.subr.mxu0 0.0
    %4398 = vmatpush1.msra.mxu0 %v4230
    %4399 = vmatprep.subr.mxu0 0.0
    %4400 = vmatpush1.msra.mxu0 %v4231
    %4401 = vmatprep.subr.mxu0 0.0
    %4402 = vmatpush1.msra.mxu0 %v4232
    %4403 = vmatprep.subr.mxu0 0.0
    %4404 = vmatpush1.msra.mxu0 %v4233
    %4405 = vmatprep.subr.mxu0 0.0
    %4406 = vmatpush1.msra.mxu0 %v4234
    %4407 = vmatprep.subr.mxu0 0.0
    %4408 = vmatpush1.msra.mxu0 %v4235
    %4409 = vmatprep.subr.mxu0 0.0
    %4410 = vmatpush1.msra.mxu0 %v4236
    %4411 = vmatprep.mubr.f32.mxu0 %v4300
    %4412 = vmatmul.mubr.f32.gmra.mrb[0].mxu0 %v4293
    %v4413 = vpop.f32.mrb[0].mxu0
    %v4414 = vadd.f32 0.0, %v4413
    %v4415 = vpop.f32.mrb[0].mxu0
    %4416 = vdwg.mxu0
    %4417 = vmatprep.subr.mxu0 0.0
    %4418 = vmatpush1.msra.mxu0 %v4237
    %4419 = vmatprep.subr.mxu0 0.0
    %4420 = vmatpush1.msra.mxu0 %v4238
    %4421 = vmatprep.subr.mxu0 0.0
    %4422 = vmatpush1.msra.mxu0 %v4239
    %4423 = vmatprep.subr.mxu0 0.0
    %4424 = vmatpush1.msra.mxu0 %v4240
    %4425 = vmatprep.subr.mxu0 0.0
    %4426 = vmatpush1.msra.mxu0 %v4241
    %4427 = vmatprep.subr.mxu0 0.0
    %4428 = vmatpush1.msra.mxu0 %v4242
    %4429 = vmatprep.subr.mxu0 0.0
    %4430 = vmatpush1.msra.mxu0 %v4243
    %4431 = vmatprep.subr.mxu0 0.0
    %4432 = vmatpush1.msra.mxu0 %v4244
    %4433 = vmatprep.subr.mxu0 0.0
    %4434 = vmatpush1.msra.mxu0 %v4245
    %4435 = vmatprep.subr.mxu0 0.0
    %4436 = vmatpush1.msra.mxu0 %v4246
    %4437 = vmatprep.subr.mxu0 0.0
    %4438 = vmatpush1.msra.mxu0 %v4247
    %4439 = vmatprep.subr.mxu0 0.0
    %4440 = vmatpush1.msra.mxu0 %v4248
    %4441 = vmatprep.subr.mxu0 0.0
    %4442 = vmatpush1.msra.mxu0 %v4249
    %4443 = vmatprep.subr.mxu0 0.0
    %4444 = vmatpush1.msra.mxu0 %v4250
    %4445 = vmatprep.subr.mxu0 0.0
    %4446 = vmatpush1.msra.mxu0 %v4251
    %4447 = vmatprep.subr.mxu0 0.0
    %4448 = vmatpush1.msra.mxu0 %v4252
    %4449 = vmatprep.subr.mxu0 0.0
    %4450 = vmatpush1.msra.mxu0 %v4253
    %4451 = vmatprep.subr.mxu0 0.0
    %4452 = vmatpush1.msra.mxu0 %v4254
    %4453 = vmatprep.subr.mxu0 0.0
    %4454 = vmatpush1.msra.mxu0 %v4255
    %4455 = vmatprep.subr.mxu0 0.0
    %4456 = vmatpush1.msra.mxu0 %v4256
    %4457 = vmatprep.subr.mxu0 0.0
    %4458 = vmatpush1.msra.mxu0 %v4257
    %4459 = vmatprep.subr.mxu0 0.0
    %4460 = vmatpush1.msra.mxu0 %v4258
    %4461 = vmatprep.subr.mxu0 0.0
    %4462 = vmatpush1.msra.mxu0 %v4259
    %4463 = vmatprep.subr.mxu0 0.0
    %4464 = vmatpush1.msra.mxu0 %v4260
    %4465 = vmatprep.subr.mxu0 0.0
    %4466 = vmatpush1.msra.mxu0 %v4261
    %4467 = vmatprep.subr.mxu0 0.0
    %4468 = vmatpush1.msra.mxu0 %v4262
    %4469 = vmatprep.subr.mxu0 0.0
    %4470 = vmatpush1.msra.mxu0 %v4263
    %4471 = vmatprep.subr.mxu0 0.0
    %4472 = vmatpush1.msra.mxu0 %v4264
    %4473 = vmatprep.subr.mxu0 0.0
    %4474 = vmatpush1.msra.mxu0 %v4265
    %4475 = vmatprep.subr.mxu0 0.0
    %4476 = vmatpush1.msra.mxu0 %v4266
    %4477 = vmatprep.subr.mxu0 0.0
    %4478 = vmatpush1.msra.mxu0 %v4267
    %4479 = vmatprep.subr.mxu0 0.0
    %4480 = vmatpush1.msra.mxu0 %v4268
    %4481 = vmatprep.mubr.f32.mxu0 %v4314
    %4482 = vmatmul.mubr.f32.gmra.mrb[0].mxu0 %v4307
    %v4483 = vpop.f32.mrb[0].mxu0
    %v4484 = vadd.f32 %v4414, %v4483
    %v4485 = vpop.f32.mrb[0].mxu0
    %4486 = vdwg.mxu0
    %v4487 = vmul.f32 %v4484, 0.5
    %4488 = vmatprep.subr.mxu0 0.0
    %4489 = vmatpush1.msra.mxu0 %v4205
    %4490 = vmatprep.subr.mxu0 0.0
    %4491 = vmatpush1.msra.mxu0 %v4206
    %4492 = vmatprep.subr.mxu0 0.0
    %4493 = vmatpush1.msra.mxu0 %v4207
    %4494 = vmatprep.subr.mxu0 0.0
    %4495 = vmatpush1.msra.mxu0 %v4208
    %4496 = vmatprep.subr.mxu0 0.0
    %4497 = vmatpush1.msra.mxu0 %v4209
    %4498 = vmatprep.subr.mxu0 0.0
    %4499 = vmatpush1.msra.mxu0 %v4210
    %4500 = vmatprep.subr.mxu0 0.0
    %4501 = vmatpush1.msra.mxu0 %v4211
    %4502 = vmatprep.subr.mxu0 0.0
    %4503 = vmatpush1.msra.mxu0 %v4212
    %4504 = vmatprep.subr.mxu0 0.0
    %4505 = vmatpush1.msra.mxu0 %v4213
    %4506 = vmatprep.subr.mxu0 0.0
    %4507 = vmatpush1.msra.mxu0 %v4214
    %4508 = vmatprep.subr.mxu0 0.0
    %4509 = vmatpush1.msra.mxu0 %v4215
    %4510 = vmatprep.subr.mxu0 0.0
    %4511 = vmatpush1.msra.mxu0 %v4216
    %4512 = vmatprep.subr.mxu0 0.0
    %4513 = vmatpush1.msra.mxu0 %v4217
    %4514 = vmatprep.subr.mxu0 0.0
    %4515 = vmatpush1.msra.mxu0 %v4218
    %4516 = vmatprep.subr.mxu0 0.0
    %4517 = vmatpush1.msra.mxu0 %v4219
    %4518 = vmatprep.subr.mxu0 0.0
    %4519 = vmatpush1.msra.mxu0 %v4220
    %4520 = vmatprep.subr.mxu0 0.0
    %4521 = vmatpush1.msra.mxu0 %v4221
    %4522 = vmatprep.subr.mxu0 0.0
    %4523 = vmatpush1.msra.mxu0 %v4222
    %4524 = vmatprep.subr.mxu0 0.0
    %4525 = vmatpush1.msra.mxu0 %v4223
    %4526 = vmatprep.subr.mxu0 0.0
    %4527 = vmatpush1.msra.mxu0 %v4224
    %4528 = vmatprep.subr.mxu0 0.0
    %4529 = vmatpush1.msra.mxu0 %v4225
    %4530 = vmatprep.subr.mxu0 0.0
    %4531 = vmatpush1.msra.mxu0 %v4226
    %4532 = vmatprep.subr.mxu0 0.0
    %4533 = vmatpush1.msra.mxu0 %v4227
    %4534 = vmatprep.subr.mxu0 0.0
    %4535 = vmatpush1.msra.mxu0 %v4228
    %4536 = vmatprep.subr.mxu0 0.0
    %4537 = vmatpush1.msra.mxu0 %v4229
    %4538 = vmatprep.subr.mxu0 0.0
    %4539 = vmatpush1.msra.mxu0 %v4230
    %4540 = vmatprep.subr.mxu0 0.0
    %4541 = vmatpush1.msra.mxu0 %v4231
    %4542 = vmatprep.subr.mxu0 0.0
    %4543 = vmatpush1.msra.mxu0 %v4232
    %4544 = vmatprep.subr.mxu0 0.0
    %4545 = vmatpush1.msra.mxu0 %v4233
    %4546 = vmatprep.subr.mxu0 0.0
    %4547 = vmatpush1.msra.mxu0 %v4234
    %4548 = vmatprep.subr.mxu0 0.0
    %4549 = vmatpush1.msra.mxu0 %v4235
    %4550 = vmatprep.subr.mxu0 0.0
    %4551 = vmatpush1.msra.mxu0 %v4236
    %4552 = vmatprep.mubr.f32.mxu0 %v4332
    %4553 = vmatmul.mubr.f32.gmra.mrb[0].mxu0 %v4325
    %v4554 = vpop.f32.mrb[0].mxu0
    %v4555 = vadd.f32 0.0, %v4554
    %v4556 = vpop.f32.mrb[0].mxu0
    %4557 = vdwg.mxu0
    %4558 = vmatprep.subr.mxu0 0.0
    %4559 = vmatpush1.msra.mxu0 %v4237
    %4560 = vmatprep.subr.mxu0 0.0
    %4561 = vmatpush1.msra.mxu0 %v4238
    %4562 = vmatprep.subr.mxu0 0.0
    %4563 = vmatpush1.msra.mxu0 %v4239
    %4564 = vmatprep.subr.mxu0 0.0
    %4565 = vmatpush1.msra.mxu0 %v4240
    %4566 = vmatprep.subr.mxu0 0.0
    %4567 = vmatpush1.msra.mxu0 %v4241
    %4568 = vmatprep.subr.mxu0 0.0
    %4569 = vmatpush1.msra.mxu0 %v4242
    %4570 = vmatprep.subr.mxu0 0.0
    %4571 = vmatpush1.msra.mxu0 %v4243
    %4572 = vmatprep.subr.mxu0 0.0
    %4573 = vmatpush1.msra.mxu0 %v4244
    %4574 = vmatprep.subr.mxu0 0.0
    %4575 = vmatpush1.msra.mxu0 %v4245
    %4576 = vmatprep.subr.mxu0 0.0
    %4577 = vmatpush1.msra.mxu0 %v4246
    %4578 = vmatprep.subr.mxu0 0.0
    %4579 = vmatpush1.msra.mxu0 %v4247
    %4580 = vmatprep.subr.mxu0 0.0
    %4581 = vmatpush1.msra.mxu0 %v4248
    %4582 = vmatprep.subr.mxu0 0.0
    %4583 = vmatpush1.msra.mxu0 %v4249
    %4584 = vmatprep.subr.mxu0 0.0
    %4585 = vmatpush1.msra.mxu0 %v4250
    %4586 = vmatprep.subr.mxu0 0.0
    %4587 = vmatpush1.msra.mxu0 %v4251
    %4588 = vmatprep.subr.mxu0 0.0
    %4589 = vmatpush1.msra.mxu0 %v4252
    %4590 = vmatprep.subr.mxu0 0.0
    %4591 = vmatpush1.msra.mxu0 %v4253
    %4592 = vmatprep.subr.mxu0 0.0
    %4593 = vmatpush1.msra.mxu0 %v4254
    %4594 = vmatprep.subr.mxu0 0.0
    %4595 = vmatpush1.msra.mxu0 %v4255
    %4596 = vmatprep.subr.mxu0 0.0
    %4597 = vmatpush1.msra.mxu0 %v4256
    %4598 = vmatprep.subr.mxu0 0.0
    %4599 = vmatpush1.msra.mxu0 %v4257
    %4600 = vmatprep.subr.mxu0 0.0
    %4601 = vmatpush1.msra.mxu0 %v4258
    %4602 = vmatprep.subr.mxu0 0.0
    %4603 = vmatpush1.msra.mxu0 %v4259
    %4604 = vmatprep.subr.mxu0 0.0
    %4605 = vmatpush1.msra.mxu0 %v4260
    %4606 = vmatprep.subr.mxu0 0.0
    %4607 = vmatpush1.msra.mxu0 %v4261
    %4608 = vmatprep.subr.mxu0 0.0
    %4609 = vmatpush1.msra.mxu0 %v4262
    %4610 = vmatprep.subr.mxu0 0.0
    %4611 = vmatpush1.msra.mxu0 %v4263
    %4612 = vmatprep.subr.mxu0 0.0
    %4613 = vmatpush1.msra.mxu0 %v4264
    %4614 = vmatprep.subr.mxu0 0.0
    %4615 = vmatpush1.msra.mxu0 %v4265
    %4616 = vmatprep.subr.mxu0 0.0
    %4617 = vmatpush1.msra.mxu0 %v4266
    %4618 = vmatprep.subr.mxu0 0.0
    %4619 = vmatpush1.msra.mxu0 %v4267
    %4620 = vmatprep.subr.mxu0 0.0
    %4621 = vmatpush1.msra.mxu0 %v4268
    %4622 = vmatprep.mubr.f32.mxu0 %v4346
    %4623 = vmatmul.mubr.f32.gmra.mrb[0].mxu0 %v4339
    %v4624 = vpop.f32.mrb[0].mxu0
    %v4625 = vadd.f32 %v4555, %v4624
    %v4626 = vpop.f32.mrb[0].mxu0
    %4627 = vdwg.mxu0
    %v4628 = vmul.f32 %v4625, 0.5
    %v4629 = vmul.f32 %v4487, %v4487
    %v4630 = vsub.f32 %v4628, %v4629
    %v4631 = vadd.f32 %v4630, 1e-05
    %v4632 = vrsqrt.pop %v4631
    %v4633 = vmul.f32 %v4285, %v4632
    %v4634 = vmul.f32 %v4487, %v4633
    %v4635 = vsub.f32 %v4286, %v4634
    %vm4636 = vcmask 261120
    %v4638 = vsel %vm4636, %v4633, 0
    %4640 = vmatprep.subr.mxu0 %v4270
    %4641 = vmatpush1.msra.mxu0 %v4269
    %4642 = vmatprep.subr.mxu0 %v4274
    %4643 = vmatpush1.msra.mxu0 %v4273
    %4644 = vmatprep.subr.mxu0 %v4278
    %4645 = vmatpush1.msra.mxu0 %v4277
    %4646 = vmatprep.subr.mxu0 %v4282
    %4647 = vmatpush1.msra.mxu0 %v4281
    %4648 = vmatprep.subr.mxu0 0.0
    %4649 = vmatpush1.msra.mxu0 0.0
    %4650 = vmatprep.subr.mxu0 0.0
    %4651 = vmatpush1.msra.mxu0 0.0
    %4652 = vmatprep.subr.mxu0 0.0
    %4653 = vmatpush1.msra.mxu0 0.0
    %4654 = vmatprep.subr.mxu0 0.0
    %4655 = vmatpush1.msra.mxu0 0.0
    %4656 = vmatprep.subr.mxu0 0.0
    %4657 = vmatpush1.msra.mxu0 0.0
    %4658 = vmatprep.subr.mxu0 0.0
    %4659 = vmatpush1.msra.mxu0 0.0
    %4660 = vmatprep.subr.mxu0 0.0
    %4661 = vmatpush1.msra.mxu0 0.0
    %4662 = vmatprep.subr.mxu0 0.0
    %4663 = vmatpush1.msra.mxu0 0.0
    %4664 = vmatprep.subr.mxu0 0.0
    %4665 = vmatpush1.msra.mxu0 0.0
    %4666 = vmatprep.subr.mxu0 0.0
    %4667 = vmatpush1.msra.mxu0 0.0
    %4668 = vmatprep.subr.mxu0 0.0
    %4669 = vmatpush1.msra.mxu0 0.0
    %4670 = vmatprep.subr.mxu0 0.0
    %4671 = vmatpush1.msra.mxu0 0.0
    %4672 = vmatprep.subr.mxu0 0.0
    %4673 = vmatpush1.msra.mxu0 0.0
    %4674 = vmatprep.subr.mxu0 0.0
    %4675 = vmatpush1.msra.mxu0 0.0
    %4676 = vmatprep.subr.mxu0 0.0
    %4677 = vmatpush1.msra.mxu0 0.0
    %4678 = vmatprep.subr.mxu0 0.0
    %4679 = vmatpush1.msra.mxu0 0.0
    %4680 = vmatprep.subr.mxu0 0.0
    %4681 = vmatpush1.msra.mxu0 0.0
    %4682 = vmatprep.subr.mxu0 0.0
    %4683 = vmatpush1.msra.mxu0 0.0
    %4684 = vmatprep.subr.mxu0 0.0
    %4685 = vmatpush1.msra.mxu0 0.0
    %4686 = vmatprep.subr.mxu0 0.0
    %4687 = vmatpush1.msra.mxu0 0.0
    %4688 = vmatprep.subr.mxu0 0.0
    %4689 = vmatpush1.msra.mxu0 0.0
    %4690 = vmatprep.subr.mxu0 0.0
    %4691 = vmatpush1.msra.mxu0 0.0
    %4692 = vmatprep.subr.mxu0 0.0
    %4693 = vmatpush1.msra.mxu0 0.0
    %4694 = vmatprep.subr.mxu0 0.0
    %4695 = vmatpush1.msra.mxu0 0.0
    %4696 = vmatprep.subr.mxu0 0.0
    %4697 = vmatpush1.msra.mxu0 0.0
    %4698 = vmatprep.subr.mxu0 0.0
    %4699 = vmatpush1.msra.mxu0 0.0
    %4700 = vmatprep.subr.mxu0 0.0
    %4701 = vmatpush1.msra.mxu0 0.0
    %4702 = vmatprep.subr.mxu0 0.0
    %4703 = vmatpush1.msra.mxu0 0.0
    %4704 = vmatprep.mubr.f32.mxu0 0.0
    %4705 = vmatmul.mubr.f32.gmra.mrb[0].mxu0 %v4638
    %v4706 = vpop.f32.mrb[0].mxu0
    %v4707 = vadd.f32 0.0, %v4706
    %v4708 = vpop.f32.mrb[0].mxu0
    %v4709 = vadd.f32 0.0, %v4708
    %4710 = vdwg.mxu0
    %4711 = vmatprep.subr.mxu0 %v4272
    %4712 = vmatpush1.msra.mxu0 %v4271
    %4713 = vmatprep.subr.mxu0 %v4276
    %4714 = vmatpush1.msra.mxu0 %v4275
    %4715 = vmatprep.subr.mxu0 %v4280
    %4716 = vmatpush1.msra.mxu0 %v4279
    %4717 = vmatprep.subr.mxu0 %v4284
    %4718 = vmatpush1.msra.mxu0 %v4283
    %4719 = vmatprep.subr.mxu0 0.0
    %4720 = vmatpush1.msra.mxu0 0.0
    %4721 = vmatprep.subr.mxu0 0.0
    %4722 = vmatpush1.msra.mxu0 0.0
    %4723 = vmatprep.subr.mxu0 0.0
    %4724 = vmatpush1.msra.mxu0 0.0
    %4725 = vmatprep.subr.mxu0 0.0
    %4726 = vmatpush1.msra.mxu0 0.0
    %4727 = vmatprep.subr.mxu0 0.0
    %4728 = vmatpush1.msra.mxu0 0.0
    %4729 = vmatprep.subr.mxu0 0.0
    %4730 = vmatpush1.msra.mxu0 0.0
    %4731 = vmatprep.subr.mxu0 0.0
    %4732 = vmatpush1.msra.mxu0 0.0
    %4733 = vmatprep.subr.mxu0 0.0
    %4734 = vmatpush1.msra.mxu0 0.0
    %4735 = vmatprep.subr.mxu0 0.0
    %4736 = vmatpush1.msra.mxu0 0.0
    %4737 = vmatprep.subr.mxu0 0.0
    %4738 = vmatpush1.msra.mxu0 0.0
    %4739 = vmatprep.subr.mxu0 0.0
    %4740 = vmatpush1.msra.mxu0 0.0
    %4741 = vmatprep.subr.mxu0 0.0
    %4742 = vmatpush1.msra.mxu0 0.0
    %4743 = vmatprep.subr.mxu0 0.0
    %4744 = vmatpush1.msra.mxu0 0.0
    %4745 = vmatprep.subr.mxu0 0.0
    %4746 = vmatpush1.msra.mxu0 0.0
    %4747 = vmatprep.subr.mxu0 0.0
    %4748 = vmatpush1.msra.mxu0 0.0
    %4749 = vmatprep.subr.mxu0 0.0
    %4750 = vmatpush1.msra.mxu0 0.0
    %4751 = vmatprep.subr.mxu0 0.0
    %4752 = vmatpush1.msra.mxu0 0.0
    %4753 = vmatprep.subr.mxu0 0.0
    %4754 = vmatpush1.msra.mxu0 0.0
    %4755 = vmatprep.subr.mxu0 0.0
    %4756 = vmatpush1.msra.mxu0 0.0
    %4757 = vmatprep.subr.mxu0 0.0
    %4758 = vmatpush1.msra.mxu0 0.0
    %4759 = vmatprep.subr.mxu0 0.0
    %4760 = vmatpush1.msra.mxu0 0.0
    %4761 = vmatprep.subr.mxu0 0.0
    %4762 = vmatpush1.msra.mxu0 0.0
    %4763 = vmatprep.subr.mxu0 0.0
    %4764 = vmatpush1.msra.mxu0 0.0
    %4765 = vmatprep.subr.mxu0 0.0
    %4766 = vmatpush1.msra.mxu0 0.0
    %4767 = vmatprep.subr.mxu0 0.0
    %4768 = vmatpush1.msra.mxu0 0.0
    %4769 = vmatprep.subr.mxu0 0.0
    %4770 = vmatpush1.msra.mxu0 0.0
    %4771 = vmatprep.subr.mxu0 0.0
    %4772 = vmatpush1.msra.mxu0 0.0
    %4773 = vmatprep.subr.mxu0 0.0
    %4774 = vmatpush1.msra.mxu0 0.0
    %4775 = vmatprep.mubr.f32.mxu0 0.0
    %4776 = vmatmul.mubr.f32.gmra.mrb[0].mxu0 %v4638
    %v4777 = vpop.f32.mrb[0].mxu0
    %v4778 = vadd.f32 0.0, %v4777
    %v4779 = vpop.f32.mrb[0].mxu0
    %v4780 = vadd.f32 0.0, %v4779
    %4781 = vdwg.mxu0
    %v4782 = vlaneseq
    %v4783 = vshrl.u32 %v4782, 7
    %v4784 = vsub.s32 0, %v4783
    %v4785 = vrot.slane %v4707, %v4784
    %v4786 = vlaneseq
    %v4787 = vshrl.u32 %v4786, 7
    %v4788 = vsub.s32 0, %v4787
    %v4789 = vrot.slane %v4709, %v4788
    %v4790 = vlaneseq
    %v4791 = vshrl.u32 %v4790, 7
    %v4792 = vsub.s32 0, %v4791
    %v4793 = vrot.slane %v4778, %v4792
    %v4794 = vlaneseq
    %v4795 = vshrl.u32 %v4794, 7
    %v4796 = vsub.s32 0, %v4795
    %v4797 = vrot.slane %v4780, %v4796
    %v4798 = vmul.f32 %v3917, %v4785
    %v4799 = vmul.f32 %v3919, %v4789
    %v4800 = vmul.f32 %v4201, %v4793
    %v4801 = vmul.f32 %v4203, %v4797
    %v4803 = vsel %vm4636, %v4635, 0
    %4805 = vmatprep.subr.mxu0 %v4270
    %4806 = vmatpush1.msra.mxu0 %v4269
    %4807 = vmatprep.subr.mxu0 %v4274
    %4808 = vmatpush1.msra.mxu0 %v4273
    %4809 = vmatprep.subr.mxu0 %v4278
    %4810 = vmatpush1.msra.mxu0 %v4277
    %4811 = vmatprep.subr.mxu0 %v4282
    %4812 = vmatpush1.msra.mxu0 %v4281
    %4813 = vmatprep.subr.mxu0 0.0
    %4814 = vmatpush1.msra.mxu0 0.0
    %4815 = vmatprep.subr.mxu0 0.0
    %4816 = vmatpush1.msra.mxu0 0.0
    %4817 = vmatprep.subr.mxu0 0.0
    %4818 = vmatpush1.msra.mxu0 0.0
    %4819 = vmatprep.subr.mxu0 0.0
    %4820 = vmatpush1.msra.mxu0 0.0
    %4821 = vmatprep.subr.mxu0 0.0
    %4822 = vmatpush1.msra.mxu0 0.0
    %4823 = vmatprep.subr.mxu0 0.0
    %4824 = vmatpush1.msra.mxu0 0.0
    %4825 = vmatprep.subr.mxu0 0.0
    %4826 = vmatpush1.msra.mxu0 0.0
    %4827 = vmatprep.subr.mxu0 0.0
    %4828 = vmatpush1.msra.mxu0 0.0
    %4829 = vmatprep.subr.mxu0 0.0
    %4830 = vmatpush1.msra.mxu0 0.0
    %4831 = vmatprep.subr.mxu0 0.0
    %4832 = vmatpush1.msra.mxu0 0.0
    %4833 = vmatprep.subr.mxu0 0.0
    %4834 = vmatpush1.msra.mxu0 0.0
    %4835 = vmatprep.subr.mxu0 0.0
    %4836 = vmatpush1.msra.mxu0 0.0
    %4837 = vmatprep.subr.mxu0 0.0
    %4838 = vmatpush1.msra.mxu0 0.0
    %4839 = vmatprep.subr.mxu0 0.0
    %4840 = vmatpush1.msra.mxu0 0.0
    %4841 = vmatprep.subr.mxu0 0.0
    %4842 = vmatpush1.msra.mxu0 0.0
    %4843 = vmatprep.subr.mxu0 0.0
    %4844 = vmatpush1.msra.mxu0 0.0
    %4845 = vmatprep.subr.mxu0 0.0
    %4846 = vmatpush1.msra.mxu0 0.0
    %4847 = vmatprep.subr.mxu0 0.0
    %4848 = vmatpush1.msra.mxu0 0.0
    %4849 = vmatprep.subr.mxu0 0.0
    %4850 = vmatpush1.msra.mxu0 0.0
    %4851 = vmatprep.subr.mxu0 0.0
    %4852 = vmatpush1.msra.mxu0 0.0
    %4853 = vmatprep.subr.mxu0 0.0
    %4854 = vmatpush1.msra.mxu0 0.0
    %4855 = vmatprep.subr.mxu0 0.0
    %4856 = vmatpush1.msra.mxu0 0.0
    %4857 = vmatprep.subr.mxu0 0.0
    %4858 = vmatpush1.msra.mxu0 0.0
    %4859 = vmatprep.subr.mxu0 0.0
    %4860 = vmatpush1.msra.mxu0 0.0
    %4861 = vmatprep.subr.mxu0 0.0
    %4862 = vmatpush1.msra.mxu0 0.0
    %4863 = vmatprep.subr.mxu0 0.0
    %4864 = vmatpush1.msra.mxu0 0.0
    %4865 = vmatprep.subr.mxu0 0.0
    %4866 = vmatpush1.msra.mxu0 0.0
    %4867 = vmatprep.subr.mxu0 0.0
    %4868 = vmatpush1.msra.mxu0 0.0
    %4869 = vmatprep.mubr.f32.mxu0 0.0
    %4870 = vmatmul.mubr.f32.gmra.mrb[0].mxu0 %v4803
    %v4871 = vpop.f32.mrb[0].mxu0
    %v4872 = vadd.f32 0.0, %v4871
    %v4873 = vpop.f32.mrb[0].mxu0
    %v4874 = vadd.f32 0.0, %v4873
    %4875 = vdwg.mxu0
    %4876 = vmatprep.subr.mxu0 %v4272
    %4877 = vmatpush1.msra.mxu0 %v4271
    %4878 = vmatprep.subr.mxu0 %v4276
    %4879 = vmatpush1.msra.mxu0 %v4275
    %4880 = vmatprep.subr.mxu0 %v4280
    %4881 = vmatpush1.msra.mxu0 %v4279
    %4882 = vmatprep.subr.mxu0 %v4284
    %4883 = vmatpush1.msra.mxu0 %v4283
    %4884 = vmatprep.subr.mxu0 0.0
    %4885 = vmatpush1.msra.mxu0 0.0
    %4886 = vmatprep.subr.mxu0 0.0
    %4887 = vmatpush1.msra.mxu0 0.0
    %4888 = vmatprep.subr.mxu0 0.0
    %4889 = vmatpush1.msra.mxu0 0.0
    %4890 = vmatprep.subr.mxu0 0.0
    %4891 = vmatpush1.msra.mxu0 0.0
    %4892 = vmatprep.subr.mxu0 0.0
    %4893 = vmatpush1.msra.mxu0 0.0
    %4894 = vmatprep.subr.mxu0 0.0
    %4895 = vmatpush1.msra.mxu0 0.0
    %4896 = vmatprep.subr.mxu0 0.0
    %4897 = vmatpush1.msra.mxu0 0.0
    %4898 = vmatprep.subr.mxu0 0.0
    %4899 = vmatpush1.msra.mxu0 0.0
    %4900 = vmatprep.subr.mxu0 0.0
    %4901 = vmatpush1.msra.mxu0 0.0
    %4902 = vmatprep.subr.mxu0 0.0
    %4903 = vmatpush1.msra.mxu0 0.0
    %4904 = vmatprep.subr.mxu0 0.0
    %4905 = vmatpush1.msra.mxu0 0.0
    %4906 = vmatprep.subr.mxu0 0.0
    %4907 = vmatpush1.msra.mxu0 0.0
    %4908 = vmatprep.subr.mxu0 0.0
    %4909 = vmatpush1.msra.mxu0 0.0
    %4910 = vmatprep.subr.mxu0 0.0
    %4911 = vmatpush1.msra.mxu0 0.0
    %4912 = vmatprep.subr.mxu0 0.0
    %4913 = vmatpush1.msra.mxu0 0.0
    %4914 = vmatprep.subr.mxu0 0.0
    %4915 = vmatpush1.msra.mxu0 0.0
    %4916 = vmatprep.subr.mxu0 0.0
    %4917 = vmatpush1.msra.mxu0 0.0
    %4918 = vmatprep.subr.mxu0 0.0
    %4919 = vmatpush1.msra.mxu0 0.0
    %4920 = vmatprep.subr.mxu0 0.0
    %4921 = vmatpush1.msra.mxu0 0.0
    %4922 = vmatprep.subr.mxu0 0.0
    %4923 = vmatpush1.msra.mxu0 0.0
    %4924 = vmatprep.subr.mxu0 0.0
    %4925 = vmatpush1.msra.mxu0 0.0
    %4926 = vmatprep.subr.mxu0 0.0
    %4927 = vmatpush1.msra.mxu0 0.0
    %4928 = vmatprep.subr.mxu0 0.0
    %4929 = vmatpush1.msra.mxu0 0.0
    %4930 = vmatprep.subr.mxu0 0.0
    %4931 = vmatpush1.msra.mxu0 0.0
    %4932 = vmatprep.subr.mxu0 0.0
    %4933 = vmatpush1.msra.mxu0 0.0
    %4934 = vmatprep.subr.mxu0 0.0
    %4935 = vmatpush1.msra.mxu0 0.0
    %4936 = vmatprep.subr.mxu0 0.0
    %4937 = vmatpush1.msra.mxu0 0.0
    %4938 = vmatprep.subr.mxu0 0.0
    %4939 = vmatpush1.msra.mxu0 0.0
    %4940 = vmatprep.mubr.f32.mxu0 0.0
    %4941 = vmatmul.mubr.f32.gmra.mrb[0].mxu0 %v4803
    %v4942 = vpop.f32.mrb[0].mxu0
    %v4943 = vadd.f32 0.0, %v4942
    %v4944 = vpop.f32.mrb[0].mxu0
    %v4945 = vadd.f32 0.0, %v4944
    %4946 = vdwg.mxu0
    %v4947 = vlaneseq
    %v4948 = vshrl.u32 %v4947, 7
    %v4949 = vsub.s32 0, %v4948
    %v4950 = vrot.slane %v4872, %v4949
    %v4951 = vlaneseq
    %v4952 = vshrl.u32 %v4951, 7
    %v4953 = vsub.s32 0, %v4952
    %v4954 = vrot.slane %v4874, %v4953
    %v4955 = vlaneseq
    %v4956 = vshrl.u32 %v4955, 7
    %v4957 = vsub.s32 0, %v4956
    %v4958 = vrot.slane %v4943, %v4957
    %v4959 = vlaneseq
    %v4960 = vshrl.u32 %v4959, 7
    %v4961 = vsub.s32 0, %v4960
    %v4962 = vrot.slane %v4945, %v4961
    %v4963 = vadd.f32 %v4798, %v4950
    %v4964 = vadd.f32 %v4799, %v4954
    %v4965 = vadd.f32 %v4800, %v4958
    %v4966 = vadd.f32 %v4801, %v4962
    %vm4967 = vcmp.gt.f32.partialorder %v4963, 0.0
    %vm4968 = vcmp.gt.f32.partialorder %v4964, 0.0
    %vm4969 = vcmp.gt.f32.partialorder %v4965, 0.0
    %vm4970 = vcmp.gt.f32.partialorder %v4966, 0.0
    %v4971 = vmul.f32 %v4963, 0.01
    %v4972 = vmul.f32 %v4964, 0.01
    %v4973 = vmul.f32 %v4965, 0.01
    %v4974 = vmul.f32 %v4966, 0.01
    %v4975 = vsel %vm4967, %v4963, %v4971
    %v4976 = vsel %vm4968, %v4964, %v4972
    %v4977 = vsel %vm4969, %v4965, %v4973
    %v4978 = vsel %vm4970, %v4966, %v4974
    %v4979 = vld [vmem:[%s29] sm:$0xff]
    %v4980 = vld [vmem:[%s29 + $0x8] sm:$0xff]
    %v4981 = vld [vmem:[%s29 + $0x10] sm:$0xff]
    %v4982 = vld [vmem:[%s29 + $0x18] sm:$0xff]
    %v4983 = vld [vmem:[%s29 + $0x20] sm:$0xff]
    %v4984 = vld [vmem:[%s29 + $0x28] sm:$0xff]
    %v4985 = vld [vmem:[%s29 + $0x30] sm:$0xff]
    %v4986 = vld [vmem:[%s29 + $0x38] sm:$0xff]
    %v4987 = vld [vmem:[%s29 + $0x40] sm:$0xff]
    %v4988 = vld [vmem:[%s29 + $0x48] sm:$0xff]
    %v4989 = vld [vmem:[%s29 + $0x50] sm:$0xff]
    %v4990 = vld [vmem:[%s29 + $0x58] sm:$0xff]
    %v4991 = vld [vmem:[%s29 + $0x60] sm:$0xff]
    %v4992 = vld [vmem:[%s29 + $0x68] sm:$0xff]
    %v4993 = vld [vmem:[%s29 + $0x70] sm:$0xff]
    %v4994 = vld [vmem:[%s29 + $0x78] sm:$0xff]
    %v4995 = vld [vmem:[%s29 + $0x80] sm:$0xff]
    %v4996 = vld [vmem:[%s29 + $0x88] sm:$0xff]
    %v4997 = vld [vmem:[%s29 + $0x90] sm:$0xff]
    %v4998 = vld [vmem:[%s29 + $0x98] sm:$0xff]
    %v4999 = vld [vmem:[%s29 + $0xa0] sm:$0xff]
    %v5000 = vld [vmem:[%s29 + $0xa8] sm:$0xff]
    %v5001 = vld [vmem:[%s29 + $0xb0] sm:$0xff]
    %v5002 = vld [vmem:[%s29 + $0xb8] sm:$0xff]
    %v5003 = vld [vmem:[%s29 + $0xc0] sm:$0xff]
    %v5004 = vld [vmem:[%s29 + $0xc8] sm:$0xff]
    %v5005 = vld [vmem:[%s29 + $0xd0] sm:$0xff]
    %v5006 = vld [vmem:[%s29 + $0xd8] sm:$0xff]
    %v5007 = vld [vmem:[%s29 + $0xe0] sm:$0xff]
    %v5008 = vld [vmem:[%s29 + $0xe8] sm:$0xff]
    %v5009 = vld [vmem:[%s29 + $0xf0] sm:$0xff]
    %v5010 = vld [vmem:[%s29 + $0xf8] sm:$0xff]
    %v5011 = vld [vmem:[%s29 + $0x100] sm:$0xff]
    %v5012 = vld [vmem:[%s29 + $0x108] sm:$0xff]
    %v5013 = vld [vmem:[%s29 + $0x110] sm:$0xff]
    %v5014 = vld [vmem:[%s29 + $0x118] sm:$0xff]
    %v5015 = vld [vmem:[%s29 + $0x120] sm:$0xff]
    %v5016 = vld [vmem:[%s29 + $0x128] sm:$0xff]
    %v5017 = vld [vmem:[%s29 + $0x130] sm:$0xff]
    %v5018 = vld [vmem:[%s29 + $0x138] sm:$0xff]
    %v5019 = vld [vmem:[%s29 + $0x140] sm:$0xff]
    %v5020 = vld [vmem:[%s29 + $0x148] sm:$0xff]
    %v5021 = vld [vmem:[%s29 + $0x150] sm:$0xff]
    %v5022 = vld [vmem:[%s29 + $0x158] sm:$0xff]
    %v5023 = vld [vmem:[%s29 + $0x160] sm:$0xff]
    %v5024 = vld [vmem:[%s29 + $0x168] sm:$0xff]
    %v5025 = vld [vmem:[%s29 + $0x170] sm:$0xff]
    %v5026 = vld [vmem:[%s29 + $0x178] sm:$0xff]
    %v5027 = vld [vmem:[%s29 + $0x180] sm:$0xff]
    %v5028 = vld [vmem:[%s29 + $0x188] sm:$0xff]
    %v5029 = vld [vmem:[%s29 + $0x190] sm:$0xff]
    %v5030 = vld [vmem:[%s29 + $0x198] sm:$0xff]
    %v5031 = vld [vmem:[%s29 + $0x1a0] sm:$0xff]
    %v5032 = vld [vmem:[%s29 + $0x1a8] sm:$0xff]
    %v5033 = vld [vmem:[%s29 + $0x1b0] sm:$0xff]
    %v5034 = vld [vmem:[%s29 + $0x1b8] sm:$0xff]
    %v5035 = vld [vmem:[%s29 + $0x1c0] sm:$0xff]
    %v5036 = vld [vmem:[%s29 + $0x1c8] sm:$0xff]
    %v5037 = vld [vmem:[%s29 + $0x1d0] sm:$0xff]
    %v5038 = vld [vmem:[%s29 + $0x1d8] sm:$0xff]
    %v5039 = vld [vmem:[%s29 + $0x1e0] sm:$0xff]
    %v5040 = vld [vmem:[%s29 + $0x1e8] sm:$0xff]
    %v5041 = vld [vmem:[%s29 + $0x1f0] sm:$0xff]
    %v5042 = vld [vmem:[%s29 + $0x1f8] sm:$0xff]
    %v5043 = vld [vmem:[#allocation20] sm:$0x1]
    %v5045 = vlaneseq
    %v5046 = vshrl.u32 %v5045, 7
    %v5047 = vsub.s32 0, %v5046
    %v5048 = vrot.slane %v5043, %v5047
    %5050 = vmatprep.subr.mxu0 0.0
    %5051 = vmatpush1.msra.mxu0 %v4979
    %5052 = vmatprep.subr.mxu0 0.0
    %5053 = vmatpush1.msra.mxu0 %v4980
    %5054 = vmatprep.subr.mxu0 0.0
    %5055 = vmatpush1.msra.mxu0 %v4981
    %5056 = vmatprep.subr.mxu0 0.0
    %5057 = vmatpush1.msra.mxu0 %v4982
    %5058 = vmatprep.subr.mxu0 0.0
    %5059 = vmatpush1.msra.mxu0 %v4983
    %5060 = vmatprep.subr.mxu0 0.0
    %5061 = vmatpush1.msra.mxu0 %v4984
    %5062 = vmatprep.subr.mxu0 0.0
    %5063 = vmatpush1.msra.mxu0 %v4985
    %5064 = vmatprep.subr.mxu0 0.0
    %5065 = vmatpush1.msra.mxu0 %v4986
    %5066 = vmatprep.subr.mxu0 0.0
    %5067 = vmatpush1.msra.mxu0 %v4987
    %5068 = vmatprep.subr.mxu0 0.0
    %5069 = vmatpush1.msra.mxu0 %v4988
    %5070 = vmatprep.subr.mxu0 0.0
    %5071 = vmatpush1.msra.mxu0 %v4989
    %5072 = vmatprep.subr.mxu0 0.0
    %5073 = vmatpush1.msra.mxu0 %v4990
    %5074 = vmatprep.subr.mxu0 0.0
    %5075 = vmatpush1.msra.mxu0 %v4991
    %5076 = vmatprep.subr.mxu0 0.0
    %5077 = vmatpush1.msra.mxu0 %v4992
    %5078 = vmatprep.subr.mxu0 0.0
    %5079 = vmatpush1.msra.mxu0 %v4993
    %5080 = vmatprep.subr.mxu0 0.0
    %5081 = vmatpush1.msra.mxu0 %v4994
    %5082 = vmatprep.subr.mxu0 0.0
    %5083 = vmatpush1.msra.mxu0 %v4995
    %5084 = vmatprep.subr.mxu0 0.0
    %5085 = vmatpush1.msra.mxu0 %v4996
    %5086 = vmatprep.subr.mxu0 0.0
    %5087 = vmatpush1.msra.mxu0 %v4997
    %5088 = vmatprep.subr.mxu0 0.0
    %5089 = vmatpush1.msra.mxu0 %v4998
    %5090 = vmatprep.subr.mxu0 0.0
    %5091 = vmatpush1.msra.mxu0 %v4999
    %5092 = vmatprep.subr.mxu0 0.0
    %5093 = vmatpush1.msra.mxu0 %v5000
    %5094 = vmatprep.subr.mxu0 0.0
    %5095 = vmatpush1.msra.mxu0 %v5001
    %5096 = vmatprep.subr.mxu0 0.0
    %5097 = vmatpush1.msra.mxu0 %v5002
    %5098 = vmatprep.subr.mxu0 0.0
    %5099 = vmatpush1.msra.mxu0 %v5003
    %5100 = vmatprep.subr.mxu0 0.0
    %5101 = vmatpush1.msra.mxu0 %v5004
    %5102 = vmatprep.subr.mxu0 0.0
    %5103 = vmatpush1.msra.mxu0 %v5005
    %5104 = vmatprep.subr.mxu0 0.0
    %5105 = vmatpush1.msra.mxu0 %v5006
    %5106 = vmatprep.subr.mxu0 0.0
    %5107 = vmatpush1.msra.mxu0 %v5007
    %5108 = vmatprep.subr.mxu0 0.0
    %5109 = vmatpush1.msra.mxu0 %v5008
    %5110 = vmatprep.subr.mxu0 0.0
    %5111 = vmatpush1.msra.mxu0 %v5009
    %5112 = vmatprep.subr.mxu0 0.0
    %5113 = vmatpush1.msra.mxu0 %v5010
    %5114 = vmatprep.mubr.f32.mxu0 %v4976
    %5115 = vmatmul.mubr.f32.gmra.mrb[0].mxu0 %v4975
    %v5116 = vpop.f32.mrb[0].mxu0
    %v5117 = vadd.f32 %v5048, %v5116
    %v5118 = vpop.f32.mrb[0].mxu0
    %5119 = vdwg.mxu0
    %5120 = vmatprep.subr.mxu0 0.0
    %5121 = vmatpush1.msra.mxu0 %v5011
    %5122 = vmatprep.subr.mxu0 0.0
    %5123 = vmatpush1.msra.mxu0 %v5012
    %5124 = vmatprep.subr.mxu0 0.0
    %5125 = vmatpush1.msra.mxu0 %v5013
    %5126 = vmatprep.subr.mxu0 0.0
    %5127 = vmatpush1.msra.mxu0 %v5014
    %5128 = vmatprep.subr.mxu0 0.0
    %5129 = vmatpush1.msra.mxu0 %v5015
    %5130 = vmatprep.subr.mxu0 0.0
    %5131 = vmatpush1.msra.mxu0 %v5016
    %5132 = vmatprep.subr.mxu0 0.0
    %5133 = vmatpush1.msra.mxu0 %v5017
    %5134 = vmatprep.subr.mxu0 0.0
    %5135 = vmatpush1.msra.mxu0 %v5018
    %5136 = vmatprep.subr.mxu0 0.0
    %5137 = vmatpush1.msra.mxu0 %v5019
    %5138 = vmatprep.subr.mxu0 0.0
    %5139 = vmatpush1.msra.mxu0 %v5020
    %5140 = vmatprep.subr.mxu0 0.0
    %5141 = vmatpush1.msra.mxu0 %v5021
    %5142 = vmatprep.subr.mxu0 0.0
    %5143 = vmatpush1.msra.mxu0 %v5022
    %5144 = vmatprep.subr.mxu0 0.0
    %5145 = vmatpush1.msra.mxu0 %v5023
    %5146 = vmatprep.subr.mxu0 0.0
    %5147 = vmatpush1.msra.mxu0 %v5024
    %5148 = vmatprep.subr.mxu0 0.0
    %5149 = vmatpush1.msra.mxu0 %v5025
    %5150 = vmatprep.subr.mxu0 0.0
    %5151 = vmatpush1.msra.mxu0 %v5026
    %5152 = vmatprep.subr.mxu0 0.0
    %5153 = vmatpush1.msra.mxu0 %v5027
    %5154 = vmatprep.subr.mxu0 0.0
    %5155 = vmatpush1.msra.mxu0 %v5028
    %5156 = vmatprep.subr.mxu0 0.0
    %5157 = vmatpush1.msra.mxu0 %v5029
    %5158 = vmatprep.subr.mxu0 0.0
    %5159 = vmatpush1.msra.mxu0 %v5030
    %5160 = vmatprep.subr.mxu0 0.0
    %5161 = vmatpush1.msra.mxu0 %v5031
    %5162 = vmatprep.subr.mxu0 0.0
    %5163 = vmatpush1.msra.mxu0 %v5032
    %5164 = vmatprep.subr.mxu0 0.0
    %5165 = vmatpush1.msra.mxu0 %v5033
    %5166 = vmatprep.subr.mxu0 0.0
    %5167 = vmatpush1.msra.mxu0 %v5034
    %5168 = vmatprep.subr.mxu0 0.0
    %5169 = vmatpush1.msra.mxu0 %v5035
    %5170 = vmatprep.subr.mxu0 0.0
    %5171 = vmatpush1.msra.mxu0 %v5036
    %5172 = vmatprep.subr.mxu0 0.0
    %5173 = vmatpush1.msra.mxu0 %v5037
    %5174 = vmatprep.subr.mxu0 0.0
    %5175 = vmatpush1.msra.mxu0 %v5038
    %5176 = vmatprep.subr.mxu0 0.0
    %5177 = vmatpush1.msra.mxu0 %v5039
    %5178 = vmatprep.subr.mxu0 0.0
    %5179 = vmatpush1.msra.mxu0 %v5040
    %5180 = vmatprep.subr.mxu0 0.0
    %5181 = vmatpush1.msra.mxu0 %v5041
    %5182 = vmatprep.subr.mxu0 0.0
    %5183 = vmatpush1.msra.mxu0 %v5042
    %5184 = vmatprep.mubr.f32.mxu0 %v4978
    %5185 = vmatmul.mubr.f32.gmra.mrb[0].mxu0 %v4977
    %v5186 = vpop.f32.mrb[0].mxu0
    %v5187 = vadd.f32 %v5117, %v5186
    %v5188 = vpop.f32.mrb[0].mxu0
    %5189 = vdwg.mxu0
    %vm5190 = vcmp.gt.f32.partialorder %v5187, 0.0
    %v5191 = vmul.f32 %v5187, 0.01
    %v5192 = vsel %vm5190, %v5187, %v5191
    %v5193 = vld [vmem:[%s3] sm:$0xff]
    %v5194 = vld [vmem:[%s3 + $0x8] sm:$0xff]
    %v5195 = vld [vmem:[#allocation21] sm:$0xff]
    %vm5196 = vcmask 64512
    %v5198 = vsel %vm5196, %v5193, 0
    %v5201 = vsel %vm5196, %v5194, 0
    %5203 = vmatprep.subr.mxu0 0.0
    %5204 = vmatpush1.msra.mxu0 %v5195
    %5205 = vmatprep.subr.mxu0 0.0
    %5206 = vmatpush1.msra.mxu0 0.0
    %5207 = vmatprep.subr.mxu0 0.0
    %5208 = vmatpush1.msra.mxu0 0.0
    %5209 = vmatprep.subr.mxu0 0.0
    %5210 = vmatpush1.msra.mxu0 0.0
    %5211 = vmatprep.subr.mxu0 0.0
    %5212 = vmatpush1.msra.mxu0 0.0
    %5213 = vmatprep.subr.mxu0 0.0
    %5214 = vmatpush1.msra.mxu0 0.0
    %5215 = vmatprep.subr.mxu0 0.0
    %5216 = vmatpush1.msra.mxu0 0.0
    %5217 = vmatprep.subr.mxu0 0.0
    %5218 = vmatpush1.msra.mxu0 0.0
    %5219 = vmatprep.subr.mxu0 0.0
    %5220 = vmatpush1.msra.mxu0 0.0
    %5221 = vmatprep.subr.mxu0 0.0
    %5222 = vmatpush1.msra.mxu0 0.0
    %5223 = vmatprep.subr.mxu0 0.0
    %5224 = vmatpush1.msra.mxu0 0.0
    %5225 = vmatprep.subr.mxu0 0.0
    %5226 = vmatpush1.msra.mxu0 0.0
    %5227 = vmatprep.subr.mxu0 0.0
    %5228 = vmatpush1.msra.mxu0 0.0
    %5229 = vmatprep.subr.mxu0 0.0
    %5230 = vmatpush1.msra.mxu0 0.0
    %5231 = vmatprep.subr.mxu0 0.0
    %5232 = vmatpush1.msra.mxu0 0.0
    %5233 = vmatprep.subr.mxu0 0.0
    %5234 = vmatpush1.msra.mxu0 0.0
    %5235 = vmatprep.subr.mxu0 0.0
    %5236 = vmatpush1.msra.mxu0 0.0
    %5237 = vmatprep.subr.mxu0 0.0
    %5238 = vmatpush1.msra.mxu0 0.0
    %5239 = vmatprep.subr.mxu0 0.0
    %5240 = vmatpush1.msra.mxu0 0.0
    %5241 = vmatprep.subr.mxu0 0.0
    %5242 = vmatpush1.msra.mxu0 0.0
    %5243 = vmatprep.subr.mxu0 0.0
    %5244 = vmatpush1.msra.mxu0 0.0
    %5245 = vmatprep.subr.mxu0 0.0
    %5246 = vmatpush1.msra.mxu0 0.0
    %5247 = vmatprep.subr.mxu0 0.0
    %5248 = vmatpush1.msra.mxu0 0.0
    %5249 = vmatprep.subr.mxu0 0.0
    %5250 = vmatpush1.msra.mxu0 0.0
    %5251 = vmatprep.subr.mxu0 0.0
    %5252 = vmatpush1.msra.mxu0 0.0
    %5253 = vmatprep.subr.mxu0 0.0
    %5254 = vmatpush1.msra.mxu0 0.0
    %5255 = vmatprep.subr.mxu0 0.0
    %5256 = vmatpush1.msra.mxu0 0.0
    %5257 = vmatprep.subr.mxu0 0.0
    %5258 = vmatpush1.msra.mxu0 0.0
    %5259 = vmatprep.subr.mxu0 0.0
    %5260 = vmatpush1.msra.mxu0 0.0
    %5261 = vmatprep.subr.mxu0 0.0
    %5262 = vmatpush1.msra.mxu0 0.0
    %5263 = vmatprep.subr.mxu0 0.0
    %5264 = vmatpush1.msra.mxu0 0.0
    %5265 = vmatprep.subr.mxu0 0.0
    %5266 = vmatpush1.msra.mxu0 0.0
    %5267 = vmatprep.mubr.f32.mxu0 0.0
    %5268 = vmatmul.mubr.f32.gmra.mrb[0].mxu0 %v5198
    %v5269 = vpop.f32.mrb[0].mxu0
    %v5270 = vadd.f32 0.0, %v5269
    %v5271 = vpop.f32.mrb[0].mxu0
    %5272 = vmatprep.mubr.f32.mxu0 0.0
    %5273 = vmatmul.mubr.f32.gmra.mrb[0].mxu0 %v5201
    %v5274 = vpop.f32.mrb[0].mxu0
    %v5275 = vadd.f32 0.0, %v5274
    %v5276 = vpop.f32.mrb[0].mxu0
    %5277 = vdwg.mxu0
    %v5278 = vld [vmem:[#allocation23] sm:$0xff]
    %v5279 = vld [vmem:[#allocation23 + $0x8] sm:$0xff]
    %v5280 = vld [vmem:[#allocation24] sm:$0x1]
    %v5282 = vlaneseq
    %v5283 = vshrl.u32 %v5282, 7
    %v5284 = vsub.s32 0, %v5283
    %v5285 = vrot.slane %v5280, %v5284
    %v5288 = vsel %vm2424, %v5192, 0
    %5290 = vmatprep.subr.mxu0 0.0
    %5291 = vmatpush1.msra.mxu0 %v5278
    %5292 = vmatprep.subr.mxu0 0.0
    %5293 = vmatpush1.msra.mxu0 %v5279
    %5294 = vmatprep.subr.mxu0 0.0
    %5295 = vmatpush1.msra.mxu0 0.0
    %5296 = vmatprep.subr.mxu0 0.0
    %5297 = vmatpush1.msra.mxu0 0.0
    %5298 = vmatprep.subr.mxu0 0.0
    %5299 = vmatpush1.msra.mxu0 0.0
    %5300 = vmatprep.subr.mxu0 0.0
    %5301 = vmatpush1.msra.mxu0 0.0
    %5302 = vmatprep.subr.mxu0 0.0
    %5303 = vmatpush1.msra.mxu0 0.0
    %5304 = vmatprep.subr.mxu0 0.0
    %5305 = vmatpush1.msra.mxu0 0.0
    %5306 = vmatprep.subr.mxu0 0.0
    %5307 = vmatpush1.msra.mxu0 0.0
    %5308 = vmatprep.subr.mxu0 0.0
    %5309 = vmatpush1.msra.mxu0 0.0
    %5310 = vmatprep.subr.mxu0 0.0
    %5311 = vmatpush1.msra.mxu0 0.0
    %5312 = vmatprep.subr.mxu0 0.0
    %5313 = vmatpush1.msra.mxu0 0.0
    %5314 = vmatprep.subr.mxu0 0.0
    %5315 = vmatpush1.msra.mxu0 0.0
    %5316 = vmatprep.subr.mxu0 0.0
    %5317 = vmatpush1.msra.mxu0 0.0
    %5318 = vmatprep.subr.mxu0 0.0
    %5319 = vmatpush1.msra.mxu0 0.0
    %5320 = vmatprep.subr.mxu0 0.0
    %5321 = vmatpush1.msra.mxu0 0.0
    %5322 = vmatprep.subr.mxu0 0.0
    %5323 = vmatpush1.msra.mxu0 0.0
    %5324 = vmatprep.subr.mxu0 0.0
    %5325 = vmatpush1.msra.mxu0 0.0
    %5326 = vmatprep.subr.mxu0 0.0
    %5327 = vmatpush1.msra.mxu0 0.0
    %5328 = vmatprep.subr.mxu0 0.0
    %5329 = vmatpush1.msra.mxu0 0.0
    %5330 = vmatprep.subr.mxu0 0.0
    %5331 = vmatpush1.msra.mxu0 0.0
    %5332 = vmatprep.subr.mxu0 0.0
    %5333 = vmatpush1.msra.mxu0 0.0
    %5334 = vmatprep.subr.mxu0 0.0
    %5335 = vmatpush1.msra.mxu0 0.0
    %5336 = vmatprep.subr.mxu0 0.0
    %5337 = vmatpush1.msra.mxu0 0.0
    %5338 = vmatprep.subr.mxu0 0.0
    %5339 = vmatpush1.msra.mxu0 0.0
    %5340 = vmatprep.subr.mxu0 0.0
    %5341 = vmatpush1.msra.mxu0 0.0
    %5342 = vmatprep.subr.mxu0 0.0
    %5343 = vmatpush1.msra.mxu0 0.0
    %5344 = vmatprep.subr.mxu0 0.0
    %5345 = vmatpush1.msra.mxu0 0.0
    %5346 = vmatprep.subr.mxu0 0.0
    %5347 = vmatpush1.msra.mxu0 0.0
    %5348 = vmatprep.subr.mxu0 0.0
    %5349 = vmatpush1.msra.mxu0 0.0
    %5350 = vmatprep.subr.mxu0 0.0
    %5351 = vmatpush1.msra.mxu0 0.0
    %5352 = vmatprep.subr.mxu0 0.0
    %5353 = vmatpush1.msra.mxu0 0.0
    %5354 = vmatprep.mubr.f32.mxu0 0.0
    %5355 = vmatmul.mubr.f32.gmra.mrb[0].mxu0 %v5288
    %v5356 = vpop.f32.mrb[0].mxu0
    %v5357 = vadd.f32 %v5285, %v5356
    %v5358 = vpop.f32.mrb[0].mxu0
    %5359 = vdwg.mxu0
    %v5360 = vld [vmem:[#allocation26] sm:$0xff]
    %v5361 = vld [vmem:[#allocation26 + $0x8] sm:$0xff]
    %v5362 = vld [vmem:[#allocation26 + $0x10] sm:$0xff]
    %v5363 = vld [vmem:[#allocation26 + $0x18] sm:$0xff]
    %v5364 = vld [vmem:[#allocation27] sm:$0x3]
    %v5365 = vld [vmem:[#allocation29] sm:$0x3]
    %v5366 = vadd.f32 %v5270, %v5357
    %v5368 = vsel %vm4636, %v5364, 0
    %5370 = vmatprep.subr.mxu0 0.0
    %5371 = vmatpush1.msra.mxu0 %v5360
    %5372 = vmatprep.subr.mxu0 0.0
    %5373 = vmatpush1.msra.mxu0 %v5361
    %5374 = vmatprep.subr.mxu0 0.0
    %5375 = vmatpush1.msra.mxu0 %v5362
    %5376 = vmatprep.subr.mxu0 0.0
    %5377 = vmatpush1.msra.mxu0 %v5363
    %5378 = vmatprep.subr.mxu0 0.0
    %5379 = vmatpush1.msra.mxu0 0.0
    %5380 = vmatprep.subr.mxu0 0.0
    %5381 = vmatpush1.msra.mxu0 0.0
    %5382 = vmatprep.subr.mxu0 0.0
    %5383 = vmatpush1.msra.mxu0 0.0
    %5384 = vmatprep.subr.mxu0 0.0
    %5385 = vmatpush1.msra.mxu0 0.0
    %5386 = vmatprep.subr.mxu0 0.0
    %5387 = vmatpush1.msra.mxu0 0.0
    %5388 = vmatprep.subr.mxu0 0.0
    %5389 = vmatpush1.msra.mxu0 0.0
    %5390 = vmatprep.subr.mxu0 0.0
    %5391 = vmatpush1.msra.mxu0 0.0
    %5392 = vmatprep.subr.mxu0 0.0
    %5393 = vmatpush1.msra.mxu0 0.0
    %5394 = vmatprep.subr.mxu0 0.0
    %5395 = vmatpush1.msra.mxu0 0.0
    %5396 = vmatprep.subr.mxu0 0.0
    %5397 = vmatpush1.msra.mxu0 0.0
    %5398 = vmatprep.subr.mxu0 0.0
    %5399 = vmatpush1.msra.mxu0 0.0
    %5400 = vmatprep.subr.mxu0 0.0
    %5401 = vmatpush1.msra.mxu0 0.0
    %5402 = vmatprep.subr.mxu0 0.0
    %5403 = vmatpush1.msra.mxu0 0.0
    %5404 = vmatprep.subr.mxu0 0.0
    %5405 = vmatpush1.msra.mxu0 0.0
    %5406 = vmatprep.subr.mxu0 0.0
    %5407 = vmatpush1.msra.mxu0 0.0
    %5408 = vmatprep.subr.mxu0 0.0
    %5409 = vmatpush1.msra.mxu0 0.0
    %5410 = vmatprep.subr.mxu0 0.0
    %5411 = vmatpush1.msra.mxu0 0.0
    %5412 = vmatprep.subr.mxu0 0.0
    %5413 = vmatpush1.msra.mxu0 0.0
    %5414 = vmatprep.subr.mxu0 0.0
    %5415 = vmatpush1.msra.mxu0 0.0
    %5416 = vmatprep.subr.mxu0 0.0
    %5417 = vmatpush1.msra.mxu0 0.0
    %5418 = vmatprep.subr.mxu0 0.0
    %5419 = vmatpush1.msra.mxu0 0.0
    %5420 = vmatprep.subr.mxu0 0.0
    %5421 = vmatpush1.msra.mxu0 0.0
    %5422 = vmatprep.subr.mxu0 0.0
    %5423 = vmatpush1.msra.mxu0 0.0
    %5424 = vmatprep.subr.mxu0 0.0
    %5425 = vmatpush1.msra.mxu0 0.0
    %5426 = vmatprep.subr.mxu0 0.0
    %5427 = vmatpush1.msra.mxu0 0.0
    %5428 = vmatprep.subr.mxu0 0.0
    %5429 = vmatpush1.msra.mxu0 0.0
    %5430 = vmatprep.subr.mxu0 0.0
    %5431 = vmatpush1.msra.mxu0 0.0
    %5432 = vmatprep.subr.mxu0 0.0
    %5433 = vmatpush1.msra.mxu0 0.0
    %5434 = vmatprep.mubr.f32.mxu0 0.0
    %5435 = vmatmul.mubr.f32.gmra.mrb[0].mxu0 %v5368
    %v5436 = vpop.f32.mrb[0].mxu0
    %v5437 = vadd.f32 0.0, %v5436
    %v5438 = vpop.f32.mrb[0].mxu0
    %5439 = vdwg.mxu0
    %v5440 = vadd.f32 %v5366, %v5437
    %v5441 = vxor.u32 %v5440, 2147483648
    %v5442 = vmul.f32 %v5441, 1.442695
    %v5443 = vpow.pop %v5442
    %v5444 = vadd.f32 %v5443, 1.0
    %v5445 = vrcp.pop %v5444
    %v5446 = vmul.f32 1.0, %v5445
    %v5447 = vtanh.pop %v5440
    %5449 = vrot.lane.b32.xlu0 %v5365, 32
    %v5450 = vpop.permute.xlu0 %5449
    %v5452 = vmul.f32 %v5446, %v5450
    %5454 = vrot.lane.b32.xlu0 %v5447, 64
    %v5455 = vpop.permute.xlu0 %5454
    %v5457 = vmul.f32 %v5446, %v5455
    %5459 = vrot.lane.b32.xlu0 %v5457, 32
    %v5460 = vpop.permute.xlu0 %5459
    %v5462 = vadd.f32 %v5452, %v5460
    %v5463 = vtanh.pop %v5462
    %5465 = vrot.lane.b32.xlu0 %v5463, 64
    %v5466 = vpop.permute.xlu0 %5465
    %v5468 = vmul.f32 %v5446, %v5466
    %5470 = vrot.lane.b32.xlu0 %v5468, 32
    %v5471 = vpop.permute.xlu0 %5470
    %vm5473 = vcmask 254976
    %5474 = vst.msk [vmem:[#allocation2] sm:$0x3] %vm5473, %v5471
    %v5476 = vrot.slane %v5357, 6
    %v5478 = vadd.f32 %v5270, %v5476
    %v5479 = vsel %vm4636, %v5471, 0
    %5481 = vmatprep.subr.mxu0 0.0
    %5482 = vmatpush1.msra.mxu0 %v5360
    %5483 = vmatprep.subr.mxu0 0.0
    %5484 = vmatpush1.msra.mxu0 %v5361
    %5485 = vmatprep.subr.mxu0 0.0
    %5486 = vmatpush1.msra.mxu0 %v5362
    %5487 = vmatprep.subr.mxu0 0.0
    %5488 = vmatpush1.msra.mxu0 %v5363
    %5489 = vmatprep.subr.mxu0 0.0
    %5490 = vmatpush1.msra.mxu0 0.0
    %5491 = vmatprep.subr.mxu0 0.0
    %5492 = vmatpush1.msra.mxu0 0.0
    %5493 = vmatprep.subr.mxu0 0.0
    %5494 = vmatpush1.msra.mxu0 0.0
    %5495 = vmatprep.subr.mxu0 0.0
    %5496 = vmatpush1.msra.mxu0 0.0
    %5497 = vmatprep.subr.mxu0 0.0
    %5498 = vmatpush1.msra.mxu0 0.0
    %5499 = vmatprep.subr.mxu0 0.0
    %5500 = vmatpush1.msra.mxu0 0.0
    %5501 = vmatprep.subr.mxu0 0.0
    %5502 = vmatpush1.msra.mxu0 0.0
    %5503 = vmatprep.subr.mxu0 0.0
    %5504 = vmatpush1.msra.mxu0 0.0
    %5505 = vmatprep.subr.mxu0 0.0
    %5506 = vmatpush1.msra.mxu0 0.0
    %5507 = vmatprep.subr.mxu0 0.0
    %5508 = vmatpush1.msra.mxu0 0.0
    %5509 = vmatprep.subr.mxu0 0.0
    %5510 = vmatpush1.msra.mxu0 0.0
    %5511 = vmatprep.subr.mxu0 0.0
    %5512 = vmatpush1.msra.mxu0 0.0
    %5513 = vmatprep.subr.mxu0 0.0
    %5514 = vmatpush1.msra.mxu0 0.0
    %5515 = vmatprep.subr.mxu0 0.0
    %5516 = vmatpush1.msra.mxu0 0.0
    %5517 = vmatprep.subr.mxu0 0.0
    %5518 = vmatpush1.msra.mxu0 0.0
    %5519 = vmatprep.subr.mxu0 0.0
    %5520 = vmatpush1.msra.mxu0 0.0
    %5521 = vmatprep.subr.mxu0 0.0
    %5522 = vmatpush1.msra.mxu0 0.0
    %5523 = vmatprep.subr.mxu0 0.0
    %5524 = vmatpush1.msra.mxu0 0.0
    %5525 = vmatprep.subr.mxu0 0.0
    %5526 = vmatpush1.msra.mxu0 0.0
    %5527 = vmatprep.subr.mxu0 0.0
    %5528 = vmatpush1.msra.mxu0 0.0
    %5529 = vmatprep.subr.mxu0 0.0
    %5530 = vmatpush1.msra.mxu0 0.0
    %5531 = vmatprep.subr.mxu0 0.0
    %5532 = vmatpush1.msra.mxu0 0.0
    %5533 = vmatprep.subr.mxu0 0.0
    %5534 = vmatpush1.msra.mxu0 0.0
    %5535 = vmatprep.subr.mxu0 0.0
    %5536 = vmatpush1.msra.mxu0 0.0
    %5537 = vmatprep.subr.mxu0 0.0
    %5538 = vmatpush1.msra.mxu0 0.0
    %5539 = vmatprep.subr.mxu0 0.0
    %5540 = vmatpush1.msra.mxu0 0.0
    %5541 = vmatprep.subr.mxu0 0.0
    %5542 = vmatpush1.msra.mxu0 0.0
    %5543 = vmatprep.subr.mxu0 0.0
    %5544 = vmatpush1.msra.mxu0 0.0
    %5545 = vmatprep.mubr.f32.mxu0 0.0
    %5546 = vmatmul.mubr.f32.gmra.mrb[0].mxu0 %v5479
    %v5547 = vpop.f32.mrb[0].mxu0
    %v5548 = vadd.f32 0.0, %v5547
    %v5549 = vpop.f32.mrb[0].mxu0
    %5550 = vdwg.mxu0
    %v5552 = vrot.slane %v5548, 6
    %v5554 = vadd.f32 %v5478, %v5552
    %v5555 = vxor.u32 %v5554, 2147483648
    %v5556 = vmul.f32 %v5555, 1.442695
    %v5557 = vpow.pop %v5556
    %v5558 = vadd.f32 %v5557, 1.0
    %v5559 = vrcp.pop %v5558
    %v5560 = vmul.f32 1.0, %v5559
    %v5561 = vtanh.pop %v5554
    %v5563 = vrot.slane %v5462, 6
    %v5565 = vmul.f32 %v5560, %v5563
    %5567 = vrot.lane.b32.xlu0 %v5561, 64
    %v5568 = vpop.permute.xlu0 %5567
    %v5570 = vmul.f32 %v5560, %v5568
    %5572 = vrot.lane.b32.xlu0 %v5570, 32
    %v5573 = vpop.permute.xlu0 %5572
    %v5575 = vadd.f32 %v5565, %v5573
    %v5576 = vtanh.pop %v5575
    %5578 = vrot.lane.b32.xlu0 %v5576, 64
    %v5579 = vpop.permute.xlu0 %5578
    %v5581 = vmul.f32 %v5560, %v5579
    %5583 = vrot.lane.b32.xlu0 %v5581, 32
    %v5584 = vpop.permute.xlu0 %5583
    %vm5586 = vcmask 257026
    %5587 = vst.msk [vmem:[#allocation2] sm:$0xc] %vm5586, %v5584
    %v5588 = vrot.slane %v5357, 4
    %v5590 = vadd.f32 %v5270, %v5588
    %v5591 = vrot.slane %v5581, 2
    %5592 = vrot.lane.b32.xlu0 %v5591, 32
    %v5593 = vpop.permute.xlu0 %5592
    %v5594 = vsel %vm4636, %v5593, 0
    %5596 = vmatprep.subr.mxu0 0.0
    %5597 = vmatpush1.msra.mxu0 %v5360
    %5598 = vmatprep.subr.mxu0 0.0
    %5599 = vmatpush1.msra.mxu0 %v5361
    %5600 = vmatprep.subr.mxu0 0.0
    %5601 = vmatpush1.msra.mxu0 %v5362
    %5602 = vmatprep.subr.mxu0 0.0
    %5603 = vmatpush1.msra.mxu0 %v5363
    %5604 = vmatprep.subr.mxu0 0.0
    %5605 = vmatpush1.msra.mxu0 0.0
    %5606 = vmatprep.subr.mxu0 0.0
    %5607 = vmatpush1.msra.mxu0 0.0
    %5608 = vmatprep.subr.mxu0 0.0
    %5609 = vmatpush1.msra.mxu0 0.0
    %5610 = vmatprep.subr.mxu0 0.0
    %5611 = vmatpush1.msra.mxu0 0.0
    %5612 = vmatprep.subr.mxu0 0.0
    %5613 = vmatpush1.msra.mxu0 0.0
    %5614 = vmatprep.subr.mxu0 0.0
    %5615 = vmatpush1.msra.mxu0 0.0
    %5616 = vmatprep.subr.mxu0 0.0
    %5617 = vmatpush1.msra.mxu0 0.0
    %5618 = vmatprep.subr.mxu0 0.0
    %5619 = vmatpush1.msra.mxu0 0.0
    %5620 = vmatprep.subr.mxu0 0.0
    %5621 = vmatpush1.msra.mxu0 0.0
    %5622 = vmatprep.subr.mxu0 0.0
    %5623 = vmatpush1.msra.mxu0 0.0
    %5624 = vmatprep.subr.mxu0 0.0
    %5625 = vmatpush1.msra.mxu0 0.0
    %5626 = vmatprep.subr.mxu0 0.0
    %5627 = vmatpush1.msra.mxu0 0.0
    %5628 = vmatprep.subr.mxu0 0.0
    %5629 = vmatpush1.msra.mxu0 0.0
    %5630 = vmatprep.subr.mxu0 0.0
    %5631 = vmatpush1.msra.mxu0 0.0
    %5632 = vmatprep.subr.mxu0 0.0
    %5633 = vmatpush1.msra.mxu0 0.0
    %5634 = vmatprep.subr.mxu0 0.0
    %5635 = vmatpush1.msra.mxu0 0.0
    %5636 = vmatprep.subr.mxu0 0.0
    %5637 = vmatpush1.msra.mxu0 0.0
    %5638 = vmatprep.subr.mxu0 0.0
    %5639 = vmatpush1.msra.mxu0 0.0
    %5640 = vmatprep.subr.mxu0 0.0
    %5641 = vmatpush1.msra.mxu0 0.0
    %5642 = vmatprep.subr.mxu0 0.0
    %5643 = vmatpush1.msra.mxu0 0.0
    %5644 = vmatprep.subr.mxu0 0.0
    %5645 = vmatpush1.msra.mxu0 0.0
    %5646 = vmatprep.subr.mxu0 0.0
    %5647 = vmatpush1.msra.mxu0 0.0
    %5648 = vmatprep.subr.mxu0 0.0
    %5649 = vmatpush1.msra.mxu0 0.0
    %5650 = vmatprep.subr.mxu0 0.0
    %5651 = vmatpush1.msra.mxu0 0.0
    %5652 = vmatprep.subr.mxu0 0.0
    %5653 = vmatpush1.msra.mxu0 0.0
    %5654 = vmatprep.subr.mxu0 0.0
    %5655 = vmatpush1.msra.mxu0 0.0
    %5656 = vmatprep.subr.mxu0 0.0
    %5657 = vmatpush1.msra.mxu0 0.0
    %5658 = vmatprep.subr.mxu0 0.0
    %5659 = vmatpush1.msra.mxu0 0.0
    %5660 = vmatprep.mubr.f32.mxu0 0.0
    %5661 = vmatmul.mubr.f32.gmra.mrb[0].mxu0 %v5594
    %v5662 = vpop.f32.mrb[0].mxu0
    %v5663 = vadd.f32 0.0, %v5662
    %v5664 = vpop.f32.mrb[0].mxu0
    %5665 = vdwg.mxu0
    %v5667 = vrot.slane %v5663, 4
    %v5669 = vadd.f32 %v5590, %v5667
    %v5670 = vxor.u32 %v5669, 2147483648
    %v5671 = vmul.f32 %v5670, 1.442695
    %v5672 = vpow.pop %v5671
    %v5673 = vadd.f32 %v5672, 1.0
    %v5674 = vrcp.pop %v5673
    %v5675 = vmul.f32 1.0, %v5674
    %v5676 = vtanh.pop %v5669
    %v5678 = vrot.slane %v5575, 6
    %v5680 = vmul.f32 %v5675, %v5678
    %5682 = vrot.lane.b32.xlu0 %v5676, 64
    %v5683 = vpop.permute.xlu0 %5682
    %v5685 = vmul.f32 %v5675, %v5683
    %5687 = vrot.lane.b32.xlu0 %v5685, 32
    %v5688 = vpop.permute.xlu0 %5687
    %v5690 = vadd.f32 %v5680, %v5688
    %v5691 = vtanh.pop %v5690
    %5693 = vrot.lane.b32.xlu0 %v5691, 64
    %v5694 = vpop.permute.xlu0 %5693
    %v5696 = vmul.f32 %v5675, %v5694
    %5698 = vrot.lane.b32.xlu0 %v5696, 32
    %v5699 = vpop.permute.xlu0 %5698
    %vm5701 = vcmask 259076
    %5702 = vst.msk [vmem:[#allocation2] sm:$0x30] %vm5701, %v5699
    %v5703 = vrot.slane %v5357, 2
    %v5705 = vadd.f32 %v5270, %v5703
    %v5706 = vrot.slane %v5696, 4
    %5707 = vrot.lane.b32.xlu0 %v5706, 32
    %v5708 = vpop.permute.xlu0 %5707
    %v5709 = vsel %vm4636, %v5708, 0
    %5711 = vmatprep.subr.mxu0 0.0
    %5712 = vmatpush1.msra.mxu0 %v5360
    %5713 = vmatprep.subr.mxu0 0.0
    %5714 = vmatpush1.msra.mxu0 %v5361
    %5715 = vmatprep.subr.mxu0 0.0
    %5716 = vmatpush1.msra.mxu0 %v5362
    %5717 = vmatprep.subr.mxu0 0.0
    %5718 = vmatpush1.msra.mxu0 %v5363
    %5719 = vmatprep.subr.mxu0 0.0
    %5720 = vmatpush1.msra.mxu0 0.0
    %5721 = vmatprep.subr.mxu0 0.0
    %5722 = vmatpush1.msra.mxu0 0.0
    %5723 = vmatprep.subr.mxu0 0.0
    %5724 = vmatpush1.msra.mxu0 0.0
    %5725 = vmatprep.subr.mxu0 0.0
    %5726 = vmatpush1.msra.mxu0 0.0
    %5727 = vmatprep.subr.mxu0 0.0
    %5728 = vmatpush1.msra.mxu0 0.0
    %5729 = vmatprep.subr.mxu0 0.0
    %5730 = vmatpush1.msra.mxu0 0.0
    %5731 = vmatprep.subr.mxu0 0.0
    %5732 = vmatpush1.msra.mxu0 0.0
    %5733 = vmatprep.subr.mxu0 0.0
    %5734 = vmatpush1.msra.mxu0 0.0
    %5735 = vmatprep.subr.mxu0 0.0
    %5736 = vmatpush1.msra.mxu0 0.0
    %5737 = vmatprep.subr.mxu0 0.0
    %5738 = vmatpush1.msra.mxu0 0.0
    %5739 = vmatprep.subr.mxu0 0.0
    %5740 = vmatpush1.msra.mxu0 0.0
    %5741 = vmatprep.subr.mxu0 0.0
    %5742 = vmatpush1.msra.mxu0 0.0
    %5743 = vmatprep.subr.mxu0 0.0
    %5744 = vmatpush1.msra.mxu0 0.0
    %5745 = vmatprep.subr.mxu0 0.0
    %5746 = vmatpush1.msra.mxu0 0.0
    %5747 = vmatprep.subr.mxu0 0.0
    %5748 = vmatpush1.msra.mxu0 0.0
    %5749 = vmatprep.subr.mxu0 0.0
    %5750 = vmatpush1.msra.mxu0 0.0
    %5751 = vmatprep.subr.mxu0 0.0
    %5752 = vmatpush1.msra.mxu0 0.0
    %5753 = vmatprep.subr.mxu0 0.0
    %5754 = vmatpush1.msra.mxu0 0.0
    %5755 = vmatprep.subr.mxu0 0.0
    %5756 = vmatpush1.msra.mxu0 0.0
    %5757 = vmatprep.subr.mxu0 0.0
    %5758 = vmatpush1.msra.mxu0 0.0
    %5759 = vmatprep.subr.mxu0 0.0
    %5760 = vmatpush1.msra.mxu0 0.0
    %5761 = vmatprep.subr.mxu0 0.0
    %5762 = vmatpush1.msra.mxu0 0.0
    %5763 = vmatprep.subr.mxu0 0.0
    %5764 = vmatpush1.msra.mxu0 0.0
    %5765 = vmatprep.subr.mxu0 0.0
    %5766 = vmatpush1.msra.mxu0 0.0
    %5767 = vmatprep.subr.mxu0 0.0
    %5768 = vmatpush1.msra.mxu0 0.0
    %5769 = vmatprep.subr.mxu0 0.0
    %5770 = vmatpush1.msra.mxu0 0.0
    %5771 = vmatprep.subr.mxu0 0.0
    %5772 = vmatpush1.msra.mxu0 0.0
    %5773 = vmatprep.subr.mxu0 0.0
    %5774 = vmatpush1.msra.mxu0 0.0
    %5775 = vmatprep.mubr.f32.mxu0 0.0
    %5776 = vmatmul.mubr.f32.gmra.mrb[0].mxu0 %v5709
    %v5777 = vpop.f32.mrb[0].mxu0
    %v5778 = vadd.f32 0.0, %v5777
    %v5779 = vpop.f32.mrb[0].mxu0
    %5780 = vdwg.mxu0
    %v5782 = vrot.slane %v5778, 2
    %v5784 = vadd.f32 %v5705, %v5782
    %v5785 = vxor.u32 %v5784, 2147483648
    %v5786 = vmul.f32 %v5785, 1.442695
    %v5787 = vpow.pop %v5786
    %v5788 = vadd.f32 %v5787, 1.0
    %v5789 = vrcp.pop %v5788
    %v5790 = vmul.f32 1.0, %v5789
    %v5791 = vtanh.pop %v5784
    %v5793 = vrot.slane %v5690, 6
    %v5795 = vmul.f32 %v5790, %v5793
    %5797 = vrot.lane.b32.xlu0 %v5791, 64
    %v5798 = vpop.permute.xlu0 %5797
    %v5800 = vmul.f32 %v5790, %v5798
    %5802 = vrot.lane.b32.xlu0 %v5800, 32
    %v5803 = vpop.permute.xlu0 %5802
    %v5805 = vadd.f32 %v5795, %v5803
    %v5806 = vtanh.pop %v5805
    %5808 = vrot.lane.b32.xlu0 %v5806, 64
    %v5809 = vpop.permute.xlu0 %5808
    %v5811 = vmul.f32 %v5790, %v5809
    %5813 = vrot.lane.b32.xlu0 %v5811, 32
    %v5814 = vpop.permute.xlu0 %5813
    %vm5816 = vcmask 261126
    %5817 = vst.msk [vmem:[#allocation2] sm:$0xc0] %vm5816, %v5814
    %v5818 = vadd.f32 %v5275, %v5357
    %v5819 = vrot.slane %v5811, 6
    %5820 = vrot.lane.b32.xlu0 %v5819, 32
    %v5821 = vpop.permute.xlu0 %5820
    %v5822 = vsel %vm4636, %v5821, 0
    %5824 = vmatprep.subr.mxu0 0.0
    %5825 = vmatpush1.msra.mxu0 %v5360
    %5826 = vmatprep.subr.mxu0 0.0
    %5827 = vmatpush1.msra.mxu0 %v5361
    %5828 = vmatprep.subr.mxu0 0.0
    %5829 = vmatpush1.msra.mxu0 %v5362
    %5830 = vmatprep.subr.mxu0 0.0
    %5831 = vmatpush1.msra.mxu0 %v5363
    %5832 = vmatprep.subr.mxu0 0.0
    %5833 = vmatpush1.msra.mxu0 0.0
    %5834 = vmatprep.subr.mxu0 0.0
    %5835 = vmatpush1.msra.mxu0 0.0
    %5836 = vmatprep.subr.mxu0 0.0
    %5837 = vmatpush1.msra.mxu0 0.0
    %5838 = vmatprep.subr.mxu0 0.0
    %5839 = vmatpush1.msra.mxu0 0.0
    %5840 = vmatprep.subr.mxu0 0.0
    %5841 = vmatpush1.msra.mxu0 0.0
    %5842 = vmatprep.subr.mxu0 0.0
    %5843 = vmatpush1.msra.mxu0 0.0
    %5844 = vmatprep.subr.mxu0 0.0
    %5845 = vmatpush1.msra.mxu0 0.0
    %5846 = vmatprep.subr.mxu0 0.0
    %5847 = vmatpush1.msra.mxu0 0.0
    %5848 = vmatprep.subr.mxu0 0.0
    %5849 = vmatpush1.msra.mxu0 0.0
    %5850 = vmatprep.subr.mxu0 0.0
    %5851 = vmatpush1.msra.mxu0 0.0
    %5852 = vmatprep.subr.mxu0 0.0
    %5853 = vmatpush1.msra.mxu0 0.0
    %5854 = vmatprep.subr.mxu0 0.0
    %5855 = vmatpush1.msra.mxu0 0.0
    %5856 = vmatprep.subr.mxu0 0.0
    %5857 = vmatpush1.msra.mxu0 0.0
    %5858 = vmatprep.subr.mxu0 0.0
    %5859 = vmatpush1.msra.mxu0 0.0
    %5860 = vmatprep.subr.mxu0 0.0
    %5861 = vmatpush1.msra.mxu0 0.0
    %5862 = vmatprep.subr.mxu0 0.0
    %5863 = vmatpush1.msra.mxu0 0.0
    %5864 = vmatprep.subr.mxu0 0.0
    %5865 = vmatpush1.msra.mxu0 0.0
    %5866 = vmatprep.subr.mxu0 0.0
    %5867 = vmatpush1.msra.mxu0 0.0
    %5868 = vmatprep.subr.mxu0 0.0
    %5869 = vmatpush1.msra.mxu0 0.0
    %5870 = vmatprep.subr.mxu0 0.0
    %5871 = vmatpush1.msra.mxu0 0.0
    %5872 = vmatprep.subr.mxu0 0.0
    %5873 = vmatpush1.msra.mxu0 0.0
    %5874 = vmatprep.subr.mxu0 0.0
    %5875 = vmatpush1.msra.mxu0 0.0
    %5876 = vmatprep.subr.mxu0 0.0
    %5877 = vmatpush1.msra.mxu0 0.0
    %5878 = vmatprep.subr.mxu0 0.0
    %5879 = vmatpush1.msra.mxu0 0.0
    %5880 = vmatprep.subr.mxu0 0.0
    %5881 = vmatpush1.msra.mxu0 0.0
    %5882 = vmatprep.subr.mxu0 0.0
    %5883 = vmatpush1.msra.mxu0 0.0
    %5884 = vmatprep.subr.mxu0 0.0
    %5885 = vmatpush1.msra.mxu0 0.0
    %5886 = vmatprep.subr.mxu0 0.0
    %5887 = vmatpush1.msra.mxu0 0.0
    %5888 = vmatprep.mubr.f32.mxu0 0.0
    %5889 = vmatmul.mubr.f32.gmra.mrb[0].mxu0 %v5822
    %v5890 = vpop.f32.mrb[0].mxu0
    %v5891 = vadd.f32 0.0, %v5890
    %v5892 = vpop.f32.mrb[0].mxu0
    %5893 = vdwg.mxu0
    %v5894 = vadd.f32 %v5818, %v5891
    %v5895 = vxor.u32 %v5894, 2147483648
    %v5896 = vmul.f32 %v5895, 1.442695
    %v5897 = vpow.pop %v5896
    %v5898 = vadd.f32 %v5897, 1.0
    %v5899 = vrcp.pop %v5898
    %v5900 = vmul.f32 1.0, %v5899
    %v5901 = vtanh.pop %v5894
    %v5903 = vrot.slane %v5805, 6
    %v5905 = vmul.f32 %v5900, %v5903
    %5907 = vrot.lane.b32.xlu0 %v5901, 64
    %v5908 = vpop.permute.xlu0 %5907
    %v5910 = vmul.f32 %v5900, %v5908
    %5912 = vrot.lane.b32.xlu0 %v5910, 32
    %v5913 = vpop.permute.xlu0 %5912
    %v5915 = vadd.f32 %v5905, %v5913
    %v5916 = vtanh.pop %v5915
    %5918 = vrot.lane.b32.xlu0 %v5916, 64
    %v5919 = vpop.permute.xlu0 %5918
    %v5921 = vmul.f32 %v5900, %v5919
    %5923 = vrot.lane.b32.xlu0 %v5921, 32
    %v5924 = vpop.permute.xlu0 %5923
    %5926 = vst.msk [vmem:[#allocation2 + $0x8] sm:$0x3] %vm5473, %v5924
    %v5927 = vadd.f32 %v5275, %v5476
    %v5928 = vsel %vm4636, %v5924, 0
    %5930 = vmatprep.subr.mxu0 0.0
    %5931 = vmatpush1.msra.mxu0 %v5360
    %5932 = vmatprep.subr.mxu0 0.0
    %5933 = vmatpush1.msra.mxu0 %v5361
    %5934 = vmatprep.subr.mxu0 0.0
    %5935 = vmatpush1.msra.mxu0 %v5362
    %5936 = vmatprep.subr.mxu0 0.0
    %5937 = vmatpush1.msra.mxu0 %v5363
    %5938 = vmatprep.subr.mxu0 0.0
    %5939 = vmatpush1.msra.mxu0 0.0
    %5940 = vmatprep.subr.mxu0 0.0
    %5941 = vmatpush1.msra.mxu0 0.0
    %5942 = vmatprep.subr.mxu0 0.0
    %5943 = vmatpush1.msra.mxu0 0.0
    %5944 = vmatprep.subr.mxu0 0.0
    %5945 = vmatpush1.msra.mxu0 0.0
    %5946 = vmatprep.subr.mxu0 0.0
    %5947 = vmatpush1.msra.mxu0 0.0
    %5948 = vmatprep.subr.mxu0 0.0
    %5949 = vmatpush1.msra.mxu0 0.0
    %5950 = vmatprep.subr.mxu0 0.0
    %5951 = vmatpush1.msra.mxu0 0.0
    %5952 = vmatprep.subr.mxu0 0.0
    %5953 = vmatpush1.msra.mxu0 0.0
    %5954 = vmatprep.subr.mxu0 0.0
    %5955 = vmatpush1.msra.mxu0 0.0
    %5956 = vmatprep.subr.mxu0 0.0
    %5957 = vmatpush1.msra.mxu0 0.0
    %5958 = vmatprep.subr.mxu0 0.0
    %5959 = vmatpush1.msra.mxu0 0.0
    %5960 = vmatprep.subr.mxu0 0.0
    %5961 = vmatpush1.msra.mxu0 0.0
    %5962 = vmatprep.subr.mxu0 0.0
    %5963 = vmatpush1.msra.mxu0 0.0
    %5964 = vmatprep.subr.mxu0 0.0
    %5965 = vmatpush1.msra.mxu0 0.0
    %5966 = vmatprep.subr.mxu0 0.0
    %5967 = vmatpush1.msra.mxu0 0.0
    %5968 = vmatprep.subr.mxu0 0.0
    %5969 = vmatpush1.msra.mxu0 0.0
    %5970 = vmatprep.subr.mxu0 0.0
    %5971 = vmatpush1.msra.mxu0 0.0
    %5972 = vmatprep.subr.mxu0 0.0
    %5973 = vmatpush1.msra.mxu0 0.0
    %5974 = vmatprep.subr.mxu0 0.0
    %5975 = vmatpush1.msra.mxu0 0.0
    %5976 = vmatprep.subr.mxu0 0.0
    %5977 = vmatpush1.msra.mxu0 0.0
    %5978 = vmatprep.subr.mxu0 0.0
    %5979 = vmatpush1.msra.mxu0 0.0
    %5980 = vmatprep.subr.mxu0 0.0
    %5981 = vmatpush1.msra.mxu0 0.0
    %5982 = vmatprep.subr.mxu0 0.0
    %5983 = vmatpush1.msra.mxu0 0.0
    %5984 = vmatprep.subr.mxu0 0.0
    %5985 = vmatpush1.msra.mxu0 0.0
    %5986 = vmatprep.subr.mxu0 0.0
    %5987 = vmatpush1.msra.mxu0 0.0
    %5988 = vmatprep.subr.mxu0 0.0
    %5989 = vmatpush1.msra.mxu0 0.0
    %5990 = vmatprep.subr.mxu0 0.0
    %5991 = vmatpush1.msra.mxu0 0.0
    %5992 = vmatprep.subr.mxu0 0.0
    %5993 = vmatpush1.msra.mxu0 0.0
    %5994 = vmatprep.mubr.f32.mxu0 0.0
    %5995 = vmatmul.mubr.f32.gmra.mrb[0].mxu0 %v5928
    %v5996 = vpop.f32.mrb[0].mxu0
    %v5997 = vadd.f32 0.0, %v5996
    %v5998 = vpop.f32.mrb[0].mxu0
    %5999 = vdwg.mxu0
    %v6001 = vrot.slane %v5997, 6
    %v6003 = vadd.f32 %v5927, %v6001
    %v6004 = vxor.u32 %v6003, 2147483648
    %v6005 = vmul.f32 %v6004, 1.442695
    %v6006 = vpow.pop %v6005
    %v6007 = vadd.f32 %v6006, 1.0
    %v6008 = vrcp.pop %v6007
    %v6009 = vmul.f32 1.0, %v6008
    %v6010 = vtanh.pop %v6003
    %v6012 = vrot.slane %v5915, 6
    %v6014 = vmul.f32 %v6009, %v6012
    %6016 = vrot.lane.b32.xlu0 %v6010, 64
    %v6017 = vpop.permute.xlu0 %6016
    %v6019 = vmul.f32 %v6009, %v6017
    %6021 = vrot.lane.b32.xlu0 %v6019, 32
    %v6022 = vpop.permute.xlu0 %6021
    %v6024 = vadd.f32 %v6014, %v6022
    %v6025 = vtanh.pop %v6024
    %6027 = vrot.lane.b32.xlu0 %v6025, 64
    %v6028 = vpop.permute.xlu0 %6027
    %v6030 = vmul.f32 %v6009, %v6028
    %6032 = vrot.lane.b32.xlu0 %v6030, 32
    %v6033 = vpop.permute.xlu0 %6032
    %6035 = vst.msk [vmem:[#allocation2 + $0x8] sm:$0xc] %vm5586, %v6033
    %v6036 = vadd.f32 %v5275, %v5588
    %v6037 = vrot.slane %v6030, 2
    %6038 = vrot.lane.b32.xlu0 %v6037, 32
    %v6039 = vpop.permute.xlu0 %6038
    %v6040 = vsel %vm4636, %v6039, 0
    %6042 = vmatprep.subr.mxu0 0.0
    %6043 = vmatpush1.msra.mxu0 %v5360
    %6044 = vmatprep.subr.mxu0 0.0
    %6045 = vmatpush1.msra.mxu0 %v5361
    %6046 = vmatprep.subr.mxu0 0.0
    %6047 = vmatpush1.msra.mxu0 %v5362
    %6048 = vmatprep.subr.mxu0 0.0
    %6049 = vmatpush1.msra.mxu0 %v5363
    %6050 = vmatprep.subr.mxu0 0.0
    %6051 = vmatpush1.msra.mxu0 0.0
    %6052 = vmatprep.subr.mxu0 0.0
    %6053 = vmatpush1.msra.mxu0 0.0
    %6054 = vmatprep.subr.mxu0 0.0
    %6055 = vmatpush1.msra.mxu0 0.0
    %6056 = vmatprep.subr.mxu0 0.0
    %6057 = vmatpush1.msra.mxu0 0.0
    %6058 = vmatprep.subr.mxu0 0.0
    %6059 = vmatpush1.msra.mxu0 0.0
    %6060 = vmatprep.subr.mxu0 0.0
    %6061 = vmatpush1.msra.mxu0 0.0
    %6062 = vmatprep.subr.mxu0 0.0
    %6063 = vmatpush1.msra.mxu0 0.0
    %6064 = vmatprep.subr.mxu0 0.0
    %6065 = vmatpush1.msra.mxu0 0.0
    %6066 = vmatprep.subr.mxu0 0.0
    %6067 = vmatpush1.msra.mxu0 0.0
    %6068 = vmatprep.subr.mxu0 0.0
    %6069 = vmatpush1.msra.mxu0 0.0
    %6070 = vmatprep.subr.mxu0 0.0
    %6071 = vmatpush1.msra.mxu0 0.0
    %6072 = vmatprep.subr.mxu0 0.0
    %6073 = vmatpush1.msra.mxu0 0.0
    %6074 = vmatprep.subr.mxu0 0.0
    %6075 = vmatpush1.msra.mxu0 0.0
    %6076 = vmatprep.subr.mxu0 0.0
    %6077 = vmatpush1.msra.mxu0 0.0
    %6078 = vmatprep.subr.mxu0 0.0
    %6079 = vmatpush1.msra.mxu0 0.0
    %6080 = vmatprep.subr.mxu0 0.0
    %6081 = vmatpush1.msra.mxu0 0.0
    %6082 = vmatprep.subr.mxu0 0.0
    %6083 = vmatpush1.msra.mxu0 0.0
    %6084 = vmatprep.subr.mxu0 0.0
    %6085 = vmatpush1.msra.mxu0 0.0
    %6086 = vmatprep.subr.mxu0 0.0
    %6087 = vmatpush1.msra.mxu0 0.0
    %6088 = vmatprep.subr.mxu0 0.0
    %6089 = vmatpush1.msra.mxu0 0.0
    %6090 = vmatprep.subr.mxu0 0.0
    %6091 = vmatpush1.msra.mxu0 0.0
    %6092 = vmatprep.subr.mxu0 0.0
    %6093 = vmatpush1.msra.mxu0 0.0
    %6094 = vmatprep.subr.mxu0 0.0
    %6095 = vmatpush1.msra.mxu0 0.0
    %6096 = vmatprep.subr.mxu0 0.0
    %6097 = vmatpush1.msra.mxu0 0.0
    %6098 = vmatprep.subr.mxu0 0.0
    %6099 = vmatpush1.msra.mxu0 0.0
    %6100 = vmatprep.subr.mxu0 0.0
    %6101 = vmatpush1.msra.mxu0 0.0
    %6102 = vmatprep.subr.mxu0 0.0
    %6103 = vmatpush1.msra.mxu0 0.0
    %6104 = vmatprep.subr.mxu0 0.0
    %6105 = vmatpush1.msra.mxu0 0.0
    %6106 = vmatprep.mubr.f32.mxu0 0.0
    %6107 = vmatmul.mubr.f32.gmra.mrb[0].mxu0 %v6040
    %v6108 = vpop.f32.mrb[0].mxu0
    %v6109 = vadd.f32 0.0, %v6108
    %v6110 = vpop.f32.mrb[0].mxu0
    %6111 = vdwg.mxu0
    %v6113 = vrot.slane %v6109, 4
    %v6115 = vadd.f32 %v6036, %v6113
    %v6116 = vxor.u32 %v6115, 2147483648
    %v6117 = vmul.f32 %v6116, 1.442695
    %v6118 = vpow.pop %v6117
    %v6119 = vadd.f32 %v6118, 1.0
    %v6120 = vrcp.pop %v6119
    %v6121 = vmul.f32 1.0, %v6120
    %v6122 = vtanh.pop %v6115
    %v6124 = vrot.slane %v6024, 6
    %v6126 = vmul.f32 %v6121, %v6124
    %6128 = vrot.lane.b32.xlu0 %v6122, 64
    %v6129 = vpop.permute.xlu0 %6128
    %v6131 = vmul.f32 %v6121, %v6129
    %6133 = vrot.lane.b32.xlu0 %v6131, 32
    %v6134 = vpop.permute.xlu0 %6133
    %v6136 = vadd.f32 %v6126, %v6134
    %v6137 = vtanh.pop %v6136
    %6139 = vrot.lane.b32.xlu0 %v6137, 64
    %v6140 = vpop.permute.xlu0 %6139
    %v6142 = vmul.f32 %v6121, %v6140
    %6144 = vrot.lane.b32.xlu0 %v6142, 32
    %v6145 = vpop.permute.xlu0 %6144
    %6147 = vst.msk [vmem:[#allocation2 + $0x8] sm:$0x30] %vm5701, %v6145
    %v6148 = vadd.f32 %v5275, %v5703
    %v6149 = vrot.slane %v6142, 4
    %6150 = vrot.lane.b32.xlu0 %v6149, 32
    %v6151 = vpop.permute.xlu0 %6150
    %v6152 = vsel %vm4636, %v6151, 0
    %6154 = vmatprep.subr.mxu0 0.0
    %6155 = vmatpush1.msra.mxu0 %v5360
    %6156 = vmatprep.subr.mxu0 0.0
    %6157 = vmatpush1.msra.mxu0 %v5361
    %6158 = vmatprep.subr.mxu0 0.0
    %6159 = vmatpush1.msra.mxu0 %v5362
    %6160 = vmatprep.subr.mxu0 0.0
    %6161 = vmatpush1.msra.mxu0 %v5363
    %6162 = vmatprep.subr.mxu0 0.0
    %6163 = vmatpush1.msra.mxu0 0.0
    %6164 = vmatprep.subr.mxu0 0.0
    %6165 = vmatpush1.msra.mxu0 0.0
    %6166 = vmatprep.subr.mxu0 0.0
    %6167 = vmatpush1.msra.mxu0 0.0
    %6168 = vmatprep.subr.mxu0 0.0
    %6169 = vmatpush1.msra.mxu0 0.0
    %6170 = vmatprep.subr.mxu0 0.0
    %6171 = vmatpush1.msra.mxu0 0.0
    %6172 = vmatprep.subr.mxu0 0.0
    %6173 = vmatpush1.msra.mxu0 0.0
    %6174 = vmatprep.subr.mxu0 0.0
    %6175 = vmatpush1.msra.mxu0 0.0
    %6176 = vmatprep.subr.mxu0 0.0
    %6177 = vmatpush1.msra.mxu0 0.0
    %6178 = vmatprep.subr.mxu0 0.0
    %6179 = vmatpush1.msra.mxu0 0.0
    %6180 = vmatprep.subr.mxu0 0.0
    %6181 = vmatpush1.msra.mxu0 0.0
    %6182 = vmatprep.subr.mxu0 0.0
    %6183 = vmatpush1.msra.mxu0 0.0
    %6184 = vmatprep.subr.mxu0 0.0
    %6185 = vmatpush1.msra.mxu0 0.0
    %6186 = vmatprep.subr.mxu0 0.0
    %6187 = vmatpush1.msra.mxu0 0.0
    %6188 = vmatprep.subr.mxu0 0.0
    %6189 = vmatpush1.msra.mxu0 0.0
    %6190 = vmatprep.subr.mxu0 0.0
    %6191 = vmatpush1.msra.mxu0 0.0
    %6192 = vmatprep.subr.mxu0 0.0
    %6193 = vmatpush1.msra.mxu0 0.0
    %6194 = vmatprep.subr.mxu0 0.0
    %6195 = vmatpush1.msra.mxu0 0.0
    %6196 = vmatprep.subr.mxu0 0.0
    %6197 = vmatpush1.msra.mxu0 0.0
    %6198 = vmatprep.subr.mxu0 0.0
    %6199 = vmatpush1.msra.mxu0 0.0
    %6200 = vmatprep.subr.mxu0 0.0
    %6201 = vmatpush1.msra.mxu0 0.0
    %6202 = vmatprep.subr.mxu0 0.0
    %6203 = vmatpush1.msra.mxu0 0.0
    %6204 = vmatprep.subr.mxu0 0.0
    %6205 = vmatpush1.msra.mxu0 0.0
    %6206 = vmatprep.subr.mxu0 0.0
    %6207 = vmatpush1.msra.mxu0 0.0
    %6208 = vmatprep.subr.mxu0 0.0
    %6209 = vmatpush1.msra.mxu0 0.0
    %6210 = vmatprep.subr.mxu0 0.0
    %6211 = vmatpush1.msra.mxu0 0.0
    %6212 = vmatprep.subr.mxu0 0.0
    %6213 = vmatpush1.msra.mxu0 0.0
    %6214 = vmatprep.subr.mxu0 0.0
    %6215 = vmatpush1.msra.mxu0 0.0
    %6216 = vmatprep.subr.mxu0 0.0
    %6217 = vmatpush1.msra.mxu0 0.0
    %6218 = vmatprep.mubr.f32.mxu0 0.0
    %6219 = vmatmul.mubr.f32.gmra.mrb[0].mxu0 %v6152
    %v6220 = vpop.f32.mrb[0].mxu0
    %v6221 = vadd.f32 0.0, %v6220
    %v6222 = vpop.f32.mrb[0].mxu0
    %6223 = vdwg.mxu0
    %v6225 = vrot.slane %v6221, 2
    %v6227 = vadd.f32 %v6148, %v6225
    %v6228 = vxor.u32 %v6227, 2147483648
    %v6229 = vmul.f32 %v6228, 1.442695
    %v6230 = vpow.pop %v6229
    %v6231 = vadd.f32 %v6230, 1.0
    %v6232 = vrcp.pop %v6231
    %v6233 = vmul.f32 1.0, %v6232
    %v6234 = vtanh.pop %v6227
    %v6236 = vrot.slane %v6136, 6
    %v6238 = vmul.f32 %v6233, %v6236
    %6240 = vrot.lane.b32.xlu0 %v6234, 64
    %v6241 = vpop.permute.xlu0 %6240
    %v6243 = vmul.f32 %v6233, %v6241
    %6245 = vrot.lane.b32.xlu0 %v6243, 32
    %v6246 = vpop.permute.xlu0 %6245
    %v6248 = vadd.f32 %v6238, %v6246
    %v6249 = vtanh.pop %v6248
    %6251 = vrot.lane.b32.xlu0 %v6249, 64
    %v6252 = vpop.permute.xlu0 %6251
    %v6254 = vmul.f32 %v6233, %v6252
    %6256 = vrot.lane.b32.xlu0 %v6254, 32
    %v6257 = vpop.permute.xlu0 %6256
    %6259 = vst.msk [vmem:[#allocation2 + $0x8] sm:$0xc0] %vm5816, %v6257
    %6260 = vst.msk [vmem:[#allocation42 - $0x6] sm:$0xc0] %vm5816, %v6257
    %6262 = vrot.lane.b32.xlu0 %v6248, 96
    %v6263 = vpop.permute.xlu0 %6262
    %6265 = vst.msk [vmem:[#allocation43 - $0x6] sm:$0xc0] %vm5816, %v6263
    %v6266 = vld [vmem:[#allocation2] sm:$0xff]
    %v6267 = vld [vmem:[#allocation2 + $0x8] sm:$0xff]
    %v6268 = vld [vmem:[#allocation30] sm:$0xff]
    %v6269 = vld [vmem:[#allocation30 + $0x8] sm:$0xff]
    %v6270 = vld [vmem:[#allocation30 + $0x10] sm:$0xff]
    %v6271 = vld [vmem:[#allocation30 + $0x18] sm:$0xff]
    %v6272 = vld [vmem:[#allocation32] sm:$0x1]
    %v6274 = vlaneseq
    %v6275 = vshrl.u32 %v6274, 7
    %v6276 = vsub.s32 0, %v6275
    %v6277 = vrot.slane %v6272, %v6276
    %v6280 = vsel %vm4636, %v6266, 0
    %v6283 = vsel %vm4636, %v6267, 0
    %6285 = vmatprep.subr.mxu0 0.0
    %6286 = vmatpush1.msra.mxu0 %v6268
    %6287 = vmatprep.subr.mxu0 0.0
    %6288 = vmatpush1.msra.mxu0 %v6269
    %6289 = vmatprep.subr.mxu0 0.0
    %6290 = vmatpush1.msra.mxu0 %v6270
    %6291 = vmatprep.subr.mxu0 0.0
    %6292 = vmatpush1.msra.mxu0 %v6271
    %6293 = vmatprep.subr.mxu0 0.0
    %6294 = vmatpush1.msra.mxu0 0.0
    %6295 = vmatprep.subr.mxu0 0.0
    %6296 = vmatpush1.msra.mxu0 0.0
    %6297 = vmatprep.subr.mxu0 0.0
    %6298 = vmatpush1.msra.mxu0 0.0
    %6299 = vmatprep.subr.mxu0 0.0
    %6300 = vmatpush1.msra.mxu0 0.0
    %6301 = vmatprep.subr.mxu0 0.0
    %6302 = vmatpush1.msra.mxu0 0.0
    %6303 = vmatprep.subr.mxu0 0.0
    %6304 = vmatpush1.msra.mxu0 0.0
    %6305 = vmatprep.subr.mxu0 0.0
    %6306 = vmatpush1.msra.mxu0 0.0
    %6307 = vmatprep.subr.mxu0 0.0
    %6308 = vmatpush1.msra.mxu0 0.0
    %6309 = vmatprep.subr.mxu0 0.0
    %6310 = vmatpush1.msra.mxu0 0.0
    %6311 = vmatprep.subr.mxu0 0.0
    %6312 = vmatpush1.msra.mxu0 0.0
    %6313 = vmatprep.subr.mxu0 0.0
    %6314 = vmatpush1.msra.mxu0 0.0
    %6315 = vmatprep.subr.mxu0 0.0
    %6316 = vmatpush1.msra.mxu0 0.0
    %6317 = vmatprep.subr.mxu0 0.0
    %6318 = vmatpush1.msra.mxu0 0.0
    %6319 = vmatprep.subr.mxu0 0.0
    %6320 = vmatpush1.msra.mxu0 0.0
    %6321 = vmatprep.subr.mxu0 0.0
    %6322 = vmatpush1.msra.mxu0 0.0
    %6323 = vmatprep.subr.mxu0 0.0
    %6324 = vmatpush1.msra.mxu0 0.0
    %6325 = vmatprep.subr.mxu0 0.0
    %6326 = vmatpush1.msra.mxu0 0.0
    %6327 = vmatprep.subr.mxu0 0.0
    %6328 = vmatpush1.msra.mxu0 0.0
    %6329 = vmatprep.subr.mxu0 0.0
    %6330 = vmatpush1.msra.mxu0 0.0
    %6331 = vmatprep.subr.mxu0 0.0
    %6332 = vmatpush1.msra.mxu0 0.0
    %6333 = vmatprep.subr.mxu0 0.0
    %6334 = vmatpush1.msra.mxu0 0.0
    %6335 = vmatprep.subr.mxu0 0.0
    %6336 = vmatpush1.msra.mxu0 0.0
    %6337 = vmatprep.subr.mxu0 0.0
    %6338 = vmatpush1.msra.mxu0 0.0
    %6339 = vmatprep.subr.mxu0 0.0
    %6340 = vmatpush1.msra.mxu0 0.0
    %6341 = vmatprep.subr.mxu0 0.0
    %6342 = vmatpush1.msra.mxu0 0.0
    %6343 = vmatprep.subr.mxu0 0.0
    %6344 = vmatpush1.msra.mxu0 0.0
    %6345 = vmatprep.subr.mxu0 0.0
    %6346 = vmatpush1.msra.mxu0 0.0
    %6347 = vmatprep.subr.mxu0 0.0
    %6348 = vmatpush1.msra.mxu0 0.0
    %6349 = vmatprep.mubr.f32.mxu0 0.0
    %6350 = vmatmul.mubr.f32.gmra.mrb[0].mxu0 %v6280
    %v6351 = vpop.f32.mrb[0].mxu0
    %v6352 = vadd.f32 %v6277, %v6351
    %v6353 = vpop.f32.mrb[0].mxu0
    %6354 = vmatprep.mubr.f32.mxu0 0.0
    %6355 = vmatmul.mubr.f32.gmra.mrb[0].mxu0 %v6283
    %v6356 = vpop.f32.mrb[0].mxu0
    %v6357 = vadd.f32 %v6277, %v6356
    %v6358 = vpop.f32.mrb[0].mxu0
    %6359 = vdwg.mxu0
    %v6360 = vld [vmem:[#allocation33] sm:$0x1]
    %v6361 = vld [vmem:[#allocation35] sm:$0x1]
    %v6362 = vsel %vm4636, %v6352, 0.0
    %6363 = vadd.xlane.f32.xlu0 %v6362
    %v6364 = vpop.xlane.xlu0 %6363
    %v6365 = vsel %vm4636, %v6357, 0.0
    %6366 = vadd.xlane.f32.xlu0 %v6365
    %v6367 = vpop.xlane.xlu0 %6366
    %v6368 = vrcp.pop 32.0
    %v6369 = vmul.f32 %v6364, %v6368
    %v6370 = vmul.f32 %v6367, %v6368
    %v6371 = vsub.f32 %v6352, %v6369
    %v6372 = vsub.f32 %v6357, %v6370
    %v6373 = vmul.f32 %v6371, %v6371
    %v6374 = vmul.f32 %v6372, %v6372
    %v6375 = vsel %vm4636, %v6373, 0.0
    %6376 = vadd.xlane.f32.xlu0 %v6375
    %v6377 = vpop.xlane.xlu0 %6376
    %v6378 = vsel %vm4636, %v6374, 0.0
    %6379 = vadd.xlane.f32.xlu0 %v6378
    %v6380 = vpop.xlane.xlu0 %6379
    %v6381 = vmul.f32 %v6377, %v6368
    %v6382 = vmul.f32 %v6380, %v6368
    %v6383 = vadd.f32 %v6381, 1e-05
    %v6384 = vadd.f32 %v6382, 1e-05
    %v6385 = vrsqrt.pop %v6383
    %v6386 = vrsqrt.pop %v6384
    %v6387 = vmul.f32 %v6371, %v6385
    %v6388 = vmul.f32 %v6372, %v6386
    %v6390 = vlaneseq
    %v6391 = vshrl.u32 %v6390, 7
    %v6392 = vsub.s32 0, %v6391
    %v6393 = vrot.slane %v6360, %v6392
    %v6395 = vmul.f32 %v6387, %v6393
    %v6396 = vmul.f32 %v6388, %v6393
    %v6398 = vlaneseq
    %v6399 = vshrl.u32 %v6398, 7
    %v6400 = vsub.s32 0, %v6399
    %v6401 = vrot.slane %v6361, %v6400
    %v6403 = vadd.f32 %v6395, %v6401
    %v6404 = vadd.f32 %v6396, %v6401
    %vm6405 = vcmp.gt.f32.partialorder %v6403, 0.0
    %vm6406 = vcmp.gt.f32.partialorder %v6404, 0.0
    %v6407 = vmul.f32 %v6403, 0.01
    %v6408 = vmul.f32 %v6404, 0.01
    %v6409 = vsel %vm6405, %v6403, %v6407
    %v6410 = vsel %vm6406, %v6404, %v6408
    %v6411 = vld [vmem:[%s53] sm:$0xff]
    %v6412 = vld [vmem:[%s53 + $0x8] sm:$0xff]
    %v6413 = vld [vmem:[%s53 + $0x10] sm:$0xff]
    %v6414 = vld [vmem:[%s53 + $0x18] sm:$0xff]
    %v6415 = vld [vmem:[#allocation36] sm:$0x1]
    %v6417 = vlaneseq
    %v6418 = vshrl.u32 %v6417, 7
    %v6419 = vsub.s32 0, %v6418
    %v6420 = vrot.slane %v6415, %v6419
    %v6423 = vsel %vm4636, %v6409, 0
    %v6426 = vsel %vm4636, %v6410, 0
    %6428 = vmatprep.subr.mxu0 0.0
    %6429 = vmatpush1.msra.mxu0 %v6411
    %6430 = vmatprep.subr.mxu0 0.0
    %6431 = vmatpush1.msra.mxu0 %v6412
    %6432 = vmatprep.subr.mxu0 0.0
    %6433 = vmatpush1.msra.mxu0 %v6413
    %6434 = vmatprep.subr.mxu0 0.0
    %6435 = vmatpush1.msra.mxu0 %v6414
    %6436 = vmatprep.subr.mxu0 0.0
    %6437 = vmatpush1.msra.mxu0 0.0
    %6438 = vmatprep.subr.mxu0 0.0
    %6439 = vmatpush1.msra.mxu0 0.0
    %6440 = vmatprep.subr.mxu0 0.0
    %6441 = vmatpush1.msra.mxu0 0.0
    %6442 = vmatprep.subr.mxu0 0.0
    %6443 = vmatpush1.msra.mxu0 0.0
    %6444 = vmatprep.subr.mxu0 0.0
    %6445 = vmatpush1.msra.mxu0 0.0
    %6446 = vmatprep.subr.mxu0 0.0
    %6447 = vmatpush1.msra.mxu0 0.0
    %6448 = vmatprep.subr.mxu0 0.0
    %6449 = vmatpush1.msra.mxu0 0.0
    %6450 = vmatprep.subr.mxu0 0.0
    %6451 = vmatpush1.msra.mxu0 0.0
    %6452 = vmatprep.subr.mxu0 0.0
    %6453 = vmatpush1.msra.mxu0 0.0
    %6454 = vmatprep.subr.mxu0 0.0
    %6455 = vmatpush1.msra.mxu0 0.0
    %6456 = vmatprep.subr.mxu0 0.0
    %6457 = vmatpush1.msra.mxu0 0.0
    %6458 = vmatprep.subr.mxu0 0.0
    %6459 = vmatpush1.msra.mxu0 0.0
    %6460 = vmatprep.subr.mxu0 0.0
    %6461 = vmatpush1.msra.mxu0 0.0
    %6462 = vmatprep.subr.mxu0 0.0
    %6463 = vmatpush1.msra.mxu0 0.0
    %6464 = vmatprep.subr.mxu0 0.0
    %6465 = vmatpush1.msra.mxu0 0.0
    %6466 = vmatprep.subr.mxu0 0.0
    %6467 = vmatpush1.msra.mxu0 0.0
    %6468 = vmatprep.subr.mxu0 0.0
    %6469 = vmatpush1.msra.mxu0 0.0
    %6470 = vmatprep.subr.mxu0 0.0
    %6471 = vmatpush1.msra.mxu0 0.0
    %6472 = vmatprep.subr.mxu0 0.0
    %6473 = vmatpush1.msra.mxu0 0.0
    %6474 = vmatprep.subr.mxu0 0.0
    %6475 = vmatpush1.msra.mxu0 0.0
    %6476 = vmatprep.subr.mxu0 0.0
    %6477 = vmatpush1.msra.mxu0 0.0
    %6478 = vmatprep.subr.mxu0 0.0
    %6479 = vmatpush1.msra.mxu0 0.0
    %6480 = vmatprep.subr.mxu0 0.0
    %6481 = vmatpush1.msra.mxu0 0.0
    %6482 = vmatprep.subr.mxu0 0.0
    %6483 = vmatpush1.msra.mxu0 0.0
    %6484 = vmatprep.subr.mxu0 0.0
    %6485 = vmatpush1.msra.mxu0 0.0
    %6486 = vmatprep.subr.mxu0 0.0
    %6487 = vmatpush1.msra.mxu0 0.0
    %6488 = vmatprep.subr.mxu0 0.0
    %6489 = vmatpush1.msra.mxu0 0.0
    %6490 = vmatprep.subr.mxu0 0.0
    %6491 = vmatpush1.msra.mxu0 0.0
    %6492 = vmatprep.mubr.f32.mxu0 0.0
    %6493 = vmatmul.mubr.f32.gmra.mrb[0].mxu0 %v6423
    %v6494 = vpop.f32.mrb[0].mxu0
    %v6495 = vadd.f32 %v6420, %v6494
    %v6496 = vpop.f32.mrb[0].mxu0
    %6497 = vmatprep.mubr.f32.mxu0 0.0
    %6498 = vmatmul.mubr.f32.gmra.mrb[0].mxu0 %v6426
    %v6499 = vpop.f32.mrb[0].mxu0
    %v6500 = vadd.f32 %v6420, %v6499
    %v6501 = vpop.f32.mrb[0].mxu0
    %6502 = vdwg.mxu0
    %v6503 = vld [vmem:[#allocation38] sm:$0x1]
    %v6504 = vld [vmem:[#allocation39] sm:$0x1]
    %v6505 = vsel %vm2424, %v6495, 0.0
    %6506 = vadd.xlane.f32.xlu0 %v6505
    %v6507 = vpop.xlane.xlu0 %6506
    %v6508 = vsel %vm2424, %v6500, 0.0
    %6509 = vadd.xlane.f32.xlu0 %v6508
    %v6510 = vpop.xlane.xlu0 %6509
    %v6511 = vrcp.pop 16.0
    %v6512 = vmul.f32 %v6507, %v6511
    %v6513 = vmul.f32 %v6510, %v6511
    %v6514 = vsub.f32 %v6495, %v6512
    %v6515 = vsub.f32 %v6500, %v6513
    %v6516 = vmul.f32 %v6514, %v6514
    %v6517 = vmul.f32 %v6515, %v6515
    %v6518 = vsel %vm2424, %v6516, 0.0
    %6519 = vadd.xlane.f32.xlu0 %v6518
    %v6520 = vpop.xlane.xlu0 %6519
    %v6521 = vsel %vm2424, %v6517, 0.0
    %6522 = vadd.xlane.f32.xlu0 %v6521
    %v6523 = vpop.xlane.xlu0 %6522
    %v6524 = vmul.f32 %v6520, %v6511
    %v6525 = vmul.f32 %v6523, %v6511
    %v6526 = vadd.f32 %v6524, 1e-05
    %v6527 = vadd.f32 %v6525, 1e-05
    %v6528 = vrsqrt.pop %v6526
    %v6529 = vrsqrt.pop %v6527
    %v6530 = vmul.f32 %v6514, %v6528
    %v6531 = vmul.f32 %v6515, %v6529
    %v6533 = vlaneseq
    %v6534 = vshrl.u32 %v6533, 7
    %v6535 = vsub.s32 0, %v6534
    %v6536 = vrot.slane %v6503, %v6535
    %v6538 = vmul.f32 %v6530, %v6536
    %v6539 = vmul.f32 %v6531, %v6536
    %v6541 = vlaneseq
    %v6542 = vshrl.u32 %v6541, 7
    %v6543 = vsub.s32 0, %v6542
    %v6544 = vrot.slane %v6504, %v6543
    %v6546 = vadd.f32 %v6538, %v6544
    %v6547 = vadd.f32 %v6539, %v6544
    %vm6548 = vcmp.gt.f32.partialorder %v6546, 0.0
    %vm6549 = vcmp.gt.f32.partialorder %v6547, 0.0
    %v6550 = vmul.f32 %v6546, 0.01
    %v6551 = vmul.f32 %v6547, 0.01
    %v6552 = vsel %vm6548, %v6546, %v6550
    %v6553 = vsel %vm6549, %v6547, %v6551
    %v6554 = vld [vmem:[%s61] sm:$0xff]
    %v6555 = vld [vmem:[%s61 + $0x8] sm:$0xff]
    %v6556 = vld [vmem:[#allocation41] sm:$0x1]
    %v6558 = vlaneseq
    %v6559 = vshrl.u32 %v6558, 7
    %v6560 = vsub.s32 0, %v6559
    %v6561 = vrot.slane %v6556, %v6560
    %v6564 = vsel %vm2424, %v6552, 0
    %v6567 = vsel %vm2424, %v6553, 0
    %6569 = vmatprep.subr.mxu0 0.0
    %6570 = vmatpush1.msra.mxu0 %v6554
    %6571 = vmatprep.subr.mxu0 0.0
    %6572 = vmatpush1.msra.mxu0 %v6555
    %6573 = vmatprep.subr.mxu0 0.0
    %6574 = vmatpush1.msra.mxu0 0.0
    %6575 = vmatprep.subr.mxu0 0.0
    %6576 = vmatpush1.msra.mxu0 0.0
    %6577 = vmatprep.subr.mxu0 0.0
    %6578 = vmatpush1.msra.mxu0 0.0
    %6579 = vmatprep.subr.mxu0 0.0
    %6580 = vmatpush1.msra.mxu0 0.0
    %6581 = vmatprep.subr.mxu0 0.0
    %6582 = vmatpush1.msra.mxu0 0.0
    %6583 = vmatprep.subr.mxu0 0.0
    %6584 = vmatpush1.msra.mxu0 0.0
    %6585 = vmatprep.subr.mxu0 0.0
    %6586 = vmatpush1.msra.mxu0 0.0
    %6587 = vmatprep.subr.mxu0 0.0
    %6588 = vmatpush1.msra.mxu0 0.0
    %6589 = vmatprep.subr.mxu0 0.0
    %6590 = vmatpush1.msra.mxu0 0.0
    %6591 = vmatprep.subr.mxu0 0.0
    %6592 = vmatpush1.msra.mxu0 0.0
    %6593 = vmatprep.subr.mxu0 0.0
    %6594 = vmatpush1.msra.mxu0 0.0
    %6595 = vmatprep.subr.mxu0 0.0
    %6596 = vmatpush1.msra.mxu0 0.0
    %6597 = vmatprep.subr.mxu0 0.0
    %6598 = vmatpush1.msra.mxu0 0.0
    %6599 = vmatprep.subr.mxu0 0.0
    %6600 = vmatpush1.msra.mxu0 0.0
    %6601 = vmatprep.subr.mxu0 0.0
    %6602 = vmatpush1.msra.mxu0 0.0
    %6603 = vmatprep.subr.mxu0 0.0
    %6604 = vmatpush1.msra.mxu0 0.0
    %6605 = vmatprep.subr.mxu0 0.0
    %6606 = vmatpush1.msra.mxu0 0.0
    %6607 = vmatprep.subr.mxu0 0.0
    %6608 = vmatpush1.msra.mxu0 0.0
    %6609 = vmatprep.subr.mxu0 0.0
    %6610 = vmatpush1.msra.mxu0 0.0
    %6611 = vmatprep.subr.mxu0 0.0
    %6612 = vmatpush1.msra.mxu0 0.0
    %6613 = vmatprep.subr.mxu0 0.0
    %6614 = vmatpush1.msra.mxu0 0.0
    %6615 = vmatprep.subr.mxu0 0.0
    %6616 = vmatpush1.msra.mxu0 0.0
    %6617 = vmatprep.subr.mxu0 0.0
    %6618 = vmatpush1.msra.mxu0 0.0
    %6619 = vmatprep.subr.mxu0 0.0
    %6620 = vmatpush1.msra.mxu0 0.0
    %6621 = vmatprep.subr.mxu0 0.0
    %6622 = vmatpush1.msra.mxu0 0.0
    %6623 = vmatprep.subr.mxu0 0.0
    %6624 = vmatpush1.msra.mxu0 0.0
    %6625 = vmatprep.subr.mxu0 0.0
    %6626 = vmatpush1.msra.mxu0 0.0
    %6627 = vmatprep.subr.mxu0 0.0
    %6628 = vmatpush1.msra.mxu0 0.0
    %6629 = vmatprep.subr.mxu0 0.0
    %6630 = vmatpush1.msra.mxu0 0.0
    %6631 = vmatprep.subr.mxu0 0.0
    %6632 = vmatpush1.msra.mxu0 0.0
    %6633 = vmatprep.mubr.f32.mxu0 0.0
    %6634 = vmatmul.mubr.f32.gmra.mrb[0].mxu0 %v6564
    %v6635 = vpop.f32.mrb[0].mxu0
    %v6636 = vadd.f32 %v6561, %v6635
    %v6637 = vpop.f32.mrb[0].mxu0
    %6638 = vmatprep.mubr.f32.mxu0 0.0
    %6639 = vmatmul.mubr.f32.gmra.mrb[0].mxu0 %v6567
    %v6640 = vpop.f32.mrb[0].mxu0
    %v6641 = vadd.f32 %v6561, %v6640
    %v6642 = vpop.f32.mrb[0].mxu0
    %6643 = vdwg.mxu0
    %v6644 = vtanh.pop %v6636
    %v6645 = vtanh.pop %v6641
    %vm6646 = vcmask 31744
    %6647 = vst.msk [vmem:[%s65] sm:$0xff] %vm6646, %v6644
    %6648 = vst.msk [vmem:[%s65 + $0x8] sm:$0xff] %vm6646, %v6645
    // Predicated region
    $region230: #{recurrent_policy_forward.1} parent=1 // pred_check
      _
    $region231: #{recurrent_policy_forward.1} parent=1 // pred_check_branch
      %6650 = sbr.rel (0) target = $region233
    $region232: #{recurrent_policy_forward.1} parent=1 // pred_region
      _
    $region233: #{recurrent_policy_forward.1} parent=1 // pred_fallthru
      _
    // Predicated region
    $region234: #{recurrent_policy_forward.1} parent=1 // pred_check
      _
    $region235: #{recurrent_policy_forward.1} parent=1 // pred_check_branch
      %6652 = sbr.rel (0) target = $region237
    $region236: #{recurrent_policy_forward.1} parent=1 // pred_region
      %s6654 = ssub.s32 32, 32
      %6655 = vsyncadd [#allocation5], %s6654
      %s6657 = sshll.u32 [#allocation42], 4
      %s6658 = int_to_ptr.vmem [resolvable:$true] %s6657
      %6660 = dma.vmem_to_hbm [thread:$0]  %s6658, 32, %s67, [#allocation5]
    $region237: #{recurrent_policy_forward.1} parent=1 // pred_fallthru
      _
    // Predicated region
    $region238: #{recurrent_policy_forward.1} parent=1 // pred_check
      _
    $region239: #{recurrent_policy_forward.1} parent=1 // pred_check_branch
      %6662 = sbr.rel (0) target = $region241
    $region240: #{recurrent_policy_forward.1} parent=1 // pred_region
      %s6664 = ssub.s32 32, 32
      %6665 = vsyncadd [#allocation44], %s6664
      %s6667 = sshll.u32 [#allocation43], 4
      %s6668 = int_to_ptr.vmem [resolvable:$true] %s6667
      %6670 = dma.vmem_to_hbm [thread:$0]  %s6668, 32, %s69, [#allocation44]
    $region241: #{recurrent_policy_forward.1} parent=1 // pred_fallthru
      _
    // Predicated region
    $region242: #{recurrent_policy_forward.1} parent=1 // pred_check
      _
    $region243: #{recurrent_policy_forward.1} parent=1 // pred_check_branch
      %6672 = sbr.rel (0) target = $region245
    $region244: #{recurrent_policy_forward.1} parent=1 // pred_region
      _
    $region245: #{recurrent_policy_forward.1} parent=1 // pred_fallthru
      _
    // Predicated region
    $region246: #{recurrent_policy_forward.1} parent=1 // pred_check
      _
    $region247: #{recurrent_policy_forward.1} parent=1 // pred_check_branch
      %6674 = sbr.rel (0) target = $region249
    $region248: #{recurrent_policy_forward.1} parent=1 // pred_region
      %6675 = dma.done [#allocation5], 32
    $region249: #{recurrent_policy_forward.1} parent=1 // pred_fallthru
      _
    // Predicated region
    $region250: #{recurrent_policy_forward.1} parent=1 // pred_check
      _
    $region251: #{recurrent_policy_forward.1} parent=1 // pred_check_branch
      %6677 = sbr.rel (0) target = $region253
    $region252: #{recurrent_policy_forward.1} parent=1 // pred_region
      %6678 = dma.done [#allocation44], 32
    $region253: #{recurrent_policy_forward.1} parent=1 // pred_fallthru
      _
    %6679 = vsyncpa [#allocation4], 1
    %6680 = vsyncpa [#allocation7], 1
    %6681 = vsyncpa [#allocation10], 1
    %6682 = vsyncpa [#allocation13], 1
    %6683 = vsyncpa [#allocation16], 1
    %6684 = vsyncpa [#allocation19], 1
    %6685 = vsyncpa [#allocation22], 1
    %6686 = vsyncpa [#allocation25], 1
    %6687 = vsyncpa [#allocation28], 1
    %6688 = vsyncpa [#allocation31], 1
    %6689 = vsyncpa [#allocation34], 1
    %6690 = vsyncpa [#allocation37], 1
    %6691 = vsyncpa [#allocation40], 1
    %6692 = vsyncpa [#allocation5], 1
    %6693 = vsyncpa [#allocation44], 1

</llo_original>
